<compile_context>
chip_gen: v7x
topology: tpu7x:2x2x1
jax: 0.10.0
libtpu: 0.0.40
codegen_flags: <defaults>
</compile_context>

<pallas_src>
import math

import jax
import jax.numpy as jnp
from jax.experimental import pallas as pl
from jax.experimental.pallas import tpu as pltpu

# ----------------------------- model dimensions (small, synthetic) -----------------------------
B, S = 2, 8          # batch, sequence length
H, NH = 32, 4        # hidden size, num attention heads
HD = H // NH         # head dim
INTER = 64           # FFN intermediate size
OUT = 2048           # clip_head out_features (matches reference default)
VOCAB = 64
MAXPOS = 16
NLAYERS = 2
D_IMG = 64
LN_EPS = 1e-12       # BERT LayerNorm eps

_VMEM = pl.BlockSpec(memory_space=pltpu.MemorySpace.VMEM)


# ----------------------------- small in-kernel helpers -----------------------------
def _ln(x, g, b, eps=LN_EPS):
    mu = jnp.mean(x, axis=-1, keepdims=True)
    var = jnp.mean(jnp.square(x - mu), axis=-1, keepdims=True)
    return (x - mu) * jax.lax.rsqrt(var + eps) * g + b


def _gelu(x):
    # TODO(synk): BERT uses exact erf-GELU; tanh approximation used here (EUP-friendly).
    return 0.5 * x * (1.0 + jnp.tanh(0.7978845608028654 * (x + 0.044715 * x * x * x)))


def _dot(a, b):
    return jnp.dot(a, b, preferred_element_type=jnp.float32)


# ----------------------------- fused text-tower kernel -----------------------------
def text_tower_kernel(emb_ref, mask_row_ref, mask_col_ref,
                      emb_g_ref, emb_b_ref,
                      wq_ref, bq_ref, wk_ref, bk_ref, wv_ref, bv_ref,
                      wo_ref, bo_ref, ln1g_ref, ln1b_ref,
                      w1_ref, b1_ref, w2_ref, b2_ref, ln2g_ref, ln2b_ref,
                      headw_ref, headb_ref,
                      out_ref):
    scale = 1.0 / math.sqrt(HD)

    # embedding LayerNorm on the flattened [B*S, H] activations
    x = _ln(emb_ref[...], emb_g_ref[...], emb_b_ref[...])        # [B*S, H]

    mask_row = mask_row_ref[...]                                  # [B, S]
    bias = (1.0 - mask_row) * (-1e9)                              # additive key mask

    for l in range(NLAYERS):                                      # static layer loop
        # per-layer tensors hoisted out of the head/batch loops
        bo = bo_ref[l]
        ln1g, ln1b = ln1g_ref[l], ln1b_ref[l]
        w1, b1 = w1_ref[l], b1_ref[l]
        w2, b2 = w2_ref[l], b2_ref[l]
        ln2g, ln2b = ln2g_ref[l], ln2b_ref[l]

        # ---- multi-head attention (dense parts batched over B*S rows) ----
        attn_acc = [None] * B                                     # per-batch [S, H] accumulators
        for h in range(NH):                                       # static head loop
            wq, bq = wq_ref[l, h], bq_ref[l, h]                   # [H, HD], [1, HD]
            wk, bk = wk_ref[l, h], bk_ref[l, h]
            wv, bv = wv_ref[l, h], bv_ref[l, h]
            wo = wo_ref[l, h]                                     # [HD, H]

            q_h = _dot(x, wq) + bq                                # [B*S, HD]
            k_h = _dot(x, wk) + bk
            v_h = _dot(x, wv) + bv

            for b in range(B):                                    # per-batch only for [S,S] scores
                qb = q_h[b * S:(b + 1) * S, :]                    # sublane slices (cheap)
                kb = k_h[b * S:(b + 1) * S, :]
                vb = v_h[b * S:(b + 1) * S, :]
                s = jax.lax.dot_general(qb, kb, (((1,), (1,)), ((), ())),
                                        preferred_element_type=jnp.float32)
                s = s * scale + bias[b:b + 1, :]                  # [S, S]
                s = s - jnp.max(s, axis=-1, keepdims=True)
                p = jnp.exp(s)
                p = p * pl.reciprocal(jnp.sum(p, axis=-1, keepdims=True), approx=True)
                ctx = _dot(p, vb)                                 # [S, HD]
                contrib = _dot(ctx, wo)                           # [S, H] (Wo folded per head)
                attn_acc[b] = contrib if attn_acc[b] is None else attn_acc[b] + contrib

        attn_out = jnp.concatenate(attn_acc, axis=0) + bo         # [B*S, H] (sublane concat)

        # ---- residual + LN + FFN + LN, all on [B*S, H] ----
        h1 = _ln(x + attn_out, ln1g, ln1b)
        ffn = _dot(_gelu(_dot(h1, w1) + b1), w2) + b2
        x = _ln(h1 + ffn, ln2g, ln2b)

    # ---- masked mean pool -> [B, H], then one M=B matmul against clip_head ----
    weighted = x * mask_col_ref[...]                              # [B*S, H] * [B*S, 1]
    pooled_rows = []
    for b in range(B):
        pb = jnp.sum(weighted[b * S:(b + 1) * S, :], axis=0, keepdims=True)      # [1, H]
        denom = jnp.sum(mask_row[b:b + 1, :], axis=-1, keepdims=True) + 1e-6     # [1, 1]
        pooled_rows.append(pb * pl.reciprocal(denom, approx=True))
    pooled = jnp.concatenate(pooled_rows, axis=0)                 # [B, H]

    out_ref[...] = _dot(pooled, headw_ref[...]) + headb_ref[...]  # [B, OUT] lane-dense store


# ----------------------------- paired L2-normalize kernel (image + text) -----------------------------
def normalize_pair_kernel(img_ref, txt_ref, img_o_ref, txt_o_ref):
    img = img_ref[...]
    txt = txt_ref[...]
    img_o_ref[...] = img * jax.lax.rsqrt(jnp.sum(img * img, axis=-1, keepdims=True) + 1e-12)
    txt_o_ref[...] = txt * jax.lax.rsqrt(jnp.sum(txt * txt, axis=-1, keepdims=True) + 1e-12)


def normalize_pair(img, txt):
    return pl.pallas_call(
        normalize_pair_kernel,
        out_shape=(jax.ShapeDtypeStruct(img.shape, jnp.float32),
                   jax.ShapeDtypeStruct(txt.shape, jnp.float32)),
        in_specs=[_VMEM, _VMEM],
        out_specs=[_VMEM, _VMEM],
    )(img, txt)


# ----------------------------- parameters (deterministic synthetic init) -----------------------------
def init_params(key):
    keys = iter(jax.random.split(key, 64))

    def nrm(shape, scale=0.02):
        return (scale * jax.random.normal(next(keys), shape)).astype(jnp.float32)

    def zeros(shape):
        return jnp.zeros(shape, jnp.float32)

    def ones(shape):
        return jnp.ones(shape, jnp.float32)

    # Generate in the "torch Linear" [in, out] layout, then pre-split per head on the host
    # (one-time layout plumbing; avoids all lane-offset head slicing inside the kernel).
    wq = nrm((NLAYERS, H, H)); wk = nrm((NLAYERS, H, H))
    wv = nrm((NLAYERS, H, H)); wo = nrm((NLAYERS, H, H))
    bq = zeros((NLAYERS, 1, H)); bk = zeros((NLAYERS, 1, H)); bv = zeros((NLAYERS, 1, H))

    def split_out(w):   # [L, H(in), H(out)] -> [L, NH, H, HD]   (split the output axis)
        return jnp.transpose(w.reshape(NLAYERS, H, NH, HD), (0, 2, 1, 3))

    def split_in(w):    # [L, H(in), H(out)] -> [L, NH, HD, H]   (split the input axis)
        return w.reshape(NLAYERS, NH, HD, H)

    def split_bias(b):  # [L, 1, H] -> [L, NH, 1, HD]
        return jnp.transpose(b.reshape(NLAYERS, 1, NH, HD), (0, 2, 1, 3))

    params = {
        "word_emb": nrm((VOCAB, H)),
        "pos_emb": nrm((MAXPOS, H)),
        "type_emb": nrm((2, H)),
        "emb_ln_g": ones((1, H)),
        "emb_ln_b": zeros((1, H)),

        "wq": split_out(wq), "bq": split_bias(bq),
        "wk": split_out(wk), "bk": split_bias(bk),
        "wv": split_out(wv), "bv": split_bias(bv),
        "wo": split_in(wo),  "bo": zeros((NLAYERS, 1, H)),
        "ln1_g": ones((NLAYERS, 1, H)), "ln1_b": zeros((NLAYERS, 1, H)),
        "w1": nrm((NLAYERS, H, INTER)), "b1": zeros((NLAYERS, 1, INTER)),
        "w2": nrm((NLAYERS, INTER, H)), "b2": zeros((NLAYERS, 1, H)),
        "ln2_g": ones((NLAYERS, 1, H)), "ln2_b": zeros((NLAYERS, 1, H)),

        "head_w": nrm((H, OUT)),          # clip_head: Linear(H -> OUT)
        "head_b": zeros((1, OUT)),
        "logit_scale": jnp.array(math.log(1.0 / 0.07), jnp.float32),
    }
    return params


# ----------------------------- forward (mirrors torch CLIP.forward) -----------------------------
def encode_image(image):
    return image.astype(jnp.float32)      # torch: image.type(self.dtype)


def encode_text(params, input_ids, attention_mask):
    # embedding gather + sums stay in plain JAX (glue); everything else is one fused kernel.
    emb = (params["word_emb"][input_ids]
           + params["pos_emb"][:S][None, :, :]
           + params["type_emb"][0][None, None, :])
    emb2d = emb.reshape(B * S, H).astype(jnp.float32)
    mask_row = attention_mask.astype(jnp.float32)                 # [B, S]
    mask_col = mask_row.reshape(B * S, 1)                         # [B*S, 1]

    args = (emb2d, mask_row, mask_col,
            params["emb_ln_g"], params["emb_ln_b"],
            params["wq"], params["bq"], params["wk"], params["bk"],
            params["wv"], params["bv"], params["wo"], params["bo"],
            params["ln1_g"], params["ln1_b"],
            params["w1"], params["b1"], params["w2"], params["b2"],
            params["ln2_g"], params["ln2_b"],
            params["head_w"], params["head_b"])
    return pl.pallas_call(
        text_tower_kernel,
        out_shape=jax.ShapeDtypeStruct((B, OUT), jnp.float32),
        in_specs=[_VMEM] * len(args),
        out_specs=_VMEM,
    )(*args)


def clip_forward(params, image, input_ids, attention_mask):
    if image is None:
        return encode_text(params, input_ids, attention_mask)
    if input_ids is None:
        return encode_image(image)
    image_features = encode_image(image)
    text_features = encode_text(params, input_ids, attention_mask)
    image_features, text_features = normalize_pair(image_features, text_features)
    return image_features, text_features, jnp.exp(params["logit_scale"])


# ----------------------------- demo -----------------------------
if __name__ == "__main__":
    key = jax.random.PRNGKey(0)
    kp, kimg, kids = jax.random.split(key, 3)

    params = init_params(kp)
    image = jax.random.normal(kimg, (B, D_IMG), dtype=jnp.float32)
    input_ids = jax.random.randint(kids, (B, S), 0, VOCAB)
    attention_mask = jnp.array([[1] * S, [1, 1, 1, 1, 1, 0, 0, 0]], dtype=jnp.int32)

    img_f, txt_f, logit_scale = clip_forward(params, image, input_ids, attention_mask)
    jax.block_until_ready((img_f, txt_f, logit_scale))

    assert img_f.shape == (B, D_IMG)
    assert txt_f.shape == (B, OUT)
    assert jnp.all(jnp.isfinite(img_f)) and jnp.all(jnp.isfinite(txt_f))
    print("KERNEL_OK")
</pallas_src>

<mosaic_0001>
module attributes {stable_mosaic.version = 11 : i64} {
  func.func @text_tower_kernel(%arg0: memref<16x32xf32, #tpu.memory_space<vmem>>, %arg1: memref<2x8xf32, #tpu.memory_space<vmem>>, %arg2: memref<16x1xf32, #tpu.memory_space<vmem>>, %arg3: memref<1x32xf32, #tpu.memory_space<vmem>>, %arg4: memref<1x32xf32, #tpu.memory_space<vmem>>, %arg5: memref<2x4x32x8xf32, #tpu.memory_space<vmem>>, %arg6: memref<2x4x1x8xf32, #tpu.memory_space<vmem>>, %arg7: memref<2x4x32x8xf32, #tpu.memory_space<vmem>>, %arg8: memref<2x4x1x8xf32, #tpu.memory_space<vmem>>, %arg9: memref<2x4x32x8xf32, #tpu.memory_space<vmem>>, %arg10: memref<2x4x1x8xf32, #tpu.memory_space<vmem>>, %arg11: memref<2x4x8x32xf32, #tpu.memory_space<vmem>>, %arg12: memref<2x1x32xf32, #tpu.memory_space<vmem>>, %arg13: memref<2x1x32xf32, #tpu.memory_space<vmem>>, %arg14: memref<2x1x32xf32, #tpu.memory_space<vmem>>, %arg15: memref<2x32x64xf32, #tpu.memory_space<vmem>>, %arg16: memref<2x1x64xf32, #tpu.memory_space<vmem>>, %arg17: memref<2x64x32xf32, #tpu.memory_space<vmem>>, %arg18: memref<2x1x32xf32, #tpu.memory_space<vmem>>, %arg19: memref<2x1x32xf32, #tpu.memory_space<vmem>>, %arg20: memref<2x1x32xf32, #tpu.memory_space<vmem>>, %arg21: memref<32x2048xf32, #tpu.memory_space<vmem>>, %arg22: memref<1x2048xf32, #tpu.memory_space<vmem>>, %arg23: memref<2x2048xf32, #tpu.memory_space<vmem>>) attributes {dimension_semantics = [], scalar_prefetch = 0 : i64, scratch_operands = 0 : i64, tpu.core_type = #tpu.core_type<tc>} {
    %c0 = arith.constant 0 : index
    %c0_0 = arith.constant 0 : index
    %0 = vector.load %arg0[%c0, %c0_0] : memref<16x32xf32, #tpu.memory_space<vmem>>, vector<16x32xf32>
    %c0_1 = arith.constant 0 : index
    %c0_2 = arith.constant 0 : index
    %1 = vector.load %arg3[%c0_1, %c0_2] : memref<1x32xf32, #tpu.memory_space<vmem>>, vector<1x32xf32>
    %c0_3 = arith.constant 0 : index
    %c0_4 = arith.constant 0 : index
    %2 = vector.load %arg4[%c0_3, %c0_4] : memref<1x32xf32, #tpu.memory_space<vmem>>, vector<1x32xf32>
    %cst = arith.constant dense<0.000000e+00> : vector<16xf32>
    %3 = vector.multi_reduction <add>, %0, %cst [1] : vector<16x32xf32> to vector<16xf32>
    %4 = vector.shape_cast %3 : vector<16xf32> to vector<16x1xf32>
    %cst_5 = arith.constant 3.200000e+01 : f32
    %5 = vector.broadcast %cst_5 : f32 to vector<16x1xf32>
    %6 = arith.divf %4, %5 : vector<16x1xf32>
    %7 = vector.broadcast %6 : vector<16x1xf32> to vector<16x32xf32>
    %8 = arith.subf %0, %7 : vector<16x32xf32>
    %9 = arith.mulf %8, %8 : vector<16x32xf32>
    %cst_6 = arith.constant dense<0.000000e+00> : vector<16xf32>
    %10 = vector.multi_reduction <add>, %9, %cst_6 [1] : vector<16x32xf32> to vector<16xf32>
    %11 = vector.shape_cast %10 : vector<16xf32> to vector<16x1xf32>
    %cst_7 = arith.constant 3.200000e+01 : f32
    %12 = vector.broadcast %cst_7 : f32 to vector<16x1xf32>
    %13 = arith.divf %11, %12 : vector<16x1xf32>
    %14 = vector.broadcast %6 : vector<16x1xf32> to vector<16x32xf32>
    %15 = arith.subf %0, %14 : vector<16x32xf32>
    %cst_8 = arith.constant 9.99999996E-13 : f32
    %16 = vector.broadcast %cst_8 : f32 to vector<16x1xf32>
    %17 = arith.addf %13, %16 : vector<16x1xf32>
    %18 = math.rsqrt %17 : vector<16x1xf32>
    %19 = vector.broadcast %18 : vector<16x1xf32> to vector<16x32xf32>
    %20 = arith.mulf %15, %19 : vector<16x32xf32>
    %21 = vector.broadcast %1 : vector<1x32xf32> to vector<16x32xf32>
    %22 = arith.mulf %20, %21 : vector<16x32xf32>
    %23 = vector.broadcast %2 : vector<1x32xf32> to vector<16x32xf32>
    %24 = arith.addf %22, %23 : vector<16x32xf32>
    %c0_9 = arith.constant 0 : index
    %c0_10 = arith.constant 0 : index
    %25 = vector.load %arg1[%c0_9, %c0_10] : memref<2x8xf32, #tpu.memory_space<vmem>>, vector<2x8xf32>
    %cst_11 = arith.constant 1.000000e+00 : f32
    %26 = vector.broadcast %cst_11 : f32 to vector<2x8xf32>
    %27 = arith.subf %26, %25 : vector<2x8xf32>
    %cst_12 = arith.constant -1.000000e+09 : f32
    %28 = vector.broadcast %cst_12 : f32 to vector<2x8xf32>
    %29 = arith.mulf %27, %28 : vector<2x8xf32>
    %c0_13 = arith.constant 0 : index
    %c0_14 = arith.constant 0 : index
    %c0_15 = arith.constant 0 : index
    %30 = vector.load %arg12[%c0_13, %c0_14, %c0_15] : memref<2x1x32xf32, #tpu.memory_space<vmem>>, vector<1x1x32xf32>
    %31 = vector.shape_cast %30 : vector<1x1x32xf32> to vector<1x32xf32>
    %c0_16 = arith.constant 0 : index
    %c0_17 = arith.constant 0 : index
    %c0_18 = arith.constant 0 : index
    %32 = vector.load %arg13[%c0_16, %c0_17, %c0_18] : memref<2x1x32xf32, #tpu.memory_space<vmem>>, vector<1x1x32xf32>
    %33 = vector.shape_cast %32 : vector<1x1x32xf32> to vector<1x32xf32>
    %c0_19 = arith.constant 0 : index
    %c0_20 = arith.constant 0 : index
    %c0_21 = arith.constant 0 : index
    %34 = vector.load %arg14[%c0_19, %c0_20, %c0_21] : memref<2x1x32xf32, #tpu.memory_space<vmem>>, vector<1x1x32xf32>
    %35 = vector.shape_cast %34 : vector<1x1x32xf32> to vector<1x32xf32>
    %c0_22 = arith.constant 0 : index
    %c0_23 = arith.constant 0 : index
    %c0_24 = arith.constant 0 : index
    %36 = vector.load %arg15[%c0_22, %c0_23, %c0_24] : memref<2x32x64xf32, #tpu.memory_space<vmem>>, vector<1x32x64xf32>
    %37 = vector.shape_cast %36 : vector<1x32x64xf32> to vector<32x64xf32>
    %c0_25 = arith.constant 0 : index
    %c0_26 = arith.constant 0 : index
    %c0_27 = arith.constant 0 : index
    %38 = vector.load %arg16[%c0_25, %c0_26, %c0_27] : memref<2x1x64xf32, #tpu.memory_space<vmem>>, vector<1x1x64xf32>
    %39 = vector.shape_cast %38 : vector<1x1x64xf32> to vector<1x64xf32>
    %c0_28 = arith.constant 0 : index
    %c0_29 = arith.constant 0 : index
    %c0_30 = arith.constant 0 : index
    %40 = vector.load %arg17[%c0_28, %c0_29, %c0_30] : memref<2x64x32xf32, #tpu.memory_space<vmem>>, vector<1x64x32xf32>
    %41 = vector.shape_cast %40 : vector<1x64x32xf32> to vector<64x32xf32>
    %c0_31 = arith.constant 0 : index
    %c0_32 = arith.constant 0 : index
    %c0_33 = arith.constant 0 : index
    %42 = vector.load %arg18[%c0_31, %c0_32, %c0_33] : memref<2x1x32xf32, #tpu.memory_space<vmem>>, vector<1x1x32xf32>
    %43 = vector.shape_cast %42 : vector<1x1x32xf32> to vector<1x32xf32>
    %c0_34 = arith.constant 0 : index
    %c0_35 = arith.constant 0 : index
    %c0_36 = arith.constant 0 : index
    %44 = vector.load %arg19[%c0_34, %c0_35, %c0_36] : memref<2x1x32xf32, #tpu.memory_space<vmem>>, vector<1x1x32xf32>
    %45 = vector.shape_cast %44 : vector<1x1x32xf32> to vector<1x32xf32>
    %c0_37 = arith.constant 0 : index
    %c0_38 = arith.constant 0 : index
    %c0_39 = arith.constant 0 : index
    %46 = vector.load %arg20[%c0_37, %c0_38, %c0_39] : memref<2x1x32xf32, #tpu.memory_space<vmem>>, vector<1x1x32xf32>
    %47 = vector.shape_cast %46 : vector<1x1x32xf32> to vector<1x32xf32>
    %c0_40 = arith.constant 0 : index
    %c0_41 = arith.constant 0 : index
    %c0_42 = arith.constant 0 : index
    %c0_43 = arith.constant 0 : index
    %48 = vector.load %arg5[%c0_40, %c0_41, %c0_42, %c0_43] : memref<2x4x32x8xf32, #tpu.memory_space<vmem>>, vector<1x1x32x8xf32>
    %49 = vector.shape_cast %48 : vector<1x1x32x8xf32> to vector<32x8xf32>
    %c0_44 = arith.constant 0 : index
    %c0_45 = arith.constant 0 : index
    %c0_46 = arith.constant 0 : index
    %c0_47 = arith.constant 0 : index
    %50 = vector.load %arg6[%c0_44, %c0_45, %c0_46, %c0_47] : memref<2x4x1x8xf32, #tpu.memory_space<vmem>>, vector<1x1x1x8xf32>
    %51 = vector.shape_cast %50 : vector<1x1x1x8xf32> to vector<1x8xf32>
    %c0_48 = arith.constant 0 : index
    %c0_49 = arith.constant 0 : index
    %c0_50 = arith.constant 0 : index
    %c0_51 = arith.constant 0 : index
    %52 = vector.load %arg7[%c0_48, %c0_49, %c0_50, %c0_51] : memref<2x4x32x8xf32, #tpu.memory_space<vmem>>, vector<1x1x32x8xf32>
    %53 = vector.shape_cast %52 : vector<1x1x32x8xf32> to vector<32x8xf32>
    %c0_52 = arith.constant 0 : index
    %c0_53 = arith.constant 0 : index
    %c0_54 = arith.constant 0 : index
    %c0_55 = arith.constant 0 : index
    %54 = vector.load %arg8[%c0_52, %c0_53, %c0_54, %c0_55] : memref<2x4x1x8xf32, #tpu.memory_space<vmem>>, vector<1x1x1x8xf32>
    %55 = vector.shape_cast %54 : vector<1x1x1x8xf32> to vector<1x8xf32>
    %c0_56 = arith.constant 0 : index
    %c0_57 = arith.constant 0 : index
    %c0_58 = arith.constant 0 : index
    %c0_59 = arith.constant 0 : index
    %56 = vector.load %arg9[%c0_56, %c0_57, %c0_58, %c0_59] : memref<2x4x32x8xf32, #tpu.memory_space<vmem>>, vector<1x1x32x8xf32>
    %57 = vector.shape_cast %56 : vector<1x1x32x8xf32> to vector<32x8xf32>
    %c0_60 = arith.constant 0 : index
    %c0_61 = arith.constant 0 : index
    %c0_62 = arith.constant 0 : index
    %c0_63 = arith.constant 0 : index
    %58 = vector.load %arg10[%c0_60, %c0_61, %c0_62, %c0_63] : memref<2x4x1x8xf32, #tpu.memory_space<vmem>>, vector<1x1x1x8xf32>
    %59 = vector.shape_cast %58 : vector<1x1x1x8xf32> to vector<1x8xf32>
    %c0_64 = arith.constant 0 : index
    %c0_65 = arith.constant 0 : index
    %c0_66 = arith.constant 0 : index
    %c0_67 = arith.constant 0 : index
    %60 = vector.load %arg11[%c0_64, %c0_65, %c0_66, %c0_67] : memref<2x4x8x32xf32, #tpu.memory_space<vmem>>, vector<1x1x8x32xf32>
    %61 = vector.shape_cast %60 : vector<1x1x8x32xf32> to vector<8x32xf32>
    %cst_68 = arith.constant dense<0.000000e+00> : vector<16x8xf32>
    %62 = tpu.matmul %24, %49, %cst_68 {dimension_numbers = #tpu.dot_dimension_numbers<[1], [0], [0], [1], [0, 0, 1, 1], [], []>} : vector<16x32xf32>, vector<32x8xf32>, vector<16x8xf32> -> vector<16x8xf32>
    %63 = vector.broadcast %51 : vector<1x8xf32> to vector<16x8xf32>
    %64 = arith.addf %62, %63 : vector<16x8xf32>
    %cst_69 = arith.constant dense<0.000000e+00> : vector<16x8xf32>
    %65 = tpu.matmul %24, %53, %cst_69 {dimension_numbers = #tpu.dot_dimension_numbers<[1], [0], [0], [1], [0, 0, 1, 1], [], []>} : vector<16x32xf32>, vector<32x8xf32>, vector<16x8xf32> -> vector<16x8xf32>
    %66 = vector.broadcast %55 : vector<1x8xf32> to vector<16x8xf32>
    %67 = arith.addf %65, %66 : vector<16x8xf32>
    %cst_70 = arith.constant dense<0.000000e+00> : vector<16x8xf32>
    %68 = tpu.matmul %24, %57, %cst_70 {dimension_numbers = #tpu.dot_dimension_numbers<[1], [0], [0], [1], [0, 0, 1, 1], [], []>} : vector<16x32xf32>, vector<32x8xf32>, vector<16x8xf32> -> vector<16x8xf32>
    %69 = vector.broadcast %59 : vector<1x8xf32> to vector<16x8xf32>
    %70 = arith.addf %68, %69 : vector<16x8xf32>
    %71 = vector.extract_strided_slice %64 {offsets = [0, 0], sizes = [8, 8], strides = [1, 1]} : vector<16x8xf32> to vector<8x8xf32>
    %72 = vector.extract_strided_slice %67 {offsets = [0, 0], sizes = [8, 8], strides = [1, 1]} : vector<16x8xf32> to vector<8x8xf32>
    %73 = vector.extract_strided_slice %70 {offsets = [0, 0], sizes = [8, 8], strides = [1, 1]} : vector<16x8xf32> to vector<8x8xf32>
    %cst_71 = arith.constant dense<0.000000e+00> : vector<8x8xf32>
    %74 = tpu.matmul %71, %72, %cst_71 {dimension_numbers = #tpu.dot_dimension_numbers<[1], [1], [0], [0], [0, 0, 1, 0], [], []>} : vector<8x8xf32>, vector<8x8xf32>, vector<8x8xf32> -> vector<8x8xf32>
    %cst_72 = arith.constant 0.353553385 : f32
    %75 = vector.broadcast %cst_72 : f32 to vector<8x8xf32>
    %76 = arith.mulf %74, %75 : vector<8x8xf32>
    %77 = vector.extract_strided_slice %29 {offsets = [0, 0], sizes = [1, 8], strides = [1, 1]} : vector<2x8xf32> to vector<1x8xf32>
    %78 = vector.broadcast %77 : vector<1x8xf32> to vector<8x8xf32>
    %79 = arith.addf %76, %78 : vector<8x8xf32>
    %cst_73 = arith.constant dense<0xFF800000> : vector<8xf32>
    %80 = vector.multi_reduction <maximumf>, %79, %cst_73 [1] : vector<8x8xf32> to vector<8xf32>
    %81 = vector.shape_cast %80 : vector<8xf32> to vector<8x1xf32>
    %82 = vector.broadcast %81 : vector<8x1xf32> to vector<8x8xf32>
    %83 = arith.subf %79, %82 : vector<8x8xf32>
    %84 = math.exp %83 : vector<8x8xf32>
    %cst_74 = arith.constant dense<0.000000e+00> : vector<8xf32>
    %85 = vector.multi_reduction <add>, %84, %cst_74 [1] : vector<8x8xf32> to vector<8xf32>
    %86 = vector.shape_cast %85 : vector<8xf32> to vector<8x1xf32>
    %87 = tpu.reciprocal %86 {approx = true} : vector<8x1xf32> -> vector<8x1xf32>
    %88 = vector.broadcast %87 : vector<8x1xf32> to vector<8x8xf32>
    %89 = arith.mulf %84, %88 : vector<8x8xf32>
    %cst_75 = arith.constant dense<0.000000e+00> : vector<8x8xf32>
    %90 = tpu.matmul %89, %73, %cst_75 {dimension_numbers = #tpu.dot_dimension_numbers<[1], [0], [0], [1], [0, 0, 1, 1], [], []>} : vector<8x8xf32>, vector<8x8xf32>, vector<8x8xf32> -> vector<8x8xf32>
    %cst_76 = arith.constant dense<0.000000e+00> : vector<8x32xf32>
    %91 = tpu.matmul %90, %61, %cst_76 {dimension_numbers = #tpu.dot_dimension_numbers<[1], [0], [0], [1], [0, 0, 1, 1], [], []>} : vector<8x8xf32>, vector<8x32xf32>, vector<8x32xf32> -> vector<8x32xf32>
    %92 = vector.extract_strided_slice %64 {offsets = [8, 0], sizes = [8, 8], strides = [1, 1]} : vector<16x8xf32> to vector<8x8xf32>
    %93 = vector.extract_strided_slice %67 {offsets = [8, 0], sizes = [8, 8], strides = [1, 1]} : vector<16x8xf32> to vector<8x8xf32>
    %94 = vector.extract_strided_slice %70 {offsets = [8, 0], sizes = [8, 8], strides = [1, 1]} : vector<16x8xf32> to vector<8x8xf32>
    %cst_77 = arith.constant dense<0.000000e+00> : vector<8x8xf32>
    %95 = tpu.matmul %92, %93, %cst_77 {dimension_numbers = #tpu.dot_dimension_numbers<[1], [1], [0], [0], [0, 0, 1, 0], [], []>} : vector<8x8xf32>, vector<8x8xf32>, vector<8x8xf32> -> vector<8x8xf32>
    %cst_78 = arith.constant 0.353553385 : f32
    %96 = vector.broadcast %cst_78 : f32 to vector<8x8xf32>
    %97 = arith.mulf %95, %96 : vector<8x8xf32>
    %98 = vector.extract_strided_slice %29 {offsets = [1, 0], sizes = [1, 8], strides = [1, 1]} : vector<2x8xf32> to vector<1x8xf32>
    %99 = vector.broadcast %98 : vector<1x8xf32> to vector<8x8xf32>
    %100 = arith.addf %97, %99 : vector<8x8xf32>
    %cst_79 = arith.constant dense<0xFF800000> : vector<8xf32>
    %101 = vector.multi_reduction <maximumf>, %100, %cst_79 [1] : vector<8x8xf32> to vector<8xf32>
    %102 = vector.shape_cast %101 : vector<8xf32> to vector<8x1xf32>
    %103 = vector.broadcast %102 : vector<8x1xf32> to vector<8x8xf32>
    %104 = arith.subf %100, %103 : vector<8x8xf32>
    %105 = math.exp %104 : vector<8x8xf32>
    %cst_80 = arith.constant dense<0.000000e+00> : vector<8xf32>
    %106 = vector.multi_reduction <add>, %105, %cst_80 [1] : vector<8x8xf32> to vector<8xf32>
    %107 = vector.shape_cast %106 : vector<8xf32> to vector<8x1xf32>
    %108 = tpu.reciprocal %107 {approx = true} : vector<8x1xf32> -> vector<8x1xf32>
    %109 = vector.broadcast %108 : vector<8x1xf32> to vector<8x8xf32>
    %110 = arith.mulf %105, %109 : vector<8x8xf32>
    %cst_81 = arith.constant dense<0.000000e+00> : vector<8x8xf32>
    %111 = tpu.matmul %110, %94, %cst_81 {dimension_numbers = #tpu.dot_dimension_numbers<[1], [0], [0], [1], [0, 0, 1, 1], [], []>} : vector<8x8xf32>, vector<8x8xf32>, vector<8x8xf32> -> vector<8x8xf32>
    %cst_82 = arith.constant dense<0.000000e+00> : vector<8x32xf32>
    %112 = tpu.matmul %111, %61, %cst_82 {dimension_numbers = #tpu.dot_dimension_numbers<[1], [0], [0], [1], [0, 0, 1, 1], [], []>} : vector<8x8xf32>, vector<8x32xf32>, vector<8x32xf32> -> vector<8x32xf32>
    %c0_83 = arith.constant 0 : index
    %c1 = arith.constant 1 : index
    %c0_84 = arith.constant 0 : index
    %c0_85 = arith.constant 0 : index
    %113 = vector.load %arg5[%c0_83, %c1, %c0_84, %c0_85] : memref<2x4x32x8xf32, #tpu.memory_space<vmem>>, vector<1x1x32x8xf32>
    %114 = vector.shape_cast %113 : vector<1x1x32x8xf32> to vector<32x8xf32>
    %c0_86 = arith.constant 0 : index
    %c1_87 = arith.constant 1 : index
    %c0_88 = arith.constant 0 : index
    %c0_89 = arith.constant 0 : index
    %115 = vector.load %arg6[%c0_86, %c1_87, %c0_88, %c0_89] : memref<2x4x1x8xf32, #tpu.memory_space<vmem>>, vector<1x1x1x8xf32>
    %116 = vector.shape_cast %115 : vector<1x1x1x8xf32> to vector<1x8xf32>
    %c0_90 = arith.constant 0 : index
    %c1_91 = arith.constant 1 : index
    %c0_92 = arith.constant 0 : index
    %c0_93 = arith.constant 0 : index
    %117 = vector.load %arg7[%c0_90, %c1_91, %c0_92, %c0_93] : memref<2x4x32x8xf32, #tpu.memory_space<vmem>>, vector<1x1x32x8xf32>
    %118 = vector.shape_cast %117 : vector<1x1x32x8xf32> to vector<32x8xf32>
    %c0_94 = arith.constant 0 : index
    %c1_95 = arith.constant 1 : index
    %c0_96 = arith.constant 0 : index
    %c0_97 = arith.constant 0 : index
    %119 = vector.load %arg8[%c0_94, %c1_95, %c0_96, %c0_97] : memref<2x4x1x8xf32, #tpu.memory_space<vmem>>, vector<1x1x1x8xf32>
    %120 = vector.shape_cast %119 : vector<1x1x1x8xf32> to vector<1x8xf32>
    %c0_98 = arith.constant 0 : index
    %c1_99 = arith.constant 1 : index
    %c0_100 = arith.constant 0 : index
    %c0_101 = arith.constant 0 : index
    %121 = vector.load %arg9[%c0_98, %c1_99, %c0_100, %c0_101] : memref<2x4x32x8xf32, #tpu.memory_space<vmem>>, vector<1x1x32x8xf32>
    %122 = vector.shape_cast %121 : vector<1x1x32x8xf32> to vector<32x8xf32>
    %c0_102 = arith.constant 0 : index
    %c1_103 = arith.constant 1 : index
    %c0_104 = arith.constant 0 : index
    %c0_105 = arith.constant 0 : index
    %123 = vector.load %arg10[%c0_102, %c1_103, %c0_104, %c0_105] : memref<2x4x1x8xf32, #tpu.memory_space<vmem>>, vector<1x1x1x8xf32>
    %124 = vector.shape_cast %123 : vector<1x1x1x8xf32> to vector<1x8xf32>
    %c0_106 = arith.constant 0 : index
    %c1_107 = arith.constant 1 : index
    %c0_108 = arith.constant 0 : index
    %c0_109 = arith.constant 0 : index
    %125 = vector.load %arg11[%c0_106, %c1_107, %c0_108, %c0_109] : memref<2x4x8x32xf32, #tpu.memory_space<vmem>>, vector<1x1x8x32xf32>
    %126 = vector.shape_cast %125 : vector<1x1x8x32xf32> to vector<8x32xf32>
    %cst_110 = arith.constant dense<0.000000e+00> : vector<16x8xf32>
    %127 = tpu.matmul %24, %114, %cst_110 {dimension_numbers = #tpu.dot_dimension_numbers<[1], [0], [0], [1], [0, 0, 1, 1], [], []>} : vector<16x32xf32>, vector<32x8xf32>, vector<16x8xf32> -> vector<16x8xf32>
    %128 = vector.broadcast %116 : vector<1x8xf32> to vector<16x8xf32>
    %129 = arith.addf %127, %128 : vector<16x8xf32>
    %cst_111 = arith.constant dense<0.000000e+00> : vector<16x8xf32>
    %130 = tpu.matmul %24, %118, %cst_111 {dimension_numbers = #tpu.dot_dimension_numbers<[1], [0], [0], [1], [0, 0, 1, 1], [], []>} : vector<16x32xf32>, vector<32x8xf32>, vector<16x8xf32> -> vector<16x8xf32>
    %131 = vector.broadcast %120 : vector<1x8xf32> to vector<16x8xf32>
    %132 = arith.addf %130, %131 : vector<16x8xf32>
    %cst_112 = arith.constant dense<0.000000e+00> : vector<16x8xf32>
    %133 = tpu.matmul %24, %122, %cst_112 {dimension_numbers = #tpu.dot_dimension_numbers<[1], [0], [0], [1], [0, 0, 1, 1], [], []>} : vector<16x32xf32>, vector<32x8xf32>, vector<16x8xf32> -> vector<16x8xf32>
    %134 = vector.broadcast %124 : vector<1x8xf32> to vector<16x8xf32>
    %135 = arith.addf %133, %134 : vector<16x8xf32>
    %136 = vector.extract_strided_slice %129 {offsets = [0, 0], sizes = [8, 8], strides = [1, 1]} : vector<16x8xf32> to vector<8x8xf32>
    %137 = vector.extract_strided_slice %132 {offsets = [0, 0], sizes = [8, 8], strides = [1, 1]} : vector<16x8xf32> to vector<8x8xf32>
    %138 = vector.extract_strided_slice %135 {offsets = [0, 0], sizes = [8, 8], strides = [1, 1]} : vector<16x8xf32> to vector<8x8xf32>
    %cst_113 = arith.constant dense<0.000000e+00> : vector<8x8xf32>
    %139 = tpu.matmul %136, %137, %cst_113 {dimension_numbers = #tpu.dot_dimension_numbers<[1], [1], [0], [0], [0, 0, 1, 0], [], []>} : vector<8x8xf32>, vector<8x8xf32>, vector<8x8xf32> -> vector<8x8xf32>
    %cst_114 = arith.constant 0.353553385 : f32
    %140 = vector.broadcast %cst_114 : f32 to vector<8x8xf32>
    %141 = arith.mulf %139, %140 : vector<8x8xf32>
    %142 = vector.extract_strided_slice %29 {offsets = [0, 0], sizes = [1, 8], strides = [1, 1]} : vector<2x8xf32> to vector<1x8xf32>
    %143 = vector.broadcast %142 : vector<1x8xf32> to vector<8x8xf32>
    %144 = arith.addf %141, %143 : vector<8x8xf32>
    %cst_115 = arith.constant dense<0xFF800000> : vector<8xf32>
    %145 = vector.multi_reduction <maximumf>, %144, %cst_115 [1] : vector<8x8xf32> to vector<8xf32>
    %146 = vector.shape_cast %145 : vector<8xf32> to vector<8x1xf32>
    %147 = vector.broadcast %146 : vector<8x1xf32> to vector<8x8xf32>
    %148 = arith.subf %144, %147 : vector<8x8xf32>
    %149 = math.exp %148 : vector<8x8xf32>
    %cst_116 = arith.constant dense<0.000000e+00> : vector<8xf32>
    %150 = vector.multi_reduction <add>, %149, %cst_116 [1] : vector<8x8xf32> to vector<8xf32>
    %151 = vector.shape_cast %150 : vector<8xf32> to vector<8x1xf32>
    %152 = tpu.reciprocal %151 {approx = true} : vector<8x1xf32> -> vector<8x1xf32>
    %153 = vector.broadcast %152 : vector<8x1xf32> to vector<8x8xf32>
    %154 = arith.mulf %149, %153 : vector<8x8xf32>
    %cst_117 = arith.constant dense<0.000000e+00> : vector<8x8xf32>
    %155 = tpu.matmul %154, %138, %cst_117 {dimension_numbers = #tpu.dot_dimension_numbers<[1], [0], [0], [1], [0, 0, 1, 1], [], []>} : vector<8x8xf32>, vector<8x8xf32>, vector<8x8xf32> -> vector<8x8xf32>
    %cst_118 = arith.constant dense<0.000000e+00> : vector<8x32xf32>
    %156 = tpu.matmul %155, %126, %cst_118 {dimension_numbers = #tpu.dot_dimension_numbers<[1], [0], [0], [1], [0, 0, 1, 1], [], []>} : vector<8x8xf32>, vector<8x32xf32>, vector<8x32xf32> -> vector<8x32xf32>
    %157 = arith.addf %91, %156 : vector<8x32xf32>
    %158 = vector.extract_strided_slice %129 {offsets = [8, 0], sizes = [8, 8], strides = [1, 1]} : vector<16x8xf32> to vector<8x8xf32>
    %159 = vector.extract_strided_slice %132 {offsets = [8, 0], sizes = [8, 8], strides = [1, 1]} : vector<16x8xf32> to vector<8x8xf32>
    %160 = vector.extract_strided_slice %135 {offsets = [8, 0], sizes = [8, 8], strides = [1, 1]} : vector<16x8xf32> to vector<8x8xf32>
    %cst_119 = arith.constant dense<0.000000e+00> : vector<8x8xf32>
    %161 = tpu.matmul %158, %159, %cst_119 {dimension_numbers = #tpu.dot_dimension_numbers<[1], [1], [0], [0], [0, 0, 1, 0], [], []>} : vector<8x8xf32>, vector<8x8xf32>, vector<8x8xf32> -> vector<8x8xf32>
    %cst_120 = arith.constant 0.353553385 : f32
    %162 = vector.broadcast %cst_120 : f32 to vector<8x8xf32>
    %163 = arith.mulf %161, %162 : vector<8x8xf32>
    %164 = vector.extract_strided_slice %29 {offsets = [1, 0], sizes = [1, 8], strides = [1, 1]} : vector<2x8xf32> to vector<1x8xf32>
    %165 = vector.broadcast %164 : vector<1x8xf32> to vector<8x8xf32>
    %166 = arith.addf %163, %165 : vector<8x8xf32>
    %cst_121 = arith.constant dense<0xFF800000> : vector<8xf32>
    %167 = vector.multi_reduction <maximumf>, %166, %cst_121 [1] : vector<8x8xf32> to vector<8xf32>
    %168 = vector.shape_cast %167 : vector<8xf32> to vector<8x1xf32>
    %169 = vector.broadcast %168 : vector<8x1xf32> to vector<8x8xf32>
    %170 = arith.subf %166, %169 : vector<8x8xf32>
    %171 = math.exp %170 : vector<8x8xf32>
    %cst_122 = arith.constant dense<0.000000e+00> : vector<8xf32>
    %172 = vector.multi_reduction <add>, %171, %cst_122 [1] : vector<8x8xf32> to vector<8xf32>
    %173 = vector.shape_cast %172 : vector<8xf32> to vector<8x1xf32>
    %174 = tpu.reciprocal %173 {approx = true} : vector<8x1xf32> -> vector<8x1xf32>
    %175 = vector.broadcast %174 : vector<8x1xf32> to vector<8x8xf32>
    %176 = arith.mulf %171, %175 : vector<8x8xf32>
    %cst_123 = arith.constant dense<0.000000e+00> : vector<8x8xf32>
    %177 = tpu.matmul %176, %160, %cst_123 {dimension_numbers = #tpu.dot_dimension_numbers<[1], [0], [0], [1], [0, 0, 1, 1], [], []>} : vector<8x8xf32>, vector<8x8xf32>, vector<8x8xf32> -> vector<8x8xf32>
    %cst_124 = arith.constant dense<0.000000e+00> : vector<8x32xf32>
    %178 = tpu.matmul %177, %126, %cst_124 {dimension_numbers = #tpu.dot_dimension_numbers<[1], [0], [0], [1], [0, 0, 1, 1], [], []>} : vector<8x8xf32>, vector<8x32xf32>, vector<8x32xf32> -> vector<8x32xf32>
    %179 = arith.addf %112, %178 : vector<8x32xf32>
    %c0_125 = arith.constant 0 : index
    %c2 = arith.constant 2 : index
    %c0_126 = arith.constant 0 : index
    %c0_127 = arith.constant 0 : index
    %180 = vector.load %arg5[%c0_125, %c2, %c0_126, %c0_127] : memref<2x4x32x8xf32, #tpu.memory_space<vmem>>, vector<1x1x32x8xf32>
    %181 = vector.shape_cast %180 : vector<1x1x32x8xf32> to vector<32x8xf32>
    %c0_128 = arith.constant 0 : index
    %c2_129 = arith.constant 2 : index
    %c0_130 = arith.constant 0 : index
    %c0_131 = arith.constant 0 : index
    %182 = vector.load %arg6[%c0_128, %c2_129, %c0_130, %c0_131] : memref<2x4x1x8xf32, #tpu.memory_space<vmem>>, vector<1x1x1x8xf32>
    %183 = vector.shape_cast %182 : vector<1x1x1x8xf32> to vector<1x8xf32>
    %c0_132 = arith.constant 0 : index
    %c2_133 = arith.constant 2 : index
    %c0_134 = arith.constant 0 : index
    %c0_135 = arith.constant 0 : index
    %184 = vector.load %arg7[%c0_132, %c2_133, %c0_134, %c0_135] : memref<2x4x32x8xf32, #tpu.memory_space<vmem>>, vector<1x1x32x8xf32>
    %185 = vector.shape_cast %184 : vector<1x1x32x8xf32> to vector<32x8xf32>
    %c0_136 = arith.constant 0 : index
    %c2_137 = arith.constant 2 : index
    %c0_138 = arith.constant 0 : index
    %c0_139 = arith.constant 0 : index
    %186 = vector.load %arg8[%c0_136, %c2_137, %c0_138, %c0_139] : memref<2x4x1x8xf32, #tpu.memory_space<vmem>>, vector<1x1x1x8xf32>
    %187 = vector.shape_cast %186 : vector<1x1x1x8xf32> to vector<1x8xf32>
    %c0_140 = arith.constant 0 : index
    %c2_141 = arith.constant 2 : index
    %c0_142 = arith.constant 0 : index
    %c0_143 = arith.constant 0 : index
    %188 = vector.load %arg9[%c0_140, %c2_141, %c0_142, %c0_143] : memref<2x4x32x8xf32, #tpu.memory_space<vmem>>, vector<1x1x32x8xf32>
    %189 = vector.shape_cast %188 : vector<1x1x32x8xf32> to vector<32x8xf32>
    %c0_144 = arith.constant 0 : index
    %c2_145 = arith.constant 2 : index
    %c0_146 = arith.constant 0 : index
    %c0_147 = arith.constant 0 : index
    %190 = vector.load %arg10[%c0_144, %c2_145, %c0_146, %c0_147] : memref<2x4x1x8xf32, #tpu.memory_space<vmem>>, vector<1x1x1x8xf32>
    %191 = vector.shape_cast %190 : vector<1x1x1x8xf32> to vector<1x8xf32>
    %c0_148 = arith.constant 0 : index
    %c2_149 = arith.constant 2 : index
    %c0_150 = arith.constant 0 : index
    %c0_151 = arith.constant 0 : index
    %192 = vector.load %arg11[%c0_148, %c2_149, %c0_150, %c0_151] : memref<2x4x8x32xf32, #tpu.memory_space<vmem>>, vector<1x1x8x32xf32>
    %193 = vector.shape_cast %192 : vector<1x1x8x32xf32> to vector<8x32xf32>
    %cst_152 = arith.constant dense<0.000000e+00> : vector<16x8xf32>
    %194 = tpu.matmul %24, %181, %cst_152 {dimension_numbers = #tpu.dot_dimension_numbers<[1], [0], [0], [1], [0, 0, 1, 1], [], []>} : vector<16x32xf32>, vector<32x8xf32>, vector<16x8xf32> -> vector<16x8xf32>
    %195 = vector.broadcast %183 : vector<1x8xf32> to vector<16x8xf32>
    %196 = arith.addf %194, %195 : vector<16x8xf32>
    %cst_153 = arith.constant dense<0.000000e+00> : vector<16x8xf32>
    %197 = tpu.matmul %24, %185, %cst_153 {dimension_numbers = #tpu.dot_dimension_numbers<[1], [0], [0], [1], [0, 0, 1, 1], [], []>} : vector<16x32xf32>, vector<32x8xf32>, vector<16x8xf32> -> vector<16x8xf32>
    %198 = vector.broadcast %187 : vector<1x8xf32> to vector<16x8xf32>
    %199 = arith.addf %197, %198 : vector<16x8xf32>
    %cst_154 = arith.constant dense<0.000000e+00> : vector<16x8xf32>
    %200 = tpu.matmul %24, %189, %cst_154 {dimension_numbers = #tpu.dot_dimension_numbers<[1], [0], [0], [1], [0, 0, 1, 1], [], []>} : vector<16x32xf32>, vector<32x8xf32>, vector<16x8xf32> -> vector<16x8xf32>
    %201 = vector.broadcast %191 : vector<1x8xf32> to vector<16x8xf32>
    %202 = arith.addf %200, %201 : vector<16x8xf32>
    %203 = vector.extract_strided_slice %196 {offsets = [0, 0], sizes = [8, 8], strides = [1, 1]} : vector<16x8xf32> to vector<8x8xf32>
    %204 = vector.extract_strided_slice %199 {offsets = [0, 0], sizes = [8, 8], strides = [1, 1]} : vector<16x8xf32> to vector<8x8xf32>
    %205 = vector.extract_strided_slice %202 {offsets = [0, 0], sizes = [8, 8], strides = [1, 1]} : vector<16x8xf32> to vector<8x8xf32>
    %cst_155 = arith.constant dense<0.000000e+00> : vector<8x8xf32>
    %206 = tpu.matmul %203, %204, %cst_155 {dimension_numbers = #tpu.dot_dimension_numbers<[1], [1], [0], [0], [0, 0, 1, 0], [], []>} : vector<8x8xf32>, vector<8x8xf32>, vector<8x8xf32> -> vector<8x8xf32>
    %cst_156 = arith.constant 0.353553385 : f32
    %207 = vector.broadcast %cst_156 : f32 to vector<8x8xf32>
    %208 = arith.mulf %206, %207 : vector<8x8xf32>
    %209 = vector.extract_strided_slice %29 {offsets = [0, 0], sizes = [1, 8], strides = [1, 1]} : vector<2x8xf32> to vector<1x8xf32>
    %210 = vector.broadcast %209 : vector<1x8xf32> to vector<8x8xf32>
    %211 = arith.addf %208, %210 : vector<8x8xf32>
    %cst_157 = arith.constant dense<0xFF800000> : vector<8xf32>
    %212 = vector.multi_reduction <maximumf>, %211, %cst_157 [1] : vector<8x8xf32> to vector<8xf32>
    %213 = vector.shape_cast %212 : vector<8xf32> to vector<8x1xf32>
    %214 = vector.broadcast %213 : vector<8x1xf32> to vector<8x8xf32>
    %215 = arith.subf %211, %214 : vector<8x8xf32>
    %216 = math.exp %215 : vector<8x8xf32>
    %cst_158 = arith.constant dense<0.000000e+00> : vector<8xf32>
    %217 = vector.multi_reduction <add>, %216, %cst_158 [1] : vector<8x8xf32> to vector<8xf32>
    %218 = vector.shape_cast %217 : vector<8xf32> to vector<8x1xf32>
    %219 = tpu.reciprocal %218 {approx = true} : vector<8x1xf32> -> vector<8x1xf32>
    %220 = vector.broadcast %219 : vector<8x1xf32> to vector<8x8xf32>
    %221 = arith.mulf %216, %220 : vector<8x8xf32>
    %cst_159 = arith.constant dense<0.000000e+00> : vector<8x8xf32>
    %222 = tpu.matmul %221, %205, %cst_159 {dimension_numbers = #tpu.dot_dimension_numbers<[1], [0], [0], [1], [0, 0, 1, 1], [], []>} : vector<8x8xf32>, vector<8x8xf32>, vector<8x8xf32> -> vector<8x8xf32>
    %cst_160 = arith.constant dense<0.000000e+00> : vector<8x32xf32>
    %223 = tpu.matmul %222, %193, %cst_160 {dimension_numbers = #tpu.dot_dimension_numbers<[1], [0], [0], [1], [0, 0, 1, 1], [], []>} : vector<8x8xf32>, vector<8x32xf32>, vector<8x32xf32> -> vector<8x32xf32>
    %224 = arith.addf %157, %223 : vector<8x32xf32>
    %225 = vector.extract_strided_slice %196 {offsets = [8, 0], sizes = [8, 8], strides = [1, 1]} : vector<16x8xf32> to vector<8x8xf32>
    %226 = vector.extract_strided_slice %199 {offsets = [8, 0], sizes = [8, 8], strides = [1, 1]} : vector<16x8xf32> to vector<8x8xf32>
    %227 = vector.extract_strided_slice %202 {offsets = [8, 0], sizes = [8, 8], strides = [1, 1]} : vector<16x8xf32> to vector<8x8xf32>
    %cst_161 = arith.constant dense<0.000000e+00> : vector<8x8xf32>
    %228 = tpu.matmul %225, %226, %cst_161 {dimension_numbers = #tpu.dot_dimension_numbers<[1], [1], [0], [0], [0, 0, 1, 0], [], []>} : vector<8x8xf32>, vector<8x8xf32>, vector<8x8xf32> -> vector<8x8xf32>
    %cst_162 = arith.constant 0.353553385 : f32
    %229 = vector.broadcast %cst_162 : f32 to vector<8x8xf32>
    %230 = arith.mulf %228, %229 : vector<8x8xf32>
    %231 = vector.extract_strided_slice %29 {offsets = [1, 0], sizes = [1, 8], strides = [1, 1]} : vector<2x8xf32> to vector<1x8xf32>
    %232 = vector.broadcast %231 : vector<1x8xf32> to vector<8x8xf32>
    %233 = arith.addf %230, %232 : vector<8x8xf32>
    %cst_163 = arith.constant dense<0xFF800000> : vector<8xf32>
    %234 = vector.multi_reduction <maximumf>, %233, %cst_163 [1] : vector<8x8xf32> to vector<8xf32>
    %235 = vector.shape_cast %234 : vector<8xf32> to vector<8x1xf32>
    %236 = vector.broadcast %235 : vector<8x1xf32> to vector<8x8xf32>
    %237 = arith.subf %233, %236 : vector<8x8xf32>
    %238 = math.exp %237 : vector<8x8xf32>
    %cst_164 = arith.constant dense<0.000000e+00> : vector<8xf32>
    %239 = vector.multi_reduction <add>, %238, %cst_164 [1] : vector<8x8xf32> to vector<8xf32>
    %240 = vector.shape_cast %239 : vector<8xf32> to vector<8x1xf32>
    %241 = tpu.reciprocal %240 {approx = true} : vector<8x1xf32> -> vector<8x1xf32>
    %242 = vector.broadcast %241 : vector<8x1xf32> to vector<8x8xf32>
    %243 = arith.mulf %238, %242 : vector<8x8xf32>
    %cst_165 = arith.constant dense<0.000000e+00> : vector<8x8xf32>
    %244 = tpu.matmul %243, %227, %cst_165 {dimension_numbers = #tpu.dot_dimension_numbers<[1], [0], [0], [1], [0, 0, 1, 1], [], []>} : vector<8x8xf32>, vector<8x8xf32>, vector<8x8xf32> -> vector<8x8xf32>
    %cst_166 = arith.constant dense<0.000000e+00> : vector<8x32xf32>
    %245 = tpu.matmul %244, %193, %cst_166 {dimension_numbers = #tpu.dot_dimension_numbers<[1], [0], [0], [1], [0, 0, 1, 1], [], []>} : vector<8x8xf32>, vector<8x32xf32>, vector<8x32xf32> -> vector<8x32xf32>
    %246 = arith.addf %179, %245 : vector<8x32xf32>
    %c0_167 = arith.constant 0 : index
    %c3 = arith.constant 3 : index
    %c0_168 = arith.constant 0 : index
    %c0_169 = arith.constant 0 : index
    %247 = vector.load %arg5[%c0_167, %c3, %c0_168, %c0_169] : memref<2x4x32x8xf32, #tpu.memory_space<vmem>>, vector<1x1x32x8xf32>
    %248 = vector.shape_cast %247 : vector<1x1x32x8xf32> to vector<32x8xf32>
    %c0_170 = arith.constant 0 : index
    %c3_171 = arith.constant 3 : index
    %c0_172 = arith.constant 0 : index
    %c0_173 = arith.constant 0 : index
    %249 = vector.load %arg6[%c0_170, %c3_171, %c0_172, %c0_173] : memref<2x4x1x8xf32, #tpu.memory_space<vmem>>, vector<1x1x1x8xf32>
    %250 = vector.shape_cast %249 : vector<1x1x1x8xf32> to vector<1x8xf32>
    %c0_174 = arith.constant 0 : index
    %c3_175 = arith.constant 3 : index
    %c0_176 = arith.constant 0 : index
    %c0_177 = arith.constant 0 : index
    %251 = vector.load %arg7[%c0_174, %c3_175, %c0_176, %c0_177] : memref<2x4x32x8xf32, #tpu.memory_space<vmem>>, vector<1x1x32x8xf32>
    %252 = vector.shape_cast %251 : vector<1x1x32x8xf32> to vector<32x8xf32>
    %c0_178 = arith.constant 0 : index
    %c3_179 = arith.constant 3 : index
    %c0_180 = arith.constant 0 : index
    %c0_181 = arith.constant 0 : index
    %253 = vector.load %arg8[%c0_178, %c3_179, %c0_180, %c0_181] : memref<2x4x1x8xf32, #tpu.memory_space<vmem>>, vector<1x1x1x8xf32>
    %254 = vector.shape_cast %253 : vector<1x1x1x8xf32> to vector<1x8xf32>
    %c0_182 = arith.constant 0 : index
    %c3_183 = arith.constant 3 : index
    %c0_184 = arith.constant 0 : index
    %c0_185 = arith.constant 0 : index
    %255 = vector.load %arg9[%c0_182, %c3_183, %c0_184, %c0_185] : memref<2x4x32x8xf32, #tpu.memory_space<vmem>>, vector<1x1x32x8xf32>
    %256 = vector.shape_cast %255 : vector<1x1x32x8xf32> to vector<32x8xf32>
    %c0_186 = arith.constant 0 : index
    %c3_187 = arith.constant 3 : index
    %c0_188 = arith.constant 0 : index
    %c0_189 = arith.constant 0 : index
    %257 = vector.load %arg10[%c0_186, %c3_187, %c0_188, %c0_189] : memref<2x4x1x8xf32, #tpu.memory_space<vmem>>, vector<1x1x1x8xf32>
    %258 = vector.shape_cast %257 : vector<1x1x1x8xf32> to vector<1x8xf32>
    %c0_190 = arith.constant 0 : index
    %c3_191 = arith.constant 3 : index
    %c0_192 = arith.constant 0 : index
    %c0_193 = arith.constant 0 : index
    %259 = vector.load %arg11[%c0_190, %c3_191, %c0_192, %c0_193] : memref<2x4x8x32xf32, #tpu.memory_space<vmem>>, vector<1x1x8x32xf32>
    %260 = vector.shape_cast %259 : vector<1x1x8x32xf32> to vector<8x32xf32>
    %cst_194 = arith.constant dense<0.000000e+00> : vector<16x8xf32>
    %261 = tpu.matmul %24, %248, %cst_194 {dimension_numbers = #tpu.dot_dimension_numbers<[1], [0], [0], [1], [0, 0, 1, 1], [], []>} : vector<16x32xf32>, vector<32x8xf32>, vector<16x8xf32> -> vector<16x8xf32>
    %262 = vector.broadcast %250 : vector<1x8xf32> to vector<16x8xf32>
    %263 = arith.addf %261, %262 : vector<16x8xf32>
    %cst_195 = arith.constant dense<0.000000e+00> : vector<16x8xf32>
    %264 = tpu.matmul %24, %252, %cst_195 {dimension_numbers = #tpu.dot_dimension_numbers<[1], [0], [0], [1], [0, 0, 1, 1], [], []>} : vector<16x32xf32>, vector<32x8xf32>, vector<16x8xf32> -> vector<16x8xf32>
    %265 = vector.broadcast %254 : vector<1x8xf32> to vector<16x8xf32>
    %266 = arith.addf %264, %265 : vector<16x8xf32>
    %cst_196 = arith.constant dense<0.000000e+00> : vector<16x8xf32>
    %267 = tpu.matmul %24, %256, %cst_196 {dimension_numbers = #tpu.dot_dimension_numbers<[1], [0], [0], [1], [0, 0, 1, 1], [], []>} : vector<16x32xf32>, vector<32x8xf32>, vector<16x8xf32> -> vector<16x8xf32>
    %268 = vector.broadcast %258 : vector<1x8xf32> to vector<16x8xf32>
    %269 = arith.addf %267, %268 : vector<16x8xf32>
    %270 = vector.extract_strided_slice %263 {offsets = [0, 0], sizes = [8, 8], strides = [1, 1]} : vector<16x8xf32> to vector<8x8xf32>
    %271 = vector.extract_strided_slice %266 {offsets = [0, 0], sizes = [8, 8], strides = [1, 1]} : vector<16x8xf32> to vector<8x8xf32>
    %272 = vector.extract_strided_slice %269 {offsets = [0, 0], sizes = [8, 8], strides = [1, 1]} : vector<16x8xf32> to vector<8x8xf32>
    %cst_197 = arith.constant dense<0.000000e+00> : vector<8x8xf32>
    %273 = tpu.matmul %270, %271, %cst_197 {dimension_numbers = #tpu.dot_dimension_numbers<[1], [1], [0], [0], [0, 0, 1, 0], [], []>} : vector<8x8xf32>, vector<8x8xf32>, vector<8x8xf32> -> vector<8x8xf32>
    %cst_198 = arith.constant 0.353553385 : f32
    %274 = vector.broadcast %cst_198 : f32 to vector<8x8xf32>
    %275 = arith.mulf %273, %274 : vector<8x8xf32>
    %276 = vector.extract_strided_slice %29 {offsets = [0, 0], sizes = [1, 8], strides = [1, 1]} : vector<2x8xf32> to vector<1x8xf32>
    %277 = vector.broadcast %276 : vector<1x8xf32> to vector<8x8xf32>
    %278 = arith.addf %275, %277 : vector<8x8xf32>
    %cst_199 = arith.constant dense<0xFF800000> : vector<8xf32>
    %279 = vector.multi_reduction <maximumf>, %278, %cst_199 [1] : vector<8x8xf32> to vector<8xf32>
    %280 = vector.shape_cast %279 : vector<8xf32> to vector<8x1xf32>
    %281 = vector.broadcast %280 : vector<8x1xf32> to vector<8x8xf32>
    %282 = arith.subf %278, %281 : vector<8x8xf32>
    %283 = math.exp %282 : vector<8x8xf32>
    %cst_200 = arith.constant dense<0.000000e+00> : vector<8xf32>
    %284 = vector.multi_reduction <add>, %283, %cst_200 [1] : vector<8x8xf32> to vector<8xf32>
    %285 = vector.shape_cast %284 : vector<8xf32> to vector<8x1xf32>
    %286 = tpu.reciprocal %285 {approx = true} : vector<8x1xf32> -> vector<8x1xf32>
    %287 = vector.broadcast %286 : vector<8x1xf32> to vector<8x8xf32>
    %288 = arith.mulf %283, %287 : vector<8x8xf32>
    %cst_201 = arith.constant dense<0.000000e+00> : vector<8x8xf32>
    %289 = tpu.matmul %288, %272, %cst_201 {dimension_numbers = #tpu.dot_dimension_numbers<[1], [0], [0], [1], [0, 0, 1, 1], [], []>} : vector<8x8xf32>, vector<8x8xf32>, vector<8x8xf32> -> vector<8x8xf32>
    %cst_202 = arith.constant dense<0.000000e+00> : vector<8x32xf32>
    %290 = tpu.matmul %289, %260, %cst_202 {dimension_numbers = #tpu.dot_dimension_numbers<[1], [0], [0], [1], [0, 0, 1, 1], [], []>} : vector<8x8xf32>, vector<8x32xf32>, vector<8x32xf32> -> vector<8x32xf32>
    %291 = arith.addf %224, %290 : vector<8x32xf32>
    %292 = vector.extract_strided_slice %263 {offsets = [8, 0], sizes = [8, 8], strides = [1, 1]} : vector<16x8xf32> to vector<8x8xf32>
    %293 = vector.extract_strided_slice %266 {offsets = [8, 0], sizes = [8, 8], strides = [1, 1]} : vector<16x8xf32> to vector<8x8xf32>
    %294 = vector.extract_strided_slice %269 {offsets = [8, 0], sizes = [8, 8], strides = [1, 1]} : vector<16x8xf32> to vector<8x8xf32>
    %cst_203 = arith.constant dense<0.000000e+00> : vector<8x8xf32>
    %295 = tpu.matmul %292, %293, %cst_203 {dimension_numbers = #tpu.dot_dimension_numbers<[1], [1], [0], [0], [0, 0, 1, 0], [], []>} : vector<8x8xf32>, vector<8x8xf32>, vector<8x8xf32> -> vector<8x8xf32>
    %cst_204 = arith.constant 0.353553385 : f32
    %296 = vector.broadcast %cst_204 : f32 to vector<8x8xf32>
    %297 = arith.mulf %295, %296 : vector<8x8xf32>
    %298 = vector.extract_strided_slice %29 {offsets = [1, 0], sizes = [1, 8], strides = [1, 1]} : vector<2x8xf32> to vector<1x8xf32>
    %299 = vector.broadcast %298 : vector<1x8xf32> to vector<8x8xf32>
    %300 = arith.addf %297, %299 : vector<8x8xf32>
    %cst_205 = arith.constant dense<0xFF800000> : vector<8xf32>
    %301 = vector.multi_reduction <maximumf>, %300, %cst_205 [1] : vector<8x8xf32> to vector<8xf32>
    %302 = vector.shape_cast %301 : vector<8xf32> to vector<8x1xf32>
    %303 = vector.broadcast %302 : vector<8x1xf32> to vector<8x8xf32>
    %304 = arith.subf %300, %303 : vector<8x8xf32>
    %305 = math.exp %304 : vector<8x8xf32>
    %cst_206 = arith.constant dense<0.000000e+00> : vector<8xf32>
    %306 = vector.multi_reduction <add>, %305, %cst_206 [1] : vector<8x8xf32> to vector<8xf32>
    %307 = vector.shape_cast %306 : vector<8xf32> to vector<8x1xf32>
    %308 = tpu.reciprocal %307 {approx = true} : vector<8x1xf32> -> vector<8x1xf32>
    %309 = vector.broadcast %308 : vector<8x1xf32> to vector<8x8xf32>
    %310 = arith.mulf %305, %309 : vector<8x8xf32>
    %cst_207 = arith.constant dense<0.000000e+00> : vector<8x8xf32>
    %311 = tpu.matmul %310, %294, %cst_207 {dimension_numbers = #tpu.dot_dimension_numbers<[1], [0], [0], [1], [0, 0, 1, 1], [], []>} : vector<8x8xf32>, vector<8x8xf32>, vector<8x8xf32> -> vector<8x8xf32>
    %cst_208 = arith.constant dense<0.000000e+00> : vector<8x32xf32>
    %312 = tpu.matmul %311, %260, %cst_208 {dimension_numbers = #tpu.dot_dimension_numbers<[1], [0], [0], [1], [0, 0, 1, 1], [], []>} : vector<8x8xf32>, vector<8x32xf32>, vector<8x32xf32> -> vector<8x32xf32>
    %313 = arith.addf %246, %312 : vector<8x32xf32>
    %314 = tpu.concatenate %291, %313 in 0 : vector<8x32xf32>, vector<8x32xf32> -> vector<16x32xf32>
    %315 = vector.broadcast %31 : vector<1x32xf32> to vector<16x32xf32>
    %316 = arith.addf %314, %315 : vector<16x32xf32>
    %317 = arith.addf %24, %316 : vector<16x32xf32>
    %cst_209 = arith.constant dense<0.000000e+00> : vector<16xf32>
    %318 = vector.multi_reduction <add>, %317, %cst_209 [1] : vector<16x32xf32> to vector<16xf32>
    %319 = vector.shape_cast %318 : vector<16xf32> to vector<16x1xf32>
    %cst_210 = arith.constant 3.200000e+01 : f32
    %320 = vector.broadcast %cst_210 : f32 to vector<16x1xf32>
    %321 = arith.divf %319, %320 : vector<16x1xf32>
    %322 = vector.broadcast %321 : vector<16x1xf32> to vector<16x32xf32>
    %323 = arith.subf %317, %322 : vector<16x32xf32>
    %324 = arith.mulf %323, %323 : vector<16x32xf32>
    %cst_211 = arith.constant dense<0.000000e+00> : vector<16xf32>
    %325 = vector.multi_reduction <add>, %324, %cst_211 [1] : vector<16x32xf32> to vector<16xf32>
    %326 = vector.shape_cast %325 : vector<16xf32> to vector<16x1xf32>
    %cst_212 = arith.constant 3.200000e+01 : f32
    %327 = vector.broadcast %cst_212 : f32 to vector<16x1xf32>
    %328 = arith.divf %326, %327 : vector<16x1xf32>
    %329 = vector.broadcast %321 : vector<16x1xf32> to vector<16x32xf32>
    %330 = arith.subf %317, %329 : vector<16x32xf32>
    %cst_213 = arith.constant 9.99999996E-13 : f32
    %331 = vector.broadcast %cst_213 : f32 to vector<16x1xf32>
    %332 = arith.addf %328, %331 : vector<16x1xf32>
    %333 = math.rsqrt %332 : vector<16x1xf32>
    %334 = vector.broadcast %333 : vector<16x1xf32> to vector<16x32xf32>
    %335 = arith.mulf %330, %334 : vector<16x32xf32>
    %336 = vector.broadcast %33 : vector<1x32xf32> to vector<16x32xf32>
    %337 = arith.mulf %335, %336 : vector<16x32xf32>
    %338 = vector.broadcast %35 : vector<1x32xf32> to vector<16x32xf32>
    %339 = arith.addf %337, %338 : vector<16x32xf32>
    %cst_214 = arith.constant dense<0.000000e+00> : vector<16x64xf32>
    %340 = tpu.matmul %339, %37, %cst_214 {dimension_numbers = #tpu.dot_dimension_numbers<[1], [0], [0], [1], [0, 0, 1, 1], [], []>} : vector<16x32xf32>, vector<32x64xf32>, vector<16x64xf32> -> vector<16x64xf32>
    %341 = vector.broadcast %39 : vector<1x64xf32> to vector<16x64xf32>
    %342 = arith.addf %340, %341 : vector<16x64xf32>
    %cst_215 = arith.constant 5.000000e-01 : f32
    %343 = vector.broadcast %cst_215 : f32 to vector<16x64xf32>
    %344 = arith.mulf %343, %342 : vector<16x64xf32>
    %cst_216 = arith.constant 4.471500e-02 : f32
    %345 = vector.broadcast %cst_216 : f32 to vector<16x64xf32>
    %346 = arith.mulf %345, %342 : vector<16x64xf32>
    %347 = arith.mulf %346, %342 : vector<16x64xf32>
    %348 = arith.mulf %347, %342 : vector<16x64xf32>
    %349 = arith.addf %342, %348 : vector<16x64xf32>
    %cst_217 = arith.constant 0.797884583 : f32
    %350 = vector.broadcast %cst_217 : f32 to vector<16x64xf32>
    %351 = arith.mulf %350, %349 : vector<16x64xf32>
    %352 = math.tanh %351 : vector<16x64xf32>
    %cst_218 = arith.constant 1.000000e+00 : f32
    %353 = vector.broadcast %cst_218 : f32 to vector<16x64xf32>
    %354 = arith.addf %353, %352 : vector<16x64xf32>
    %355 = arith.mulf %344, %354 : vector<16x64xf32>
    %cst_219 = arith.constant dense<0.000000e+00> : vector<16x32xf32>
    %356 = tpu.matmul %355, %41, %cst_219 {dimension_numbers = #tpu.dot_dimension_numbers<[1], [0], [0], [1], [0, 0, 1, 1], [], []>} : vector<16x64xf32>, vector<64x32xf32>, vector<16x32xf32> -> vector<16x32xf32>
    %357 = vector.broadcast %43 : vector<1x32xf32> to vector<16x32xf32>
    %358 = arith.addf %356, %357 : vector<16x32xf32>
    %359 = arith.addf %339, %358 : vector<16x32xf32>
    %cst_220 = arith.constant dense<0.000000e+00> : vector<16xf32>
    %360 = vector.multi_reduction <add>, %359, %cst_220 [1] : vector<16x32xf32> to vector<16xf32>
    %361 = vector.shape_cast %360 : vector<16xf32> to vector<16x1xf32>
    %cst_221 = arith.constant 3.200000e+01 : f32
    %362 = vector.broadcast %cst_221 : f32 to vector<16x1xf32>
    %363 = arith.divf %361, %362 : vector<16x1xf32>
    %364 = vector.broadcast %363 : vector<16x1xf32> to vector<16x32xf32>
    %365 = arith.subf %359, %364 : vector<16x32xf32>
    %366 = arith.mulf %365, %365 : vector<16x32xf32>
    %cst_222 = arith.constant dense<0.000000e+00> : vector<16xf32>
    %367 = vector.multi_reduction <add>, %366, %cst_222 [1] : vector<16x32xf32> to vector<16xf32>
    %368 = vector.shape_cast %367 : vector<16xf32> to vector<16x1xf32>
    %cst_223 = arith.constant 3.200000e+01 : f32
    %369 = vector.broadcast %cst_223 : f32 to vector<16x1xf32>
    %370 = arith.divf %368, %369 : vector<16x1xf32>
    %371 = vector.broadcast %363 : vector<16x1xf32> to vector<16x32xf32>
    %372 = arith.subf %359, %371 : vector<16x32xf32>
    %cst_224 = arith.constant 9.99999996E-13 : f32
    %373 = vector.broadcast %cst_224 : f32 to vector<16x1xf32>
    %374 = arith.addf %370, %373 : vector<16x1xf32>
    %375 = math.rsqrt %374 : vector<16x1xf32>
    %376 = vector.broadcast %375 : vector<16x1xf32> to vector<16x32xf32>
    %377 = arith.mulf %372, %376 : vector<16x32xf32>
    %378 = vector.broadcast %45 : vector<1x32xf32> to vector<16x32xf32>
    %379 = arith.mulf %377, %378 : vector<16x32xf32>
    %380 = vector.broadcast %47 : vector<1x32xf32> to vector<16x32xf32>
    %381 = arith.addf %379, %380 : vector<16x32xf32>
    %c1_225 = arith.constant 1 : index
    %c0_226 = arith.constant 0 : index
    %c0_227 = arith.constant 0 : index
    %382 = vector.load %arg12[%c1_225, %c0_226, %c0_227] : memref<2x1x32xf32, #tpu.memory_space<vmem>>, vector<1x1x32xf32>
    %383 = vector.shape_cast %382 : vector<1x1x32xf32> to vector<1x32xf32>
    %c1_228 = arith.constant 1 : index
    %c0_229 = arith.constant 0 : index
    %c0_230 = arith.constant 0 : index
    %384 = vector.load %arg13[%c1_228, %c0_229, %c0_230] : memref<2x1x32xf32, #tpu.memory_space<vmem>>, vector<1x1x32xf32>
    %385 = vector.shape_cast %384 : vector<1x1x32xf32> to vector<1x32xf32>
    %c1_231 = arith.constant 1 : index
    %c0_232 = arith.constant 0 : index
    %c0_233 = arith.constant 0 : index
    %386 = vector.load %arg14[%c1_231, %c0_232, %c0_233] : memref<2x1x32xf32, #tpu.memory_space<vmem>>, vector<1x1x32xf32>
    %387 = vector.shape_cast %386 : vector<1x1x32xf32> to vector<1x32xf32>
    %c1_234 = arith.constant 1 : index
    %c0_235 = arith.constant 0 : index
    %c0_236 = arith.constant 0 : index
    %388 = vector.load %arg15[%c1_234, %c0_235, %c0_236] : memref<2x32x64xf32, #tpu.memory_space<vmem>>, vector<1x32x64xf32>
    %389 = vector.shape_cast %388 : vector<1x32x64xf32> to vector<32x64xf32>
    %c1_237 = arith.constant 1 : index
    %c0_238 = arith.constant 0 : index
    %c0_239 = arith.constant 0 : index
    %390 = vector.load %arg16[%c1_237, %c0_238, %c0_239] : memref<2x1x64xf32, #tpu.memory_space<vmem>>, vector<1x1x64xf32>
    %391 = vector.shape_cast %390 : vector<1x1x64xf32> to vector<1x64xf32>
    %c1_240 = arith.constant 1 : index
    %c0_241 = arith.constant 0 : index
    %c0_242 = arith.constant 0 : index
    %392 = vector.load %arg17[%c1_240, %c0_241, %c0_242] : memref<2x64x32xf32, #tpu.memory_space<vmem>>, vector<1x64x32xf32>
    %393 = vector.shape_cast %392 : vector<1x64x32xf32> to vector<64x32xf32>
    %c1_243 = arith.constant 1 : index
    %c0_244 = arith.constant 0 : index
    %c0_245 = arith.constant 0 : index
    %394 = vector.load %arg18[%c1_243, %c0_244, %c0_245] : memref<2x1x32xf32, #tpu.memory_space<vmem>>, vector<1x1x32xf32>
    %395 = vector.shape_cast %394 : vector<1x1x32xf32> to vector<1x32xf32>
    %c1_246 = arith.constant 1 : index
    %c0_247 = arith.constant 0 : index
    %c0_248 = arith.constant 0 : index
    %396 = vector.load %arg19[%c1_246, %c0_247, %c0_248] : memref<2x1x32xf32, #tpu.memory_space<vmem>>, vector<1x1x32xf32>
    %397 = vector.shape_cast %396 : vector<1x1x32xf32> to vector<1x32xf32>
    %c1_249 = arith.constant 1 : index
    %c0_250 = arith.constant 0 : index
    %c0_251 = arith.constant 0 : index
    %398 = vector.load %arg20[%c1_249, %c0_250, %c0_251] : memref<2x1x32xf32, #tpu.memory_space<vmem>>, vector<1x1x32xf32>
    %399 = vector.shape_cast %398 : vector<1x1x32xf32> to vector<1x32xf32>
    %c1_252 = arith.constant 1 : index
    %c0_253 = arith.constant 0 : index
    %c0_254 = arith.constant 0 : index
    %c0_255 = arith.constant 0 : index
    %400 = vector.load %arg5[%c1_252, %c0_253, %c0_254, %c0_255] : memref<2x4x32x8xf32, #tpu.memory_space<vmem>>, vector<1x1x32x8xf32>
    %401 = vector.shape_cast %400 : vector<1x1x32x8xf32> to vector<32x8xf32>
    %c1_256 = arith.constant 1 : index
    %c0_257 = arith.constant 0 : index
    %c0_258 = arith.constant 0 : index
    %c0_259 = arith.constant 0 : index
    %402 = vector.load %arg6[%c1_256, %c0_257, %c0_258, %c0_259] : memref<2x4x1x8xf32, #tpu.memory_space<vmem>>, vector<1x1x1x8xf32>
    %403 = vector.shape_cast %402 : vector<1x1x1x8xf32> to vector<1x8xf32>
    %c1_260 = arith.constant 1 : index
    %c0_261 = arith.constant 0 : index
    %c0_262 = arith.constant 0 : index
    %c0_263 = arith.constant 0 : index
    %404 = vector.load %arg7[%c1_260, %c0_261, %c0_262, %c0_263] : memref<2x4x32x8xf32, #tpu.memory_space<vmem>>, vector<1x1x32x8xf32>
    %405 = vector.shape_cast %404 : vector<1x1x32x8xf32> to vector<32x8xf32>
    %c1_264 = arith.constant 1 : index
    %c0_265 = arith.constant 0 : index
    %c0_266 = arith.constant 0 : index
    %c0_267 = arith.constant 0 : index
    %406 = vector.load %arg8[%c1_264, %c0_265, %c0_266, %c0_267] : memref<2x4x1x8xf32, #tpu.memory_space<vmem>>, vector<1x1x1x8xf32>
    %407 = vector.shape_cast %406 : vector<1x1x1x8xf32> to vector<1x8xf32>
    %c1_268 = arith.constant 1 : index
    %c0_269 = arith.constant 0 : index
    %c0_270 = arith.constant 0 : index
    %c0_271 = arith.constant 0 : index
    %408 = vector.load %arg9[%c1_268, %c0_269, %c0_270, %c0_271] : memref<2x4x32x8xf32, #tpu.memory_space<vmem>>, vector<1x1x32x8xf32>
    %409 = vector.shape_cast %408 : vector<1x1x32x8xf32> to vector<32x8xf32>
    %c1_272 = arith.constant 1 : index
    %c0_273 = arith.constant 0 : index
    %c0_274 = arith.constant 0 : index
    %c0_275 = arith.constant 0 : index
    %410 = vector.load %arg10[%c1_272, %c0_273, %c0_274, %c0_275] : memref<2x4x1x8xf32, #tpu.memory_space<vmem>>, vector<1x1x1x8xf32>
    %411 = vector.shape_cast %410 : vector<1x1x1x8xf32> to vector<1x8xf32>
    %c1_276 = arith.constant 1 : index
    %c0_277 = arith.constant 0 : index
    %c0_278 = arith.constant 0 : index
    %c0_279 = arith.constant 0 : index
    %412 = vector.load %arg11[%c1_276, %c0_277, %c0_278, %c0_279] : memref<2x4x8x32xf32, #tpu.memory_space<vmem>>, vector<1x1x8x32xf32>
    %413 = vector.shape_cast %412 : vector<1x1x8x32xf32> to vector<8x32xf32>
    %cst_280 = arith.constant dense<0.000000e+00> : vector<16x8xf32>
    %414 = tpu.matmul %381, %401, %cst_280 {dimension_numbers = #tpu.dot_dimension_numbers<[1], [0], [0], [1], [0, 0, 1, 1], [], []>} : vector<16x32xf32>, vector<32x8xf32>, vector<16x8xf32> -> vector<16x8xf32>
    %415 = vector.broadcast %403 : vector<1x8xf32> to vector<16x8xf32>
    %416 = arith.addf %414, %415 : vector<16x8xf32>
    %cst_281 = arith.constant dense<0.000000e+00> : vector<16x8xf32>
    %417 = tpu.matmul %381, %405, %cst_281 {dimension_numbers = #tpu.dot_dimension_numbers<[1], [0], [0], [1], [0, 0, 1, 1], [], []>} : vector<16x32xf32>, vector<32x8xf32>, vector<16x8xf32> -> vector<16x8xf32>
    %418 = vector.broadcast %407 : vector<1x8xf32> to vector<16x8xf32>
    %419 = arith.addf %417, %418 : vector<16x8xf32>
    %cst_282 = arith.constant dense<0.000000e+00> : vector<16x8xf32>
    %420 = tpu.matmul %381, %409, %cst_282 {dimension_numbers = #tpu.dot_dimension_numbers<[1], [0], [0], [1], [0, 0, 1, 1], [], []>} : vector<16x32xf32>, vector<32x8xf32>, vector<16x8xf32> -> vector<16x8xf32>
    %421 = vector.broadcast %411 : vector<1x8xf32> to vector<16x8xf32>
    %422 = arith.addf %420, %421 : vector<16x8xf32>
    %423 = vector.extract_strided_slice %416 {offsets = [0, 0], sizes = [8, 8], strides = [1, 1]} : vector<16x8xf32> to vector<8x8xf32>
    %424 = vector.extract_strided_slice %419 {offsets = [0, 0], sizes = [8, 8], strides = [1, 1]} : vector<16x8xf32> to vector<8x8xf32>
    %425 = vector.extract_strided_slice %422 {offsets = [0, 0], sizes = [8, 8], strides = [1, 1]} : vector<16x8xf32> to vector<8x8xf32>
    %cst_283 = arith.constant dense<0.000000e+00> : vector<8x8xf32>
    %426 = tpu.matmul %423, %424, %cst_283 {dimension_numbers = #tpu.dot_dimension_numbers<[1], [1], [0], [0], [0, 0, 1, 0], [], []>} : vector<8x8xf32>, vector<8x8xf32>, vector<8x8xf32> -> vector<8x8xf32>
    %cst_284 = arith.constant 0.353553385 : f32
    %427 = vector.broadcast %cst_284 : f32 to vector<8x8xf32>
    %428 = arith.mulf %426, %427 : vector<8x8xf32>
    %429 = vector.extract_strided_slice %29 {offsets = [0, 0], sizes = [1, 8], strides = [1, 1]} : vector<2x8xf32> to vector<1x8xf32>
    %430 = vector.broadcast %429 : vector<1x8xf32> to vector<8x8xf32>
    %431 = arith.addf %428, %430 : vector<8x8xf32>
    %cst_285 = arith.constant dense<0xFF800000> : vector<8xf32>
    %432 = vector.multi_reduction <maximumf>, %431, %cst_285 [1] : vector<8x8xf32> to vector<8xf32>
    %433 = vector.shape_cast %432 : vector<8xf32> to vector<8x1xf32>
    %434 = vector.broadcast %433 : vector<8x1xf32> to vector<8x8xf32>
    %435 = arith.subf %431, %434 : vector<8x8xf32>
    %436 = math.exp %435 : vector<8x8xf32>
    %cst_286 = arith.constant dense<0.000000e+00> : vector<8xf32>
    %437 = vector.multi_reduction <add>, %436, %cst_286 [1] : vector<8x8xf32> to vector<8xf32>
    %438 = vector.shape_cast %437 : vector<8xf32> to vector<8x1xf32>
    %439 = tpu.reciprocal %438 {approx = true} : vector<8x1xf32> -> vector<8x1xf32>
    %440 = vector.broadcast %439 : vector<8x1xf32> to vector<8x8xf32>
    %441 = arith.mulf %436, %440 : vector<8x8xf32>
    %cst_287 = arith.constant dense<0.000000e+00> : vector<8x8xf32>
    %442 = tpu.matmul %441, %425, %cst_287 {dimension_numbers = #tpu.dot_dimension_numbers<[1], [0], [0], [1], [0, 0, 1, 1], [], []>} : vector<8x8xf32>, vector<8x8xf32>, vector<8x8xf32> -> vector<8x8xf32>
    %cst_288 = arith.constant dense<0.000000e+00> : vector<8x32xf32>
    %443 = tpu.matmul %442, %413, %cst_288 {dimension_numbers = #tpu.dot_dimension_numbers<[1], [0], [0], [1], [0, 0, 1, 1], [], []>} : vector<8x8xf32>, vector<8x32xf32>, vector<8x32xf32> -> vector<8x32xf32>
    %444 = vector.extract_strided_slice %416 {offsets = [8, 0], sizes = [8, 8], strides = [1, 1]} : vector<16x8xf32> to vector<8x8xf32>
    %445 = vector.extract_strided_slice %419 {offsets = [8, 0], sizes = [8, 8], strides = [1, 1]} : vector<16x8xf32> to vector<8x8xf32>
    %446 = vector.extract_strided_slice %422 {offsets = [8, 0], sizes = [8, 8], strides = [1, 1]} : vector<16x8xf32> to vector<8x8xf32>
    %cst_289 = arith.constant dense<0.000000e+00> : vector<8x8xf32>
    %447 = tpu.matmul %444, %445, %cst_289 {dimension_numbers = #tpu.dot_dimension_numbers<[1], [1], [0], [0], [0, 0, 1, 0], [], []>} : vector<8x8xf32>, vector<8x8xf32>, vector<8x8xf32> -> vector<8x8xf32>
    %cst_290 = arith.constant 0.353553385 : f32
    %448 = vector.broadcast %cst_290 : f32 to vector<8x8xf32>
    %449 = arith.mulf %447, %448 : vector<8x8xf32>
    %450 = vector.extract_strided_slice %29 {offsets = [1, 0], sizes = [1, 8], strides = [1, 1]} : vector<2x8xf32> to vector<1x8xf32>
    %451 = vector.broadcast %450 : vector<1x8xf32> to vector<8x8xf32>
    %452 = arith.addf %449, %451 : vector<8x8xf32>
    %cst_291 = arith.constant dense<0xFF800000> : vector<8xf32>
    %453 = vector.multi_reduction <maximumf>, %452, %cst_291 [1] : vector<8x8xf32> to vector<8xf32>
    %454 = vector.shape_cast %453 : vector<8xf32> to vector<8x1xf32>
    %455 = vector.broadcast %454 : vector<8x1xf32> to vector<8x8xf32>
    %456 = arith.subf %452, %455 : vector<8x8xf32>
    %457 = math.exp %456 : vector<8x8xf32>
    %cst_292 = arith.constant dense<0.000000e+00> : vector<8xf32>
    %458 = vector.multi_reduction <add>, %457, %cst_292 [1] : vector<8x8xf32> to vector<8xf32>
    %459 = vector.shape_cast %458 : vector<8xf32> to vector<8x1xf32>
    %460 = tpu.reciprocal %459 {approx = true} : vector<8x1xf32> -> vector<8x1xf32>
    %461 = vector.broadcast %460 : vector<8x1xf32> to vector<8x8xf32>
    %462 = arith.mulf %457, %461 : vector<8x8xf32>
    %cst_293 = arith.constant dense<0.000000e+00> : vector<8x8xf32>
    %463 = tpu.matmul %462, %446, %cst_293 {dimension_numbers = #tpu.dot_dimension_numbers<[1], [0], [0], [1], [0, 0, 1, 1], [], []>} : vector<8x8xf32>, vector<8x8xf32>, vector<8x8xf32> -> vector<8x8xf32>
    %cst_294 = arith.constant dense<0.000000e+00> : vector<8x32xf32>
    %464 = tpu.matmul %463, %413, %cst_294 {dimension_numbers = #tpu.dot_dimension_numbers<[1], [0], [0], [1], [0, 0, 1, 1], [], []>} : vector<8x8xf32>, vector<8x32xf32>, vector<8x32xf32> -> vector<8x32xf32>
    %c1_295 = arith.constant 1 : index
    %c1_296 = arith.constant 1 : index
    %c0_297 = arith.constant 0 : index
    %c0_298 = arith.constant 0 : index
    %465 = vector.load %arg5[%c1_295, %c1_296, %c0_297, %c0_298] : memref<2x4x32x8xf32, #tpu.memory_space<vmem>>, vector<1x1x32x8xf32>
    %466 = vector.shape_cast %465 : vector<1x1x32x8xf32> to vector<32x8xf32>
    %c1_299 = arith.constant 1 : index
    %c1_300 = arith.constant 1 : index
    %c0_301 = arith.constant 0 : index
    %c0_302 = arith.constant 0 : index
    %467 = vector.load %arg6[%c1_299, %c1_300, %c0_301, %c0_302] : memref<2x4x1x8xf32, #tpu.memory_space<vmem>>, vector<1x1x1x8xf32>
    %468 = vector.shape_cast %467 : vector<1x1x1x8xf32> to vector<1x8xf32>
    %c1_303 = arith.constant 1 : index
    %c1_304 = arith.constant 1 : index
    %c0_305 = arith.constant 0 : index
    %c0_306 = arith.constant 0 : index
    %469 = vector.load %arg7[%c1_303, %c1_304, %c0_305, %c0_306] : memref<2x4x32x8xf32, #tpu.memory_space<vmem>>, vector<1x1x32x8xf32>
    %470 = vector.shape_cast %469 : vector<1x1x32x8xf32> to vector<32x8xf32>
    %c1_307 = arith.constant 1 : index
    %c1_308 = arith.constant 1 : index
    %c0_309 = arith.constant 0 : index
    %c0_310 = arith.constant 0 : index
    %471 = vector.load %arg8[%c1_307, %c1_308, %c0_309, %c0_310] : memref<2x4x1x8xf32, #tpu.memory_space<vmem>>, vector<1x1x1x8xf32>
    %472 = vector.shape_cast %471 : vector<1x1x1x8xf32> to vector<1x8xf32>
    %c1_311 = arith.constant 1 : index
    %c1_312 = arith.constant 1 : index
    %c0_313 = arith.constant 0 : index
    %c0_314 = arith.constant 0 : index
    %473 = vector.load %arg9[%c1_311, %c1_312, %c0_313, %c0_314] : memref<2x4x32x8xf32, #tpu.memory_space<vmem>>, vector<1x1x32x8xf32>
    %474 = vector.shape_cast %473 : vector<1x1x32x8xf32> to vector<32x8xf32>
    %c1_315 = arith.constant 1 : index
    %c1_316 = arith.constant 1 : index
    %c0_317 = arith.constant 0 : index
    %c0_318 = arith.constant 0 : index
    %475 = vector.load %arg10[%c1_315, %c1_316, %c0_317, %c0_318] : memref<2x4x1x8xf32, #tpu.memory_space<vmem>>, vector<1x1x1x8xf32>
    %476 = vector.shape_cast %475 : vector<1x1x1x8xf32> to vector<1x8xf32>
    %c1_319 = arith.constant 1 : index
    %c1_320 = arith.constant 1 : index
    %c0_321 = arith.constant 0 : index
    %c0_322 = arith.constant 0 : index
    %477 = vector.load %arg11[%c1_319, %c1_320, %c0_321, %c0_322] : memref<2x4x8x32xf32, #tpu.memory_space<vmem>>, vector<1x1x8x32xf32>
    %478 = vector.shape_cast %477 : vector<1x1x8x32xf32> to vector<8x32xf32>
    %cst_323 = arith.constant dense<0.000000e+00> : vector<16x8xf32>
    %479 = tpu.matmul %381, %466, %cst_323 {dimension_numbers = #tpu.dot_dimension_numbers<[1], [0], [0], [1], [0, 0, 1, 1], [], []>} : vector<16x32xf32>, vector<32x8xf32>, vector<16x8xf32> -> vector<16x8xf32>
    %480 = vector.broadcast %468 : vector<1x8xf32> to vector<16x8xf32>
    %481 = arith.addf %479, %480 : vector<16x8xf32>
    %cst_324 = arith.constant dense<0.000000e+00> : vector<16x8xf32>
    %482 = tpu.matmul %381, %470, %cst_324 {dimension_numbers = #tpu.dot_dimension_numbers<[1], [0], [0], [1], [0, 0, 1, 1], [], []>} : vector<16x32xf32>, vector<32x8xf32>, vector<16x8xf32> -> vector<16x8xf32>
    %483 = vector.broadcast %472 : vector<1x8xf32> to vector<16x8xf32>
    %484 = arith.addf %482, %483 : vector<16x8xf32>
    %cst_325 = arith.constant dense<0.000000e+00> : vector<16x8xf32>
    %485 = tpu.matmul %381, %474, %cst_325 {dimension_numbers = #tpu.dot_dimension_numbers<[1], [0], [0], [1], [0, 0, 1, 1], [], []>} : vector<16x32xf32>, vector<32x8xf32>, vector<16x8xf32> -> vector<16x8xf32>
    %486 = vector.broadcast %476 : vector<1x8xf32> to vector<16x8xf32>
    %487 = arith.addf %485, %486 : vector<16x8xf32>
    %488 = vector.extract_strided_slice %481 {offsets = [0, 0], sizes = [8, 8], strides = [1, 1]} : vector<16x8xf32> to vector<8x8xf32>
    %489 = vector.extract_strided_slice %484 {offsets = [0, 0], sizes = [8, 8], strides = [1, 1]} : vector<16x8xf32> to vector<8x8xf32>
    %490 = vector.extract_strided_slice %487 {offsets = [0, 0], sizes = [8, 8], strides = [1, 1]} : vector<16x8xf32> to vector<8x8xf32>
    %cst_326 = arith.constant dense<0.000000e+00> : vector<8x8xf32>
    %491 = tpu.matmul %488, %489, %cst_326 {dimension_numbers = #tpu.dot_dimension_numbers<[1], [1], [0], [0], [0, 0, 1, 0], [], []>} : vector<8x8xf32>, vector<8x8xf32>, vector<8x8xf32> -> vector<8x8xf32>
    %cst_327 = arith.constant 0.353553385 : f32
    %492 = vector.broadcast %cst_327 : f32 to vector<8x8xf32>
    %493 = arith.mulf %491, %492 : vector<8x8xf32>
    %494 = vector.extract_strided_slice %29 {offsets = [0, 0], sizes = [1, 8], strides = [1, 1]} : vector<2x8xf32> to vector<1x8xf32>
    %495 = vector.broadcast %494 : vector<1x8xf32> to vector<8x8xf32>
    %496 = arith.addf %493, %495 : vector<8x8xf32>
    %cst_328 = arith.constant dense<0xFF800000> : vector<8xf32>
    %497 = vector.multi_reduction <maximumf>, %496, %cst_328 [1] : vector<8x8xf32> to vector<8xf32>
    %498 = vector.shape_cast %497 : vector<8xf32> to vector<8x1xf32>
    %499 = vector.broadcast %498 : vector<8x1xf32> to vector<8x8xf32>
    %500 = arith.subf %496, %499 : vector<8x8xf32>
    %501 = math.exp %500 : vector<8x8xf32>
    %cst_329 = arith.constant dense<0.000000e+00> : vector<8xf32>
    %502 = vector.multi_reduction <add>, %501, %cst_329 [1] : vector<8x8xf32> to vector<8xf32>
    %503 = vector.shape_cast %502 : vector<8xf32> to vector<8x1xf32>
    %504 = tpu.reciprocal %503 {approx = true} : vector<8x1xf32> -> vector<8x1xf32>
    %505 = vector.broadcast %504 : vector<8x1xf32> to vector<8x8xf32>
    %506 = arith.mulf %501, %505 : vector<8x8xf32>
    %cst_330 = arith.constant dense<0.000000e+00> : vector<8x8xf32>
    %507 = tpu.matmul %506, %490, %cst_330 {dimension_numbers = #tpu.dot_dimension_numbers<[1], [0], [0], [1], [0, 0, 1, 1], [], []>} : vector<8x8xf32>, vector<8x8xf32>, vector<8x8xf32> -> vector<8x8xf32>
    %cst_331 = arith.constant dense<0.000000e+00> : vector<8x32xf32>
    %508 = tpu.matmul %507, %478, %cst_331 {dimension_numbers = #tpu.dot_dimension_numbers<[1], [0], [0], [1], [0, 0, 1, 1], [], []>} : vector<8x8xf32>, vector<8x32xf32>, vector<8x32xf32> -> vector<8x32xf32>
    %509 = arith.addf %443, %508 : vector<8x32xf32>
    %510 = vector.extract_strided_slice %481 {offsets = [8, 0], sizes = [8, 8], strides = [1, 1]} : vector<16x8xf32> to vector<8x8xf32>
    %511 = vector.extract_strided_slice %484 {offsets = [8, 0], sizes = [8, 8], strides = [1, 1]} : vector<16x8xf32> to vector<8x8xf32>
    %512 = vector.extract_strided_slice %487 {offsets = [8, 0], sizes = [8, 8], strides = [1, 1]} : vector<16x8xf32> to vector<8x8xf32>
    %cst_332 = arith.constant dense<0.000000e+00> : vector<8x8xf32>
    %513 = tpu.matmul %510, %511, %cst_332 {dimension_numbers = #tpu.dot_dimension_numbers<[1], [1], [0], [0], [0, 0, 1, 0], [], []>} : vector<8x8xf32>, vector<8x8xf32>, vector<8x8xf32> -> vector<8x8xf32>
    %cst_333 = arith.constant 0.353553385 : f32
    %514 = vector.broadcast %cst_333 : f32 to vector<8x8xf32>
    %515 = arith.mulf %513, %514 : vector<8x8xf32>
    %516 = vector.extract_strided_slice %29 {offsets = [1, 0], sizes = [1, 8], strides = [1, 1]} : vector<2x8xf32> to vector<1x8xf32>
    %517 = vector.broadcast %516 : vector<1x8xf32> to vector<8x8xf32>
    %518 = arith.addf %515, %517 : vector<8x8xf32>
    %cst_334 = arith.constant dense<0xFF800000> : vector<8xf32>
    %519 = vector.multi_reduction <maximumf>, %518, %cst_334 [1] : vector<8x8xf32> to vector<8xf32>
    %520 = vector.shape_cast %519 : vector<8xf32> to vector<8x1xf32>
    %521 = vector.broadcast %520 : vector<8x1xf32> to vector<8x8xf32>
    %522 = arith.subf %518, %521 : vector<8x8xf32>
    %523 = math.exp %522 : vector<8x8xf32>
    %cst_335 = arith.constant dense<0.000000e+00> : vector<8xf32>
    %524 = vector.multi_reduction <add>, %523, %cst_335 [1] : vector<8x8xf32> to vector<8xf32>
    %525 = vector.shape_cast %524 : vector<8xf32> to vector<8x1xf32>
    %526 = tpu.reciprocal %525 {approx = true} : vector<8x1xf32> -> vector<8x1xf32>
    %527 = vector.broadcast %526 : vector<8x1xf32> to vector<8x8xf32>
    %528 = arith.mulf %523, %527 : vector<8x8xf32>
    %cst_336 = arith.constant dense<0.000000e+00> : vector<8x8xf32>
    %529 = tpu.matmul %528, %512, %cst_336 {dimension_numbers = #tpu.dot_dimension_numbers<[1], [0], [0], [1], [0, 0, 1, 1], [], []>} : vector<8x8xf32>, vector<8x8xf32>, vector<8x8xf32> -> vector<8x8xf32>
    %cst_337 = arith.constant dense<0.000000e+00> : vector<8x32xf32>
    %530 = tpu.matmul %529, %478, %cst_337 {dimension_numbers = #tpu.dot_dimension_numbers<[1], [0], [0], [1], [0, 0, 1, 1], [], []>} : vector<8x8xf32>, vector<8x32xf32>, vector<8x32xf32> -> vector<8x32xf32>
    %531 = arith.addf %464, %530 : vector<8x32xf32>
    %c1_338 = arith.constant 1 : index
    %c2_339 = arith.constant 2 : index
    %c0_340 = arith.constant 0 : index
    %c0_341 = arith.constant 0 : index
    %532 = vector.load %arg5[%c1_338, %c2_339, %c0_340, %c0_341] : memref<2x4x32x8xf32, #tpu.memory_space<vmem>>, vector<1x1x32x8xf32>
    %533 = vector.shape_cast %532 : vector<1x1x32x8xf32> to vector<32x8xf32>
    %c1_342 = arith.constant 1 : index
    %c2_343 = arith.constant 2 : index
    %c0_344 = arith.constant 0 : index
    %c0_345 = arith.constant 0 : index
    %534 = vector.load %arg6[%c1_342, %c2_343, %c0_344, %c0_345] : memref<2x4x1x8xf32, #tpu.memory_space<vmem>>, vector<1x1x1x8xf32>
    %535 = vector.shape_cast %534 : vector<1x1x1x8xf32> to vector<1x8xf32>
    %c1_346 = arith.constant 1 : index
    %c2_347 = arith.constant 2 : index
    %c0_348 = arith.constant 0 : index
    %c0_349 = arith.constant 0 : index
    %536 = vector.load %arg7[%c1_346, %c2_347, %c0_348, %c0_349] : memref<2x4x32x8xf32, #tpu.memory_space<vmem>>, vector<1x1x32x8xf32>
    %537 = vector.shape_cast %536 : vector<1x1x32x8xf32> to vector<32x8xf32>
    %c1_350 = arith.constant 1 : index
    %c2_351 = arith.constant 2 : index
    %c0_352 = arith.constant 0 : index
    %c0_353 = arith.constant 0 : index
    %538 = vector.load %arg8[%c1_350, %c2_351, %c0_352, %c0_353] : memref<2x4x1x8xf32, #tpu.memory_space<vmem>>, vector<1x1x1x8xf32>
    %539 = vector.shape_cast %538 : vector<1x1x1x8xf32> to vector<1x8xf32>
    %c1_354 = arith.constant 1 : index
    %c2_355 = arith.constant 2 : index
    %c0_356 = arith.constant 0 : index
    %c0_357 = arith.constant 0 : index
    %540 = vector.load %arg9[%c1_354, %c2_355, %c0_356, %c0_357] : memref<2x4x32x8xf32, #tpu.memory_space<vmem>>, vector<1x1x32x8xf32>
    %541 = vector.shape_cast %540 : vector<1x1x32x8xf32> to vector<32x8xf32>
    %c1_358 = arith.constant 1 : index
    %c2_359 = arith.constant 2 : index
    %c0_360 = arith.constant 0 : index
    %c0_361 = arith.constant 0 : index
    %542 = vector.load %arg10[%c1_358, %c2_359, %c0_360, %c0_361] : memref<2x4x1x8xf32, #tpu.memory_space<vmem>>, vector<1x1x1x8xf32>
    %543 = vector.shape_cast %542 : vector<1x1x1x8xf32> to vector<1x8xf32>
    %c1_362 = arith.constant 1 : index
    %c2_363 = arith.constant 2 : index
    %c0_364 = arith.constant 0 : index
    %c0_365 = arith.constant 0 : index
    %544 = vector.load %arg11[%c1_362, %c2_363, %c0_364, %c0_365] : memref<2x4x8x32xf32, #tpu.memory_space<vmem>>, vector<1x1x8x32xf32>
    %545 = vector.shape_cast %544 : vector<1x1x8x32xf32> to vector<8x32xf32>
    %cst_366 = arith.constant dense<0.000000e+00> : vector<16x8xf32>
    %546 = tpu.matmul %381, %533, %cst_366 {dimension_numbers = #tpu.dot_dimension_numbers<[1], [0], [0], [1], [0, 0, 1, 1], [], []>} : vector<16x32xf32>, vector<32x8xf32>, vector<16x8xf32> -> vector<16x8xf32>
    %547 = vector.broadcast %535 : vector<1x8xf32> to vector<16x8xf32>
    %548 = arith.addf %546, %547 : vector<16x8xf32>
    %cst_367 = arith.constant dense<0.000000e+00> : vector<16x8xf32>
    %549 = tpu.matmul %381, %537, %cst_367 {dimension_numbers = #tpu.dot_dimension_numbers<[1], [0], [0], [1], [0, 0, 1, 1], [], []>} : vector<16x32xf32>, vector<32x8xf32>, vector<16x8xf32> -> vector<16x8xf32>
    %550 = vector.broadcast %539 : vector<1x8xf32> to vector<16x8xf32>
    %551 = arith.addf %549, %550 : vector<16x8xf32>
    %cst_368 = arith.constant dense<0.000000e+00> : vector<16x8xf32>
    %552 = tpu.matmul %381, %541, %cst_368 {dimension_numbers = #tpu.dot_dimension_numbers<[1], [0], [0], [1], [0, 0, 1, 1], [], []>} : vector<16x32xf32>, vector<32x8xf32>, vector<16x8xf32> -> vector<16x8xf32>
    %553 = vector.broadcast %543 : vector<1x8xf32> to vector<16x8xf32>
    %554 = arith.addf %552, %553 : vector<16x8xf32>
    %555 = vector.extract_strided_slice %548 {offsets = [0, 0], sizes = [8, 8], strides = [1, 1]} : vector<16x8xf32> to vector<8x8xf32>
    %556 = vector.extract_strided_slice %551 {offsets = [0, 0], sizes = [8, 8], strides = [1, 1]} : vector<16x8xf32> to vector<8x8xf32>
    %557 = vector.extract_strided_slice %554 {offsets = [0, 0], sizes = [8, 8], strides = [1, 1]} : vector<16x8xf32> to vector<8x8xf32>
    %cst_369 = arith.constant dense<0.000000e+00> : vector<8x8xf32>
    %558 = tpu.matmul %555, %556, %cst_369 {dimension_numbers = #tpu.dot_dimension_numbers<[1], [1], [0], [0], [0, 0, 1, 0], [], []>} : vector<8x8xf32>, vector<8x8xf32>, vector<8x8xf32> -> vector<8x8xf32>
    %cst_370 = arith.constant 0.353553385 : f32
    %559 = vector.broadcast %cst_370 : f32 to vector<8x8xf32>
    %560 = arith.mulf %558, %559 : vector<8x8xf32>
    %561 = vector.extract_strided_slice %29 {offsets = [0, 0], sizes = [1, 8], strides = [1, 1]} : vector<2x8xf32> to vector<1x8xf32>
    %562 = vector.broadcast %561 : vector<1x8xf32> to vector<8x8xf32>
    %563 = arith.addf %560, %562 : vector<8x8xf32>
    %cst_371 = arith.constant dense<0xFF800000> : vector<8xf32>
    %564 = vector.multi_reduction <maximumf>, %563, %cst_371 [1] : vector<8x8xf32> to vector<8xf32>
    %565 = vector.shape_cast %564 : vector<8xf32> to vector<8x1xf32>
    %566 = vector.broadcast %565 : vector<8x1xf32> to vector<8x8xf32>
    %567 = arith.subf %563, %566 : vector<8x8xf32>
    %568 = math.exp %567 : vector<8x8xf32>
    %cst_372 = arith.constant dense<0.000000e+00> : vector<8xf32>
    %569 = vector.multi_reduction <add>, %568, %cst_372 [1] : vector<8x8xf32> to vector<8xf32>
    %570 = vector.shape_cast %569 : vector<8xf32> to vector<8x1xf32>
    %571 = tpu.reciprocal %570 {approx = true} : vector<8x1xf32> -> vector<8x1xf32>
    %572 = vector.broadcast %571 : vector<8x1xf32> to vector<8x8xf32>
    %573 = arith.mulf %568, %572 : vector<8x8xf32>
    %cst_373 = arith.constant dense<0.000000e+00> : vector<8x8xf32>
    %574 = tpu.matmul %573, %557, %cst_373 {dimension_numbers = #tpu.dot_dimension_numbers<[1], [0], [0], [1], [0, 0, 1, 1], [], []>} : vector<8x8xf32>, vector<8x8xf32>, vector<8x8xf32> -> vector<8x8xf32>
    %cst_374 = arith.constant dense<0.000000e+00> : vector<8x32xf32>
    %575 = tpu.matmul %574, %545, %cst_374 {dimension_numbers = #tpu.dot_dimension_numbers<[1], [0], [0], [1], [0, 0, 1, 1], [], []>} : vector<8x8xf32>, vector<8x32xf32>, vector<8x32xf32> -> vector<8x32xf32>
    %576 = arith.addf %509, %575 : vector<8x32xf32>
    %577 = vector.extract_strided_slice %548 {offsets = [8, 0], sizes = [8, 8], strides = [1, 1]} : vector<16x8xf32> to vector<8x8xf32>
    %578 = vector.extract_strided_slice %551 {offsets = [8, 0], sizes = [8, 8], strides = [1, 1]} : vector<16x8xf32> to vector<8x8xf32>
    %579 = vector.extract_strided_slice %554 {offsets = [8, 0], sizes = [8, 8], strides = [1, 1]} : vector<16x8xf32> to vector<8x8xf32>
    %cst_375 = arith.constant dense<0.000000e+00> : vector<8x8xf32>
    %580 = tpu.matmul %577, %578, %cst_375 {dimension_numbers = #tpu.dot_dimension_numbers<[1], [1], [0], [0], [0, 0, 1, 0], [], []>} : vector<8x8xf32>, vector<8x8xf32>, vector<8x8xf32> -> vector<8x8xf32>
    %cst_376 = arith.constant 0.353553385 : f32
    %581 = vector.broadcast %cst_376 : f32 to vector<8x8xf32>
    %582 = arith.mulf %580, %581 : vector<8x8xf32>
    %583 = vector.extract_strided_slice %29 {offsets = [1, 0], sizes = [1, 8], strides = [1, 1]} : vector<2x8xf32> to vector<1x8xf32>
    %584 = vector.broadcast %583 : vector<1x8xf32> to vector<8x8xf32>
    %585 = arith.addf %582, %584 : vector<8x8xf32>
    %cst_377 = arith.constant dense<0xFF800000> : vector<8xf32>
    %586 = vector.multi_reduction <maximumf>, %585, %cst_377 [1] : vector<8x8xf32> to vector<8xf32>
    %587 = vector.shape_cast %586 : vector<8xf32> to vector<8x1xf32>
    %588 = vector.broadcast %587 : vector<8x1xf32> to vector<8x8xf32>
    %589 = arith.subf %585, %588 : vector<8x8xf32>
    %590 = math.exp %589 : vector<8x8xf32>
    %cst_378 = arith.constant dense<0.000000e+00> : vector<8xf32>
    %591 = vector.multi_reduction <add>, %590, %cst_378 [1] : vector<8x8xf32> to vector<8xf32>
    %592 = vector.shape_cast %591 : vector<8xf32> to vector<8x1xf32>
    %593 = tpu.reciprocal %592 {approx = true} : vector<8x1xf32> -> vector<8x1xf32>
    %594 = vector.broadcast %593 : vector<8x1xf32> to vector<8x8xf32>
    %595 = arith.mulf %590, %594 : vector<8x8xf32>
    %cst_379 = arith.constant dense<0.000000e+00> : vector<8x8xf32>
    %596 = tpu.matmul %595, %579, %cst_379 {dimension_numbers = #tpu.dot_dimension_numbers<[1], [0], [0], [1], [0, 0, 1, 1], [], []>} : vector<8x8xf32>, vector<8x8xf32>, vector<8x8xf32> -> vector<8x8xf32>
    %cst_380 = arith.constant dense<0.000000e+00> : vector<8x32xf32>
    %597 = tpu.matmul %596, %545, %cst_380 {dimension_numbers = #tpu.dot_dimension_numbers<[1], [0], [0], [1], [0, 0, 1, 1], [], []>} : vector<8x8xf32>, vector<8x32xf32>, vector<8x32xf32> -> vector<8x32xf32>
    %598 = arith.addf %531, %597 : vector<8x32xf32>
    %c1_381 = arith.constant 1 : index
    %c3_382 = arith.constant 3 : index
    %c0_383 = arith.constant 0 : index
    %c0_384 = arith.constant 0 : index
    %599 = vector.load %arg5[%c1_381, %c3_382, %c0_383, %c0_384] : memref<2x4x32x8xf32, #tpu.memory_space<vmem>>, vector<1x1x32x8xf32>
    %600 = vector.shape_cast %599 : vector<1x1x32x8xf32> to vector<32x8xf32>
    %c1_385 = arith.constant 1 : index
    %c3_386 = arith.constant 3 : index
    %c0_387 = arith.constant 0 : index
    %c0_388 = arith.constant 0 : index
    %601 = vector.load %arg6[%c1_385, %c3_386, %c0_387, %c0_388] : memref<2x4x1x8xf32, #tpu.memory_space<vmem>>, vector<1x1x1x8xf32>
    %602 = vector.shape_cast %601 : vector<1x1x1x8xf32> to vector<1x8xf32>
    %c1_389 = arith.constant 1 : index
    %c3_390 = arith.constant 3 : index
    %c0_391 = arith.constant 0 : index
    %c0_392 = arith.constant 0 : index
    %603 = vector.load %arg7[%c1_389, %c3_390, %c0_391, %c0_392] : memref<2x4x32x8xf32, #tpu.memory_space<vmem>>, vector<1x1x32x8xf32>
    %604 = vector.shape_cast %603 : vector<1x1x32x8xf32> to vector<32x8xf32>
    %c1_393 = arith.constant 1 : index
    %c3_394 = arith.constant 3 : index
    %c0_395 = arith.constant 0 : index
    %c0_396 = arith.constant 0 : index
    %605 = vector.load %arg8[%c1_393, %c3_394, %c0_395, %c0_396] : memref<2x4x1x8xf32, #tpu.memory_space<vmem>>, vector<1x1x1x8xf32>
    %606 = vector.shape_cast %605 : vector<1x1x1x8xf32> to vector<1x8xf32>
    %c1_397 = arith.constant 1 : index
    %c3_398 = arith.constant 3 : index
    %c0_399 = arith.constant 0 : index
    %c0_400 = arith.constant 0 : index
    %607 = vector.load %arg9[%c1_397, %c3_398, %c0_399, %c0_400] : memref<2x4x32x8xf32, #tpu.memory_space<vmem>>, vector<1x1x32x8xf32>
    %608 = vector.shape_cast %607 : vector<1x1x32x8xf32> to vector<32x8xf32>
    %c1_401 = arith.constant 1 : index
    %c3_402 = arith.constant 3 : index
    %c0_403 = arith.constant 0 : index
    %c0_404 = arith.constant 0 : index
    %609 = vector.load %arg10[%c1_401, %c3_402, %c0_403, %c0_404] : memref<2x4x1x8xf32, #tpu.memory_space<vmem>>, vector<1x1x1x8xf32>
    %610 = vector.shape_cast %609 : vector<1x1x1x8xf32> to vector<1x8xf32>
    %c1_405 = arith.constant 1 : index
    %c3_406 = arith.constant 3 : index
    %c0_407 = arith.constant 0 : index
    %c0_408 = arith.constant 0 : index
    %611 = vector.load %arg11[%c1_405, %c3_406, %c0_407, %c0_408] : memref<2x4x8x32xf32, #tpu.memory_space<vmem>>, vector<1x1x8x32xf32>
    %612 = vector.shape_cast %611 : vector<1x1x8x32xf32> to vector<8x32xf32>
    %cst_409 = arith.constant dense<0.000000e+00> : vector<16x8xf32>
    %613 = tpu.matmul %381, %600, %cst_409 {dimension_numbers = #tpu.dot_dimension_numbers<[1], [0], [0], [1], [0, 0, 1, 1], [], []>} : vector<16x32xf32>, vector<32x8xf32>, vector<16x8xf32> -> vector<16x8xf32>
    %614 = vector.broadcast %602 : vector<1x8xf32> to vector<16x8xf32>
    %615 = arith.addf %613, %614 : vector<16x8xf32>
    %cst_410 = arith.constant dense<0.000000e+00> : vector<16x8xf32>
    %616 = tpu.matmul %381, %604, %cst_410 {dimension_numbers = #tpu.dot_dimension_numbers<[1], [0], [0], [1], [0, 0, 1, 1], [], []>} : vector<16x32xf32>, vector<32x8xf32>, vector<16x8xf32> -> vector<16x8xf32>
    %617 = vector.broadcast %606 : vector<1x8xf32> to vector<16x8xf32>
    %618 = arith.addf %616, %617 : vector<16x8xf32>
    %cst_411 = arith.constant dense<0.000000e+00> : vector<16x8xf32>
    %619 = tpu.matmul %381, %608, %cst_411 {dimension_numbers = #tpu.dot_dimension_numbers<[1], [0], [0], [1], [0, 0, 1, 1], [], []>} : vector<16x32xf32>, vector<32x8xf32>, vector<16x8xf32> -> vector<16x8xf32>
    %620 = vector.broadcast %610 : vector<1x8xf32> to vector<16x8xf32>
    %621 = arith.addf %619, %620 : vector<16x8xf32>
    %622 = vector.extract_strided_slice %615 {offsets = [0, 0], sizes = [8, 8], strides = [1, 1]} : vector<16x8xf32> to vector<8x8xf32>
    %623 = vector.extract_strided_slice %618 {offsets = [0, 0], sizes = [8, 8], strides = [1, 1]} : vector<16x8xf32> to vector<8x8xf32>
    %624 = vector.extract_strided_slice %621 {offsets = [0, 0], sizes = [8, 8], strides = [1, 1]} : vector<16x8xf32> to vector<8x8xf32>
    %cst_412 = arith.constant dense<0.000000e+00> : vector<8x8xf32>
    %625 = tpu.matmul %622, %623, %cst_412 {dimension_numbers = #tpu.dot_dimension_numbers<[1], [1], [0], [0], [0, 0, 1, 0], [], []>} : vector<8x8xf32>, vector<8x8xf32>, vector<8x8xf32> -> vector<8x8xf32>
    %cst_413 = arith.constant 0.353553385 : f32
    %626 = vector.broadcast %cst_413 : f32 to vector<8x8xf32>
    %627 = arith.mulf %625, %626 : vector<8x8xf32>
    %628 = vector.extract_strided_slice %29 {offsets = [0, 0], sizes = [1, 8], strides = [1, 1]} : vector<2x8xf32> to vector<1x8xf32>
    %629 = vector.broadcast %628 : vector<1x8xf32> to vector<8x8xf32>
    %630 = arith.addf %627, %629 : vector<8x8xf32>
    %cst_414 = arith.constant dense<0xFF800000> : vector<8xf32>
    %631 = vector.multi_reduction <maximumf>, %630, %cst_414 [1] : vector<8x8xf32> to vector<8xf32>
    %632 = vector.shape_cast %631 : vector<8xf32> to vector<8x1xf32>
    %633 = vector.broadcast %632 : vector<8x1xf32> to vector<8x8xf32>
    %634 = arith.subf %630, %633 : vector<8x8xf32>
    %635 = math.exp %634 : vector<8x8xf32>
    %cst_415 = arith.constant dense<0.000000e+00> : vector<8xf32>
    %636 = vector.multi_reduction <add>, %635, %cst_415 [1] : vector<8x8xf32> to vector<8xf32>
    %637 = vector.shape_cast %636 : vector<8xf32> to vector<8x1xf32>
    %638 = tpu.reciprocal %637 {approx = true} : vector<8x1xf32> -> vector<8x1xf32>
    %639 = vector.broadcast %638 : vector<8x1xf32> to vector<8x8xf32>
    %640 = arith.mulf %635, %639 : vector<8x8xf32>
    %cst_416 = arith.constant dense<0.000000e+00> : vector<8x8xf32>
    %641 = tpu.matmul %640, %624, %cst_416 {dimension_numbers = #tpu.dot_dimension_numbers<[1], [0], [0], [1], [0, 0, 1, 1], [], []>} : vector<8x8xf32>, vector<8x8xf32>, vector<8x8xf32> -> vector<8x8xf32>
    %cst_417 = arith.constant dense<0.000000e+00> : vector<8x32xf32>
    %642 = tpu.matmul %641, %612, %cst_417 {dimension_numbers = #tpu.dot_dimension_numbers<[1], [0], [0], [1], [0, 0, 1, 1], [], []>} : vector<8x8xf32>, vector<8x32xf32>, vector<8x32xf32> -> vector<8x32xf32>
    %643 = arith.addf %576, %642 : vector<8x32xf32>
    %644 = vector.extract_strided_slice %615 {offsets = [8, 0], sizes = [8, 8], strides = [1, 1]} : vector<16x8xf32> to vector<8x8xf32>
    %645 = vector.extract_strided_slice %618 {offsets = [8, 0], sizes = [8, 8], strides = [1, 1]} : vector<16x8xf32> to vector<8x8xf32>
    %646 = vector.extract_strided_slice %621 {offsets = [8, 0], sizes = [8, 8], strides = [1, 1]} : vector<16x8xf32> to vector<8x8xf32>
    %cst_418 = arith.constant dense<0.000000e+00> : vector<8x8xf32>
    %647 = tpu.matmul %644, %645, %cst_418 {dimension_numbers = #tpu.dot_dimension_numbers<[1], [1], [0], [0], [0, 0, 1, 0], [], []>} : vector<8x8xf32>, vector<8x8xf32>, vector<8x8xf32> -> vector<8x8xf32>
    %cst_419 = arith.constant 0.353553385 : f32
    %648 = vector.broadcast %cst_419 : f32 to vector<8x8xf32>
    %649 = arith.mulf %647, %648 : vector<8x8xf32>
    %650 = vector.extract_strided_slice %29 {offsets = [1, 0], sizes = [1, 8], strides = [1, 1]} : vector<2x8xf32> to vector<1x8xf32>
    %651 = vector.broadcast %650 : vector<1x8xf32> to vector<8x8xf32>
    %652 = arith.addf %649, %651 : vector<8x8xf32>
    %cst_420 = arith.constant dense<0xFF800000> : vector<8xf32>
    %653 = vector.multi_reduction <maximumf>, %652, %cst_420 [1] : vector<8x8xf32> to vector<8xf32>
    %654 = vector.shape_cast %653 : vector<8xf32> to vector<8x1xf32>
    %655 = vector.broadcast %654 : vector<8x1xf32> to vector<8x8xf32>
    %656 = arith.subf %652, %655 : vector<8x8xf32>
    %657 = math.exp %656 : vector<8x8xf32>
    %cst_421 = arith.constant dense<0.000000e+00> : vector<8xf32>
    %658 = vector.multi_reduction <add>, %657, %cst_421 [1] : vector<8x8xf32> to vector<8xf32>
    %659 = vector.shape_cast %658 : vector<8xf32> to vector<8x1xf32>
    %660 = tpu.reciprocal %659 {approx = true} : vector<8x1xf32> -> vector<8x1xf32>
    %661 = vector.broadcast %660 : vector<8x1xf32> to vector<8x8xf32>
    %662 = arith.mulf %657, %661 : vector<8x8xf32>
    %cst_422 = arith.constant dense<0.000000e+00> : vector<8x8xf32>
    %663 = tpu.matmul %662, %646, %cst_422 {dimension_numbers = #tpu.dot_dimension_numbers<[1], [0], [0], [1], [0, 0, 1, 1], [], []>} : vector<8x8xf32>, vector<8x8xf32>, vector<8x8xf32> -> vector<8x8xf32>
    %cst_423 = arith.constant dense<0.000000e+00> : vector<8x32xf32>
    %664 = tpu.matmul %663, %612, %cst_423 {dimension_numbers = #tpu.dot_dimension_numbers<[1], [0], [0], [1], [0, 0, 1, 1], [], []>} : vector<8x8xf32>, vector<8x32xf32>, vector<8x32xf32> -> vector<8x32xf32>
    %665 = arith.addf %598, %664 : vector<8x32xf32>
    %666 = tpu.concatenate %643, %665 in 0 : vector<8x32xf32>, vector<8x32xf32> -> vector<16x32xf32>
    %667 = vector.broadcast %383 : vector<1x32xf32> to vector<16x32xf32>
    %668 = arith.addf %666, %667 : vector<16x32xf32>
    %669 = arith.addf %381, %668 : vector<16x32xf32>
    %cst_424 = arith.constant dense<0.000000e+00> : vector<16xf32>
    %670 = vector.multi_reduction <add>, %669, %cst_424 [1] : vector<16x32xf32> to vector<16xf32>
    %671 = vector.shape_cast %670 : vector<16xf32> to vector<16x1xf32>
    %cst_425 = arith.constant 3.200000e+01 : f32
    %672 = vector.broadcast %cst_425 : f32 to vector<16x1xf32>
    %673 = arith.divf %671, %672 : vector<16x1xf32>
    %674 = vector.broadcast %673 : vector<16x1xf32> to vector<16x32xf32>
    %675 = arith.subf %669, %674 : vector<16x32xf32>
    %676 = arith.mulf %675, %675 : vector<16x32xf32>
    %cst_426 = arith.constant dense<0.000000e+00> : vector<16xf32>
    %677 = vector.multi_reduction <add>, %676, %cst_426 [1] : vector<16x32xf32> to vector<16xf32>
    %678 = vector.shape_cast %677 : vector<16xf32> to vector<16x1xf32>
    %cst_427 = arith.constant 3.200000e+01 : f32
    %679 = vector.broadcast %cst_427 : f32 to vector<16x1xf32>
    %680 = arith.divf %678, %679 : vector<16x1xf32>
    %681 = vector.broadcast %673 : vector<16x1xf32> to vector<16x32xf32>
    %682 = arith.subf %669, %681 : vector<16x32xf32>
    %cst_428 = arith.constant 9.99999996E-13 : f32
    %683 = vector.broadcast %cst_428 : f32 to vector<16x1xf32>
    %684 = arith.addf %680, %683 : vector<16x1xf32>
    %685 = math.rsqrt %684 : vector<16x1xf32>
    %686 = vector.broadcast %685 : vector<16x1xf32> to vector<16x32xf32>
    %687 = arith.mulf %682, %686 : vector<16x32xf32>
    %688 = vector.broadcast %385 : vector<1x32xf32> to vector<16x32xf32>
    %689 = arith.mulf %687, %688 : vector<16x32xf32>
    %690 = vector.broadcast %387 : vector<1x32xf32> to vector<16x32xf32>
    %691 = arith.addf %689, %690 : vector<16x32xf32>
    %cst_429 = arith.constant dense<0.000000e+00> : vector<16x64xf32>
    %692 = tpu.matmul %691, %389, %cst_429 {dimension_numbers = #tpu.dot_dimension_numbers<[1], [0], [0], [1], [0, 0, 1, 1], [], []>} : vector<16x32xf32>, vector<32x64xf32>, vector<16x64xf32> -> vector<16x64xf32>
    %693 = vector.broadcast %391 : vector<1x64xf32> to vector<16x64xf32>
    %694 = arith.addf %692, %693 : vector<16x64xf32>
    %cst_430 = arith.constant 5.000000e-01 : f32
    %695 = vector.broadcast %cst_430 : f32 to vector<16x64xf32>
    %696 = arith.mulf %695, %694 : vector<16x64xf32>
    %cst_431 = arith.constant 4.471500e-02 : f32
    %697 = vector.broadcast %cst_431 : f32 to vector<16x64xf32>
    %698 = arith.mulf %697, %694 : vector<16x64xf32>
    %699 = arith.mulf %698, %694 : vector<16x64xf32>
    %700 = arith.mulf %699, %694 : vector<16x64xf32>
    %701 = arith.addf %694, %700 : vector<16x64xf32>
    %cst_432 = arith.constant 0.797884583 : f32
    %702 = vector.broadcast %cst_432 : f32 to vector<16x64xf32>
    %703 = arith.mulf %702, %701 : vector<16x64xf32>
    %704 = math.tanh %703 : vector<16x64xf32>
    %cst_433 = arith.constant 1.000000e+00 : f32
    %705 = vector.broadcast %cst_433 : f32 to vector<16x64xf32>
    %706 = arith.addf %705, %704 : vector<16x64xf32>
    %707 = arith.mulf %696, %706 : vector<16x64xf32>
    %cst_434 = arith.constant dense<0.000000e+00> : vector<16x32xf32>
    %708 = tpu.matmul %707, %393, %cst_434 {dimension_numbers = #tpu.dot_dimension_numbers<[1], [0], [0], [1], [0, 0, 1, 1], [], []>} : vector<16x64xf32>, vector<64x32xf32>, vector<16x32xf32> -> vector<16x32xf32>
    %709 = vector.broadcast %395 : vector<1x32xf32> to vector<16x32xf32>
    %710 = arith.addf %708, %709 : vector<16x32xf32>
    %711 = arith.addf %691, %710 : vector<16x32xf32>
    %cst_435 = arith.constant dense<0.000000e+00> : vector<16xf32>
    %712 = vector.multi_reduction <add>, %711, %cst_435 [1] : vector<16x32xf32> to vector<16xf32>
    %713 = vector.shape_cast %712 : vector<16xf32> to vector<16x1xf32>
    %cst_436 = arith.constant 3.200000e+01 : f32
    %714 = vector.broadcast %cst_436 : f32 to vector<16x1xf32>
    %715 = arith.divf %713, %714 : vector<16x1xf32>
    %716 = vector.broadcast %715 : vector<16x1xf32> to vector<16x32xf32>
    %717 = arith.subf %711, %716 : vector<16x32xf32>
    %718 = arith.mulf %717, %717 : vector<16x32xf32>
    %cst_437 = arith.constant dense<0.000000e+00> : vector<16xf32>
    %719 = vector.multi_reduction <add>, %718, %cst_437 [1] : vector<16x32xf32> to vector<16xf32>
    %720 = vector.shape_cast %719 : vector<16xf32> to vector<16x1xf32>
    %cst_438 = arith.constant 3.200000e+01 : f32
    %721 = vector.broadcast %cst_438 : f32 to vector<16x1xf32>
    %722 = arith.divf %720, %721 : vector<16x1xf32>
    %723 = vector.broadcast %715 : vector<16x1xf32> to vector<16x32xf32>
    %724 = arith.subf %711, %723 : vector<16x32xf32>
    %cst_439 = arith.constant 9.99999996E-13 : f32
    %725 = vector.broadcast %cst_439 : f32 to vector<16x1xf32>
    %726 = arith.addf %722, %725 : vector<16x1xf32>
    %727 = math.rsqrt %726 : vector<16x1xf32>
    %728 = vector.broadcast %727 : vector<16x1xf32> to vector<16x32xf32>
    %729 = arith.mulf %724, %728 : vector<16x32xf32>
    %730 = vector.broadcast %397 : vector<1x32xf32> to vector<16x32xf32>
    %731 = arith.mulf %729, %730 : vector<16x32xf32>
    %732 = vector.broadcast %399 : vector<1x32xf32> to vector<16x32xf32>
    %733 = arith.addf %731, %732 : vector<16x32xf32>
    %c0_440 = arith.constant 0 : index
    %c0_441 = arith.constant 0 : index
    %734 = vector.load %arg2[%c0_440, %c0_441] : memref<16x1xf32, #tpu.memory_space<vmem>>, vector<16x1xf32>
    %735 = vector.broadcast %734 : vector<16x1xf32> to vector<16x32xf32>
    %736 = arith.mulf %733, %735 : vector<16x32xf32>
    %737 = vector.extract_strided_slice %736 {offsets = [0, 0], sizes = [8, 32], strides = [1, 1]} : vector<16x32xf32> to vector<8x32xf32>
    %cst_442 = arith.constant dense<0.000000e+00> : vector<32xf32>
    %738 = vector.multi_reduction <add>, %737, %cst_442 [0] : vector<8x32xf32> to vector<32xf32>
    %739 = vector.shape_cast %738 : vector<32xf32> to vector<1x32xf32>
    %740 = vector.extract_strided_slice %25 {offsets = [0, 0], sizes = [1, 8], strides = [1, 1]} : vector<2x8xf32> to vector<1x8xf32>
    %cst_443 = arith.constant dense<0.000000e+00> : vector<1xf32>
    %741 = vector.multi_reduction <add>, %740, %cst_443 [1] : vector<1x8xf32> to vector<1xf32>
    %742 = vector.shape_cast %741 : vector<1xf32> to vector<1x1xf32>
    %cst_444 = arith.constant 9.99999997E-7 : f32
    %743 = vector.broadcast %cst_444 : f32 to vector<1x1xf32>
    %744 = arith.addf %742, %743 : vector<1x1xf32>
    %745 = tpu.reciprocal %744 {approx = true} : vector<1x1xf32> -> vector<1x1xf32>
    %746 = vector.broadcast %745 : vector<1x1xf32> to vector<1x32xf32>
    %747 = arith.mulf %739, %746 : vector<1x32xf32>
    %748 = vector.extract_strided_slice %736 {offsets = [8, 0], sizes = [8, 32], strides = [1, 1]} : vector<16x32xf32> to vector<8x32xf32>
    %cst_445 = arith.constant dense<0.000000e+00> : vector<32xf32>
    %749 = vector.multi_reduction <add>, %748, %cst_445 [0] : vector<8x32xf32> to vector<32xf32>
    %750 = vector.shape_cast %749 : vector<32xf32> to vector<1x32xf32>
    %751 = vector.extract_strided_slice %25 {offsets = [1, 0], sizes = [1, 8], strides = [1, 1]} : vector<2x8xf32> to vector<1x8xf32>
    %cst_446 = arith.constant dense<0.000000e+00> : vector<1xf32>
    %752 = vector.multi_reduction <add>, %751, %cst_446 [1] : vector<1x8xf32> to vector<1xf32>
    %753 = vector.shape_cast %752 : vector<1xf32> to vector<1x1xf32>
    %cst_447 = arith.constant 9.99999997E-7 : f32
    %754 = vector.broadcast %cst_447 : f32 to vector<1x1xf32>
    %755 = arith.addf %753, %754 : vector<1x1xf32>
    %756 = tpu.reciprocal %755 {approx = true} : vector<1x1xf32> -> vector<1x1xf32>
    %757 = vector.broadcast %756 : vector<1x1xf32> to vector<1x32xf32>
    %758 = arith.mulf %750, %757 : vector<1x32xf32>
    %759 = tpu.concatenate %747, %758 in 0 : vector<1x32xf32>, vector<1x32xf32> -> vector<2x32xf32>
    %c0_448 = arith.constant 0 : index
    %c0_449 = arith.constant 0 : index
    %760 = vector.load %arg21[%c0_448, %c0_449] : memref<32x2048xf32, #tpu.memory_space<vmem>>, vector<32x2048xf32>
    %cst_450 = arith.constant dense<0.000000e+00> : vector<2x2048xf32>
    %761 = tpu.matmul %759, %760, %cst_450 {dimension_numbers = #tpu.dot_dimension_numbers<[1], [0], [0], [1], [0, 0, 1, 1], [], []>} : vector<2x32xf32>, vector<32x2048xf32>, vector<2x2048xf32> -> vector<2x2048xf32>
    %c0_451 = arith.constant 0 : index
    %c0_452 = arith.constant 0 : index
    %762 = vector.load %arg22[%c0_451, %c0_452] : memref<1x2048xf32, #tpu.memory_space<vmem>>, vector<1x2048xf32>
    %763 = vector.broadcast %762 : vector<1x2048xf32> to vector<2x2048xf32>
    %764 = arith.addf %761, %763 : vector<2x2048xf32>
    %c0_453 = arith.constant 0 : index
    %c0_454 = arith.constant 0 : index
    %765 = vector.load %arg23[%c0_453, %c0_454] : memref<2x2048xf32, #tpu.memory_space<vmem>>, vector<2x2048xf32>
    tpu.vector_store %arg23[%c0_453, %c0_454], %764 {strides = array<i32>} : memref<2x2048xf32, #tpu.memory_space<vmem>>, vector<2x2048xf32>,
    return
  }
}

</mosaic_0001>

<llo_original>
// kernel: tpu_custom_call.1
$region0: #{tpu_custom_call.1}
  #allocation0 [shape = 'u32[]', space=smem, size = 0x4, offset = 0x4, fixed_abs, tag = 'smem constant byte address 0x4 - core index']
  #allocation1 [shape = 'u32[144,128]{1,0:T(1,128)}', space=vmem, size = 0x12000, scoped, tag = 'internal scratch']
  %s0 = inlined_call_operand.vmem [shape: f32[16,32], index: 0, kind: input, shape index: {}]
  %s1 = inlined_call_operand.vmem [shape: f32[2,8], index: 1, kind: input, shape index: {}]
  %s2 = inlined_call_operand.vmem [shape: f32[16,1], index: 2, kind: input, shape index: {}]
  %s3 = inlined_call_operand.vmem [shape: f32[1,32], index: 3, kind: input, shape index: {}]
  %s4 = inlined_call_operand.vmem [shape: f32[1,32], index: 4, kind: input, shape index: {}]
  %s5 = inlined_call_operand.vmem [shape: f32[2,4,32,8], index: 5, kind: input, shape index: {}]
  %s6 = inlined_call_operand.vmem [shape: f32[2,4,1,8], index: 6, kind: input, shape index: {}]
  %s7 = inlined_call_operand.vmem [shape: f32[2,4,32,8], index: 7, kind: input, shape index: {}]
  %s8 = inlined_call_operand.vmem [shape: f32[2,4,1,8], index: 8, kind: input, shape index: {}]
  %s9 = inlined_call_operand.vmem [shape: f32[2,4,32,8], index: 9, kind: input, shape index: {}]
  %s10 = inlined_call_operand.vmem [shape: f32[2,4,1,8], index: 10, kind: input, shape index: {}]
  %s11 = inlined_call_operand.vmem [shape: f32[2,4,8,32], index: 11, kind: input, shape index: {}]
  %s12 = inlined_call_operand.vmem [shape: f32[2,1,32], index: 12, kind: input, shape index: {}]
  %s13 = inlined_call_operand.vmem [shape: f32[2,1,32], index: 13, kind: input, shape index: {}]
  %s14 = inlined_call_operand.vmem [shape: f32[2,1,32], index: 14, kind: input, shape index: {}]
  %s15 = inlined_call_operand.vmem [shape: f32[2,32,64], index: 15, kind: input, shape index: {}]
  %s16 = inlined_call_operand.vmem [shape: f32[2,1,64], index: 16, kind: input, shape index: {}]
  %s17 = inlined_call_operand.vmem [shape: f32[2,64,32], index: 17, kind: input, shape index: {}]
  %s18 = inlined_call_operand.vmem [shape: f32[2,1,32], index: 18, kind: input, shape index: {}]
  %s19 = inlined_call_operand.vmem [shape: f32[2,1,32], index: 19, kind: input, shape index: {}]
  %s20 = inlined_call_operand.vmem [shape: f32[2,1,32], index: 20, kind: input, shape index: {}]
  %s21 = inlined_call_operand.vmem [shape: f32[32,2048], index: 21, kind: input, shape index: {}]
  %s22 = inlined_call_operand.vmem [shape: f32[1,2048], index: 22, kind: input, shape index: {}]
  %s23 = inlined_call_operand.hbm [shape: f32[2,2048], index: 23, kind: output, shape index: {}]
  %s24 = sld [smem:[#allocation0]]
  $region102: #{tpu_custom_call.1} parent=0
    _
  %s26 = ssub.s32 1, %s24
  %s27 = scalar_select 0, %s26, %s24
  $region1: #{tpu_custom_call.1} parent=0
    #allocation2 [shape = 'u8[16384]{0}', space=vmem, size = 0x4000, scoped, tag = 'output window, operand 0, single buffered']
    #allocation3 [shape = 's32[1]{0}', space=sflag, size = 0x4, scoped, tag = 'scoped memory for tpu_custom_call.1']
    %28 = vsyncpa [#allocation3], 0
    // Predicated region
    $region2: #{tpu_custom_call.1} parent=1 // pred_check
      _
    $region3: #{tpu_custom_call.1} parent=1 // pred_check_branch
      %30 = sbr.rel (0) target = $region5
    $region4: #{tpu_custom_call.1} parent=1 // pred_region
      _
    $region5: #{tpu_custom_call.1} parent=1 // pred_fallthru
      _
    // Predicated region
    $region6: #{tpu_custom_call.1} parent=1 // pred_check
      _
    $region7: #{tpu_custom_call.1} parent=1 // pred_check_branch
      %32 = sbr.rel (0) target = $region9
    $region8: #{tpu_custom_call.1} parent=1 // pred_region
      _
    $region9: #{tpu_custom_call.1} parent=1 // pred_fallthru
      _
    // Predicated region
    $region10: #{tpu_custom_call.1} parent=1 // pred_check
      _
    $region11: #{tpu_custom_call.1} parent=1 // pred_check_branch
      %34 = sbr.rel (0) target = $region13
    $region12: #{tpu_custom_call.1} parent=1 // pred_region
      _
    $region13: #{tpu_custom_call.1} parent=1 // pred_fallthru
      _
    // Predicated region
    $region14: #{tpu_custom_call.1} parent=1 // pred_check
      _
    $region15: #{tpu_custom_call.1} parent=1 // pred_check_branch
      %36 = sbr.rel (0) target = $region17
    $region16: #{tpu_custom_call.1} parent=1 // pred_region
      _
    $region17: #{tpu_custom_call.1} parent=1 // pred_fallthru
      _
    // Predicated region
    $region18: #{tpu_custom_call.1} parent=1 // pred_check
      _
    $region19: #{tpu_custom_call.1} parent=1 // pred_check_branch
      %38 = sbr.rel (0) target = $region21
    $region20: #{tpu_custom_call.1} parent=1 // pred_region
      _
    $region21: #{tpu_custom_call.1} parent=1 // pred_fallthru
      _
    // Predicated region
    $region22: #{tpu_custom_call.1} parent=1 // pred_check
      _
    $region23: #{tpu_custom_call.1} parent=1 // pred_check_branch
      %40 = sbr.rel (0) target = $region25
    $region24: #{tpu_custom_call.1} parent=1 // pred_region
      _
    $region25: #{tpu_custom_call.1} parent=1 // pred_fallthru
      _
    // Predicated region
    $region26: #{tpu_custom_call.1} parent=1 // pred_check
      _
    $region27: #{tpu_custom_call.1} parent=1 // pred_check_branch
      %42 = sbr.rel (0) target = $region29
    $region28: #{tpu_custom_call.1} parent=1 // pred_region
      _
    $region29: #{tpu_custom_call.1} parent=1 // pred_fallthru
      _
    // Predicated region
    $region30: #{tpu_custom_call.1} parent=1 // pred_check
      _
    $region31: #{tpu_custom_call.1} parent=1 // pred_check_branch
      %44 = sbr.rel (0) target = $region33
    $region32: #{tpu_custom_call.1} parent=1 // pred_region
      _
    $region33: #{tpu_custom_call.1} parent=1 // pred_fallthru
      _
    // Predicated region
    $region34: #{tpu_custom_call.1} parent=1 // pred_check
      _
    $region35: #{tpu_custom_call.1} parent=1 // pred_check_branch
      %46 = sbr.rel (0) target = $region37
    $region36: #{tpu_custom_call.1} parent=1 // pred_region
      _
    $region37: #{tpu_custom_call.1} parent=1 // pred_fallthru
      _
    // Predicated region
    $region38: #{tpu_custom_call.1} parent=1 // pred_check
      _
    $region39: #{tpu_custom_call.1} parent=1 // pred_check_branch
      %48 = sbr.rel (0) target = $region41
    $region40: #{tpu_custom_call.1} parent=1 // pred_region
      _
    $region41: #{tpu_custom_call.1} parent=1 // pred_fallthru
      _
    // Predicated region
    $region42: #{tpu_custom_call.1} parent=1 // pred_check
      _
    $region43: #{tpu_custom_call.1} parent=1 // pred_check_branch
      %50 = sbr.rel (0) target = $region45
    $region44: #{tpu_custom_call.1} parent=1 // pred_region
      _
    $region45: #{tpu_custom_call.1} parent=1 // pred_fallthru
      _
    // Predicated region
    $region46: #{tpu_custom_call.1} parent=1 // pred_check
      _
    $region47: #{tpu_custom_call.1} parent=1 // pred_check_branch
      %52 = sbr.rel (0) target = $region49
    $region48: #{tpu_custom_call.1} parent=1 // pred_region
      _
    $region49: #{tpu_custom_call.1} parent=1 // pred_fallthru
      _
    // Predicated region
    $region50: #{tpu_custom_call.1} parent=1 // pred_check
      _
    $region51: #{tpu_custom_call.1} parent=1 // pred_check_branch
      %54 = sbr.rel (0) target = $region53
    $region52: #{tpu_custom_call.1} parent=1 // pred_region
      _
    $region53: #{tpu_custom_call.1} parent=1 // pred_fallthru
      _
    // Predicated region
    $region54: #{tpu_custom_call.1} parent=1 // pred_check
      _
    $region55: #{tpu_custom_call.1} parent=1 // pred_check_branch
      %56 = sbr.rel (0) target = $region57
    $region56: #{tpu_custom_call.1} parent=1 // pred_region
      _
    $region57: #{tpu_custom_call.1} parent=1 // pred_fallthru
      _
    // Predicated region
    $region58: #{tpu_custom_call.1} parent=1 // pred_check
      _
    $region59: #{tpu_custom_call.1} parent=1 // pred_check_branch
      %58 = sbr.rel (0) target = $region61
    $region60: #{tpu_custom_call.1} parent=1 // pred_region
      _
    $region61: #{tpu_custom_call.1} parent=1 // pred_fallthru
      _
    // Predicated region
    $region62: #{tpu_custom_call.1} parent=1 // pred_check
      _
    $region63: #{tpu_custom_call.1} parent=1 // pred_check_branch
      %60 = sbr.rel (0) target = $region65
    $region64: #{tpu_custom_call.1} parent=1 // pred_region
      _
    $region65: #{tpu_custom_call.1} parent=1 // pred_fallthru
      _
    // Predicated region
    $region66: #{tpu_custom_call.1} parent=1 // pred_check
      _
    $region67: #{tpu_custom_call.1} parent=1 // pred_check_branch
      %62 = sbr.rel (0) target = $region69
    $region68: #{tpu_custom_call.1} parent=1 // pred_region
      _
    $region69: #{tpu_custom_call.1} parent=1 // pred_fallthru
      _
    // Predicated region
    $region70: #{tpu_custom_call.1} parent=1 // pred_check
      _
    $region71: #{tpu_custom_call.1} parent=1 // pred_check_branch
      %64 = sbr.rel (0) target = $region73
    $region72: #{tpu_custom_call.1} parent=1 // pred_region
      _
    $region73: #{tpu_custom_call.1} parent=1 // pred_fallthru
      _
    // Predicated region
    $region74: #{tpu_custom_call.1} parent=1 // pred_check
      _
    $region75: #{tpu_custom_call.1} parent=1 // pred_check_branch
      %66 = sbr.rel (0) target = $region77
    $region76: #{tpu_custom_call.1} parent=1 // pred_region
      _
    $region77: #{tpu_custom_call.1} parent=1 // pred_fallthru
      _
    // Predicated region
    $region78: #{tpu_custom_call.1} parent=1 // pred_check
      _
    $region79: #{tpu_custom_call.1} parent=1 // pred_check_branch
      %68 = sbr.rel (0) target = $region81
    $region80: #{tpu_custom_call.1} parent=1 // pred_region
      _
    $region81: #{tpu_custom_call.1} parent=1 // pred_fallthru
      _
    // Predicated region
    $region82: #{tpu_custom_call.1} parent=1 // pred_check
      _
    $region83: #{tpu_custom_call.1} parent=1 // pred_check_branch
      %70 = sbr.rel (0) target = $region85
    $region84: #{tpu_custom_call.1} parent=1 // pred_region
      _
    $region85: #{tpu_custom_call.1} parent=1 // pred_fallthru
      _
    // Predicated region
    $region86: #{tpu_custom_call.1} parent=1 // pred_check
      _
    $region87: #{tpu_custom_call.1} parent=1 // pred_check_branch
      %72 = sbr.rel (0) target = $region89
    $region88: #{tpu_custom_call.1} parent=1 // pred_region
      _
    $region89: #{tpu_custom_call.1} parent=1 // pred_fallthru
      _
    // Predicated region
    $region90: #{tpu_custom_call.1} parent=1 // pred_check
      _
    $region91: #{tpu_custom_call.1} parent=1 // pred_check_branch
      %74 = sbr.rel (0) target = $region93
    $region92: #{tpu_custom_call.1} parent=1 // pred_region
      _
    $region93: #{tpu_custom_call.1} parent=1 // pred_fallthru
      _
    %v75 = vld [vmem:[%s0] sm:$0xff]
    %v76 = vld [vmem:[%s0 + $0x8] sm:$0xff]
    %v77 = vld [vmem:[%s3] sm:$0x1]
    %v78 = vld [vmem:[%s4] sm:$0x1]
    %vm79 = vcmask 261120
    %v80 = vsel %vm79, %v75, 0.0
    %81 = vadd.xlane.f32.xlu0 %v80
    %v82 = vpop.xlane.xlu0 %81
    %v83 = vsel %vm79, %v76, 0.0
    %84 = vadd.xlane.f32.xlu0 %v83
    %v85 = vpop.xlane.xlu0 %84
    %v86 = vrcp.pop 32.0
    %v87 = vmul.f32 %v82, %v86
    %v88 = vmul.f32 %v85, %v86
    %v89 = vsub.f32 %v75, %v87
    %v90 = vsub.f32 %v76, %v88
    %v91 = vmul.f32 %v89, %v89
    %v92 = vmul.f32 %v90, %v90
    %v93 = vsel %vm79, %v91, 0.0
    %94 = vadd.xlane.f32.xlu0 %v93
    %v95 = vpop.xlane.xlu0 %94
    %v96 = vsel %vm79, %v92, 0.0
    %97 = vadd.xlane.f32.xlu0 %v96
    %v98 = vpop.xlane.xlu0 %97
    %v99 = vmul.f32 %v95, %v86
    %v100 = vmul.f32 %v98, %v86
    %v101 = vadd.f32 %v99, 1e-12
    %v102 = vadd.f32 %v100, 1e-12
    %v103 = vrsqrt.pop %v101
    %v104 = vrsqrt.pop %v102
    %v105 = vmul.f32 %v89, %v103
    %v106 = vmul.f32 %v90, %v104
    %v108 = vlaneseq
    %v109 = vshrl.u32 %v108, 7
    %v110 = vsub.s32 0, %v109
    %v111 = vrot.slane %v77, %v110
    %v113 = vmul.f32 %v105, %v111
    %v114 = vmul.f32 %v106, %v111
    %v116 = vlaneseq
    %v117 = vshrl.u32 %v116, 7
    %v118 = vsub.s32 0, %v117
    %v119 = vrot.slane %v78, %v118
    %v121 = vadd.f32 %v113, %v119
    %v122 = vadd.f32 %v114, %v119
    %v123 = vld [vmem:[%s1] sm:$0x3]
    %v124 = vsub.f32 1.0, %v123
    %v125 = vmul.f32 %v124, -1e+09
    %v126 = vld [vmem:[%s12] sm:$0x1]
    %v127 = vld [vmem:[%s13] sm:$0x1]
    %v128 = vld [vmem:[%s14] sm:$0x1]
    %v129 = vld [vmem:[%s15] sm:$0xff]
    %v130 = vld [vmem:[%s15 + $0x8] sm:$0xff]
    %v131 = vld [vmem:[%s15 + $0x10] sm:$0xff]
    %v132 = vld [vmem:[%s15 + $0x18] sm:$0xff]
    %v133 = vld [vmem:[%s16] sm:$0x1]
    %v134 = vld [vmem:[%s17] sm:$0xff]
    %v135 = vld [vmem:[%s17 + $0x8] sm:$0xff]
    %v136 = vld [vmem:[%s17 + $0x10] sm:$0xff]
    %v137 = vld [vmem:[%s17 + $0x18] sm:$0xff]
    %v138 = vld [vmem:[%s17 + $0x20] sm:$0xff]
    %v139 = vld [vmem:[%s17 + $0x28] sm:$0xff]
    %v140 = vld [vmem:[%s17 + $0x30] sm:$0xff]
    %v141 = vld [vmem:[%s17 + $0x38] sm:$0xff]
    %v142 = vld [vmem:[%s18] sm:$0x1]
    %v143 = vld [vmem:[%s19] sm:$0x1]
    %v144 = vld [vmem:[%s20] sm:$0x1]
    %v145 = vld [vmem:[%s5] sm:$0xff]
    %v146 = vld [vmem:[%s5 + $0x8] sm:$0xff]
    %v147 = vld [vmem:[%s5 + $0x10] sm:$0xff]
    %v148 = vld [vmem:[%s5 + $0x18] sm:$0xff]
    %v149 = vld [vmem:[%s6] sm:$0x1]
    %v150 = vld [vmem:[%s7] sm:$0xff]
    %v151 = vld [vmem:[%s7 + $0x8] sm:$0xff]
    %v152 = vld [vmem:[%s7 + $0x10] sm:$0xff]
    %v153 = vld [vmem:[%s7 + $0x18] sm:$0xff]
    %v154 = vld [vmem:[%s8] sm:$0x1]
    %v155 = vld [vmem:[%s9] sm:$0xff]
    %v156 = vld [vmem:[%s9 + $0x8] sm:$0xff]
    %v157 = vld [vmem:[%s9 + $0x10] sm:$0xff]
    %v158 = vld [vmem:[%s9 + $0x18] sm:$0xff]
    %v159 = vld [vmem:[%s10] sm:$0x1]
    %v160 = vld [vmem:[%s11] sm:$0xff]
    %v162 = vlaneseq
    %v163 = vshrl.u32 %v162, 7
    %v164 = vsub.s32 0, %v163
    %v165 = vrot.slane %v149, %v164
    %v168 = vsel %vm79, %v121, 0
    %v171 = vsel %vm79, %v122, 0
    %173 = vmatprep.subr.mxu0 0.0
    %174 = vmatpush1.msra.mxu0 %v145
    %175 = vmatprep.subr.mxu0 0.0
    %176 = vmatpush1.msra.mxu0 %v146
    %177 = vmatprep.subr.mxu0 0.0
    %178 = vmatpush1.msra.mxu0 %v147
    %179 = vmatprep.subr.mxu0 0.0
    %180 = vmatpush1.msra.mxu0 %v148
    %181 = vmatprep.subr.mxu0 0.0
    %182 = vmatpush1.msra.mxu0 0.0
    %183 = vmatprep.subr.mxu0 0.0
    %184 = vmatpush1.msra.mxu0 0.0
    %185 = vmatprep.subr.mxu0 0.0
    %186 = vmatpush1.msra.mxu0 0.0
    %187 = vmatprep.subr.mxu0 0.0
    %188 = vmatpush1.msra.mxu0 0.0
    %189 = vmatprep.subr.mxu0 0.0
    %190 = vmatpush1.msra.mxu0 0.0
    %191 = vmatprep.subr.mxu0 0.0
    %192 = vmatpush1.msra.mxu0 0.0
    %193 = vmatprep.subr.mxu0 0.0
    %194 = vmatpush1.msra.mxu0 0.0
    %195 = vmatprep.subr.mxu0 0.0
    %196 = vmatpush1.msra.mxu0 0.0
    %197 = vmatprep.subr.mxu0 0.0
    %198 = vmatpush1.msra.mxu0 0.0
    %199 = vmatprep.subr.mxu0 0.0
    %200 = vmatpush1.msra.mxu0 0.0
    %201 = vmatprep.subr.mxu0 0.0
    %202 = vmatpush1.msra.mxu0 0.0
    %203 = vmatprep.subr.mxu0 0.0
    %204 = vmatpush1.msra.mxu0 0.0
    %205 = vmatprep.subr.mxu0 0.0
    %206 = vmatpush1.msra.mxu0 0.0
    %207 = vmatprep.subr.mxu0 0.0
    %208 = vmatpush1.msra.mxu0 0.0
    %209 = vmatprep.subr.mxu0 0.0
    %210 = vmatpush1.msra.mxu0 0.0
    %211 = vmatprep.subr.mxu0 0.0
    %212 = vmatpush1.msra.mxu0 0.0
    %213 = vmatprep.subr.mxu0 0.0
    %214 = vmatpush1.msra.mxu0 0.0
    %215 = vmatprep.subr.mxu0 0.0
    %216 = vmatpush1.msra.mxu0 0.0
    %217 = vmatprep.subr.mxu0 0.0
    %218 = vmatpush1.msra.mxu0 0.0
    %219 = vmatprep.subr.mxu0 0.0
    %220 = vmatpush1.msra.mxu0 0.0
    %221 = vmatprep.subr.mxu0 0.0
    %222 = vmatpush1.msra.mxu0 0.0
    %223 = vmatprep.subr.mxu0 0.0
    %224 = vmatpush1.msra.mxu0 0.0
    %225 = vmatprep.subr.mxu0 0.0
    %226 = vmatpush1.msra.mxu0 0.0
    %227 = vmatprep.subr.mxu0 0.0
    %228 = vmatpush1.msra.mxu0 0.0
    %229 = vmatprep.subr.mxu0 0.0
    %230 = vmatpush1.msra.mxu0 0.0
    %231 = vmatprep.subr.mxu0 0.0
    %232 = vmatpush1.msra.mxu0 0.0
    %233 = vmatprep.subr.mxu0 0.0
    %234 = vmatpush1.msra.mxu0 0.0
    %235 = vmatprep.subr.mxu0 0.0
    %236 = vmatpush1.msra.mxu0 0.0
    %237 = vmatprep.mubr.f32.mxu0 0.0
    %238 = vmatmul.mubr.f32.gmra.mrb[0].mxu0 %v168
    %v239 = vpop.f32.mrb[0].mxu0
    %v240 = vadd.f32 %v165, %v239
    %v241 = vpop.f32.mrb[0].mxu0
    %242 = vmatprep.mubr.f32.mxu0 0.0
    %243 = vmatmul.mubr.f32.gmra.mrb[0].mxu0 %v171
    %v244 = vpop.f32.mrb[0].mxu0
    %v245 = vadd.f32 %v165, %v244
    %v246 = vpop.f32.mrb[0].mxu0
    %247 = vdwg.mxu0
    %v249 = vlaneseq
    %v250 = vshrl.u32 %v249, 7
    %v251 = vsub.s32 0, %v250
    %v252 = vrot.slane %v154, %v251
    %254 = vmatprep.subr.mxu0 0.0
    %255 = vmatpush1.msra.mxu0 %v150
    %256 = vmatprep.subr.mxu0 0.0
    %257 = vmatpush1.msra.mxu0 %v151
    %258 = vmatprep.subr.mxu0 0.0
    %259 = vmatpush1.msra.mxu0 %v152
    %260 = vmatprep.subr.mxu0 0.0
    %261 = vmatpush1.msra.mxu0 %v153
    %262 = vmatprep.subr.mxu0 0.0
    %263 = vmatpush1.msra.mxu0 0.0
    %264 = vmatprep.subr.mxu0 0.0
    %265 = vmatpush1.msra.mxu0 0.0
    %266 = vmatprep.subr.mxu0 0.0
    %267 = vmatpush1.msra.mxu0 0.0
    %268 = vmatprep.subr.mxu0 0.0
    %269 = vmatpush1.msra.mxu0 0.0
    %270 = vmatprep.subr.mxu0 0.0
    %271 = vmatpush1.msra.mxu0 0.0
    %272 = vmatprep.subr.mxu0 0.0
    %273 = vmatpush1.msra.mxu0 0.0
    %274 = vmatprep.subr.mxu0 0.0
    %275 = vmatpush1.msra.mxu0 0.0
    %276 = vmatprep.subr.mxu0 0.0
    %277 = vmatpush1.msra.mxu0 0.0
    %278 = vmatprep.subr.mxu0 0.0
    %279 = vmatpush1.msra.mxu0 0.0
    %280 = vmatprep.subr.mxu0 0.0
    %281 = vmatpush1.msra.mxu0 0.0
    %282 = vmatprep.subr.mxu0 0.0
    %283 = vmatpush1.msra.mxu0 0.0
    %284 = vmatprep.subr.mxu0 0.0
    %285 = vmatpush1.msra.mxu0 0.0
    %286 = vmatprep.subr.mxu0 0.0
    %287 = vmatpush1.msra.mxu0 0.0
    %288 = vmatprep.subr.mxu0 0.0
    %289 = vmatpush1.msra.mxu0 0.0
    %290 = vmatprep.subr.mxu0 0.0
    %291 = vmatpush1.msra.mxu0 0.0
    %292 = vmatprep.subr.mxu0 0.0
    %293 = vmatpush1.msra.mxu0 0.0
    %294 = vmatprep.subr.mxu0 0.0
    %295 = vmatpush1.msra.mxu0 0.0
    %296 = vmatprep.subr.mxu0 0.0
    %297 = vmatpush1.msra.mxu0 0.0
    %298 = vmatprep.subr.mxu0 0.0
    %299 = vmatpush1.msra.mxu0 0.0
    %300 = vmatprep.subr.mxu0 0.0
    %301 = vmatpush1.msra.mxu0 0.0
    %302 = vmatprep.subr.mxu0 0.0
    %303 = vmatpush1.msra.mxu0 0.0
    %304 = vmatprep.subr.mxu0 0.0
    %305 = vmatpush1.msra.mxu0 0.0
    %306 = vmatprep.subr.mxu0 0.0
    %307 = vmatpush1.msra.mxu0 0.0
    %308 = vmatprep.subr.mxu0 0.0
    %309 = vmatpush1.msra.mxu0 0.0
    %310 = vmatprep.subr.mxu0 0.0
    %311 = vmatpush1.msra.mxu0 0.0
    %312 = vmatprep.subr.mxu0 0.0
    %313 = vmatpush1.msra.mxu0 0.0
    %314 = vmatprep.subr.mxu0 0.0
    %315 = vmatpush1.msra.mxu0 0.0
    %316 = vmatprep.subr.mxu0 0.0
    %317 = vmatpush1.msra.mxu0 0.0
    %318 = vmatprep.mubr.f32.mxu0 0.0
    %319 = vmatmul.mubr.f32.gmra.mrb[0].mxu0 %v168
    %v320 = vpop.f32.mrb[0].mxu0
    %v321 = vadd.f32 %v252, %v320
    %v322 = vpop.f32.mrb[0].mxu0
    %323 = vmatprep.mubr.f32.mxu0 0.0
    %324 = vmatmul.mubr.f32.gmra.mrb[0].mxu0 %v171
    %v325 = vpop.f32.mrb[0].mxu0
    %v326 = vadd.f32 %v252, %v325
    %v327 = vpop.f32.mrb[0].mxu0
    %328 = vdwg.mxu0
    %v330 = vlaneseq
    %v331 = vshrl.u32 %v330, 7
    %v332 = vsub.s32 0, %v331
    %v333 = vrot.slane %v159, %v332
    %335 = vmatprep.subr.mxu0 0.0
    %336 = vmatpush1.msra.mxu0 %v155
    %337 = vmatprep.subr.mxu0 0.0
    %338 = vmatpush1.msra.mxu0 %v156
    %339 = vmatprep.subr.mxu0 0.0
    %340 = vmatpush1.msra.mxu0 %v157
    %341 = vmatprep.subr.mxu0 0.0
    %342 = vmatpush1.msra.mxu0 %v158
    %343 = vmatprep.subr.mxu0 0.0
    %344 = vmatpush1.msra.mxu0 0.0
    %345 = vmatprep.subr.mxu0 0.0
    %346 = vmatpush1.msra.mxu0 0.0
    %347 = vmatprep.subr.mxu0 0.0
    %348 = vmatpush1.msra.mxu0 0.0
    %349 = vmatprep.subr.mxu0 0.0
    %350 = vmatpush1.msra.mxu0 0.0
    %351 = vmatprep.subr.mxu0 0.0
    %352 = vmatpush1.msra.mxu0 0.0
    %353 = vmatprep.subr.mxu0 0.0
    %354 = vmatpush1.msra.mxu0 0.0
    %355 = vmatprep.subr.mxu0 0.0
    %356 = vmatpush1.msra.mxu0 0.0
    %357 = vmatprep.subr.mxu0 0.0
    %358 = vmatpush1.msra.mxu0 0.0
    %359 = vmatprep.subr.mxu0 0.0
    %360 = vmatpush1.msra.mxu0 0.0
    %361 = vmatprep.subr.mxu0 0.0
    %362 = vmatpush1.msra.mxu0 0.0
    %363 = vmatprep.subr.mxu0 0.0
    %364 = vmatpush1.msra.mxu0 0.0
    %365 = vmatprep.subr.mxu0 0.0
    %366 = vmatpush1.msra.mxu0 0.0
    %367 = vmatprep.subr.mxu0 0.0
    %368 = vmatpush1.msra.mxu0 0.0
    %369 = vmatprep.subr.mxu0 0.0
    %370 = vmatpush1.msra.mxu0 0.0
    %371 = vmatprep.subr.mxu0 0.0
    %372 = vmatpush1.msra.mxu0 0.0
    %373 = vmatprep.subr.mxu0 0.0
    %374 = vmatpush1.msra.mxu0 0.0
    %375 = vmatprep.subr.mxu0 0.0
    %376 = vmatpush1.msra.mxu0 0.0
    %377 = vmatprep.subr.mxu0 0.0
    %378 = vmatpush1.msra.mxu0 0.0
    %379 = vmatprep.subr.mxu0 0.0
    %380 = vmatpush1.msra.mxu0 0.0
    %381 = vmatprep.subr.mxu0 0.0
    %382 = vmatpush1.msra.mxu0 0.0
    %383 = vmatprep.subr.mxu0 0.0
    %384 = vmatpush1.msra.mxu0 0.0
    %385 = vmatprep.subr.mxu0 0.0
    %386 = vmatpush1.msra.mxu0 0.0
    %387 = vmatprep.subr.mxu0 0.0
    %388 = vmatpush1.msra.mxu0 0.0
    %389 = vmatprep.subr.mxu0 0.0
    %390 = vmatpush1.msra.mxu0 0.0
    %391 = vmatprep.subr.mxu0 0.0
    %392 = vmatpush1.msra.mxu0 0.0
    %393 = vmatprep.subr.mxu0 0.0
    %394 = vmatpush1.msra.mxu0 0.0
    %395 = vmatprep.subr.mxu0 0.0
    %396 = vmatpush1.msra.mxu0 0.0
    %397 = vmatprep.subr.mxu0 0.0
    %398 = vmatpush1.msra.mxu0 0.0
    %399 = vmatprep.mubr.f32.mxu0 0.0
    %400 = vmatmul.mubr.f32.gmra.mrb[0].mxu0 %v168
    %v401 = vpop.f32.mrb[0].mxu0
    %v402 = vadd.f32 %v333, %v401
    %v403 = vpop.f32.mrb[0].mxu0
    %404 = vmatprep.mubr.f32.mxu0 0.0
    %405 = vmatmul.mubr.f32.gmra.mrb[0].mxu0 %v171
    %v406 = vpop.f32.mrb[0].mxu0
    %v407 = vadd.f32 %v333, %v406
    %v408 = vpop.f32.mrb[0].mxu0
    %409 = vdwg.mxu0
    %vm410 = vcmask 64512
    %v412 = vsel %vm410, %v240, 0
    %v415 = vsel %vm410, %v321, 0
    %417 = vmatprep.subr.mxu0 0.0
    %418 = vmatpush1.xpose.msra.mxu0 %v415
    %419 = vmatprep.subr.mxu0 0.0
    %420 = vmatpush1.xpose.msra.mxu0 0.0
    %421 = vmatprep.subr.mxu0 0.0
    %422 = vmatpush1.xpose.msra.mxu0 0.0
    %423 = vmatprep.subr.mxu0 0.0
    %424 = vmatpush1.xpose.msra.mxu0 0.0
    %425 = vmatprep.subr.mxu0 0.0
    %426 = vmatpush1.xpose.msra.mxu0 0.0
    %427 = vmatprep.subr.mxu0 0.0
    %428 = vmatpush1.xpose.msra.mxu0 0.0
    %429 = vmatprep.subr.mxu0 0.0
    %430 = vmatpush1.xpose.msra.mxu0 0.0
    %431 = vmatprep.subr.mxu0 0.0
    %432 = vmatpush1.xpose.msra.mxu0 0.0
    %433 = vmatprep.subr.mxu0 0.0
    %434 = vmatpush1.xpose.msra.mxu0 0.0
    %435 = vmatprep.subr.mxu0 0.0
    %436 = vmatpush1.xpose.msra.mxu0 0.0
    %437 = vmatprep.subr.mxu0 0.0
    %438 = vmatpush1.xpose.msra.mxu0 0.0
    %439 = vmatprep.subr.mxu0 0.0
    %440 = vmatpush1.xpose.msra.mxu0 0.0
    %441 = vmatprep.subr.mxu0 0.0
    %442 = vmatpush1.xpose.msra.mxu0 0.0
    %443 = vmatprep.subr.mxu0 0.0
    %444 = vmatpush1.xpose.msra.mxu0 0.0
    %445 = vmatprep.subr.mxu0 0.0
    %446 = vmatpush1.xpose.msra.mxu0 0.0
    %447 = vmatprep.subr.mxu0 0.0
    %448 = vmatpush1.xpose.msra.mxu0 0.0
    %449 = vmatprep.subr.mxu0 0.0
    %450 = vmatpush1.xpose.msra.mxu0 0.0
    %451 = vmatprep.subr.mxu0 0.0
    %452 = vmatpush1.xpose.msra.mxu0 0.0
    %453 = vmatprep.subr.mxu0 0.0
    %454 = vmatpush1.xpose.msra.mxu0 0.0
    %455 = vmatprep.subr.mxu0 0.0
    %456 = vmatpush1.xpose.msra.mxu0 0.0
    %457 = vmatprep.subr.mxu0 0.0
    %458 = vmatpush1.xpose.msra.mxu0 0.0
    %459 = vmatprep.subr.mxu0 0.0
    %460 = vmatpush1.xpose.msra.mxu0 0.0
    %461 = vmatprep.subr.mxu0 0.0
    %462 = vmatpush1.xpose.msra.mxu0 0.0
    %463 = vmatprep.subr.mxu0 0.0
    %464 = vmatpush1.xpose.msra.mxu0 0.0
    %465 = vmatprep.subr.mxu0 0.0
    %466 = vmatpush1.xpose.msra.mxu0 0.0
    %467 = vmatprep.subr.mxu0 0.0
    %468 = vmatpush1.xpose.msra.mxu0 0.0
    %469 = vmatprep.subr.mxu0 0.0
    %470 = vmatpush1.xpose.msra.mxu0 0.0
    %471 = vmatprep.subr.mxu0 0.0
    %472 = vmatpush1.xpose.msra.mxu0 0.0
    %473 = vmatprep.subr.mxu0 0.0
    %474 = vmatpush1.xpose.msra.mxu0 0.0
    %475 = vmatprep.subr.mxu0 0.0
    %476 = vmatpush1.xpose.msra.mxu0 0.0
    %477 = vmatprep.subr.mxu0 0.0
    %478 = vmatpush1.xpose.msra.mxu0 0.0
    %479 = vmatprep.subr.mxu0 0.0
    %480 = vmatpush1.xpose.msra.mxu0 0.0
    %481 = vmatprep.mubr.f32.mxu0 0.0
    %482 = vmatmul.mubr.f32.gmra.mrb[0].mxu0 %v412
    %v483 = vpop.f32.mrb[0].mxu0
    %v484 = vadd.f32 0.0, %v483
    %v485 = vpop.f32.mrb[0].mxu0
    %486 = vdwg.mxu0
    %v487 = vmul.f32 %v484, 0.35355338
    %v488 = vlaneseq
    %v489 = vshrl.u32 %v488, 7
    %v490 = vsub.s32 0, %v489
    %v491 = vrot.slane %v125, %v490
    %v492 = vadd.f32 %v487, %v491
    %v493 = vsel %vm410, %v492, -inf
    %494 = vmax.xlane.f32.xlu0 %v493
    %v495 = vpop.xlane.xlu0 %494
    %v496 = vsub.f32 %v492, %v495
    %v497 = vmul.f32 %v496, 1.442695
    %v498 = vpow.pop %v497
    %v499 = vsel %vm410, %v498, 0.0
    %500 = vadd.xlane.f32.xlu0 %v499
    %v501 = vpop.xlane.xlu0 %500
    %v502 = vrcp.pop %v501
    %v503 = vmul.f32 %v498, %v502
    %v505 = vsel %vm410, %v503, 0
    %507 = vmatprep.subr.mxu0 0.0
    %508 = vmatpush1.msra.mxu0 %v402
    %509 = vmatprep.subr.mxu0 0.0
    %510 = vmatpush1.msra.mxu0 0.0
    %511 = vmatprep.subr.mxu0 0.0
    %512 = vmatpush1.msra.mxu0 0.0
    %513 = vmatprep.subr.mxu0 0.0
    %514 = vmatpush1.msra.mxu0 0.0
    %515 = vmatprep.subr.mxu0 0.0
    %516 = vmatpush1.msra.mxu0 0.0
    %517 = vmatprep.subr.mxu0 0.0
    %518 = vmatpush1.msra.mxu0 0.0
    %519 = vmatprep.subr.mxu0 0.0
    %520 = vmatpush1.msra.mxu0 0.0
    %521 = vmatprep.subr.mxu0 0.0
    %522 = vmatpush1.msra.mxu0 0.0
    %523 = vmatprep.subr.mxu0 0.0
    %524 = vmatpush1.msra.mxu0 0.0
    %525 = vmatprep.subr.mxu0 0.0
    %526 = vmatpush1.msra.mxu0 0.0
    %527 = vmatprep.subr.mxu0 0.0
    %528 = vmatpush1.msra.mxu0 0.0
    %529 = vmatprep.subr.mxu0 0.0
    %530 = vmatpush1.msra.mxu0 0.0
    %531 = vmatprep.subr.mxu0 0.0
    %532 = vmatpush1.msra.mxu0 0.0
    %533 = vmatprep.subr.mxu0 0.0
    %534 = vmatpush1.msra.mxu0 0.0
    %535 = vmatprep.subr.mxu0 0.0
    %536 = vmatpush1.msra.mxu0 0.0
    %537 = vmatprep.subr.mxu0 0.0
    %538 = vmatpush1.msra.mxu0 0.0
    %539 = vmatprep.subr.mxu0 0.0
    %540 = vmatpush1.msra.mxu0 0.0
    %541 = vmatprep.subr.mxu0 0.0
    %542 = vmatpush1.msra.mxu0 0.0
    %543 = vmatprep.subr.mxu0 0.0
    %544 = vmatpush1.msra.mxu0 0.0
    %545 = vmatprep.subr.mxu0 0.0
    %546 = vmatpush1.msra.mxu0 0.0
    %547 = vmatprep.subr.mxu0 0.0
    %548 = vmatpush1.msra.mxu0 0.0
    %549 = vmatprep.subr.mxu0 0.0
    %550 = vmatpush1.msra.mxu0 0.0
    %551 = vmatprep.subr.mxu0 0.0
    %552 = vmatpush1.msra.mxu0 0.0
    %553 = vmatprep.subr.mxu0 0.0
    %554 = vmatpush1.msra.mxu0 0.0
    %555 = vmatprep.subr.mxu0 0.0
    %556 = vmatpush1.msra.mxu0 0.0
    %557 = vmatprep.subr.mxu0 0.0
    %558 = vmatpush1.msra.mxu0 0.0
    %559 = vmatprep.subr.mxu0 0.0
    %560 = vmatpush1.msra.mxu0 0.0
    %561 = vmatprep.subr.mxu0 0.0
    %562 = vmatpush1.msra.mxu0 0.0
    %563 = vmatprep.subr.mxu0 0.0
    %564 = vmatpush1.msra.mxu0 0.0
    %565 = vmatprep.subr.mxu0 0.0
    %566 = vmatpush1.msra.mxu0 0.0
    %567 = vmatprep.subr.mxu0 0.0
    %568 = vmatpush1.msra.mxu0 0.0
    %569 = vmatprep.subr.mxu0 0.0
    %570 = vmatpush1.msra.mxu0 0.0
    %571 = vmatprep.mubr.f32.mxu0 0.0
    %572 = vmatmul.mubr.f32.gmra.mrb[0].mxu0 %v505
    %v573 = vpop.f32.mrb[0].mxu0
    %v574 = vadd.f32 0.0, %v573
    %v575 = vpop.f32.mrb[0].mxu0
    %576 = vdwg.mxu0
    %v578 = vsel %vm410, %v245, 0
    %v581 = vsel %vm410, %v326, 0
    %583 = vmatprep.subr.mxu0 0.0
    %584 = vmatpush1.xpose.msra.mxu0 %v581
    %585 = vmatprep.subr.mxu0 0.0
    %586 = vmatpush1.xpose.msra.mxu0 0.0
    %587 = vmatprep.subr.mxu0 0.0
    %588 = vmatpush1.xpose.msra.mxu0 0.0
    %589 = vmatprep.subr.mxu0 0.0
    %590 = vmatpush1.xpose.msra.mxu0 0.0
    %591 = vmatprep.subr.mxu0 0.0
    %592 = vmatpush1.xpose.msra.mxu0 0.0
    %593 = vmatprep.subr.mxu0 0.0
    %594 = vmatpush1.xpose.msra.mxu0 0.0
    %595 = vmatprep.subr.mxu0 0.0
    %596 = vmatpush1.xpose.msra.mxu0 0.0
    %597 = vmatprep.subr.mxu0 0.0
    %598 = vmatpush1.xpose.msra.mxu0 0.0
    %599 = vmatprep.subr.mxu0 0.0
    %600 = vmatpush1.xpose.msra.mxu0 0.0
    %601 = vmatprep.subr.mxu0 0.0
    %602 = vmatpush1.xpose.msra.mxu0 0.0
    %603 = vmatprep.subr.mxu0 0.0
    %604 = vmatpush1.xpose.msra.mxu0 0.0
    %605 = vmatprep.subr.mxu0 0.0
    %606 = vmatpush1.xpose.msra.mxu0 0.0
    %607 = vmatprep.subr.mxu0 0.0
    %608 = vmatpush1.xpose.msra.mxu0 0.0
    %609 = vmatprep.subr.mxu0 0.0
    %610 = vmatpush1.xpose.msra.mxu0 0.0
    %611 = vmatprep.subr.mxu0 0.0
    %612 = vmatpush1.xpose.msra.mxu0 0.0
    %613 = vmatprep.subr.mxu0 0.0
    %614 = vmatpush1.xpose.msra.mxu0 0.0
    %615 = vmatprep.subr.mxu0 0.0
    %616 = vmatpush1.xpose.msra.mxu0 0.0
    %617 = vmatprep.subr.mxu0 0.0
    %618 = vmatpush1.xpose.msra.mxu0 0.0
    %619 = vmatprep.subr.mxu0 0.0
    %620 = vmatpush1.xpose.msra.mxu0 0.0
    %621 = vmatprep.subr.mxu0 0.0
    %622 = vmatpush1.xpose.msra.mxu0 0.0
    %623 = vmatprep.subr.mxu0 0.0
    %624 = vmatpush1.xpose.msra.mxu0 0.0
    %625 = vmatprep.subr.mxu0 0.0
    %626 = vmatpush1.xpose.msra.mxu0 0.0
    %627 = vmatprep.subr.mxu0 0.0
    %628 = vmatpush1.xpose.msra.mxu0 0.0
    %629 = vmatprep.subr.mxu0 0.0
    %630 = vmatpush1.xpose.msra.mxu0 0.0
    %631 = vmatprep.subr.mxu0 0.0
    %632 = vmatpush1.xpose.msra.mxu0 0.0
    %633 = vmatprep.subr.mxu0 0.0
    %634 = vmatpush1.xpose.msra.mxu0 0.0
    %635 = vmatprep.subr.mxu0 0.0
    %636 = vmatpush1.xpose.msra.mxu0 0.0
    %637 = vmatprep.subr.mxu0 0.0
    %638 = vmatpush1.xpose.msra.mxu0 0.0
    %639 = vmatprep.subr.mxu0 0.0
    %640 = vmatpush1.xpose.msra.mxu0 0.0
    %641 = vmatprep.subr.mxu0 0.0
    %642 = vmatpush1.xpose.msra.mxu0 0.0
    %643 = vmatprep.subr.mxu0 0.0
    %644 = vmatpush1.xpose.msra.mxu0 0.0
    %645 = vmatprep.subr.mxu0 0.0
    %646 = vmatpush1.xpose.msra.mxu0 0.0
    %647 = vmatprep.mubr.f32.mxu0 0.0
    %648 = vmatmul.mubr.f32.gmra.mrb[0].mxu0 %v578
    %v649 = vpop.f32.mrb[0].mxu0
    %v650 = vadd.f32 0.0, %v649
    %v651 = vpop.f32.mrb[0].mxu0
    %652 = vdwg.mxu0
    %v653 = vmul.f32 %v650, 0.35355338
    %v654 = vlaneseq
    %v655 = vshrl.u32 %v654, 7
    %v656 = vsub.s32 1, %v655
    %v657 = vrot.slane %v125, %v656
    %v658 = vadd.f32 %v653, %v657
    %v659 = vsel %vm410, %v658, -inf
    %660 = vmax.xlane.f32.xlu0 %v659
    %v661 = vpop.xlane.xlu0 %660
    %v662 = vsub.f32 %v658, %v661
    %v663 = vmul.f32 %v662, 1.442695
    %v664 = vpow.pop %v663
    %v665 = vsel %vm410, %v664, 0.0
    %666 = vadd.xlane.f32.xlu0 %v665
    %v667 = vpop.xlane.xlu0 %666
    %v668 = vrcp.pop %v667
    %v669 = vmul.f32 %v664, %v668
    %v671 = vsel %vm410, %v669, 0
    %673 = vmatprep.subr.mxu0 0.0
    %674 = vmatpush1.msra.mxu0 %v407
    %675 = vmatprep.subr.mxu0 0.0
    %676 = vmatpush1.msra.mxu0 0.0
    %677 = vmatprep.subr.mxu0 0.0
    %678 = vmatpush1.msra.mxu0 0.0
    %679 = vmatprep.subr.mxu0 0.0
    %680 = vmatpush1.msra.mxu0 0.0
    %681 = vmatprep.subr.mxu0 0.0
    %682 = vmatpush1.msra.mxu0 0.0
    %683 = vmatprep.subr.mxu0 0.0
    %684 = vmatpush1.msra.mxu0 0.0
    %685 = vmatprep.subr.mxu0 0.0
    %686 = vmatpush1.msra.mxu0 0.0
    %687 = vmatprep.subr.mxu0 0.0
    %688 = vmatpush1.msra.mxu0 0.0
    %689 = vmatprep.subr.mxu0 0.0
    %690 = vmatpush1.msra.mxu0 0.0
    %691 = vmatprep.subr.mxu0 0.0
    %692 = vmatpush1.msra.mxu0 0.0
    %693 = vmatprep.subr.mxu0 0.0
    %694 = vmatpush1.msra.mxu0 0.0
    %695 = vmatprep.subr.mxu0 0.0
    %696 = vmatpush1.msra.mxu0 0.0
    %697 = vmatprep.subr.mxu0 0.0
    %698 = vmatpush1.msra.mxu0 0.0
    %699 = vmatprep.subr.mxu0 0.0
    %700 = vmatpush1.msra.mxu0 0.0
    %701 = vmatprep.subr.mxu0 0.0
    %702 = vmatpush1.msra.mxu0 0.0
    %703 = vmatprep.subr.mxu0 0.0
    %704 = vmatpush1.msra.mxu0 0.0
    %705 = vmatprep.subr.mxu0 0.0
    %706 = vmatpush1.msra.mxu0 0.0
    %707 = vmatprep.subr.mxu0 0.0
    %708 = vmatpush1.msra.mxu0 0.0
    %709 = vmatprep.subr.mxu0 0.0
    %710 = vmatpush1.msra.mxu0 0.0
    %711 = vmatprep.subr.mxu0 0.0
    %712 = vmatpush1.msra.mxu0 0.0
    %713 = vmatprep.subr.mxu0 0.0
    %714 = vmatpush1.msra.mxu0 0.0
    %715 = vmatprep.subr.mxu0 0.0
    %716 = vmatpush1.msra.mxu0 0.0
    %717 = vmatprep.subr.mxu0 0.0
    %718 = vmatpush1.msra.mxu0 0.0
    %719 = vmatprep.subr.mxu0 0.0
    %720 = vmatpush1.msra.mxu0 0.0
    %721 = vmatprep.subr.mxu0 0.0
    %722 = vmatpush1.msra.mxu0 0.0
    %723 = vmatprep.subr.mxu0 0.0
    %724 = vmatpush1.msra.mxu0 0.0
    %725 = vmatprep.subr.mxu0 0.0
    %726 = vmatpush1.msra.mxu0 0.0
    %727 = vmatprep.subr.mxu0 0.0
    %728 = vmatpush1.msra.mxu0 0.0
    %729 = vmatprep.subr.mxu0 0.0
    %730 = vmatpush1.msra.mxu0 0.0
    %731 = vmatprep.subr.mxu0 0.0
    %732 = vmatpush1.msra.mxu0 0.0
    %733 = vmatprep.subr.mxu0 0.0
    %734 = vmatpush1.msra.mxu0 0.0
    %735 = vmatprep.subr.mxu0 0.0
    %736 = vmatpush1.msra.mxu0 0.0
    %737 = vmatprep.mubr.f32.mxu0 0.0
    %738 = vmatmul.mubr.f32.gmra.mrb[0].mxu0 %v671
    %v739 = vpop.f32.mrb[0].mxu0
    %v740 = vadd.f32 0.0, %v739
    %v741 = vpop.f32.mrb[0].mxu0
    %742 = vdwg.mxu0
    %s743 = scalar_lea.vmem %s5, 32
    %v744 = vld [vmem:[%s743] sm:$0xff]
    %v745 = vld [vmem:[%s743 + $0x8] sm:$0xff]
    %v746 = vld [vmem:[%s743 + $0x10] sm:$0xff]
    %v747 = vld [vmem:[%s743 + $0x18] sm:$0xff]
    %s748 = scalar_lea.vmem %s6, 1
    %v749 = vld [vmem:[%s748] sm:$0x1]
    %s750 = scalar_lea.vmem %s7, 32
    %v751 = vld [vmem:[%s750] sm:$0xff]
    %v752 = vld [vmem:[%s750 + $0x8] sm:$0xff]
    %v753 = vld [vmem:[%s750 + $0x10] sm:$0xff]
    %v754 = vld [vmem:[%s750 + $0x18] sm:$0xff]
    %s755 = scalar_lea.vmem %s8, 1
    %v756 = vld [vmem:[%s755] sm:$0x1]
    %s757 = scalar_lea.vmem %s9, 32
    %v758 = vld [vmem:[%s757] sm:$0xff]
    %v759 = vld [vmem:[%s757 + $0x8] sm:$0xff]
    %v760 = vld [vmem:[%s757 + $0x10] sm:$0xff]
    %v761 = vld [vmem:[%s757 + $0x18] sm:$0xff]
    %s762 = scalar_lea.vmem %s10, 1
    %v763 = vld [vmem:[%s762] sm:$0x1]
    %s764 = scalar_lea.vmem %s11, 8
    %v765 = vld [vmem:[%s764] sm:$0xff]
    %v767 = vlaneseq
    %v768 = vshrl.u32 %v767, 7
    %v769 = vsub.s32 0, %v768
    %v770 = vrot.slane %v749, %v769
    %772 = vmatprep.subr.mxu0 0.0
    %773 = vmatpush1.msra.mxu0 %v744
    %774 = vmatprep.subr.mxu0 0.0
    %775 = vmatpush1.msra.mxu0 %v745
    %776 = vmatprep.subr.mxu0 0.0
    %777 = vmatpush1.msra.mxu0 %v746
    %778 = vmatprep.subr.mxu0 0.0
    %779 = vmatpush1.msra.mxu0 %v747
    %780 = vmatprep.subr.mxu0 0.0
    %781 = vmatpush1.msra.mxu0 0.0
    %782 = vmatprep.subr.mxu0 0.0
    %783 = vmatpush1.msra.mxu0 0.0
    %784 = vmatprep.subr.mxu0 0.0
    %785 = vmatpush1.msra.mxu0 0.0
    %786 = vmatprep.subr.mxu0 0.0
    %787 = vmatpush1.msra.mxu0 0.0
    %788 = vmatprep.subr.mxu0 0.0
    %789 = vmatpush1.msra.mxu0 0.0
    %790 = vmatprep.subr.mxu0 0.0
    %791 = vmatpush1.msra.mxu0 0.0
    %792 = vmatprep.subr.mxu0 0.0
    %793 = vmatpush1.msra.mxu0 0.0
    %794 = vmatprep.subr.mxu0 0.0
    %795 = vmatpush1.msra.mxu0 0.0
    %796 = vmatprep.subr.mxu0 0.0
    %797 = vmatpush1.msra.mxu0 0.0
    %798 = vmatprep.subr.mxu0 0.0
    %799 = vmatpush1.msra.mxu0 0.0
    %800 = vmatprep.subr.mxu0 0.0
    %801 = vmatpush1.msra.mxu0 0.0
    %802 = vmatprep.subr.mxu0 0.0
    %803 = vmatpush1.msra.mxu0 0.0
    %804 = vmatprep.subr.mxu0 0.0
    %805 = vmatpush1.msra.mxu0 0.0
    %806 = vmatprep.subr.mxu0 0.0
    %807 = vmatpush1.msra.mxu0 0.0
    %808 = vmatprep.subr.mxu0 0.0
    %809 = vmatpush1.msra.mxu0 0.0
    %810 = vmatprep.subr.mxu0 0.0
    %811 = vmatpush1.msra.mxu0 0.0
    %812 = vmatprep.subr.mxu0 0.0
    %813 = vmatpush1.msra.mxu0 0.0
    %814 = vmatprep.subr.mxu0 0.0
    %815 = vmatpush1.msra.mxu0 0.0
    %816 = vmatprep.subr.mxu0 0.0
    %817 = vmatpush1.msra.mxu0 0.0
    %818 = vmatprep.subr.mxu0 0.0
    %819 = vmatpush1.msra.mxu0 0.0
    %820 = vmatprep.subr.mxu0 0.0
    %821 = vmatpush1.msra.mxu0 0.0
    %822 = vmatprep.subr.mxu0 0.0
    %823 = vmatpush1.msra.mxu0 0.0
    %824 = vmatprep.subr.mxu0 0.0
    %825 = vmatpush1.msra.mxu0 0.0
    %826 = vmatprep.subr.mxu0 0.0
    %827 = vmatpush1.msra.mxu0 0.0
    %828 = vmatprep.subr.mxu0 0.0
    %829 = vmatpush1.msra.mxu0 0.0
    %830 = vmatprep.subr.mxu0 0.0
    %831 = vmatpush1.msra.mxu0 0.0
    %832 = vmatprep.subr.mxu0 0.0
    %833 = vmatpush1.msra.mxu0 0.0
    %834 = vmatprep.subr.mxu0 0.0
    %835 = vmatpush1.msra.mxu0 0.0
    %836 = vmatprep.mubr.f32.mxu0 0.0
    %837 = vmatmul.mubr.f32.gmra.mrb[0].mxu0 %v168
    %v838 = vpop.f32.mrb[0].mxu0
    %v839 = vadd.f32 %v770, %v838
    %v840 = vpop.f32.mrb[0].mxu0
    %841 = vmatprep.mubr.f32.mxu0 0.0
    %842 = vmatmul.mubr.f32.gmra.mrb[0].mxu0 %v171
    %v843 = vpop.f32.mrb[0].mxu0
    %v844 = vadd.f32 %v770, %v843
    %v845 = vpop.f32.mrb[0].mxu0
    %846 = vdwg.mxu0
    %v848 = vlaneseq
    %v849 = vshrl.u32 %v848, 7
    %v850 = vsub.s32 0, %v849
    %v851 = vrot.slane %v756, %v850
    %853 = vmatprep.subr.mxu0 0.0
    %854 = vmatpush1.msra.mxu0 %v751
    %855 = vmatprep.subr.mxu0 0.0
    %856 = vmatpush1.msra.mxu0 %v752
    %857 = vmatprep.subr.mxu0 0.0
    %858 = vmatpush1.msra.mxu0 %v753
    %859 = vmatprep.subr.mxu0 0.0
    %860 = vmatpush1.msra.mxu0 %v754
    %861 = vmatprep.subr.mxu0 0.0
    %862 = vmatpush1.msra.mxu0 0.0
    %863 = vmatprep.subr.mxu0 0.0
    %864 = vmatpush1.msra.mxu0 0.0
    %865 = vmatprep.subr.mxu0 0.0
    %866 = vmatpush1.msra.mxu0 0.0
    %867 = vmatprep.subr.mxu0 0.0
    %868 = vmatpush1.msra.mxu0 0.0
    %869 = vmatprep.subr.mxu0 0.0
    %870 = vmatpush1.msra.mxu0 0.0
    %871 = vmatprep.subr.mxu0 0.0
    %872 = vmatpush1.msra.mxu0 0.0
    %873 = vmatprep.subr.mxu0 0.0
    %874 = vmatpush1.msra.mxu0 0.0
    %875 = vmatprep.subr.mxu0 0.0
    %876 = vmatpush1.msra.mxu0 0.0
    %877 = vmatprep.subr.mxu0 0.0
    %878 = vmatpush1.msra.mxu0 0.0
    %879 = vmatprep.subr.mxu0 0.0
    %880 = vmatpush1.msra.mxu0 0.0
    %881 = vmatprep.subr.mxu0 0.0
    %882 = vmatpush1.msra.mxu0 0.0
    %883 = vmatprep.subr.mxu0 0.0
    %884 = vmatpush1.msra.mxu0 0.0
    %885 = vmatprep.subr.mxu0 0.0
    %886 = vmatpush1.msra.mxu0 0.0
    %887 = vmatprep.subr.mxu0 0.0
    %888 = vmatpush1.msra.mxu0 0.0
    %889 = vmatprep.subr.mxu0 0.0
    %890 = vmatpush1.msra.mxu0 0.0
    %891 = vmatprep.subr.mxu0 0.0
    %892 = vmatpush1.msra.mxu0 0.0
    %893 = vmatprep.subr.mxu0 0.0
    %894 = vmatpush1.msra.mxu0 0.0
    %895 = vmatprep.subr.mxu0 0.0
    %896 = vmatpush1.msra.mxu0 0.0
    %897 = vmatprep.subr.mxu0 0.0
    %898 = vmatpush1.msra.mxu0 0.0
    %899 = vmatprep.subr.mxu0 0.0
    %900 = vmatpush1.msra.mxu0 0.0
    %901 = vmatprep.subr.mxu0 0.0
    %902 = vmatpush1.msra.mxu0 0.0
    %903 = vmatprep.subr.mxu0 0.0
    %904 = vmatpush1.msra.mxu0 0.0
    %905 = vmatprep.subr.mxu0 0.0
    %906 = vmatpush1.msra.mxu0 0.0
    %907 = vmatprep.subr.mxu0 0.0
    %908 = vmatpush1.msra.mxu0 0.0
    %909 = vmatprep.subr.mxu0 0.0
    %910 = vmatpush1.msra.mxu0 0.0
    %911 = vmatprep.subr.mxu0 0.0
    %912 = vmatpush1.msra.mxu0 0.0
    %913 = vmatprep.subr.mxu0 0.0
    %914 = vmatpush1.msra.mxu0 0.0
    %915 = vmatprep.subr.mxu0 0.0
    %916 = vmatpush1.msra.mxu0 0.0
    %917 = vmatprep.mubr.f32.mxu0 0.0
    %918 = vmatmul.mubr.f32.gmra.mrb[0].mxu0 %v168
    %v919 = vpop.f32.mrb[0].mxu0
    %v920 = vadd.f32 %v851, %v919
    %v921 = vpop.f32.mrb[0].mxu0
    %922 = vmatprep.mubr.f32.mxu0 0.0
    %923 = vmatmul.mubr.f32.gmra.mrb[0].mxu0 %v171
    %v924 = vpop.f32.mrb[0].mxu0
    %v925 = vadd.f32 %v851, %v924
    %v926 = vpop.f32.mrb[0].mxu0
    %927 = vdwg.mxu0
    %v929 = vlaneseq
    %v930 = vshrl.u32 %v929, 7
    %v931 = vsub.s32 0, %v930
    %v932 = vrot.slane %v763, %v931
    %934 = vmatprep.subr.mxu0 0.0
    %935 = vmatpush1.msra.mxu0 %v758
    %936 = vmatprep.subr.mxu0 0.0
    %937 = vmatpush1.msra.mxu0 %v759
    %938 = vmatprep.subr.mxu0 0.0
    %939 = vmatpush1.msra.mxu0 %v760
    %940 = vmatprep.subr.mxu0 0.0
    %941 = vmatpush1.msra.mxu0 %v761
    %942 = vmatprep.subr.mxu0 0.0
    %943 = vmatpush1.msra.mxu0 0.0
    %944 = vmatprep.subr.mxu0 0.0
    %945 = vmatpush1.msra.mxu0 0.0
    %946 = vmatprep.subr.mxu0 0.0
    %947 = vmatpush1.msra.mxu0 0.0
    %948 = vmatprep.subr.mxu0 0.0
    %949 = vmatpush1.msra.mxu0 0.0
    %950 = vmatprep.subr.mxu0 0.0
    %951 = vmatpush1.msra.mxu0 0.0
    %952 = vmatprep.subr.mxu0 0.0
    %953 = vmatpush1.msra.mxu0 0.0
    %954 = vmatprep.subr.mxu0 0.0
    %955 = vmatpush1.msra.mxu0 0.0
    %956 = vmatprep.subr.mxu0 0.0
    %957 = vmatpush1.msra.mxu0 0.0
    %958 = vmatprep.subr.mxu0 0.0
    %959 = vmatpush1.msra.mxu0 0.0
    %960 = vmatprep.subr.mxu0 0.0
    %961 = vmatpush1.msra.mxu0 0.0
    %962 = vmatprep.subr.mxu0 0.0
    %963 = vmatpush1.msra.mxu0 0.0
    %964 = vmatprep.subr.mxu0 0.0
    %965 = vmatpush1.msra.mxu0 0.0
    %966 = vmatprep.subr.mxu0 0.0
    %967 = vmatpush1.msra.mxu0 0.0
    %968 = vmatprep.subr.mxu0 0.0
    %969 = vmatpush1.msra.mxu0 0.0
    %970 = vmatprep.subr.mxu0 0.0
    %971 = vmatpush1.msra.mxu0 0.0
    %972 = vmatprep.subr.mxu0 0.0
    %973 = vmatpush1.msra.mxu0 0.0
    %974 = vmatprep.subr.mxu0 0.0
    %975 = vmatpush1.msra.mxu0 0.0
    %976 = vmatprep.subr.mxu0 0.0
    %977 = vmatpush1.msra.mxu0 0.0
    %978 = vmatprep.subr.mxu0 0.0
    %979 = vmatpush1.msra.mxu0 0.0
    %980 = vmatprep.subr.mxu0 0.0
    %981 = vmatpush1.msra.mxu0 0.0
    %982 = vmatprep.subr.mxu0 0.0
    %983 = vmatpush1.msra.mxu0 0.0
    %984 = vmatprep.subr.mxu0 0.0
    %985 = vmatpush1.msra.mxu0 0.0
    %986 = vmatprep.subr.mxu0 0.0
    %987 = vmatpush1.msra.mxu0 0.0
    %988 = vmatprep.subr.mxu0 0.0
    %989 = vmatpush1.msra.mxu0 0.0
    %990 = vmatprep.subr.mxu0 0.0
    %991 = vmatpush1.msra.mxu0 0.0
    %992 = vmatprep.subr.mxu0 0.0
    %993 = vmatpush1.msra.mxu0 0.0
    %994 = vmatprep.subr.mxu0 0.0
    %995 = vmatpush1.msra.mxu0 0.0
    %996 = vmatprep.subr.mxu0 0.0
    %997 = vmatpush1.msra.mxu0 0.0
    %998 = vmatprep.mubr.f32.mxu0 0.0
    %999 = vmatmul.mubr.f32.gmra.mrb[0].mxu0 %v168
    %v1000 = vpop.f32.mrb[0].mxu0
    %v1001 = vadd.f32 %v932, %v1000
    %v1002 = vpop.f32.mrb[0].mxu0
    %1003 = vmatprep.mubr.f32.mxu0 0.0
    %1004 = vmatmul.mubr.f32.gmra.mrb[0].mxu0 %v171
    %v1005 = vpop.f32.mrb[0].mxu0
    %v1006 = vadd.f32 %v932, %v1005
    %v1007 = vpop.f32.mrb[0].mxu0
    %1008 = vdwg.mxu0
    %v1010 = vsel %vm410, %v839, 0
    %v1013 = vsel %vm410, %v920, 0
    %1015 = vmatprep.subr.mxu0 0.0
    %1016 = vmatpush1.xpose.msra.mxu0 %v1013
    %1017 = vmatprep.subr.mxu0 0.0
    %1018 = vmatpush1.xpose.msra.mxu0 0.0
    %1019 = vmatprep.subr.mxu0 0.0
    %1020 = vmatpush1.xpose.msra.mxu0 0.0
    %1021 = vmatprep.subr.mxu0 0.0
    %1022 = vmatpush1.xpose.msra.mxu0 0.0
    %1023 = vmatprep.subr.mxu0 0.0
    %1024 = vmatpush1.xpose.msra.mxu0 0.0
    %1025 = vmatprep.subr.mxu0 0.0
    %1026 = vmatpush1.xpose.msra.mxu0 0.0
    %1027 = vmatprep.subr.mxu0 0.0
    %1028 = vmatpush1.xpose.msra.mxu0 0.0
    %1029 = vmatprep.subr.mxu0 0.0
    %1030 = vmatpush1.xpose.msra.mxu0 0.0
    %1031 = vmatprep.subr.mxu0 0.0
    %1032 = vmatpush1.xpose.msra.mxu0 0.0
    %1033 = vmatprep.subr.mxu0 0.0
    %1034 = vmatpush1.xpose.msra.mxu0 0.0
    %1035 = vmatprep.subr.mxu0 0.0
    %1036 = vmatpush1.xpose.msra.mxu0 0.0
    %1037 = vmatprep.subr.mxu0 0.0
    %1038 = vmatpush1.xpose.msra.mxu0 0.0
    %1039 = vmatprep.subr.mxu0 0.0
    %1040 = vmatpush1.xpose.msra.mxu0 0.0
    %1041 = vmatprep.subr.mxu0 0.0
    %1042 = vmatpush1.xpose.msra.mxu0 0.0
    %1043 = vmatprep.subr.mxu0 0.0
    %1044 = vmatpush1.xpose.msra.mxu0 0.0
    %1045 = vmatprep.subr.mxu0 0.0
    %1046 = vmatpush1.xpose.msra.mxu0 0.0
    %1047 = vmatprep.subr.mxu0 0.0
    %1048 = vmatpush1.xpose.msra.mxu0 0.0
    %1049 = vmatprep.subr.mxu0 0.0
    %1050 = vmatpush1.xpose.msra.mxu0 0.0
    %1051 = vmatprep.subr.mxu0 0.0
    %1052 = vmatpush1.xpose.msra.mxu0 0.0
    %1053 = vmatprep.subr.mxu0 0.0
    %1054 = vmatpush1.xpose.msra.mxu0 0.0
    %1055 = vmatprep.subr.mxu0 0.0
    %1056 = vmatpush1.xpose.msra.mxu0 0.0
    %1057 = vmatprep.subr.mxu0 0.0
    %1058 = vmatpush1.xpose.msra.mxu0 0.0
    %1059 = vmatprep.subr.mxu0 0.0
    %1060 = vmatpush1.xpose.msra.mxu0 0.0
    %1061 = vmatprep.subr.mxu0 0.0
    %1062 = vmatpush1.xpose.msra.mxu0 0.0
    %1063 = vmatprep.subr.mxu0 0.0
    %1064 = vmatpush1.xpose.msra.mxu0 0.0
    %1065 = vmatprep.subr.mxu0 0.0
    %1066 = vmatpush1.xpose.msra.mxu0 0.0
    %1067 = vmatprep.subr.mxu0 0.0
    %1068 = vmatpush1.xpose.msra.mxu0 0.0
    %1069 = vmatprep.subr.mxu0 0.0
    %1070 = vmatpush1.xpose.msra.mxu0 0.0
    %1071 = vmatprep.subr.mxu0 0.0
    %1072 = vmatpush1.xpose.msra.mxu0 0.0
    %1073 = vmatprep.subr.mxu0 0.0
    %1074 = vmatpush1.xpose.msra.mxu0 0.0
    %1075 = vmatprep.subr.mxu0 0.0
    %1076 = vmatpush1.xpose.msra.mxu0 0.0
    %1077 = vmatprep.subr.mxu0 0.0
    %1078 = vmatpush1.xpose.msra.mxu0 0.0
    %1079 = vmatprep.mubr.f32.mxu0 0.0
    %1080 = vmatmul.mubr.f32.gmra.mrb[0].mxu0 %v1010
    %v1081 = vpop.f32.mrb[0].mxu0
    %v1082 = vadd.f32 0.0, %v1081
    %v1083 = vpop.f32.mrb[0].mxu0
    %1084 = vdwg.mxu0
    %v1085 = vmul.f32 %v1082, 0.35355338
    %v1086 = vadd.f32 %v1085, %v491
    %v1087 = vsel %vm410, %v1086, -inf
    %1088 = vmax.xlane.f32.xlu0 %v1087
    %v1089 = vpop.xlane.xlu0 %1088
    %v1090 = vsub.f32 %v1086, %v1089
    %v1091 = vmul.f32 %v1090, 1.442695
    %v1092 = vpow.pop %v1091
    %v1093 = vsel %vm410, %v1092, 0.0
    %1094 = vadd.xlane.f32.xlu0 %v1093
    %v1095 = vpop.xlane.xlu0 %1094
    %v1096 = vrcp.pop %v1095
    %v1097 = vmul.f32 %v1092, %v1096
    %v1099 = vsel %vm410, %v1097, 0
    %1101 = vmatprep.subr.mxu0 0.0
    %1102 = vmatpush1.msra.mxu0 %v1001
    %1103 = vmatprep.subr.mxu0 0.0
    %1104 = vmatpush1.msra.mxu0 0.0
    %1105 = vmatprep.subr.mxu0 0.0
    %1106 = vmatpush1.msra.mxu0 0.0
    %1107 = vmatprep.subr.mxu0 0.0
    %1108 = vmatpush1.msra.mxu0 0.0
    %1109 = vmatprep.subr.mxu0 0.0
    %1110 = vmatpush1.msra.mxu0 0.0
    %1111 = vmatprep.subr.mxu0 0.0
    %1112 = vmatpush1.msra.mxu0 0.0
    %1113 = vmatprep.subr.mxu0 0.0
    %1114 = vmatpush1.msra.mxu0 0.0
    %1115 = vmatprep.subr.mxu0 0.0
    %1116 = vmatpush1.msra.mxu0 0.0
    %1117 = vmatprep.subr.mxu0 0.0
    %1118 = vmatpush1.msra.mxu0 0.0
    %1119 = vmatprep.subr.mxu0 0.0
    %1120 = vmatpush1.msra.mxu0 0.0
    %1121 = vmatprep.subr.mxu0 0.0
    %1122 = vmatpush1.msra.mxu0 0.0
    %1123 = vmatprep.subr.mxu0 0.0
    %1124 = vmatpush1.msra.mxu0 0.0
    %1125 = vmatprep.subr.mxu0 0.0
    %1126 = vmatpush1.msra.mxu0 0.0
    %1127 = vmatprep.subr.mxu0 0.0
    %1128 = vmatpush1.msra.mxu0 0.0
    %1129 = vmatprep.subr.mxu0 0.0
    %1130 = vmatpush1.msra.mxu0 0.0
    %1131 = vmatprep.subr.mxu0 0.0
    %1132 = vmatpush1.msra.mxu0 0.0
    %1133 = vmatprep.subr.mxu0 0.0
    %1134 = vmatpush1.msra.mxu0 0.0
    %1135 = vmatprep.subr.mxu0 0.0
    %1136 = vmatpush1.msra.mxu0 0.0
    %1137 = vmatprep.subr.mxu0 0.0
    %1138 = vmatpush1.msra.mxu0 0.0
    %1139 = vmatprep.subr.mxu0 0.0
    %1140 = vmatpush1.msra.mxu0 0.0
    %1141 = vmatprep.subr.mxu0 0.0
    %1142 = vmatpush1.msra.mxu0 0.0
    %1143 = vmatprep.subr.mxu0 0.0
    %1144 = vmatpush1.msra.mxu0 0.0
    %1145 = vmatprep.subr.mxu0 0.0
    %1146 = vmatpush1.msra.mxu0 0.0
    %1147 = vmatprep.subr.mxu0 0.0
    %1148 = vmatpush1.msra.mxu0 0.0
    %1149 = vmatprep.subr.mxu0 0.0
    %1150 = vmatpush1.msra.mxu0 0.0
    %1151 = vmatprep.subr.mxu0 0.0
    %1152 = vmatpush1.msra.mxu0 0.0
    %1153 = vmatprep.subr.mxu0 0.0
    %1154 = vmatpush1.msra.mxu0 0.0
    %1155 = vmatprep.subr.mxu0 0.0
    %1156 = vmatpush1.msra.mxu0 0.0
    %1157 = vmatprep.subr.mxu0 0.0
    %1158 = vmatpush1.msra.mxu0 0.0
    %1159 = vmatprep.subr.mxu0 0.0
    %1160 = vmatpush1.msra.mxu0 0.0
    %1161 = vmatprep.subr.mxu0 0.0
    %1162 = vmatpush1.msra.mxu0 0.0
    %1163 = vmatprep.subr.mxu0 0.0
    %1164 = vmatpush1.msra.mxu0 0.0
    %1165 = vmatprep.mubr.f32.mxu0 0.0
    %1166 = vmatmul.mubr.f32.gmra.mrb[0].mxu0 %v1099
    %v1167 = vpop.f32.mrb[0].mxu0
    %v1168 = vadd.f32 0.0, %v1167
    %v1169 = vpop.f32.mrb[0].mxu0
    %1170 = vdwg.mxu0
    %v1172 = vsel %vm410, %v1168, 0
    %1174 = vmatprep.subr.mxu0 0.0
    %1175 = vmatpush1.msra.mxu0 %v765
    %1176 = vmatprep.subr.mxu0 0.0
    %1177 = vmatpush1.msra.mxu0 0.0
    %1178 = vmatprep.subr.mxu0 0.0
    %1179 = vmatpush1.msra.mxu0 0.0
    %1180 = vmatprep.subr.mxu0 0.0
    %1181 = vmatpush1.msra.mxu0 0.0
    %1182 = vmatprep.subr.mxu0 0.0
    %1183 = vmatpush1.msra.mxu0 0.0
    %1184 = vmatprep.subr.mxu0 0.0
    %1185 = vmatpush1.msra.mxu0 0.0
    %1186 = vmatprep.subr.mxu0 0.0
    %1187 = vmatpush1.msra.mxu0 0.0
    %1188 = vmatprep.subr.mxu0 0.0
    %1189 = vmatpush1.msra.mxu0 0.0
    %1190 = vmatprep.subr.mxu0 0.0
    %1191 = vmatpush1.msra.mxu0 0.0
    %1192 = vmatprep.subr.mxu0 0.0
    %1193 = vmatpush1.msra.mxu0 0.0
    %1194 = vmatprep.subr.mxu0 0.0
    %1195 = vmatpush1.msra.mxu0 0.0
    %1196 = vmatprep.subr.mxu0 0.0
    %1197 = vmatpush1.msra.mxu0 0.0
    %1198 = vmatprep.subr.mxu0 0.0
    %1199 = vmatpush1.msra.mxu0 0.0
    %1200 = vmatprep.subr.mxu0 0.0
    %1201 = vmatpush1.msra.mxu0 0.0
    %1202 = vmatprep.subr.mxu0 0.0
    %1203 = vmatpush1.msra.mxu0 0.0
    %1204 = vmatprep.subr.mxu0 0.0
    %1205 = vmatpush1.msra.mxu0 0.0
    %1206 = vmatprep.subr.mxu0 0.0
    %1207 = vmatpush1.msra.mxu0 0.0
    %1208 = vmatprep.subr.mxu0 0.0
    %1209 = vmatpush1.msra.mxu0 0.0
    %1210 = vmatprep.subr.mxu0 0.0
    %1211 = vmatpush1.msra.mxu0 0.0
    %1212 = vmatprep.subr.mxu0 0.0
    %1213 = vmatpush1.msra.mxu0 0.0
    %1214 = vmatprep.subr.mxu0 0.0
    %1215 = vmatpush1.msra.mxu0 0.0
    %1216 = vmatprep.subr.mxu0 0.0
    %1217 = vmatpush1.msra.mxu0 0.0
    %1218 = vmatprep.subr.mxu0 0.0
    %1219 = vmatpush1.msra.mxu0 0.0
    %1220 = vmatprep.subr.mxu0 0.0
    %1221 = vmatpush1.msra.mxu0 0.0
    %1222 = vmatprep.subr.mxu0 0.0
    %1223 = vmatpush1.msra.mxu0 0.0
    %1224 = vmatprep.subr.mxu0 0.0
    %1225 = vmatpush1.msra.mxu0 0.0
    %1226 = vmatprep.subr.mxu0 0.0
    %1227 = vmatpush1.msra.mxu0 0.0
    %1228 = vmatprep.subr.mxu0 0.0
    %1229 = vmatpush1.msra.mxu0 0.0
    %1230 = vmatprep.subr.mxu0 0.0
    %1231 = vmatpush1.msra.mxu0 0.0
    %1232 = vmatprep.subr.mxu0 0.0
    %1233 = vmatpush1.msra.mxu0 0.0
    %1234 = vmatprep.subr.mxu0 0.0
    %1235 = vmatpush1.msra.mxu0 0.0
    %1236 = vmatprep.subr.mxu0 0.0
    %1237 = vmatpush1.msra.mxu0 0.0
    %1238 = vmatprep.mubr.f32.mxu0 0.0
    %1239 = vmatmul.mubr.f32.gmra.mrb[0].mxu0 %v1172
    %v1240 = vpop.f32.mrb[0].mxu0
    %v1241 = vadd.f32 0.0, %v1240
    %v1242 = vpop.f32.mrb[0].mxu0
    %1243 = vdwg.mxu0
    %v1245 = vsel %vm410, %v574, 0
    %1247 = vmatprep.subr.mxu0 0.0
    %1248 = vmatpush1.msra.mxu0 %v160
    %1249 = vmatprep.subr.mxu0 0.0
    %1250 = vmatpush1.msra.mxu0 0.0
    %1251 = vmatprep.subr.mxu0 0.0
    %1252 = vmatpush1.msra.mxu0 0.0
    %1253 = vmatprep.subr.mxu0 0.0
    %1254 = vmatpush1.msra.mxu0 0.0
    %1255 = vmatprep.subr.mxu0 0.0
    %1256 = vmatpush1.msra.mxu0 0.0
    %1257 = vmatprep.subr.mxu0 0.0
    %1258 = vmatpush1.msra.mxu0 0.0
    %1259 = vmatprep.subr.mxu0 0.0
    %1260 = vmatpush1.msra.mxu0 0.0
    %1261 = vmatprep.subr.mxu0 0.0
    %1262 = vmatpush1.msra.mxu0 0.0
    %1263 = vmatprep.subr.mxu0 0.0
    %1264 = vmatpush1.msra.mxu0 0.0
    %1265 = vmatprep.subr.mxu0 0.0
    %1266 = vmatpush1.msra.mxu0 0.0
    %1267 = vmatprep.subr.mxu0 0.0
    %1268 = vmatpush1.msra.mxu0 0.0
    %1269 = vmatprep.subr.mxu0 0.0
    %1270 = vmatpush1.msra.mxu0 0.0
    %1271 = vmatprep.subr.mxu0 0.0
    %1272 = vmatpush1.msra.mxu0 0.0
    %1273 = vmatprep.subr.mxu0 0.0
    %1274 = vmatpush1.msra.mxu0 0.0
    %1275 = vmatprep.subr.mxu0 0.0
    %1276 = vmatpush1.msra.mxu0 0.0
    %1277 = vmatprep.subr.mxu0 0.0
    %1278 = vmatpush1.msra.mxu0 0.0
    %1279 = vmatprep.subr.mxu0 0.0
    %1280 = vmatpush1.msra.mxu0 0.0
    %1281 = vmatprep.subr.mxu0 0.0
    %1282 = vmatpush1.msra.mxu0 0.0
    %1283 = vmatprep.subr.mxu0 0.0
    %1284 = vmatpush1.msra.mxu0 0.0
    %1285 = vmatprep.subr.mxu0 0.0
    %1286 = vmatpush1.msra.mxu0 0.0
    %1287 = vmatprep.subr.mxu0 0.0
    %1288 = vmatpush1.msra.mxu0 0.0
    %1289 = vmatprep.subr.mxu0 0.0
    %1290 = vmatpush1.msra.mxu0 0.0
    %1291 = vmatprep.subr.mxu0 0.0
    %1292 = vmatpush1.msra.mxu0 0.0
    %1293 = vmatprep.subr.mxu0 0.0
    %1294 = vmatpush1.msra.mxu0 0.0
    %1295 = vmatprep.subr.mxu0 0.0
    %1296 = vmatpush1.msra.mxu0 0.0
    %1297 = vmatprep.subr.mxu0 0.0
    %1298 = vmatpush1.msra.mxu0 0.0
    %1299 = vmatprep.subr.mxu0 0.0
    %1300 = vmatpush1.msra.mxu0 0.0
    %1301 = vmatprep.subr.mxu0 0.0
    %1302 = vmatpush1.msra.mxu0 0.0
    %1303 = vmatprep.subr.mxu0 0.0
    %1304 = vmatpush1.msra.mxu0 0.0
    %1305 = vmatprep.subr.mxu0 0.0
    %1306 = vmatpush1.msra.mxu0 0.0
    %1307 = vmatprep.subr.mxu0 0.0
    %1308 = vmatpush1.msra.mxu0 0.0
    %1309 = vmatprep.subr.mxu0 0.0
    %1310 = vmatpush1.msra.mxu0 0.0
    %1311 = vmatprep.mubr.f32.mxu0 0.0
    %1312 = vmatmul.mubr.f32.gmra.mrb[0].mxu0 %v1245
    %v1313 = vpop.f32.mrb[0].mxu0
    %v1314 = vadd.f32 %v1241, %v1313
    %v1315 = vpop.f32.mrb[0].mxu0
    %1316 = vdwg.mxu0
    %v1318 = vsel %vm410, %v844, 0
    %v1321 = vsel %vm410, %v925, 0
    %1323 = vmatprep.subr.mxu0 0.0
    %1324 = vmatpush1.xpose.msra.mxu0 %v1321
    %1325 = vmatprep.subr.mxu0 0.0
    %1326 = vmatpush1.xpose.msra.mxu0 0.0
    %1327 = vmatprep.subr.mxu0 0.0
    %1328 = vmatpush1.xpose.msra.mxu0 0.0
    %1329 = vmatprep.subr.mxu0 0.0
    %1330 = vmatpush1.xpose.msra.mxu0 0.0
    %1331 = vmatprep.subr.mxu0 0.0
    %1332 = vmatpush1.xpose.msra.mxu0 0.0
    %1333 = vmatprep.subr.mxu0 0.0
    %1334 = vmatpush1.xpose.msra.mxu0 0.0
    %1335 = vmatprep.subr.mxu0 0.0
    %1336 = vmatpush1.xpose.msra.mxu0 0.0
    %1337 = vmatprep.subr.mxu0 0.0
    %1338 = vmatpush1.xpose.msra.mxu0 0.0
    %1339 = vmatprep.subr.mxu0 0.0
    %1340 = vmatpush1.xpose.msra.mxu0 0.0
    %1341 = vmatprep.subr.mxu0 0.0
    %1342 = vmatpush1.xpose.msra.mxu0 0.0
    %1343 = vmatprep.subr.mxu0 0.0
    %1344 = vmatpush1.xpose.msra.mxu0 0.0
    %1345 = vmatprep.subr.mxu0 0.0
    %1346 = vmatpush1.xpose.msra.mxu0 0.0
    %1347 = vmatprep.subr.mxu0 0.0
    %1348 = vmatpush1.xpose.msra.mxu0 0.0
    %1349 = vmatprep.subr.mxu0 0.0
    %1350 = vmatpush1.xpose.msra.mxu0 0.0
    %1351 = vmatprep.subr.mxu0 0.0
    %1352 = vmatpush1.xpose.msra.mxu0 0.0
    %1353 = vmatprep.subr.mxu0 0.0
    %1354 = vmatpush1.xpose.msra.mxu0 0.0
    %1355 = vmatprep.subr.mxu0 0.0
    %1356 = vmatpush1.xpose.msra.mxu0 0.0
    %1357 = vmatprep.subr.mxu0 0.0
    %1358 = vmatpush1.xpose.msra.mxu0 0.0
    %1359 = vmatprep.subr.mxu0 0.0
    %1360 = vmatpush1.xpose.msra.mxu0 0.0
    %1361 = vmatprep.subr.mxu0 0.0
    %1362 = vmatpush1.xpose.msra.mxu0 0.0
    %1363 = vmatprep.subr.mxu0 0.0
    %1364 = vmatpush1.xpose.msra.mxu0 0.0
    %1365 = vmatprep.subr.mxu0 0.0
    %1366 = vmatpush1.xpose.msra.mxu0 0.0
    %1367 = vmatprep.subr.mxu0 0.0
    %1368 = vmatpush1.xpose.msra.mxu0 0.0
    %1369 = vmatprep.subr.mxu0 0.0
    %1370 = vmatpush1.xpose.msra.mxu0 0.0
    %1371 = vmatprep.subr.mxu0 0.0
    %1372 = vmatpush1.xpose.msra.mxu0 0.0
    %1373 = vmatprep.subr.mxu0 0.0
    %1374 = vmatpush1.xpose.msra.mxu0 0.0
    %1375 = vmatprep.subr.mxu0 0.0
    %1376 = vmatpush1.xpose.msra.mxu0 0.0
    %1377 = vmatprep.subr.mxu0 0.0
    %1378 = vmatpush1.xpose.msra.mxu0 0.0
    %1379 = vmatprep.subr.mxu0 0.0
    %1380 = vmatpush1.xpose.msra.mxu0 0.0
    %1381 = vmatprep.subr.mxu0 0.0
    %1382 = vmatpush1.xpose.msra.mxu0 0.0
    %1383 = vmatprep.subr.mxu0 0.0
    %1384 = vmatpush1.xpose.msra.mxu0 0.0
    %1385 = vmatprep.subr.mxu0 0.0
    %1386 = vmatpush1.xpose.msra.mxu0 0.0
    %1387 = vmatprep.mubr.f32.mxu0 0.0
    %1388 = vmatmul.mubr.f32.gmra.mrb[0].mxu0 %v1318
    %v1389 = vpop.f32.mrb[0].mxu0
    %v1390 = vadd.f32 0.0, %v1389
    %v1391 = vpop.f32.mrb[0].mxu0
    %1392 = vdwg.mxu0
    %v1393 = vmul.f32 %v1390, 0.35355338
    %v1394 = vadd.f32 %v1393, %v657
    %v1395 = vsel %vm410, %v1394, -inf
    %1396 = vmax.xlane.f32.xlu0 %v1395
    %v1397 = vpop.xlane.xlu0 %1396
    %v1398 = vsub.f32 %v1394, %v1397
    %v1399 = vmul.f32 %v1398, 1.442695
    %v1400 = vpow.pop %v1399
    %v1401 = vsel %vm410, %v1400, 0.0
    %1402 = vadd.xlane.f32.xlu0 %v1401
    %v1403 = vpop.xlane.xlu0 %1402
    %v1404 = vrcp.pop %v1403
    %v1405 = vmul.f32 %v1400, %v1404
    %v1407 = vsel %vm410, %v1405, 0
    %1409 = vmatprep.subr.mxu0 0.0
    %1410 = vmatpush1.msra.mxu0 %v1006
    %1411 = vmatprep.subr.mxu0 0.0
    %1412 = vmatpush1.msra.mxu0 0.0
    %1413 = vmatprep.subr.mxu0 0.0
    %1414 = vmatpush1.msra.mxu0 0.0
    %1415 = vmatprep.subr.mxu0 0.0
    %1416 = vmatpush1.msra.mxu0 0.0
    %1417 = vmatprep.subr.mxu0 0.0
    %1418 = vmatpush1.msra.mxu0 0.0
    %1419 = vmatprep.subr.mxu0 0.0
    %1420 = vmatpush1.msra.mxu0 0.0
    %1421 = vmatprep.subr.mxu0 0.0
    %1422 = vmatpush1.msra.mxu0 0.0
    %1423 = vmatprep.subr.mxu0 0.0
    %1424 = vmatpush1.msra.mxu0 0.0
    %1425 = vmatprep.subr.mxu0 0.0
    %1426 = vmatpush1.msra.mxu0 0.0
    %1427 = vmatprep.subr.mxu0 0.0
    %1428 = vmatpush1.msra.mxu0 0.0
    %1429 = vmatprep.subr.mxu0 0.0
    %1430 = vmatpush1.msra.mxu0 0.0
    %1431 = vmatprep.subr.mxu0 0.0
    %1432 = vmatpush1.msra.mxu0 0.0
    %1433 = vmatprep.subr.mxu0 0.0
    %1434 = vmatpush1.msra.mxu0 0.0
    %1435 = vmatprep.subr.mxu0 0.0
    %1436 = vmatpush1.msra.mxu0 0.0
    %1437 = vmatprep.subr.mxu0 0.0
    %1438 = vmatpush1.msra.mxu0 0.0
    %1439 = vmatprep.subr.mxu0 0.0
    %1440 = vmatpush1.msra.mxu0 0.0
    %1441 = vmatprep.subr.mxu0 0.0
    %1442 = vmatpush1.msra.mxu0 0.0
    %1443 = vmatprep.subr.mxu0 0.0
    %1444 = vmatpush1.msra.mxu0 0.0
    %1445 = vmatprep.subr.mxu0 0.0
    %1446 = vmatpush1.msra.mxu0 0.0
    %1447 = vmatprep.subr.mxu0 0.0
    %1448 = vmatpush1.msra.mxu0 0.0
    %1449 = vmatprep.subr.mxu0 0.0
    %1450 = vmatpush1.msra.mxu0 0.0
    %1451 = vmatprep.subr.mxu0 0.0
    %1452 = vmatpush1.msra.mxu0 0.0
    %1453 = vmatprep.subr.mxu0 0.0
    %1454 = vmatpush1.msra.mxu0 0.0
    %1455 = vmatprep.subr.mxu0 0.0
    %1456 = vmatpush1.msra.mxu0 0.0
    %1457 = vmatprep.subr.mxu0 0.0
    %1458 = vmatpush1.msra.mxu0 0.0
    %1459 = vmatprep.subr.mxu0 0.0
    %1460 = vmatpush1.msra.mxu0 0.0
    %1461 = vmatprep.subr.mxu0 0.0
    %1462 = vmatpush1.msra.mxu0 0.0
    %1463 = vmatprep.subr.mxu0 0.0
    %1464 = vmatpush1.msra.mxu0 0.0
    %1465 = vmatprep.subr.mxu0 0.0
    %1466 = vmatpush1.msra.mxu0 0.0
    %1467 = vmatprep.subr.mxu0 0.0
    %1468 = vmatpush1.msra.mxu0 0.0
    %1469 = vmatprep.subr.mxu0 0.0
    %1470 = vmatpush1.msra.mxu0 0.0
    %1471 = vmatprep.subr.mxu0 0.0
    %1472 = vmatpush1.msra.mxu0 0.0
    %1473 = vmatprep.mubr.f32.mxu0 0.0
    %1474 = vmatmul.mubr.f32.gmra.mrb[0].mxu0 %v1407
    %v1475 = vpop.f32.mrb[0].mxu0
    %v1476 = vadd.f32 0.0, %v1475
    %v1477 = vpop.f32.mrb[0].mxu0
    %1478 = vdwg.mxu0
    %v1480 = vsel %vm410, %v1476, 0
    %1482 = vmatprep.subr.mxu0 0.0
    %1483 = vmatpush1.msra.mxu0 %v765
    %1484 = vmatprep.subr.mxu0 0.0
    %1485 = vmatpush1.msra.mxu0 0.0
    %1486 = vmatprep.subr.mxu0 0.0
    %1487 = vmatpush1.msra.mxu0 0.0
    %1488 = vmatprep.subr.mxu0 0.0
    %1489 = vmatpush1.msra.mxu0 0.0
    %1490 = vmatprep.subr.mxu0 0.0
    %1491 = vmatpush1.msra.mxu0 0.0
    %1492 = vmatprep.subr.mxu0 0.0
    %1493 = vmatpush1.msra.mxu0 0.0
    %1494 = vmatprep.subr.mxu0 0.0
    %1495 = vmatpush1.msra.mxu0 0.0
    %1496 = vmatprep.subr.mxu0 0.0
    %1497 = vmatpush1.msra.mxu0 0.0
    %1498 = vmatprep.subr.mxu0 0.0
    %1499 = vmatpush1.msra.mxu0 0.0
    %1500 = vmatprep.subr.mxu0 0.0
    %1501 = vmatpush1.msra.mxu0 0.0
    %1502 = vmatprep.subr.mxu0 0.0
    %1503 = vmatpush1.msra.mxu0 0.0
    %1504 = vmatprep.subr.mxu0 0.0
    %1505 = vmatpush1.msra.mxu0 0.0
    %1506 = vmatprep.subr.mxu0 0.0
    %1507 = vmatpush1.msra.mxu0 0.0
    %1508 = vmatprep.subr.mxu0 0.0
    %1509 = vmatpush1.msra.mxu0 0.0
    %1510 = vmatprep.subr.mxu0 0.0
    %1511 = vmatpush1.msra.mxu0 0.0
    %1512 = vmatprep.subr.mxu0 0.0
    %1513 = vmatpush1.msra.mxu0 0.0
    %1514 = vmatprep.subr.mxu0 0.0
    %1515 = vmatpush1.msra.mxu0 0.0
    %1516 = vmatprep.subr.mxu0 0.0
    %1517 = vmatpush1.msra.mxu0 0.0
    %1518 = vmatprep.subr.mxu0 0.0
    %1519 = vmatpush1.msra.mxu0 0.0
    %1520 = vmatprep.subr.mxu0 0.0
    %1521 = vmatpush1.msra.mxu0 0.0
    %1522 = vmatprep.subr.mxu0 0.0
    %1523 = vmatpush1.msra.mxu0 0.0
    %1524 = vmatprep.subr.mxu0 0.0
    %1525 = vmatpush1.msra.mxu0 0.0
    %1526 = vmatprep.subr.mxu0 0.0
    %1527 = vmatpush1.msra.mxu0 0.0
    %1528 = vmatprep.subr.mxu0 0.0
    %1529 = vmatpush1.msra.mxu0 0.0
    %1530 = vmatprep.subr.mxu0 0.0
    %1531 = vmatpush1.msra.mxu0 0.0
    %1532 = vmatprep.subr.mxu0 0.0
    %1533 = vmatpush1.msra.mxu0 0.0
    %1534 = vmatprep.subr.mxu0 0.0
    %1535 = vmatpush1.msra.mxu0 0.0
    %1536 = vmatprep.subr.mxu0 0.0
    %1537 = vmatpush1.msra.mxu0 0.0
    %1538 = vmatprep.subr.mxu0 0.0
    %1539 = vmatpush1.msra.mxu0 0.0
    %1540 = vmatprep.subr.mxu0 0.0
    %1541 = vmatpush1.msra.mxu0 0.0
    %1542 = vmatprep.subr.mxu0 0.0
    %1543 = vmatpush1.msra.mxu0 0.0
    %1544 = vmatprep.subr.mxu0 0.0
    %1545 = vmatpush1.msra.mxu0 0.0
    %1546 = vmatprep.mubr.f32.mxu0 0.0
    %1547 = vmatmul.mubr.f32.gmra.mrb[0].mxu0 %v1480
    %v1548 = vpop.f32.mrb[0].mxu0
    %v1549 = vadd.f32 0.0, %v1548
    %v1550 = vpop.f32.mrb[0].mxu0
    %1551 = vdwg.mxu0
    %v1553 = vsel %vm410, %v740, 0
    %1555 = vmatprep.subr.mxu0 0.0
    %1556 = vmatpush1.msra.mxu0 %v160
    %1557 = vmatprep.subr.mxu0 0.0
    %1558 = vmatpush1.msra.mxu0 0.0
    %1559 = vmatprep.subr.mxu0 0.0
    %1560 = vmatpush1.msra.mxu0 0.0
    %1561 = vmatprep.subr.mxu0 0.0
    %1562 = vmatpush1.msra.mxu0 0.0
    %1563 = vmatprep.subr.mxu0 0.0
    %1564 = vmatpush1.msra.mxu0 0.0
    %1565 = vmatprep.subr.mxu0 0.0
    %1566 = vmatpush1.msra.mxu0 0.0
    %1567 = vmatprep.subr.mxu0 0.0
    %1568 = vmatpush1.msra.mxu0 0.0
    %1569 = vmatprep.subr.mxu0 0.0
    %1570 = vmatpush1.msra.mxu0 0.0
    %1571 = vmatprep.subr.mxu0 0.0
    %1572 = vmatpush1.msra.mxu0 0.0
    %1573 = vmatprep.subr.mxu0 0.0
    %1574 = vmatpush1.msra.mxu0 0.0
    %1575 = vmatprep.subr.mxu0 0.0
    %1576 = vmatpush1.msra.mxu0 0.0
    %1577 = vmatprep.subr.mxu0 0.0
    %1578 = vmatpush1.msra.mxu0 0.0
    %1579 = vmatprep.subr.mxu0 0.0
    %1580 = vmatpush1.msra.mxu0 0.0
    %1581 = vmatprep.subr.mxu0 0.0
    %1582 = vmatpush1.msra.mxu0 0.0
    %1583 = vmatprep.subr.mxu0 0.0
    %1584 = vmatpush1.msra.mxu0 0.0
    %1585 = vmatprep.subr.mxu0 0.0
    %1586 = vmatpush1.msra.mxu0 0.0
    %1587 = vmatprep.subr.mxu0 0.0
    %1588 = vmatpush1.msra.mxu0 0.0
    %1589 = vmatprep.subr.mxu0 0.0
    %1590 = vmatpush1.msra.mxu0 0.0
    %1591 = vmatprep.subr.mxu0 0.0
    %1592 = vmatpush1.msra.mxu0 0.0
    %1593 = vmatprep.subr.mxu0 0.0
    %1594 = vmatpush1.msra.mxu0 0.0
    %1595 = vmatprep.subr.mxu0 0.0
    %1596 = vmatpush1.msra.mxu0 0.0
    %1597 = vmatprep.subr.mxu0 0.0
    %1598 = vmatpush1.msra.mxu0 0.0
    %1599 = vmatprep.subr.mxu0 0.0
    %1600 = vmatpush1.msra.mxu0 0.0
    %1601 = vmatprep.subr.mxu0 0.0
    %1602 = vmatpush1.msra.mxu0 0.0
    %1603 = vmatprep.subr.mxu0 0.0
    %1604 = vmatpush1.msra.mxu0 0.0
    %1605 = vmatprep.subr.mxu0 0.0
    %1606 = vmatpush1.msra.mxu0 0.0
    %1607 = vmatprep.subr.mxu0 0.0
    %1608 = vmatpush1.msra.mxu0 0.0
    %1609 = vmatprep.subr.mxu0 0.0
    %1610 = vmatpush1.msra.mxu0 0.0
    %1611 = vmatprep.subr.mxu0 0.0
    %1612 = vmatpush1.msra.mxu0 0.0
    %1613 = vmatprep.subr.mxu0 0.0
    %1614 = vmatpush1.msra.mxu0 0.0
    %1615 = vmatprep.subr.mxu0 0.0
    %1616 = vmatpush1.msra.mxu0 0.0
    %1617 = vmatprep.subr.mxu0 0.0
    %1618 = vmatpush1.msra.mxu0 0.0
    %1619 = vmatprep.mubr.f32.mxu0 0.0
    %1620 = vmatmul.mubr.f32.gmra.mrb[0].mxu0 %v1553
    %v1621 = vpop.f32.mrb[0].mxu0
    %v1622 = vadd.f32 %v1549, %v1621
    %v1623 = vpop.f32.mrb[0].mxu0
    %1624 = vdwg.mxu0
    %s1625 = scalar_lea.vmem %s5, 64
    %v1626 = vld [vmem:[%s1625] sm:$0xff]
    %v1627 = vld [vmem:[%s1625 + $0x8] sm:$0xff]
    %v1628 = vld [vmem:[%s1625 + $0x10] sm:$0xff]
    %v1629 = vld [vmem:[%s1625 + $0x18] sm:$0xff]
    %s1630 = scalar_lea.vmem %s6, 2
    %v1631 = vld [vmem:[%s1630] sm:$0x1]
    %s1632 = scalar_lea.vmem %s7, 64
    %v1633 = vld [vmem:[%s1632] sm:$0xff]
    %v1634 = vld [vmem:[%s1632 + $0x8] sm:$0xff]
    %v1635 = vld [vmem:[%s1632 + $0x10] sm:$0xff]
    %v1636 = vld [vmem:[%s1632 + $0x18] sm:$0xff]
    %s1637 = scalar_lea.vmem %s8, 2
    %v1638 = vld [vmem:[%s1637] sm:$0x1]
    %s1639 = scalar_lea.vmem %s9, 64
    %v1640 = vld [vmem:[%s1639] sm:$0xff]
    %v1641 = vld [vmem:[%s1639 + $0x8] sm:$0xff]
    %v1642 = vld [vmem:[%s1639 + $0x10] sm:$0xff]
    %v1643 = vld [vmem:[%s1639 + $0x18] sm:$0xff]
    %s1644 = scalar_lea.vmem %s10, 2
    %v1645 = vld [vmem:[%s1644] sm:$0x1]
    %s1646 = scalar_lea.vmem %s11, 16
    %v1647 = vld [vmem:[%s1646] sm:$0xff]
    %v1649 = vlaneseq
    %v1650 = vshrl.u32 %v1649, 7
    %v1651 = vsub.s32 0, %v1650
    %v1652 = vrot.slane %v1631, %v1651
    %1654 = vmatprep.subr.mxu0 0.0
    %1655 = vmatpush1.msra.mxu0 %v1626
    %1656 = vmatprep.subr.mxu0 0.0
    %1657 = vmatpush1.msra.mxu0 %v1627
    %1658 = vmatprep.subr.mxu0 0.0
    %1659 = vmatpush1.msra.mxu0 %v1628
    %1660 = vmatprep.subr.mxu0 0.0
    %1661 = vmatpush1.msra.mxu0 %v1629
    %1662 = vmatprep.subr.mxu0 0.0
    %1663 = vmatpush1.msra.mxu0 0.0
    %1664 = vmatprep.subr.mxu0 0.0
    %1665 = vmatpush1.msra.mxu0 0.0
    %1666 = vmatprep.subr.mxu0 0.0
    %1667 = vmatpush1.msra.mxu0 0.0
    %1668 = vmatprep.subr.mxu0 0.0
    %1669 = vmatpush1.msra.mxu0 0.0
    %1670 = vmatprep.subr.mxu0 0.0
    %1671 = vmatpush1.msra.mxu0 0.0
    %1672 = vmatprep.subr.mxu0 0.0
    %1673 = vmatpush1.msra.mxu0 0.0
    %1674 = vmatprep.subr.mxu0 0.0
    %1675 = vmatpush1.msra.mxu0 0.0
    %1676 = vmatprep.subr.mxu0 0.0
    %1677 = vmatpush1.msra.mxu0 0.0
    %1678 = vmatprep.subr.mxu0 0.0
    %1679 = vmatpush1.msra.mxu0 0.0
    %1680 = vmatprep.subr.mxu0 0.0
    %1681 = vmatpush1.msra.mxu0 0.0
    %1682 = vmatprep.subr.mxu0 0.0
    %1683 = vmatpush1.msra.mxu0 0.0
    %1684 = vmatprep.subr.mxu0 0.0
    %1685 = vmatpush1.msra.mxu0 0.0
    %1686 = vmatprep.subr.mxu0 0.0
    %1687 = vmatpush1.msra.mxu0 0.0
    %1688 = vmatprep.subr.mxu0 0.0
    %1689 = vmatpush1.msra.mxu0 0.0
    %1690 = vmatprep.subr.mxu0 0.0
    %1691 = vmatpush1.msra.mxu0 0.0
    %1692 = vmatprep.subr.mxu0 0.0
    %1693 = vmatpush1.msra.mxu0 0.0
    %1694 = vmatprep.subr.mxu0 0.0
    %1695 = vmatpush1.msra.mxu0 0.0
    %1696 = vmatprep.subr.mxu0 0.0
    %1697 = vmatpush1.msra.mxu0 0.0
    %1698 = vmatprep.subr.mxu0 0.0
    %1699 = vmatpush1.msra.mxu0 0.0
    %1700 = vmatprep.subr.mxu0 0.0
    %1701 = vmatpush1.msra.mxu0 0.0
    %1702 = vmatprep.subr.mxu0 0.0
    %1703 = vmatpush1.msra.mxu0 0.0
    %1704 = vmatprep.subr.mxu0 0.0
    %1705 = vmatpush1.msra.mxu0 0.0
    %1706 = vmatprep.subr.mxu0 0.0
    %1707 = vmatpush1.msra.mxu0 0.0
    %1708 = vmatprep.subr.mxu0 0.0
    %1709 = vmatpush1.msra.mxu0 0.0
    %1710 = vmatprep.subr.mxu0 0.0
    %1711 = vmatpush1.msra.mxu0 0.0
    %1712 = vmatprep.subr.mxu0 0.0
    %1713 = vmatpush1.msra.mxu0 0.0
    %1714 = vmatprep.subr.mxu0 0.0
    %1715 = vmatpush1.msra.mxu0 0.0
    %1716 = vmatprep.subr.mxu0 0.0
    %1717 = vmatpush1.msra.mxu0 0.0
    %1718 = vmatprep.mubr.f32.mxu0 0.0
    %1719 = vmatmul.mubr.f32.gmra.mrb[0].mxu0 %v168
    %v1720 = vpop.f32.mrb[0].mxu0
    %v1721 = vadd.f32 %v1652, %v1720
    %v1722 = vpop.f32.mrb[0].mxu0
    %1723 = vmatprep.mubr.f32.mxu0 0.0
    %1724 = vmatmul.mubr.f32.gmra.mrb[0].mxu0 %v171
    %v1725 = vpop.f32.mrb[0].mxu0
    %v1726 = vadd.f32 %v1652, %v1725
    %v1727 = vpop.f32.mrb[0].mxu0
    %1728 = vdwg.mxu0
    %v1730 = vlaneseq
    %v1731 = vshrl.u32 %v1730, 7
    %v1732 = vsub.s32 0, %v1731
    %v1733 = vrot.slane %v1638, %v1732
    %1735 = vmatprep.subr.mxu0 0.0
    %1736 = vmatpush1.msra.mxu0 %v1633
    %1737 = vmatprep.subr.mxu0 0.0
    %1738 = vmatpush1.msra.mxu0 %v1634
    %1739 = vmatprep.subr.mxu0 0.0
    %1740 = vmatpush1.msra.mxu0 %v1635
    %1741 = vmatprep.subr.mxu0 0.0
    %1742 = vmatpush1.msra.mxu0 %v1636
    %1743 = vmatprep.subr.mxu0 0.0
    %1744 = vmatpush1.msra.mxu0 0.0
    %1745 = vmatprep.subr.mxu0 0.0
    %1746 = vmatpush1.msra.mxu0 0.0
    %1747 = vmatprep.subr.mxu0 0.0
    %1748 = vmatpush1.msra.mxu0 0.0
    %1749 = vmatprep.subr.mxu0 0.0
    %1750 = vmatpush1.msra.mxu0 0.0
    %1751 = vmatprep.subr.mxu0 0.0
    %1752 = vmatpush1.msra.mxu0 0.0
    %1753 = vmatprep.subr.mxu0 0.0
    %1754 = vmatpush1.msra.mxu0 0.0
    %1755 = vmatprep.subr.mxu0 0.0
    %1756 = vmatpush1.msra.mxu0 0.0
    %1757 = vmatprep.subr.mxu0 0.0
    %1758 = vmatpush1.msra.mxu0 0.0
    %1759 = vmatprep.subr.mxu0 0.0
    %1760 = vmatpush1.msra.mxu0 0.0
    %1761 = vmatprep.subr.mxu0 0.0
    %1762 = vmatpush1.msra.mxu0 0.0
    %1763 = vmatprep.subr.mxu0 0.0
    %1764 = vmatpush1.msra.mxu0 0.0
    %1765 = vmatprep.subr.mxu0 0.0
    %1766 = vmatpush1.msra.mxu0 0.0
    %1767 = vmatprep.subr.mxu0 0.0
    %1768 = vmatpush1.msra.mxu0 0.0
    %1769 = vmatprep.subr.mxu0 0.0
    %1770 = vmatpush1.msra.mxu0 0.0
    %1771 = vmatprep.subr.mxu0 0.0
    %1772 = vmatpush1.msra.mxu0 0.0
    %1773 = vmatprep.subr.mxu0 0.0
    %1774 = vmatpush1.msra.mxu0 0.0
    %1775 = vmatprep.subr.mxu0 0.0
    %1776 = vmatpush1.msra.mxu0 0.0
    %1777 = vmatprep.subr.mxu0 0.0
    %1778 = vmatpush1.msra.mxu0 0.0
    %1779 = vmatprep.subr.mxu0 0.0
    %1780 = vmatpush1.msra.mxu0 0.0
    %1781 = vmatprep.subr.mxu0 0.0
    %1782 = vmatpush1.msra.mxu0 0.0
    %1783 = vmatprep.subr.mxu0 0.0
    %1784 = vmatpush1.msra.mxu0 0.0
    %1785 = vmatprep.subr.mxu0 0.0
    %1786 = vmatpush1.msra.mxu0 0.0
    %1787 = vmatprep.subr.mxu0 0.0
    %1788 = vmatpush1.msra.mxu0 0.0
    %1789 = vmatprep.subr.mxu0 0.0
    %1790 = vmatpush1.msra.mxu0 0.0
    %1791 = vmatprep.subr.mxu0 0.0
    %1792 = vmatpush1.msra.mxu0 0.0
    %1793 = vmatprep.subr.mxu0 0.0
    %1794 = vmatpush1.msra.mxu0 0.0
    %1795 = vmatprep.subr.mxu0 0.0
    %1796 = vmatpush1.msra.mxu0 0.0
    %1797 = vmatprep.subr.mxu0 0.0
    %1798 = vmatpush1.msra.mxu0 0.0
    %1799 = vmatprep.mubr.f32.mxu0 0.0
    %1800 = vmatmul.mubr.f32.gmra.mrb[0].mxu0 %v168
    %v1801 = vpop.f32.mrb[0].mxu0
    %v1802 = vadd.f32 %v1733, %v1801
    %v1803 = vpop.f32.mrb[0].mxu0
    %1804 = vmatprep.mubr.f32.mxu0 0.0
    %1805 = vmatmul.mubr.f32.gmra.mrb[0].mxu0 %v171
    %v1806 = vpop.f32.mrb[0].mxu0
    %v1807 = vadd.f32 %v1733, %v1806
    %v1808 = vpop.f32.mrb[0].mxu0
    %1809 = vdwg.mxu0
    %v1811 = vlaneseq
    %v1812 = vshrl.u32 %v1811, 7
    %v1813 = vsub.s32 0, %v1812
    %v1814 = vrot.slane %v1645, %v1813
    %1816 = vmatprep.subr.mxu0 0.0
    %1817 = vmatpush1.msra.mxu0 %v1640
    %1818 = vmatprep.subr.mxu0 0.0
    %1819 = vmatpush1.msra.mxu0 %v1641
    %1820 = vmatprep.subr.mxu0 0.0
    %1821 = vmatpush1.msra.mxu0 %v1642
    %1822 = vmatprep.subr.mxu0 0.0
    %1823 = vmatpush1.msra.mxu0 %v1643
    %1824 = vmatprep.subr.mxu0 0.0
    %1825 = vmatpush1.msra.mxu0 0.0
    %1826 = vmatprep.subr.mxu0 0.0
    %1827 = vmatpush1.msra.mxu0 0.0
    %1828 = vmatprep.subr.mxu0 0.0
    %1829 = vmatpush1.msra.mxu0 0.0
    %1830 = vmatprep.subr.mxu0 0.0
    %1831 = vmatpush1.msra.mxu0 0.0
    %1832 = vmatprep.subr.mxu0 0.0
    %1833 = vmatpush1.msra.mxu0 0.0
    %1834 = vmatprep.subr.mxu0 0.0
    %1835 = vmatpush1.msra.mxu0 0.0
    %1836 = vmatprep.subr.mxu0 0.0
    %1837 = vmatpush1.msra.mxu0 0.0
    %1838 = vmatprep.subr.mxu0 0.0
    %1839 = vmatpush1.msra.mxu0 0.0
    %1840 = vmatprep.subr.mxu0 0.0
    %1841 = vmatpush1.msra.mxu0 0.0
    %1842 = vmatprep.subr.mxu0 0.0
    %1843 = vmatpush1.msra.mxu0 0.0
    %1844 = vmatprep.subr.mxu0 0.0
    %1845 = vmatpush1.msra.mxu0 0.0
    %1846 = vmatprep.subr.mxu0 0.0
    %1847 = vmatpush1.msra.mxu0 0.0
    %1848 = vmatprep.subr.mxu0 0.0
    %1849 = vmatpush1.msra.mxu0 0.0
    %1850 = vmatprep.subr.mxu0 0.0
    %1851 = vmatpush1.msra.mxu0 0.0
    %1852 = vmatprep.subr.mxu0 0.0
    %1853 = vmatpush1.msra.mxu0 0.0
    %1854 = vmatprep.subr.mxu0 0.0
    %1855 = vmatpush1.msra.mxu0 0.0
    %1856 = vmatprep.subr.mxu0 0.0
    %1857 = vmatpush1.msra.mxu0 0.0
    %1858 = vmatprep.subr.mxu0 0.0
    %1859 = vmatpush1.msra.mxu0 0.0
    %1860 = vmatprep.subr.mxu0 0.0
    %1861 = vmatpush1.msra.mxu0 0.0
    %1862 = vmatprep.subr.mxu0 0.0
    %1863 = vmatpush1.msra.mxu0 0.0
    %1864 = vmatprep.subr.mxu0 0.0
    %1865 = vmatpush1.msra.mxu0 0.0
    %1866 = vmatprep.subr.mxu0 0.0
    %1867 = vmatpush1.msra.mxu0 0.0
    %1868 = vmatprep.subr.mxu0 0.0
    %1869 = vmatpush1.msra.mxu0 0.0
    %1870 = vmatprep.subr.mxu0 0.0
    %1871 = vmatpush1.msra.mxu0 0.0
    %1872 = vmatprep.subr.mxu0 0.0
    %1873 = vmatpush1.msra.mxu0 0.0
    %1874 = vmatprep.subr.mxu0 0.0
    %1875 = vmatpush1.msra.mxu0 0.0
    %1876 = vmatprep.subr.mxu0 0.0
    %1877 = vmatpush1.msra.mxu0 0.0
    %1878 = vmatprep.subr.mxu0 0.0
    %1879 = vmatpush1.msra.mxu0 0.0
    %1880 = vmatprep.mubr.f32.mxu0 0.0
    %1881 = vmatmul.mubr.f32.gmra.mrb[0].mxu0 %v168
    %v1882 = vpop.f32.mrb[0].mxu0
    %v1883 = vadd.f32 %v1814, %v1882
    %v1884 = vpop.f32.mrb[0].mxu0
    %1885 = vmatprep.mubr.f32.mxu0 0.0
    %1886 = vmatmul.mubr.f32.gmra.mrb[0].mxu0 %v171
    %v1887 = vpop.f32.mrb[0].mxu0
    %v1888 = vadd.f32 %v1814, %v1887
    %v1889 = vpop.f32.mrb[0].mxu0
    %1890 = vdwg.mxu0
    %v1892 = vsel %vm410, %v1721, 0
    %v1895 = vsel %vm410, %v1802, 0
    %1897 = vmatprep.subr.mxu0 0.0
    %1898 = vmatpush1.xpose.msra.mxu0 %v1895
    %1899 = vmatprep.subr.mxu0 0.0
    %1900 = vmatpush1.xpose.msra.mxu0 0.0
    %1901 = vmatprep.subr.mxu0 0.0
    %1902 = vmatpush1.xpose.msra.mxu0 0.0
    %1903 = vmatprep.subr.mxu0 0.0
    %1904 = vmatpush1.xpose.msra.mxu0 0.0
    %1905 = vmatprep.subr.mxu0 0.0
    %1906 = vmatpush1.xpose.msra.mxu0 0.0
    %1907 = vmatprep.subr.mxu0 0.0
    %1908 = vmatpush1.xpose.msra.mxu0 0.0
    %1909 = vmatprep.subr.mxu0 0.0
    %1910 = vmatpush1.xpose.msra.mxu0 0.0
    %1911 = vmatprep.subr.mxu0 0.0
    %1912 = vmatpush1.xpose.msra.mxu0 0.0
    %1913 = vmatprep.subr.mxu0 0.0
    %1914 = vmatpush1.xpose.msra.mxu0 0.0
    %1915 = vmatprep.subr.mxu0 0.0
    %1916 = vmatpush1.xpose.msra.mxu0 0.0
    %1917 = vmatprep.subr.mxu0 0.0
    %1918 = vmatpush1.xpose.msra.mxu0 0.0
    %1919 = vmatprep.subr.mxu0 0.0
    %1920 = vmatpush1.xpose.msra.mxu0 0.0
    %1921 = vmatprep.subr.mxu0 0.0
    %1922 = vmatpush1.xpose.msra.mxu0 0.0
    %1923 = vmatprep.subr.mxu0 0.0
    %1924 = vmatpush1.xpose.msra.mxu0 0.0
    %1925 = vmatprep.subr.mxu0 0.0
    %1926 = vmatpush1.xpose.msra.mxu0 0.0
    %1927 = vmatprep.subr.mxu0 0.0
    %1928 = vmatpush1.xpose.msra.mxu0 0.0
    %1929 = vmatprep.subr.mxu0 0.0
    %1930 = vmatpush1.xpose.msra.mxu0 0.0
    %1931 = vmatprep.subr.mxu0 0.0
    %1932 = vmatpush1.xpose.msra.mxu0 0.0
    %1933 = vmatprep.subr.mxu0 0.0
    %1934 = vmatpush1.xpose.msra.mxu0 0.0
    %1935 = vmatprep.subr.mxu0 0.0
    %1936 = vmatpush1.xpose.msra.mxu0 0.0
    %1937 = vmatprep.subr.mxu0 0.0
    %1938 = vmatpush1.xpose.msra.mxu0 0.0
    %1939 = vmatprep.subr.mxu0 0.0
    %1940 = vmatpush1.xpose.msra.mxu0 0.0
    %1941 = vmatprep.subr.mxu0 0.0
    %1942 = vmatpush1.xpose.msra.mxu0 0.0
    %1943 = vmatprep.subr.mxu0 0.0
    %1944 = vmatpush1.xpose.msra.mxu0 0.0
    %1945 = vmatprep.subr.mxu0 0.0
    %1946 = vmatpush1.xpose.msra.mxu0 0.0
    %1947 = vmatprep.subr.mxu0 0.0
    %1948 = vmatpush1.xpose.msra.mxu0 0.0
    %1949 = vmatprep.subr.mxu0 0.0
    %1950 = vmatpush1.xpose.msra.mxu0 0.0
    %1951 = vmatprep.subr.mxu0 0.0
    %1952 = vmatpush1.xpose.msra.mxu0 0.0
    %1953 = vmatprep.subr.mxu0 0.0
    %1954 = vmatpush1.xpose.msra.mxu0 0.0
    %1955 = vmatprep.subr.mxu0 0.0
    %1956 = vmatpush1.xpose.msra.mxu0 0.0
    %1957 = vmatprep.subr.mxu0 0.0
    %1958 = vmatpush1.xpose.msra.mxu0 0.0
    %1959 = vmatprep.subr.mxu0 0.0
    %1960 = vmatpush1.xpose.msra.mxu0 0.0
    %1961 = vmatprep.mubr.f32.mxu0 0.0
    %1962 = vmatmul.mubr.f32.gmra.mrb[0].mxu0 %v1892
    %v1963 = vpop.f32.mrb[0].mxu0
    %v1964 = vadd.f32 0.0, %v1963
    %v1965 = vpop.f32.mrb[0].mxu0
    %1966 = vdwg.mxu0
    %v1967 = vmul.f32 %v1964, 0.35355338
    %v1968 = vadd.f32 %v1967, %v491
    %v1969 = vsel %vm410, %v1968, -inf
    %1970 = vmax.xlane.f32.xlu0 %v1969
    %v1971 = vpop.xlane.xlu0 %1970
    %v1972 = vsub.f32 %v1968, %v1971
    %v1973 = vmul.f32 %v1972, 1.442695
    %v1974 = vpow.pop %v1973
    %v1975 = vsel %vm410, %v1974, 0.0
    %1976 = vadd.xlane.f32.xlu0 %v1975
    %v1977 = vpop.xlane.xlu0 %1976
    %v1978 = vrcp.pop %v1977
    %v1979 = vmul.f32 %v1974, %v1978
    %v1981 = vsel %vm410, %v1979, 0
    %1983 = vmatprep.subr.mxu0 0.0
    %1984 = vmatpush1.msra.mxu0 %v1883
    %1985 = vmatprep.subr.mxu0 0.0
    %1986 = vmatpush1.msra.mxu0 0.0
    %1987 = vmatprep.subr.mxu0 0.0
    %1988 = vmatpush1.msra.mxu0 0.0
    %1989 = vmatprep.subr.mxu0 0.0
    %1990 = vmatpush1.msra.mxu0 0.0
    %1991 = vmatprep.subr.mxu0 0.0
    %1992 = vmatpush1.msra.mxu0 0.0
    %1993 = vmatprep.subr.mxu0 0.0
    %1994 = vmatpush1.msra.mxu0 0.0
    %1995 = vmatprep.subr.mxu0 0.0
    %1996 = vmatpush1.msra.mxu0 0.0
    %1997 = vmatprep.subr.mxu0 0.0
    %1998 = vmatpush1.msra.mxu0 0.0
    %1999 = vmatprep.subr.mxu0 0.0
    %2000 = vmatpush1.msra.mxu0 0.0
    %2001 = vmatprep.subr.mxu0 0.0
    %2002 = vmatpush1.msra.mxu0 0.0
    %2003 = vmatprep.subr.mxu0 0.0
    %2004 = vmatpush1.msra.mxu0 0.0
    %2005 = vmatprep.subr.mxu0 0.0
    %2006 = vmatpush1.msra.mxu0 0.0
    %2007 = vmatprep.subr.mxu0 0.0
    %2008 = vmatpush1.msra.mxu0 0.0
    %2009 = vmatprep.subr.mxu0 0.0
    %2010 = vmatpush1.msra.mxu0 0.0
    %2011 = vmatprep.subr.mxu0 0.0
    %2012 = vmatpush1.msra.mxu0 0.0
    %2013 = vmatprep.subr.mxu0 0.0
    %2014 = vmatpush1.msra.mxu0 0.0
    %2015 = vmatprep.subr.mxu0 0.0
    %2016 = vmatpush1.msra.mxu0 0.0
    %2017 = vmatprep.subr.mxu0 0.0
    %2018 = vmatpush1.msra.mxu0 0.0
    %2019 = vmatprep.subr.mxu0 0.0
    %2020 = vmatpush1.msra.mxu0 0.0
    %2021 = vmatprep.subr.mxu0 0.0
    %2022 = vmatpush1.msra.mxu0 0.0
    %2023 = vmatprep.subr.mxu0 0.0
    %2024 = vmatpush1.msra.mxu0 0.0
    %2025 = vmatprep.subr.mxu0 0.0
    %2026 = vmatpush1.msra.mxu0 0.0
    %2027 = vmatprep.subr.mxu0 0.0
    %2028 = vmatpush1.msra.mxu0 0.0
    %2029 = vmatprep.subr.mxu0 0.0
    %2030 = vmatpush1.msra.mxu0 0.0
    %2031 = vmatprep.subr.mxu0 0.0
    %2032 = vmatpush1.msra.mxu0 0.0
    %2033 = vmatprep.subr.mxu0 0.0
    %2034 = vmatpush1.msra.mxu0 0.0
    %2035 = vmatprep.subr.mxu0 0.0
    %2036 = vmatpush1.msra.mxu0 0.0
    %2037 = vmatprep.subr.mxu0 0.0
    %2038 = vmatpush1.msra.mxu0 0.0
    %2039 = vmatprep.subr.mxu0 0.0
    %2040 = vmatpush1.msra.mxu0 0.0
    %2041 = vmatprep.subr.mxu0 0.0
    %2042 = vmatpush1.msra.mxu0 0.0
    %2043 = vmatprep.subr.mxu0 0.0
    %2044 = vmatpush1.msra.mxu0 0.0
    %2045 = vmatprep.subr.mxu0 0.0
    %2046 = vmatpush1.msra.mxu0 0.0
    %2047 = vmatprep.mubr.f32.mxu0 0.0
    %2048 = vmatmul.mubr.f32.gmra.mrb[0].mxu0 %v1981
    %v2049 = vpop.f32.mrb[0].mxu0
    %v2050 = vadd.f32 0.0, %v2049
    %v2051 = vpop.f32.mrb[0].mxu0
    %2052 = vdwg.mxu0
    %v2054 = vsel %vm410, %v2050, 0
    %2056 = vmatprep.subr.mxu0 0.0
    %2057 = vmatpush1.msra.mxu0 %v1647
    %2058 = vmatprep.subr.mxu0 0.0
    %2059 = vmatpush1.msra.mxu0 0.0
    %2060 = vmatprep.subr.mxu0 0.0
    %2061 = vmatpush1.msra.mxu0 0.0
    %2062 = vmatprep.subr.mxu0 0.0
    %2063 = vmatpush1.msra.mxu0 0.0
    %2064 = vmatprep.subr.mxu0 0.0
    %2065 = vmatpush1.msra.mxu0 0.0
    %2066 = vmatprep.subr.mxu0 0.0
    %2067 = vmatpush1.msra.mxu0 0.0
    %2068 = vmatprep.subr.mxu0 0.0
    %2069 = vmatpush1.msra.mxu0 0.0
    %2070 = vmatprep.subr.mxu0 0.0
    %2071 = vmatpush1.msra.mxu0 0.0
    %2072 = vmatprep.subr.mxu0 0.0
    %2073 = vmatpush1.msra.mxu0 0.0
    %2074 = vmatprep.subr.mxu0 0.0
    %2075 = vmatpush1.msra.mxu0 0.0
    %2076 = vmatprep.subr.mxu0 0.0
    %2077 = vmatpush1.msra.mxu0 0.0
    %2078 = vmatprep.subr.mxu0 0.0
    %2079 = vmatpush1.msra.mxu0 0.0
    %2080 = vmatprep.subr.mxu0 0.0
    %2081 = vmatpush1.msra.mxu0 0.0
    %2082 = vmatprep.subr.mxu0 0.0
    %2083 = vmatpush1.msra.mxu0 0.0
    %2084 = vmatprep.subr.mxu0 0.0
    %2085 = vmatpush1.msra.mxu0 0.0
    %2086 = vmatprep.subr.mxu0 0.0
    %2087 = vmatpush1.msra.mxu0 0.0
    %2088 = vmatprep.subr.mxu0 0.0
    %2089 = vmatpush1.msra.mxu0 0.0
    %2090 = vmatprep.subr.mxu0 0.0
    %2091 = vmatpush1.msra.mxu0 0.0
    %2092 = vmatprep.subr.mxu0 0.0
    %2093 = vmatpush1.msra.mxu0 0.0
    %2094 = vmatprep.subr.mxu0 0.0
    %2095 = vmatpush1.msra.mxu0 0.0
    %2096 = vmatprep.subr.mxu0 0.0
    %2097 = vmatpush1.msra.mxu0 0.0
    %2098 = vmatprep.subr.mxu0 0.0
    %2099 = vmatpush1.msra.mxu0 0.0
    %2100 = vmatprep.subr.mxu0 0.0
    %2101 = vmatpush1.msra.mxu0 0.0
    %2102 = vmatprep.subr.mxu0 0.0
    %2103 = vmatpush1.msra.mxu0 0.0
    %2104 = vmatprep.subr.mxu0 0.0
    %2105 = vmatpush1.msra.mxu0 0.0
    %2106 = vmatprep.subr.mxu0 0.0
    %2107 = vmatpush1.msra.mxu0 0.0
    %2108 = vmatprep.subr.mxu0 0.0
    %2109 = vmatpush1.msra.mxu0 0.0
    %2110 = vmatprep.subr.mxu0 0.0
    %2111 = vmatpush1.msra.mxu0 0.0
    %2112 = vmatprep.subr.mxu0 0.0
    %2113 = vmatpush1.msra.mxu0 0.0
    %2114 = vmatprep.subr.mxu0 0.0
    %2115 = vmatpush1.msra.mxu0 0.0
    %2116 = vmatprep.subr.mxu0 0.0
    %2117 = vmatpush1.msra.mxu0 0.0
    %2118 = vmatprep.subr.mxu0 0.0
    %2119 = vmatpush1.msra.mxu0 0.0
    %2120 = vmatprep.mubr.f32.mxu0 0.0
    %2121 = vmatmul.mubr.f32.gmra.mrb[0].mxu0 %v2054
    %v2122 = vpop.f32.mrb[0].mxu0
    %v2123 = vadd.f32 0.0, %v2122
    %v2124 = vpop.f32.mrb[0].mxu0
    %2125 = vdwg.mxu0
    %v2126 = vadd.f32 %v1314, %v2123
    %v2128 = vsel %vm410, %v1726, 0
    %v2131 = vsel %vm410, %v1807, 0
    %2133 = vmatprep.subr.mxu0 0.0
    %2134 = vmatpush1.xpose.msra.mxu0 %v2131
    %2135 = vmatprep.subr.mxu0 0.0
    %2136 = vmatpush1.xpose.msra.mxu0 0.0
    %2137 = vmatprep.subr.mxu0 0.0
    %2138 = vmatpush1.xpose.msra.mxu0 0.0
    %2139 = vmatprep.subr.mxu0 0.0
    %2140 = vmatpush1.xpose.msra.mxu0 0.0
    %2141 = vmatprep.subr.mxu0 0.0
    %2142 = vmatpush1.xpose.msra.mxu0 0.0
    %2143 = vmatprep.subr.mxu0 0.0
    %2144 = vmatpush1.xpose.msra.mxu0 0.0
    %2145 = vmatprep.subr.mxu0 0.0
    %2146 = vmatpush1.xpose.msra.mxu0 0.0
    %2147 = vmatprep.subr.mxu0 0.0
    %2148 = vmatpush1.xpose.msra.mxu0 0.0
    %2149 = vmatprep.subr.mxu0 0.0
    %2150 = vmatpush1.xpose.msra.mxu0 0.0
    %2151 = vmatprep.subr.mxu0 0.0
    %2152 = vmatpush1.xpose.msra.mxu0 0.0
    %2153 = vmatprep.subr.mxu0 0.0
    %2154 = vmatpush1.xpose.msra.mxu0 0.0
    %2155 = vmatprep.subr.mxu0 0.0
    %2156 = vmatpush1.xpose.msra.mxu0 0.0
    %2157 = vmatprep.subr.mxu0 0.0
    %2158 = vmatpush1.xpose.msra.mxu0 0.0
    %2159 = vmatprep.subr.mxu0 0.0
    %2160 = vmatpush1.xpose.msra.mxu0 0.0
    %2161 = vmatprep.subr.mxu0 0.0
    %2162 = vmatpush1.xpose.msra.mxu0 0.0
    %2163 = vmatprep.subr.mxu0 0.0
    %2164 = vmatpush1.xpose.msra.mxu0 0.0
    %2165 = vmatprep.subr.mxu0 0.0
    %2166 = vmatpush1.xpose.msra.mxu0 0.0
    %2167 = vmatprep.subr.mxu0 0.0
    %2168 = vmatpush1.xpose.msra.mxu0 0.0
    %2169 = vmatprep.subr.mxu0 0.0
    %2170 = vmatpush1.xpose.msra.mxu0 0.0
    %2171 = vmatprep.subr.mxu0 0.0
    %2172 = vmatpush1.xpose.msra.mxu0 0.0
    %2173 = vmatprep.subr.mxu0 0.0
    %2174 = vmatpush1.xpose.msra.mxu0 0.0
    %2175 = vmatprep.subr.mxu0 0.0
    %2176 = vmatpush1.xpose.msra.mxu0 0.0
    %2177 = vmatprep.subr.mxu0 0.0
    %2178 = vmatpush1.xpose.msra.mxu0 0.0
    %2179 = vmatprep.subr.mxu0 0.0
    %2180 = vmatpush1.xpose.msra.mxu0 0.0
    %2181 = vmatprep.subr.mxu0 0.0
    %2182 = vmatpush1.xpose.msra.mxu0 0.0
    %2183 = vmatprep.subr.mxu0 0.0
    %2184 = vmatpush1.xpose.msra.mxu0 0.0
    %2185 = vmatprep.subr.mxu0 0.0
    %2186 = vmatpush1.xpose.msra.mxu0 0.0
    %2187 = vmatprep.subr.mxu0 0.0
    %2188 = vmatpush1.xpose.msra.mxu0 0.0
    %2189 = vmatprep.subr.mxu0 0.0
    %2190 = vmatpush1.xpose.msra.mxu0 0.0
    %2191 = vmatprep.subr.mxu0 0.0
    %2192 = vmatpush1.xpose.msra.mxu0 0.0
    %2193 = vmatprep.subr.mxu0 0.0
    %2194 = vmatpush1.xpose.msra.mxu0 0.0
    %2195 = vmatprep.subr.mxu0 0.0
    %2196 = vmatpush1.xpose.msra.mxu0 0.0
    %2197 = vmatprep.mubr.f32.mxu0 0.0
    %2198 = vmatmul.mubr.f32.gmra.mrb[0].mxu0 %v2128
    %v2199 = vpop.f32.mrb[0].mxu0
    %v2200 = vadd.f32 0.0, %v2199
    %v2201 = vpop.f32.mrb[0].mxu0
    %2202 = vdwg.mxu0
    %v2203 = vmul.f32 %v2200, 0.35355338
    %v2204 = vadd.f32 %v2203, %v657
    %v2205 = vsel %vm410, %v2204, -inf
    %2206 = vmax.xlane.f32.xlu0 %v2205
    %v2207 = vpop.xlane.xlu0 %2206
    %v2208 = vsub.f32 %v2204, %v2207
    %v2209 = vmul.f32 %v2208, 1.442695
    %v2210 = vpow.pop %v2209
    %v2211 = vsel %vm410, %v2210, 0.0
    %2212 = vadd.xlane.f32.xlu0 %v2211
    %v2213 = vpop.xlane.xlu0 %2212
    %v2214 = vrcp.pop %v2213
    %v2215 = vmul.f32 %v2210, %v2214
    %v2217 = vsel %vm410, %v2215, 0
    %2219 = vmatprep.subr.mxu0 0.0
    %2220 = vmatpush1.msra.mxu0 %v1888
    %2221 = vmatprep.subr.mxu0 0.0
    %2222 = vmatpush1.msra.mxu0 0.0
    %2223 = vmatprep.subr.mxu0 0.0
    %2224 = vmatpush1.msra.mxu0 0.0
    %2225 = vmatprep.subr.mxu0 0.0
    %2226 = vmatpush1.msra.mxu0 0.0
    %2227 = vmatprep.subr.mxu0 0.0
    %2228 = vmatpush1.msra.mxu0 0.0
    %2229 = vmatprep.subr.mxu0 0.0
    %2230 = vmatpush1.msra.mxu0 0.0
    %2231 = vmatprep.subr.mxu0 0.0
    %2232 = vmatpush1.msra.mxu0 0.0
    %2233 = vmatprep.subr.mxu0 0.0
    %2234 = vmatpush1.msra.mxu0 0.0
    %2235 = vmatprep.subr.mxu0 0.0
    %2236 = vmatpush1.msra.mxu0 0.0
    %2237 = vmatprep.subr.mxu0 0.0
    %2238 = vmatpush1.msra.mxu0 0.0
    %2239 = vmatprep.subr.mxu0 0.0
    %2240 = vmatpush1.msra.mxu0 0.0
    %2241 = vmatprep.subr.mxu0 0.0
    %2242 = vmatpush1.msra.mxu0 0.0
    %2243 = vmatprep.subr.mxu0 0.0
    %2244 = vmatpush1.msra.mxu0 0.0
    %2245 = vmatprep.subr.mxu0 0.0
    %2246 = vmatpush1.msra.mxu0 0.0
    %2247 = vmatprep.subr.mxu0 0.0
    %2248 = vmatpush1.msra.mxu0 0.0
    %2249 = vmatprep.subr.mxu0 0.0
    %2250 = vmatpush1.msra.mxu0 0.0
    %2251 = vmatprep.subr.mxu0 0.0
    %2252 = vmatpush1.msra.mxu0 0.0
    %2253 = vmatprep.subr.mxu0 0.0
    %2254 = vmatpush1.msra.mxu0 0.0
    %2255 = vmatprep.subr.mxu0 0.0
    %2256 = vmatpush1.msra.mxu0 0.0
    %2257 = vmatprep.subr.mxu0 0.0
    %2258 = vmatpush1.msra.mxu0 0.0
    %2259 = vmatprep.subr.mxu0 0.0
    %2260 = vmatpush1.msra.mxu0 0.0
    %2261 = vmatprep.subr.mxu0 0.0
    %2262 = vmatpush1.msra.mxu0 0.0
    %2263 = vmatprep.subr.mxu0 0.0
    %2264 = vmatpush1.msra.mxu0 0.0
    %2265 = vmatprep.subr.mxu0 0.0
    %2266 = vmatpush1.msra.mxu0 0.0
    %2267 = vmatprep.subr.mxu0 0.0
    %2268 = vmatpush1.msra.mxu0 0.0
    %2269 = vmatprep.subr.mxu0 0.0
    %2270 = vmatpush1.msra.mxu0 0.0
    %2271 = vmatprep.subr.mxu0 0.0
    %2272 = vmatpush1.msra.mxu0 0.0
    %2273 = vmatprep.subr.mxu0 0.0
    %2274 = vmatpush1.msra.mxu0 0.0
    %2275 = vmatprep.subr.mxu0 0.0
    %2276 = vmatpush1.msra.mxu0 0.0
    %2277 = vmatprep.subr.mxu0 0.0
    %2278 = vmatpush1.msra.mxu0 0.0
    %2279 = vmatprep.subr.mxu0 0.0
    %2280 = vmatpush1.msra.mxu0 0.0
    %2281 = vmatprep.subr.mxu0 0.0
    %2282 = vmatpush1.msra.mxu0 0.0
    %2283 = vmatprep.mubr.f32.mxu0 0.0
    %2284 = vmatmul.mubr.f32.gmra.mrb[0].mxu0 %v2217
    %v2285 = vpop.f32.mrb[0].mxu0
    %v2286 = vadd.f32 0.0, %v2285
    %v2287 = vpop.f32.mrb[0].mxu0
    %2288 = vdwg.mxu0
    %v2290 = vsel %vm410, %v2286, 0
    %2292 = vmatprep.subr.mxu0 0.0
    %2293 = vmatpush1.msra.mxu0 %v1647
    %2294 = vmatprep.subr.mxu0 0.0
    %2295 = vmatpush1.msra.mxu0 0.0
    %2296 = vmatprep.subr.mxu0 0.0
    %2297 = vmatpush1.msra.mxu0 0.0
    %2298 = vmatprep.subr.mxu0 0.0
    %2299 = vmatpush1.msra.mxu0 0.0
    %2300 = vmatprep.subr.mxu0 0.0
    %2301 = vmatpush1.msra.mxu0 0.0
    %2302 = vmatprep.subr.mxu0 0.0
    %2303 = vmatpush1.msra.mxu0 0.0
    %2304 = vmatprep.subr.mxu0 0.0
    %2305 = vmatpush1.msra.mxu0 0.0
    %2306 = vmatprep.subr.mxu0 0.0
    %2307 = vmatpush1.msra.mxu0 0.0
    %2308 = vmatprep.subr.mxu0 0.0
    %2309 = vmatpush1.msra.mxu0 0.0
    %2310 = vmatprep.subr.mxu0 0.0
    %2311 = vmatpush1.msra.mxu0 0.0
    %2312 = vmatprep.subr.mxu0 0.0
    %2313 = vmatpush1.msra.mxu0 0.0
    %2314 = vmatprep.subr.mxu0 0.0
    %2315 = vmatpush1.msra.mxu0 0.0
    %2316 = vmatprep.subr.mxu0 0.0
    %2317 = vmatpush1.msra.mxu0 0.0
    %2318 = vmatprep.subr.mxu0 0.0
    %2319 = vmatpush1.msra.mxu0 0.0
    %2320 = vmatprep.subr.mxu0 0.0
    %2321 = vmatpush1.msra.mxu0 0.0
    %2322 = vmatprep.subr.mxu0 0.0
    %2323 = vmatpush1.msra.mxu0 0.0
    %2324 = vmatprep.subr.mxu0 0.0
    %2325 = vmatpush1.msra.mxu0 0.0
    %2326 = vmatprep.subr.mxu0 0.0
    %2327 = vmatpush1.msra.mxu0 0.0
    %2328 = vmatprep.subr.mxu0 0.0
    %2329 = vmatpush1.msra.mxu0 0.0
    %2330 = vmatprep.subr.mxu0 0.0
    %2331 = vmatpush1.msra.mxu0 0.0
    %2332 = vmatprep.subr.mxu0 0.0
    %2333 = vmatpush1.msra.mxu0 0.0
    %2334 = vmatprep.subr.mxu0 0.0
    %2335 = vmatpush1.msra.mxu0 0.0
    %2336 = vmatprep.subr.mxu0 0.0
    %2337 = vmatpush1.msra.mxu0 0.0
    %2338 = vmatprep.subr.mxu0 0.0
    %2339 = vmatpush1.msra.mxu0 0.0
    %2340 = vmatprep.subr.mxu0 0.0
    %2341 = vmatpush1.msra.mxu0 0.0
    %2342 = vmatprep.subr.mxu0 0.0
    %2343 = vmatpush1.msra.mxu0 0.0
    %2344 = vmatprep.subr.mxu0 0.0
    %2345 = vmatpush1.msra.mxu0 0.0
    %2346 = vmatprep.subr.mxu0 0.0
    %2347 = vmatpush1.msra.mxu0 0.0
    %2348 = vmatprep.subr.mxu0 0.0
    %2349 = vmatpush1.msra.mxu0 0.0
    %2350 = vmatprep.subr.mxu0 0.0
    %2351 = vmatpush1.msra.mxu0 0.0
    %2352 = vmatprep.subr.mxu0 0.0
    %2353 = vmatpush1.msra.mxu0 0.0
    %2354 = vmatprep.subr.mxu0 0.0
    %2355 = vmatpush1.msra.mxu0 0.0
    %2356 = vmatprep.mubr.f32.mxu0 0.0
    %2357 = vmatmul.mubr.f32.gmra.mrb[0].mxu0 %v2290
    %v2358 = vpop.f32.mrb[0].mxu0
    %v2359 = vadd.f32 0.0, %v2358
    %v2360 = vpop.f32.mrb[0].mxu0
    %2361 = vdwg.mxu0
    %v2362 = vadd.f32 %v1622, %v2359
    %s2363 = scalar_lea.vmem %s5, 96
    %v2364 = vld [vmem:[%s2363] sm:$0xff]
    %v2365 = vld [vmem:[%s2363 + $0x8] sm:$0xff]
    %v2366 = vld [vmem:[%s2363 + $0x10] sm:$0xff]
    %v2367 = vld [vmem:[%s2363 + $0x18] sm:$0xff]
    %s2368 = scalar_lea.vmem %s6, 3
    %v2369 = vld [vmem:[%s2368] sm:$0x1]
    %s2370 = scalar_lea.vmem %s7, 96
    %v2371 = vld [vmem:[%s2370] sm:$0xff]
    %v2372 = vld [vmem:[%s2370 + $0x8] sm:$0xff]
    %v2373 = vld [vmem:[%s2370 + $0x10] sm:$0xff]
    %v2374 = vld [vmem:[%s2370 + $0x18] sm:$0xff]
    %s2375 = scalar_lea.vmem %s8, 3
    %v2376 = vld [vmem:[%s2375] sm:$0x1]
    %s2377 = scalar_lea.vmem %s9, 96
    %v2378 = vld [vmem:[%s2377] sm:$0xff]
    %v2379 = vld [vmem:[%s2377 + $0x8] sm:$0xff]
    %v2380 = vld [vmem:[%s2377 + $0x10] sm:$0xff]
    %v2381 = vld [vmem:[%s2377 + $0x18] sm:$0xff]
    %s2382 = scalar_lea.vmem %s10, 3
    %v2383 = vld [vmem:[%s2382] sm:$0x1]
    %s2384 = scalar_lea.vmem %s11, 24
    %v2385 = vld [vmem:[%s2384] sm:$0xff]
    %v2387 = vlaneseq
    %v2388 = vshrl.u32 %v2387, 7
    %v2389 = vsub.s32 0, %v2388
    %v2390 = vrot.slane %v2369, %v2389
    %2392 = vmatprep.subr.mxu0 0.0
    %2393 = vmatpush1.msra.mxu0 %v2364
    %2394 = vmatprep.subr.mxu0 0.0
    %2395 = vmatpush1.msra.mxu0 %v2365
    %2396 = vmatprep.subr.mxu0 0.0
    %2397 = vmatpush1.msra.mxu0 %v2366
    %2398 = vmatprep.subr.mxu0 0.0
    %2399 = vmatpush1.msra.mxu0 %v2367
    %2400 = vmatprep.subr.mxu0 0.0
    %2401 = vmatpush1.msra.mxu0 0.0
    %2402 = vmatprep.subr.mxu0 0.0
    %2403 = vmatpush1.msra.mxu0 0.0
    %2404 = vmatprep.subr.mxu0 0.0
    %2405 = vmatpush1.msra.mxu0 0.0
    %2406 = vmatprep.subr.mxu0 0.0
    %2407 = vmatpush1.msra.mxu0 0.0
    %2408 = vmatprep.subr.mxu0 0.0
    %2409 = vmatpush1.msra.mxu0 0.0
    %2410 = vmatprep.subr.mxu0 0.0
    %2411 = vmatpush1.msra.mxu0 0.0
    %2412 = vmatprep.subr.mxu0 0.0
    %2413 = vmatpush1.msra.mxu0 0.0
    %2414 = vmatprep.subr.mxu0 0.0
    %2415 = vmatpush1.msra.mxu0 0.0
    %2416 = vmatprep.subr.mxu0 0.0
    %2417 = vmatpush1.msra.mxu0 0.0
    %2418 = vmatprep.subr.mxu0 0.0
    %2419 = vmatpush1.msra.mxu0 0.0
    %2420 = vmatprep.subr.mxu0 0.0
    %2421 = vmatpush1.msra.mxu0 0.0
    %2422 = vmatprep.subr.mxu0 0.0
    %2423 = vmatpush1.msra.mxu0 0.0
    %2424 = vmatprep.subr.mxu0 0.0
    %2425 = vmatpush1.msra.mxu0 0.0
    %2426 = vmatprep.subr.mxu0 0.0
    %2427 = vmatpush1.msra.mxu0 0.0
    %2428 = vmatprep.subr.mxu0 0.0
    %2429 = vmatpush1.msra.mxu0 0.0
    %2430 = vmatprep.subr.mxu0 0.0
    %2431 = vmatpush1.msra.mxu0 0.0
    %2432 = vmatprep.subr.mxu0 0.0
    %2433 = vmatpush1.msra.mxu0 0.0
    %2434 = vmatprep.subr.mxu0 0.0
    %2435 = vmatpush1.msra.mxu0 0.0
    %2436 = vmatprep.subr.mxu0 0.0
    %2437 = vmatpush1.msra.mxu0 0.0
    %2438 = vmatprep.subr.mxu0 0.0
    %2439 = vmatpush1.msra.mxu0 0.0
    %2440 = vmatprep.subr.mxu0 0.0
    %2441 = vmatpush1.msra.mxu0 0.0
    %2442 = vmatprep.subr.mxu0 0.0
    %2443 = vmatpush1.msra.mxu0 0.0
    %2444 = vmatprep.subr.mxu0 0.0
    %2445 = vmatpush1.msra.mxu0 0.0
    %2446 = vmatprep.subr.mxu0 0.0
    %2447 = vmatpush1.msra.mxu0 0.0
    %2448 = vmatprep.subr.mxu0 0.0
    %2449 = vmatpush1.msra.mxu0 0.0
    %2450 = vmatprep.subr.mxu0 0.0
    %2451 = vmatpush1.msra.mxu0 0.0
    %2452 = vmatprep.subr.mxu0 0.0
    %2453 = vmatpush1.msra.mxu0 0.0
    %2454 = vmatprep.subr.mxu0 0.0
    %2455 = vmatpush1.msra.mxu0 0.0
    %2456 = vmatprep.mubr.f32.mxu0 0.0
    %2457 = vmatmul.mubr.f32.gmra.mrb[0].mxu0 %v168
    %v2458 = vpop.f32.mrb[0].mxu0
    %v2459 = vadd.f32 %v2390, %v2458
    %v2460 = vpop.f32.mrb[0].mxu0
    %2461 = vmatprep.mubr.f32.mxu0 0.0
    %2462 = vmatmul.mubr.f32.gmra.mrb[0].mxu0 %v171
    %v2463 = vpop.f32.mrb[0].mxu0
    %v2464 = vadd.f32 %v2390, %v2463
    %v2465 = vpop.f32.mrb[0].mxu0
    %2466 = vdwg.mxu0
    %v2468 = vlaneseq
    %v2469 = vshrl.u32 %v2468, 7
    %v2470 = vsub.s32 0, %v2469
    %v2471 = vrot.slane %v2376, %v2470
    %2473 = vmatprep.subr.mxu0 0.0
    %2474 = vmatpush1.msra.mxu0 %v2371
    %2475 = vmatprep.subr.mxu0 0.0
    %2476 = vmatpush1.msra.mxu0 %v2372
    %2477 = vmatprep.subr.mxu0 0.0
    %2478 = vmatpush1.msra.mxu0 %v2373
    %2479 = vmatprep.subr.mxu0 0.0
    %2480 = vmatpush1.msra.mxu0 %v2374
    %2481 = vmatprep.subr.mxu0 0.0
    %2482 = vmatpush1.msra.mxu0 0.0
    %2483 = vmatprep.subr.mxu0 0.0
    %2484 = vmatpush1.msra.mxu0 0.0
    %2485 = vmatprep.subr.mxu0 0.0
    %2486 = vmatpush1.msra.mxu0 0.0
    %2487 = vmatprep.subr.mxu0 0.0
    %2488 = vmatpush1.msra.mxu0 0.0
    %2489 = vmatprep.subr.mxu0 0.0
    %2490 = vmatpush1.msra.mxu0 0.0
    %2491 = vmatprep.subr.mxu0 0.0
    %2492 = vmatpush1.msra.mxu0 0.0
    %2493 = vmatprep.subr.mxu0 0.0
    %2494 = vmatpush1.msra.mxu0 0.0
    %2495 = vmatprep.subr.mxu0 0.0
    %2496 = vmatpush1.msra.mxu0 0.0
    %2497 = vmatprep.subr.mxu0 0.0
    %2498 = vmatpush1.msra.mxu0 0.0
    %2499 = vmatprep.subr.mxu0 0.0
    %2500 = vmatpush1.msra.mxu0 0.0
    %2501 = vmatprep.subr.mxu0 0.0
    %2502 = vmatpush1.msra.mxu0 0.0
    %2503 = vmatprep.subr.mxu0 0.0
    %2504 = vmatpush1.msra.mxu0 0.0
    %2505 = vmatprep.subr.mxu0 0.0
    %2506 = vmatpush1.msra.mxu0 0.0
    %2507 = vmatprep.subr.mxu0 0.0
    %2508 = vmatpush1.msra.mxu0 0.0
    %2509 = vmatprep.subr.mxu0 0.0
    %2510 = vmatpush1.msra.mxu0 0.0
    %2511 = vmatprep.subr.mxu0 0.0
    %2512 = vmatpush1.msra.mxu0 0.0
    %2513 = vmatprep.subr.mxu0 0.0
    %2514 = vmatpush1.msra.mxu0 0.0
    %2515 = vmatprep.subr.mxu0 0.0
    %2516 = vmatpush1.msra.mxu0 0.0
    %2517 = vmatprep.subr.mxu0 0.0
    %2518 = vmatpush1.msra.mxu0 0.0
    %2519 = vmatprep.subr.mxu0 0.0
    %2520 = vmatpush1.msra.mxu0 0.0
    %2521 = vmatprep.subr.mxu0 0.0
    %2522 = vmatpush1.msra.mxu0 0.0
    %2523 = vmatprep.subr.mxu0 0.0
    %2524 = vmatpush1.msra.mxu0 0.0
    %2525 = vmatprep.subr.mxu0 0.0
    %2526 = vmatpush1.msra.mxu0 0.0
    %2527 = vmatprep.subr.mxu0 0.0
    %2528 = vmatpush1.msra.mxu0 0.0
    %2529 = vmatprep.subr.mxu0 0.0
    %2530 = vmatpush1.msra.mxu0 0.0
    %2531 = vmatprep.subr.mxu0 0.0
    %2532 = vmatpush1.msra.mxu0 0.0
    %2533 = vmatprep.subr.mxu0 0.0
    %2534 = vmatpush1.msra.mxu0 0.0
    %2535 = vmatprep.subr.mxu0 0.0
    %2536 = vmatpush1.msra.mxu0 0.0
    %2537 = vmatprep.mubr.f32.mxu0 0.0
    %2538 = vmatmul.mubr.f32.gmra.mrb[0].mxu0 %v168
    %v2539 = vpop.f32.mrb[0].mxu0
    %v2540 = vadd.f32 %v2471, %v2539
    %v2541 = vpop.f32.mrb[0].mxu0
    %2542 = vmatprep.mubr.f32.mxu0 0.0
    %2543 = vmatmul.mubr.f32.gmra.mrb[0].mxu0 %v171
    %v2544 = vpop.f32.mrb[0].mxu0
    %v2545 = vadd.f32 %v2471, %v2544
    %v2546 = vpop.f32.mrb[0].mxu0
    %2547 = vdwg.mxu0
    %v2549 = vlaneseq
    %v2550 = vshrl.u32 %v2549, 7
    %v2551 = vsub.s32 0, %v2550
    %v2552 = vrot.slane %v2383, %v2551
    %2554 = vmatprep.subr.mxu0 0.0
    %2555 = vmatpush1.msra.mxu0 %v2378
    %2556 = vmatprep.subr.mxu0 0.0
    %2557 = vmatpush1.msra.mxu0 %v2379
    %2558 = vmatprep.subr.mxu0 0.0
    %2559 = vmatpush1.msra.mxu0 %v2380
    %2560 = vmatprep.subr.mxu0 0.0
    %2561 = vmatpush1.msra.mxu0 %v2381
    %2562 = vmatprep.subr.mxu0 0.0
    %2563 = vmatpush1.msra.mxu0 0.0
    %2564 = vmatprep.subr.mxu0 0.0
    %2565 = vmatpush1.msra.mxu0 0.0
    %2566 = vmatprep.subr.mxu0 0.0
    %2567 = vmatpush1.msra.mxu0 0.0
    %2568 = vmatprep.subr.mxu0 0.0
    %2569 = vmatpush1.msra.mxu0 0.0
    %2570 = vmatprep.subr.mxu0 0.0
    %2571 = vmatpush1.msra.mxu0 0.0
    %2572 = vmatprep.subr.mxu0 0.0
    %2573 = vmatpush1.msra.mxu0 0.0
    %2574 = vmatprep.subr.mxu0 0.0
    %2575 = vmatpush1.msra.mxu0 0.0
    %2576 = vmatprep.subr.mxu0 0.0
    %2577 = vmatpush1.msra.mxu0 0.0
    %2578 = vmatprep.subr.mxu0 0.0
    %2579 = vmatpush1.msra.mxu0 0.0
    %2580 = vmatprep.subr.mxu0 0.0
    %2581 = vmatpush1.msra.mxu0 0.0
    %2582 = vmatprep.subr.mxu0 0.0
    %2583 = vmatpush1.msra.mxu0 0.0
    %2584 = vmatprep.subr.mxu0 0.0
    %2585 = vmatpush1.msra.mxu0 0.0
    %2586 = vmatprep.subr.mxu0 0.0
    %2587 = vmatpush1.msra.mxu0 0.0
    %2588 = vmatprep.subr.mxu0 0.0
    %2589 = vmatpush1.msra.mxu0 0.0
    %2590 = vmatprep.subr.mxu0 0.0
    %2591 = vmatpush1.msra.mxu0 0.0
    %2592 = vmatprep.subr.mxu0 0.0
    %2593 = vmatpush1.msra.mxu0 0.0
    %2594 = vmatprep.subr.mxu0 0.0
    %2595 = vmatpush1.msra.mxu0 0.0
    %2596 = vmatprep.subr.mxu0 0.0
    %2597 = vmatpush1.msra.mxu0 0.0
    %2598 = vmatprep.subr.mxu0 0.0
    %2599 = vmatpush1.msra.mxu0 0.0
    %2600 = vmatprep.subr.mxu0 0.0
    %2601 = vmatpush1.msra.mxu0 0.0
    %2602 = vmatprep.subr.mxu0 0.0
    %2603 = vmatpush1.msra.mxu0 0.0
    %2604 = vmatprep.subr.mxu0 0.0
    %2605 = vmatpush1.msra.mxu0 0.0
    %2606 = vmatprep.subr.mxu0 0.0
    %2607 = vmatpush1.msra.mxu0 0.0
    %2608 = vmatprep.subr.mxu0 0.0
    %2609 = vmatpush1.msra.mxu0 0.0
    %2610 = vmatprep.subr.mxu0 0.0
    %2611 = vmatpush1.msra.mxu0 0.0
    %2612 = vmatprep.subr.mxu0 0.0
    %2613 = vmatpush1.msra.mxu0 0.0
    %2614 = vmatprep.subr.mxu0 0.0
    %2615 = vmatpush1.msra.mxu0 0.0
    %2616 = vmatprep.subr.mxu0 0.0
    %2617 = vmatpush1.msra.mxu0 0.0
    %2618 = vmatprep.mubr.f32.mxu0 0.0
    %2619 = vmatmul.mubr.f32.gmra.mrb[0].mxu0 %v168
    %v2620 = vpop.f32.mrb[0].mxu0
    %v2621 = vadd.f32 %v2552, %v2620
    %v2622 = vpop.f32.mrb[0].mxu0
    %2623 = vmatprep.mubr.f32.mxu0 0.0
    %2624 = vmatmul.mubr.f32.gmra.mrb[0].mxu0 %v171
    %v2625 = vpop.f32.mrb[0].mxu0
    %v2626 = vadd.f32 %v2552, %v2625
    %v2627 = vpop.f32.mrb[0].mxu0
    %2628 = vdwg.mxu0
    %v2630 = vsel %vm410, %v2459, 0
    %v2633 = vsel %vm410, %v2540, 0
    %2635 = vmatprep.subr.mxu0 0.0
    %2636 = vmatpush1.xpose.msra.mxu0 %v2633
    %2637 = vmatprep.subr.mxu0 0.0
    %2638 = vmatpush1.xpose.msra.mxu0 0.0
    %2639 = vmatprep.subr.mxu0 0.0
    %2640 = vmatpush1.xpose.msra.mxu0 0.0
    %2641 = vmatprep.subr.mxu0 0.0
    %2642 = vmatpush1.xpose.msra.mxu0 0.0
    %2643 = vmatprep.subr.mxu0 0.0
    %2644 = vmatpush1.xpose.msra.mxu0 0.0
    %2645 = vmatprep.subr.mxu0 0.0
    %2646 = vmatpush1.xpose.msra.mxu0 0.0
    %2647 = vmatprep.subr.mxu0 0.0
    %2648 = vmatpush1.xpose.msra.mxu0 0.0
    %2649 = vmatprep.subr.mxu0 0.0
    %2650 = vmatpush1.xpose.msra.mxu0 0.0
    %2651 = vmatprep.subr.mxu0 0.0
    %2652 = vmatpush1.xpose.msra.mxu0 0.0
    %2653 = vmatprep.subr.mxu0 0.0
    %2654 = vmatpush1.xpose.msra.mxu0 0.0
    %2655 = vmatprep.subr.mxu0 0.0
    %2656 = vmatpush1.xpose.msra.mxu0 0.0
    %2657 = vmatprep.subr.mxu0 0.0
    %2658 = vmatpush1.xpose.msra.mxu0 0.0
    %2659 = vmatprep.subr.mxu0 0.0
    %2660 = vmatpush1.xpose.msra.mxu0 0.0
    %2661 = vmatprep.subr.mxu0 0.0
    %2662 = vmatpush1.xpose.msra.mxu0 0.0
    %2663 = vmatprep.subr.mxu0 0.0
    %2664 = vmatpush1.xpose.msra.mxu0 0.0
    %2665 = vmatprep.subr.mxu0 0.0
    %2666 = vmatpush1.xpose.msra.mxu0 0.0
    %2667 = vmatprep.subr.mxu0 0.0
    %2668 = vmatpush1.xpose.msra.mxu0 0.0
    %2669 = vmatprep.subr.mxu0 0.0
    %2670 = vmatpush1.xpose.msra.mxu0 0.0
    %2671 = vmatprep.subr.mxu0 0.0
    %2672 = vmatpush1.xpose.msra.mxu0 0.0
    %2673 = vmatprep.subr.mxu0 0.0
    %2674 = vmatpush1.xpose.msra.mxu0 0.0
    %2675 = vmatprep.subr.mxu0 0.0
    %2676 = vmatpush1.xpose.msra.mxu0 0.0
    %2677 = vmatprep.subr.mxu0 0.0
    %2678 = vmatpush1.xpose.msra.mxu0 0.0
    %2679 = vmatprep.subr.mxu0 0.0
    %2680 = vmatpush1.xpose.msra.mxu0 0.0
    %2681 = vmatprep.subr.mxu0 0.0
    %2682 = vmatpush1.xpose.msra.mxu0 0.0
    %2683 = vmatprep.subr.mxu0 0.0
    %2684 = vmatpush1.xpose.msra.mxu0 0.0
    %2685 = vmatprep.subr.mxu0 0.0
    %2686 = vmatpush1.xpose.msra.mxu0 0.0
    %2687 = vmatprep.subr.mxu0 0.0
    %2688 = vmatpush1.xpose.msra.mxu0 0.0
    %2689 = vmatprep.subr.mxu0 0.0
    %2690 = vmatpush1.xpose.msra.mxu0 0.0
    %2691 = vmatprep.subr.mxu0 0.0
    %2692 = vmatpush1.xpose.msra.mxu0 0.0
    %2693 = vmatprep.subr.mxu0 0.0
    %2694 = vmatpush1.xpose.msra.mxu0 0.0
    %2695 = vmatprep.subr.mxu0 0.0
    %2696 = vmatpush1.xpose.msra.mxu0 0.0
    %2697 = vmatprep.subr.mxu0 0.0
    %2698 = vmatpush1.xpose.msra.mxu0 0.0
    %2699 = vmatprep.mubr.f32.mxu0 0.0
    %2700 = vmatmul.mubr.f32.gmra.mrb[0].mxu0 %v2630
    %v2701 = vpop.f32.mrb[0].mxu0
    %v2702 = vadd.f32 0.0, %v2701
    %v2703 = vpop.f32.mrb[0].mxu0
    %2704 = vdwg.mxu0
    %v2705 = vmul.f32 %v2702, 0.35355338
    %v2706 = vadd.f32 %v2705, %v491
    %v2707 = vsel %vm410, %v2706, -inf
    %2708 = vmax.xlane.f32.xlu0 %v2707
    %v2709 = vpop.xlane.xlu0 %2708
    %v2710 = vsub.f32 %v2706, %v2709
    %v2711 = vmul.f32 %v2710, 1.442695
    %v2712 = vpow.pop %v2711
    %v2713 = vsel %vm410, %v2712, 0.0
    %2714 = vadd.xlane.f32.xlu0 %v2713
    %v2715 = vpop.xlane.xlu0 %2714
    %v2716 = vrcp.pop %v2715
    %v2717 = vmul.f32 %v2712, %v2716
    %v2719 = vsel %vm410, %v2717, 0
    %2721 = vmatprep.subr.mxu0 0.0
    %2722 = vmatpush1.msra.mxu0 %v2621
    %2723 = vmatprep.subr.mxu0 0.0
    %2724 = vmatpush1.msra.mxu0 0.0
    %2725 = vmatprep.subr.mxu0 0.0
    %2726 = vmatpush1.msra.mxu0 0.0
    %2727 = vmatprep.subr.mxu0 0.0
    %2728 = vmatpush1.msra.mxu0 0.0
    %2729 = vmatprep.subr.mxu0 0.0
    %2730 = vmatpush1.msra.mxu0 0.0
    %2731 = vmatprep.subr.mxu0 0.0
    %2732 = vmatpush1.msra.mxu0 0.0
    %2733 = vmatprep.subr.mxu0 0.0
    %2734 = vmatpush1.msra.mxu0 0.0
    %2735 = vmatprep.subr.mxu0 0.0
    %2736 = vmatpush1.msra.mxu0 0.0
    %2737 = vmatprep.subr.mxu0 0.0
    %2738 = vmatpush1.msra.mxu0 0.0
    %2739 = vmatprep.subr.mxu0 0.0
    %2740 = vmatpush1.msra.mxu0 0.0
    %2741 = vmatprep.subr.mxu0 0.0
    %2742 = vmatpush1.msra.mxu0 0.0
    %2743 = vmatprep.subr.mxu0 0.0
    %2744 = vmatpush1.msra.mxu0 0.0
    %2745 = vmatprep.subr.mxu0 0.0
    %2746 = vmatpush1.msra.mxu0 0.0
    %2747 = vmatprep.subr.mxu0 0.0
    %2748 = vmatpush1.msra.mxu0 0.0
    %2749 = vmatprep.subr.mxu0 0.0
    %2750 = vmatpush1.msra.mxu0 0.0
    %2751 = vmatprep.subr.mxu0 0.0
    %2752 = vmatpush1.msra.mxu0 0.0
    %2753 = vmatprep.subr.mxu0 0.0
    %2754 = vmatpush1.msra.mxu0 0.0
    %2755 = vmatprep.subr.mxu0 0.0
    %2756 = vmatpush1.msra.mxu0 0.0
    %2757 = vmatprep.subr.mxu0 0.0
    %2758 = vmatpush1.msra.mxu0 0.0
    %2759 = vmatprep.subr.mxu0 0.0
    %2760 = vmatpush1.msra.mxu0 0.0
    %2761 = vmatprep.subr.mxu0 0.0
    %2762 = vmatpush1.msra.mxu0 0.0
    %2763 = vmatprep.subr.mxu0 0.0
    %2764 = vmatpush1.msra.mxu0 0.0
    %2765 = vmatprep.subr.mxu0 0.0
    %2766 = vmatpush1.msra.mxu0 0.0
    %2767 = vmatprep.subr.mxu0 0.0
    %2768 = vmatpush1.msra.mxu0 0.0
    %2769 = vmatprep.subr.mxu0 0.0
    %2770 = vmatpush1.msra.mxu0 0.0
    %2771 = vmatprep.subr.mxu0 0.0
    %2772 = vmatpush1.msra.mxu0 0.0
    %2773 = vmatprep.subr.mxu0 0.0
    %2774 = vmatpush1.msra.mxu0 0.0
    %2775 = vmatprep.subr.mxu0 0.0
    %2776 = vmatpush1.msra.mxu0 0.0
    %2777 = vmatprep.subr.mxu0 0.0
    %2778 = vmatpush1.msra.mxu0 0.0
    %2779 = vmatprep.subr.mxu0 0.0
    %2780 = vmatpush1.msra.mxu0 0.0
    %2781 = vmatprep.subr.mxu0 0.0
    %2782 = vmatpush1.msra.mxu0 0.0
    %2783 = vmatprep.subr.mxu0 0.0
    %2784 = vmatpush1.msra.mxu0 0.0
    %2785 = vmatprep.mubr.f32.mxu0 0.0
    %2786 = vmatmul.mubr.f32.gmra.mrb[0].mxu0 %v2719
    %v2787 = vpop.f32.mrb[0].mxu0
    %v2788 = vadd.f32 0.0, %v2787
    %v2789 = vpop.f32.mrb[0].mxu0
    %2790 = vdwg.mxu0
    %v2792 = vsel %vm410, %v2788, 0
    %2794 = vmatprep.subr.mxu0 0.0
    %2795 = vmatpush1.msra.mxu0 %v2385
    %2796 = vmatprep.subr.mxu0 0.0
    %2797 = vmatpush1.msra.mxu0 0.0
    %2798 = vmatprep.subr.mxu0 0.0
    %2799 = vmatpush1.msra.mxu0 0.0
    %2800 = vmatprep.subr.mxu0 0.0
    %2801 = vmatpush1.msra.mxu0 0.0
    %2802 = vmatprep.subr.mxu0 0.0
    %2803 = vmatpush1.msra.mxu0 0.0
    %2804 = vmatprep.subr.mxu0 0.0
    %2805 = vmatpush1.msra.mxu0 0.0
    %2806 = vmatprep.subr.mxu0 0.0
    %2807 = vmatpush1.msra.mxu0 0.0
    %2808 = vmatprep.subr.mxu0 0.0
    %2809 = vmatpush1.msra.mxu0 0.0
    %2810 = vmatprep.subr.mxu0 0.0
    %2811 = vmatpush1.msra.mxu0 0.0
    %2812 = vmatprep.subr.mxu0 0.0
    %2813 = vmatpush1.msra.mxu0 0.0
    %2814 = vmatprep.subr.mxu0 0.0
    %2815 = vmatpush1.msra.mxu0 0.0
    %2816 = vmatprep.subr.mxu0 0.0
    %2817 = vmatpush1.msra.mxu0 0.0
    %2818 = vmatprep.subr.mxu0 0.0
    %2819 = vmatpush1.msra.mxu0 0.0
    %2820 = vmatprep.subr.mxu0 0.0
    %2821 = vmatpush1.msra.mxu0 0.0
    %2822 = vmatprep.subr.mxu0 0.0
    %2823 = vmatpush1.msra.mxu0 0.0
    %2824 = vmatprep.subr.mxu0 0.0
    %2825 = vmatpush1.msra.mxu0 0.0
    %2826 = vmatprep.subr.mxu0 0.0
    %2827 = vmatpush1.msra.mxu0 0.0
    %2828 = vmatprep.subr.mxu0 0.0
    %2829 = vmatpush1.msra.mxu0 0.0
    %2830 = vmatprep.subr.mxu0 0.0
    %2831 = vmatpush1.msra.mxu0 0.0
    %2832 = vmatprep.subr.mxu0 0.0
    %2833 = vmatpush1.msra.mxu0 0.0
    %2834 = vmatprep.subr.mxu0 0.0
    %2835 = vmatpush1.msra.mxu0 0.0
    %2836 = vmatprep.subr.mxu0 0.0
    %2837 = vmatpush1.msra.mxu0 0.0
    %2838 = vmatprep.subr.mxu0 0.0
    %2839 = vmatpush1.msra.mxu0 0.0
    %2840 = vmatprep.subr.mxu0 0.0
    %2841 = vmatpush1.msra.mxu0 0.0
    %2842 = vmatprep.subr.mxu0 0.0
    %2843 = vmatpush1.msra.mxu0 0.0
    %2844 = vmatprep.subr.mxu0 0.0
    %2845 = vmatpush1.msra.mxu0 0.0
    %2846 = vmatprep.subr.mxu0 0.0
    %2847 = vmatpush1.msra.mxu0 0.0
    %2848 = vmatprep.subr.mxu0 0.0
    %2849 = vmatpush1.msra.mxu0 0.0
    %2850 = vmatprep.subr.mxu0 0.0
    %2851 = vmatpush1.msra.mxu0 0.0
    %2852 = vmatprep.subr.mxu0 0.0
    %2853 = vmatpush1.msra.mxu0 0.0
    %2854 = vmatprep.subr.mxu0 0.0
    %2855 = vmatpush1.msra.mxu0 0.0
    %2856 = vmatprep.subr.mxu0 0.0
    %2857 = vmatpush1.msra.mxu0 0.0
    %2858 = vmatprep.mubr.f32.mxu0 0.0
    %2859 = vmatmul.mubr.f32.gmra.mrb[0].mxu0 %v2792
    %v2860 = vpop.f32.mrb[0].mxu0
    %v2861 = vadd.f32 0.0, %v2860
    %v2862 = vpop.f32.mrb[0].mxu0
    %2863 = vdwg.mxu0
    %v2864 = vadd.f32 %v2126, %v2861
    %v2866 = vsel %vm410, %v2464, 0
    %v2869 = vsel %vm410, %v2545, 0
    %2871 = vmatprep.subr.mxu0 0.0
    %2872 = vmatpush1.xpose.msra.mxu0 %v2869
    %2873 = vmatprep.subr.mxu0 0.0
    %2874 = vmatpush1.xpose.msra.mxu0 0.0
    %2875 = vmatprep.subr.mxu0 0.0
    %2876 = vmatpush1.xpose.msra.mxu0 0.0
    %2877 = vmatprep.subr.mxu0 0.0
    %2878 = vmatpush1.xpose.msra.mxu0 0.0
    %2879 = vmatprep.subr.mxu0 0.0
    %2880 = vmatpush1.xpose.msra.mxu0 0.0
    %2881 = vmatprep.subr.mxu0 0.0
    %2882 = vmatpush1.xpose.msra.mxu0 0.0
    %2883 = vmatprep.subr.mxu0 0.0
    %2884 = vmatpush1.xpose.msra.mxu0 0.0
    %2885 = vmatprep.subr.mxu0 0.0
    %2886 = vmatpush1.xpose.msra.mxu0 0.0
    %2887 = vmatprep.subr.mxu0 0.0
    %2888 = vmatpush1.xpose.msra.mxu0 0.0
    %2889 = vmatprep.subr.mxu0 0.0
    %2890 = vmatpush1.xpose.msra.mxu0 0.0
    %2891 = vmatprep.subr.mxu0 0.0
    %2892 = vmatpush1.xpose.msra.mxu0 0.0
    %2893 = vmatprep.subr.mxu0 0.0
    %2894 = vmatpush1.xpose.msra.mxu0 0.0
    %2895 = vmatprep.subr.mxu0 0.0
    %2896 = vmatpush1.xpose.msra.mxu0 0.0
    %2897 = vmatprep.subr.mxu0 0.0
    %2898 = vmatpush1.xpose.msra.mxu0 0.0
    %2899 = vmatprep.subr.mxu0 0.0
    %2900 = vmatpush1.xpose.msra.mxu0 0.0
    %2901 = vmatprep.subr.mxu0 0.0
    %2902 = vmatpush1.xpose.msra.mxu0 0.0
    %2903 = vmatprep.subr.mxu0 0.0
    %2904 = vmatpush1.xpose.msra.mxu0 0.0
    %2905 = vmatprep.subr.mxu0 0.0
    %2906 = vmatpush1.xpose.msra.mxu0 0.0
    %2907 = vmatprep.subr.mxu0 0.0
    %2908 = vmatpush1.xpose.msra.mxu0 0.0
    %2909 = vmatprep.subr.mxu0 0.0
    %2910 = vmatpush1.xpose.msra.mxu0 0.0
    %2911 = vmatprep.subr.mxu0 0.0
    %2912 = vmatpush1.xpose.msra.mxu0 0.0
    %2913 = vmatprep.subr.mxu0 0.0
    %2914 = vmatpush1.xpose.msra.mxu0 0.0
    %2915 = vmatprep.subr.mxu0 0.0
    %2916 = vmatpush1.xpose.msra.mxu0 0.0
    %2917 = vmatprep.subr.mxu0 0.0
    %2918 = vmatpush1.xpose.msra.mxu0 0.0
    %2919 = vmatprep.subr.mxu0 0.0
    %2920 = vmatpush1.xpose.msra.mxu0 0.0
    %2921 = vmatprep.subr.mxu0 0.0
    %2922 = vmatpush1.xpose.msra.mxu0 0.0
    %2923 = vmatprep.subr.mxu0 0.0
    %2924 = vmatpush1.xpose.msra.mxu0 0.0
    %2925 = vmatprep.subr.mxu0 0.0
    %2926 = vmatpush1.xpose.msra.mxu0 0.0
    %2927 = vmatprep.subr.mxu0 0.0
    %2928 = vmatpush1.xpose.msra.mxu0 0.0
    %2929 = vmatprep.subr.mxu0 0.0
    %2930 = vmatpush1.xpose.msra.mxu0 0.0
    %2931 = vmatprep.subr.mxu0 0.0
    %2932 = vmatpush1.xpose.msra.mxu0 0.0
    %2933 = vmatprep.subr.mxu0 0.0
    %2934 = vmatpush1.xpose.msra.mxu0 0.0
    %2935 = vmatprep.mubr.f32.mxu0 0.0
    %2936 = vmatmul.mubr.f32.gmra.mrb[0].mxu0 %v2866
    %v2937 = vpop.f32.mrb[0].mxu0
    %v2938 = vadd.f32 0.0, %v2937
    %v2939 = vpop.f32.mrb[0].mxu0
    %2940 = vdwg.mxu0
    %v2941 = vmul.f32 %v2938, 0.35355338
    %v2942 = vadd.f32 %v2941, %v657
    %v2943 = vsel %vm410, %v2942, -inf
    %2944 = vmax.xlane.f32.xlu0 %v2943
    %v2945 = vpop.xlane.xlu0 %2944
    %v2946 = vsub.f32 %v2942, %v2945
    %v2947 = vmul.f32 %v2946, 1.442695
    %v2948 = vpow.pop %v2947
    %v2949 = vsel %vm410, %v2948, 0.0
    %2950 = vadd.xlane.f32.xlu0 %v2949
    %v2951 = vpop.xlane.xlu0 %2950
    %v2952 = vrcp.pop %v2951
    %v2953 = vmul.f32 %v2948, %v2952
    %v2955 = vsel %vm410, %v2953, 0
    %2957 = vmatprep.subr.mxu0 0.0
    %2958 = vmatpush1.msra.mxu0 %v2626
    %2959 = vmatprep.subr.mxu0 0.0
    %2960 = vmatpush1.msra.mxu0 0.0
    %2961 = vmatprep.subr.mxu0 0.0
    %2962 = vmatpush1.msra.mxu0 0.0
    %2963 = vmatprep.subr.mxu0 0.0
    %2964 = vmatpush1.msra.mxu0 0.0
    %2965 = vmatprep.subr.mxu0 0.0
    %2966 = vmatpush1.msra.mxu0 0.0
    %2967 = vmatprep.subr.mxu0 0.0
    %2968 = vmatpush1.msra.mxu0 0.0
    %2969 = vmatprep.subr.mxu0 0.0
    %2970 = vmatpush1.msra.mxu0 0.0
    %2971 = vmatprep.subr.mxu0 0.0
    %2972 = vmatpush1.msra.mxu0 0.0
    %2973 = vmatprep.subr.mxu0 0.0
    %2974 = vmatpush1.msra.mxu0 0.0
    %2975 = vmatprep.subr.mxu0 0.0
    %2976 = vmatpush1.msra.mxu0 0.0
    %2977 = vmatprep.subr.mxu0 0.0
    %2978 = vmatpush1.msra.mxu0 0.0
    %2979 = vmatprep.subr.mxu0 0.0
    %2980 = vmatpush1.msra.mxu0 0.0
    %2981 = vmatprep.subr.mxu0 0.0
    %2982 = vmatpush1.msra.mxu0 0.0
    %2983 = vmatprep.subr.mxu0 0.0
    %2984 = vmatpush1.msra.mxu0 0.0
    %2985 = vmatprep.subr.mxu0 0.0
    %2986 = vmatpush1.msra.mxu0 0.0
    %2987 = vmatprep.subr.mxu0 0.0
    %2988 = vmatpush1.msra.mxu0 0.0
    %2989 = vmatprep.subr.mxu0 0.0
    %2990 = vmatpush1.msra.mxu0 0.0
    %2991 = vmatprep.subr.mxu0 0.0
    %2992 = vmatpush1.msra.mxu0 0.0
    %2993 = vmatprep.subr.mxu0 0.0
    %2994 = vmatpush1.msra.mxu0 0.0
    %2995 = vmatprep.subr.mxu0 0.0
    %2996 = vmatpush1.msra.mxu0 0.0
    %2997 = vmatprep.subr.mxu0 0.0
    %2998 = vmatpush1.msra.mxu0 0.0
    %2999 = vmatprep.subr.mxu0 0.0
    %3000 = vmatpush1.msra.mxu0 0.0
    %3001 = vmatprep.subr.mxu0 0.0
    %3002 = vmatpush1.msra.mxu0 0.0
    %3003 = vmatprep.subr.mxu0 0.0
    %3004 = vmatpush1.msra.mxu0 0.0
    %3005 = vmatprep.subr.mxu0 0.0
    %3006 = vmatpush1.msra.mxu0 0.0
    %3007 = vmatprep.subr.mxu0 0.0
    %3008 = vmatpush1.msra.mxu0 0.0
    %3009 = vmatprep.subr.mxu0 0.0
    %3010 = vmatpush1.msra.mxu0 0.0
    %3011 = vmatprep.subr.mxu0 0.0
    %3012 = vmatpush1.msra.mxu0 0.0
    %3013 = vmatprep.subr.mxu0 0.0
    %3014 = vmatpush1.msra.mxu0 0.0
    %3015 = vmatprep.subr.mxu0 0.0
    %3016 = vmatpush1.msra.mxu0 0.0
    %3017 = vmatprep.subr.mxu0 0.0
    %3018 = vmatpush1.msra.mxu0 0.0
    %3019 = vmatprep.subr.mxu0 0.0
    %3020 = vmatpush1.msra.mxu0 0.0
    %3021 = vmatprep.mubr.f32.mxu0 0.0
    %3022 = vmatmul.mubr.f32.gmra.mrb[0].mxu0 %v2955
    %v3023 = vpop.f32.mrb[0].mxu0
    %v3024 = vadd.f32 0.0, %v3023
    %v3025 = vpop.f32.mrb[0].mxu0
    %3026 = vdwg.mxu0
    %v3028 = vsel %vm410, %v3024, 0
    %3030 = vmatprep.subr.mxu0 0.0
    %3031 = vmatpush1.msra.mxu0 %v2385
    %3032 = vmatprep.subr.mxu0 0.0
    %3033 = vmatpush1.msra.mxu0 0.0
    %3034 = vmatprep.subr.mxu0 0.0
    %3035 = vmatpush1.msra.mxu0 0.0
    %3036 = vmatprep.subr.mxu0 0.0
    %3037 = vmatpush1.msra.mxu0 0.0
    %3038 = vmatprep.subr.mxu0 0.0
    %3039 = vmatpush1.msra.mxu0 0.0
    %3040 = vmatprep.subr.mxu0 0.0
    %3041 = vmatpush1.msra.mxu0 0.0
    %3042 = vmatprep.subr.mxu0 0.0
    %3043 = vmatpush1.msra.mxu0 0.0
    %3044 = vmatprep.subr.mxu0 0.0
    %3045 = vmatpush1.msra.mxu0 0.0
    %3046 = vmatprep.subr.mxu0 0.0
    %3047 = vmatpush1.msra.mxu0 0.0
    %3048 = vmatprep.subr.mxu0 0.0
    %3049 = vmatpush1.msra.mxu0 0.0
    %3050 = vmatprep.subr.mxu0 0.0
    %3051 = vmatpush1.msra.mxu0 0.0
    %3052 = vmatprep.subr.mxu0 0.0
    %3053 = vmatpush1.msra.mxu0 0.0
    %3054 = vmatprep.subr.mxu0 0.0
    %3055 = vmatpush1.msra.mxu0 0.0
    %3056 = vmatprep.subr.mxu0 0.0
    %3057 = vmatpush1.msra.mxu0 0.0
    %3058 = vmatprep.subr.mxu0 0.0
    %3059 = vmatpush1.msra.mxu0 0.0
    %3060 = vmatprep.subr.mxu0 0.0
    %3061 = vmatpush1.msra.mxu0 0.0
    %3062 = vmatprep.subr.mxu0 0.0
    %3063 = vmatpush1.msra.mxu0 0.0
    %3064 = vmatprep.subr.mxu0 0.0
    %3065 = vmatpush1.msra.mxu0 0.0
    %3066 = vmatprep.subr.mxu0 0.0
    %3067 = vmatpush1.msra.mxu0 0.0
    %3068 = vmatprep.subr.mxu0 0.0
    %3069 = vmatpush1.msra.mxu0 0.0
    %3070 = vmatprep.subr.mxu0 0.0
    %3071 = vmatpush1.msra.mxu0 0.0
    %3072 = vmatprep.subr.mxu0 0.0
    %3073 = vmatpush1.msra.mxu0 0.0
    %3074 = vmatprep.subr.mxu0 0.0
    %3075 = vmatpush1.msra.mxu0 0.0
    %3076 = vmatprep.subr.mxu0 0.0
    %3077 = vmatpush1.msra.mxu0 0.0
    %3078 = vmatprep.subr.mxu0 0.0
    %3079 = vmatpush1.msra.mxu0 0.0
    %3080 = vmatprep.subr.mxu0 0.0
    %3081 = vmatpush1.msra.mxu0 0.0
    %3082 = vmatprep.subr.mxu0 0.0
    %3083 = vmatpush1.msra.mxu0 0.0
    %3084 = vmatprep.subr.mxu0 0.0
    %3085 = vmatpush1.msra.mxu0 0.0
    %3086 = vmatprep.subr.mxu0 0.0
    %3087 = vmatpush1.msra.mxu0 0.0
    %3088 = vmatprep.subr.mxu0 0.0
    %3089 = vmatpush1.msra.mxu0 0.0
    %3090 = vmatprep.subr.mxu0 0.0
    %3091 = vmatpush1.msra.mxu0 0.0
    %3092 = vmatprep.subr.mxu0 0.0
    %3093 = vmatpush1.msra.mxu0 0.0
    %3094 = vmatprep.mubr.f32.mxu0 0.0
    %3095 = vmatmul.mubr.f32.gmra.mrb[0].mxu0 %v3028
    %v3096 = vpop.f32.mrb[0].mxu0
    %v3097 = vadd.f32 0.0, %v3096
    %v3098 = vpop.f32.mrb[0].mxu0
    %3099 = vdwg.mxu0
    %v3100 = vadd.f32 %v2362, %v3097
    %v3102 = vlaneseq
    %v3103 = vshrl.u32 %v3102, 7
    %v3104 = vsub.s32 0, %v3103
    %v3105 = vrot.slane %v126, %v3104
    %v3107 = vadd.f32 %v2864, %v3105
    %v3108 = vadd.f32 %v3100, %v3105
    %v3109 = vadd.f32 %v121, %v3107
    %v3110 = vadd.f32 %v122, %v3108
    %v3111 = vsel %vm79, %v3109, 0.0
    %3112 = vadd.xlane.f32.xlu0 %v3111
    %v3113 = vpop.xlane.xlu0 %3112
    %v3114 = vsel %vm79, %v3110, 0.0
    %3115 = vadd.xlane.f32.xlu0 %v3114
    %v3116 = vpop.xlane.xlu0 %3115
    %v3117 = vmul.f32 %v3113, %v86
    %v3118 = vmul.f32 %v3116, %v86
    %v3119 = vsub.f32 %v3109, %v3117
    %v3120 = vsub.f32 %v3110, %v3118
    %v3121 = vmul.f32 %v3119, %v3119
    %v3122 = vmul.f32 %v3120, %v3120
    %v3123 = vsel %vm79, %v3121, 0.0
    %3124 = vadd.xlane.f32.xlu0 %v3123
    %v3125 = vpop.xlane.xlu0 %3124
    %v3126 = vsel %vm79, %v3122, 0.0
    %3127 = vadd.xlane.f32.xlu0 %v3126
    %v3128 = vpop.xlane.xlu0 %3127
    %v3129 = vmul.f32 %v3125, %v86
    %v3130 = vmul.f32 %v3128, %v86
    %v3131 = vadd.f32 %v3129, 1e-12
    %v3132 = vadd.f32 %v3130, 1e-12
    %v3133 = vrsqrt.pop %v3131
    %v3134 = vrsqrt.pop %v3132
    %v3135 = vmul.f32 %v3119, %v3133
    %v3136 = vmul.f32 %v3120, %v3134
    %v3138 = vlaneseq
    %v3139 = vshrl.u32 %v3138, 7
    %v3140 = vsub.s32 0, %v3139
    %v3141 = vrot.slane %v127, %v3140
    %v3143 = vmul.f32 %v3135, %v3141
    %v3144 = vmul.f32 %v3136, %v3141
    %v3146 = vlaneseq
    %v3147 = vshrl.u32 %v3146, 7
    %v3148 = vsub.s32 0, %v3147
    %v3149 = vrot.slane %v128, %v3148
    %v3151 = vadd.f32 %v3143, %v3149
    %v3152 = vadd.f32 %v3144, %v3149
    %v3154 = vlaneseq
    %v3155 = vshrl.u32 %v3154, 7
    %v3156 = vsub.s32 0, %v3155
    %v3157 = vrot.slane %v133, %v3156
    %v3160 = vsel %vm79, %v3151, 0
    %v3163 = vsel %vm79, %v3152, 0
    %3165 = vmatprep.subr.mxu0 0.0
    %3166 = vmatpush1.msra.mxu0 %v129
    %3167 = vmatprep.subr.mxu0 0.0
    %3168 = vmatpush1.msra.mxu0 %v130
    %3169 = vmatprep.subr.mxu0 0.0
    %3170 = vmatpush1.msra.mxu0 %v131
    %3171 = vmatprep.subr.mxu0 0.0
    %3172 = vmatpush1.msra.mxu0 %v132
    %3173 = vmatprep.subr.mxu0 0.0
    %3174 = vmatpush1.msra.mxu0 0.0
    %3175 = vmatprep.subr.mxu0 0.0
    %3176 = vmatpush1.msra.mxu0 0.0
    %3177 = vmatprep.subr.mxu0 0.0
    %3178 = vmatpush1.msra.mxu0 0.0
    %3179 = vmatprep.subr.mxu0 0.0
    %3180 = vmatpush1.msra.mxu0 0.0
    %3181 = vmatprep.subr.mxu0 0.0
    %3182 = vmatpush1.msra.mxu0 0.0
    %3183 = vmatprep.subr.mxu0 0.0
    %3184 = vmatpush1.msra.mxu0 0.0
    %3185 = vmatprep.subr.mxu0 0.0
    %3186 = vmatpush1.msra.mxu0 0.0
    %3187 = vmatprep.subr.mxu0 0.0
    %3188 = vmatpush1.msra.mxu0 0.0
    %3189 = vmatprep.subr.mxu0 0.0
    %3190 = vmatpush1.msra.mxu0 0.0
    %3191 = vmatprep.subr.mxu0 0.0
    %3192 = vmatpush1.msra.mxu0 0.0
    %3193 = vmatprep.subr.mxu0 0.0
    %3194 = vmatpush1.msra.mxu0 0.0
    %3195 = vmatprep.subr.mxu0 0.0
    %3196 = vmatpush1.msra.mxu0 0.0
    %3197 = vmatprep.subr.mxu0 0.0
    %3198 = vmatpush1.msra.mxu0 0.0
    %3199 = vmatprep.subr.mxu0 0.0
    %3200 = vmatpush1.msra.mxu0 0.0
    %3201 = vmatprep.subr.mxu0 0.0
    %3202 = vmatpush1.msra.mxu0 0.0
    %3203 = vmatprep.subr.mxu0 0.0
    %3204 = vmatpush1.msra.mxu0 0.0
    %3205 = vmatprep.subr.mxu0 0.0
    %3206 = vmatpush1.msra.mxu0 0.0
    %3207 = vmatprep.subr.mxu0 0.0
    %3208 = vmatpush1.msra.mxu0 0.0
    %3209 = vmatprep.subr.mxu0 0.0
    %3210 = vmatpush1.msra.mxu0 0.0
    %3211 = vmatprep.subr.mxu0 0.0
    %3212 = vmatpush1.msra.mxu0 0.0
    %3213 = vmatprep.subr.mxu0 0.0
    %3214 = vmatpush1.msra.mxu0 0.0
    %3215 = vmatprep.subr.mxu0 0.0
    %3216 = vmatpush1.msra.mxu0 0.0
    %3217 = vmatprep.subr.mxu0 0.0
    %3218 = vmatpush1.msra.mxu0 0.0
    %3219 = vmatprep.subr.mxu0 0.0
    %3220 = vmatpush1.msra.mxu0 0.0
    %3221 = vmatprep.subr.mxu0 0.0
    %3222 = vmatpush1.msra.mxu0 0.0
    %3223 = vmatprep.subr.mxu0 0.0
    %3224 = vmatpush1.msra.mxu0 0.0
    %3225 = vmatprep.subr.mxu0 0.0
    %3226 = vmatpush1.msra.mxu0 0.0
    %3227 = vmatprep.subr.mxu0 0.0
    %3228 = vmatpush1.msra.mxu0 0.0
    %3229 = vmatprep.mubr.f32.mxu0 0.0
    %3230 = vmatmul.mubr.f32.gmra.mrb[0].mxu0 %v3160
    %v3231 = vpop.f32.mrb[0].mxu0
    %v3232 = vadd.f32 %v3157, %v3231
    %v3233 = vpop.f32.mrb[0].mxu0
    %3234 = vmatprep.mubr.f32.mxu0 0.0
    %3235 = vmatmul.mubr.f32.gmra.mrb[0].mxu0 %v3163
    %v3236 = vpop.f32.mrb[0].mxu0
    %v3237 = vadd.f32 %v3157, %v3236
    %v3238 = vpop.f32.mrb[0].mxu0
    %3239 = vdwg.mxu0
    %v3240 = vmul.f32 %v3232, 0.5
    %v3241 = vmul.f32 %v3237, 0.5
    %v3242 = vmul.f32 %v3232, 0.044715
    %v3243 = vmul.f32 %v3237, 0.044715
    %v3244 = vmul.f32 %v3242, %v3232
    %v3245 = vmul.f32 %v3243, %v3237
    %v3246 = vmul.f32 %v3244, %v3232
    %v3247 = vmul.f32 %v3245, %v3237
    %v3248 = vadd.f32 %v3232, %v3246
    %v3249 = vadd.f32 %v3237, %v3247
    %v3250 = vmul.f32 %v3248, 0.7978846
    %v3251 = vmul.f32 %v3249, 0.7978846
    %v3252 = vtanh.pop %v3250
    %v3253 = vtanh.pop %v3251
    %v3254 = vadd.f32 %v3252, 1.0
    %v3255 = vadd.f32 %v3253, 1.0
    %v3256 = vmul.f32 %v3240, %v3254
    %v3257 = vmul.f32 %v3241, %v3255
    %v3259 = vlaneseq
    %v3260 = vshrl.u32 %v3259, 7
    %v3261 = vsub.s32 0, %v3260
    %v3262 = vrot.slane %v142, %v3261
    %vm3264 = vcmask 523264
    %v3266 = vsel %vm3264, %v3256, 0
    %v3269 = vsel %vm3264, %v3257, 0
    %3271 = vmatprep.subr.mxu0 0.0
    %3272 = vmatpush1.msra.mxu0 %v134
    %3273 = vmatprep.subr.mxu0 0.0
    %3274 = vmatpush1.msra.mxu0 %v135
    %3275 = vmatprep.subr.mxu0 0.0
    %3276 = vmatpush1.msra.mxu0 %v136
    %3277 = vmatprep.subr.mxu0 0.0
    %3278 = vmatpush1.msra.mxu0 %v137
    %3279 = vmatprep.subr.mxu0 0.0
    %3280 = vmatpush1.msra.mxu0 %v138
    %3281 = vmatprep.subr.mxu0 0.0
    %3282 = vmatpush1.msra.mxu0 %v139
    %3283 = vmatprep.subr.mxu0 0.0
    %3284 = vmatpush1.msra.mxu0 %v140
    %3285 = vmatprep.subr.mxu0 0.0
    %3286 = vmatpush1.msra.mxu0 %v141
    %3287 = vmatprep.subr.mxu0 0.0
    %3288 = vmatpush1.msra.mxu0 0.0
    %3289 = vmatprep.subr.mxu0 0.0
    %3290 = vmatpush1.msra.mxu0 0.0
    %3291 = vmatprep.subr.mxu0 0.0
    %3292 = vmatpush1.msra.mxu0 0.0
    %3293 = vmatprep.subr.mxu0 0.0
    %3294 = vmatpush1.msra.mxu0 0.0
    %3295 = vmatprep.subr.mxu0 0.0
    %3296 = vmatpush1.msra.mxu0 0.0
    %3297 = vmatprep.subr.mxu0 0.0
    %3298 = vmatpush1.msra.mxu0 0.0
    %3299 = vmatprep.subr.mxu0 0.0
    %3300 = vmatpush1.msra.mxu0 0.0
    %3301 = vmatprep.subr.mxu0 0.0
    %3302 = vmatpush1.msra.mxu0 0.0
    %3303 = vmatprep.subr.mxu0 0.0
    %3304 = vmatpush1.msra.mxu0 0.0
    %3305 = vmatprep.subr.mxu0 0.0
    %3306 = vmatpush1.msra.mxu0 0.0
    %3307 = vmatprep.subr.mxu0 0.0
    %3308 = vmatpush1.msra.mxu0 0.0
    %3309 = vmatprep.subr.mxu0 0.0
    %3310 = vmatpush1.msra.mxu0 0.0
    %3311 = vmatprep.subr.mxu0 0.0
    %3312 = vmatpush1.msra.mxu0 0.0
    %3313 = vmatprep.subr.mxu0 0.0
    %3314 = vmatpush1.msra.mxu0 0.0
    %3315 = vmatprep.subr.mxu0 0.0
    %3316 = vmatpush1.msra.mxu0 0.0
    %3317 = vmatprep.subr.mxu0 0.0
    %3318 = vmatpush1.msra.mxu0 0.0
    %3319 = vmatprep.subr.mxu0 0.0
    %3320 = vmatpush1.msra.mxu0 0.0
    %3321 = vmatprep.subr.mxu0 0.0
    %3322 = vmatpush1.msra.mxu0 0.0
    %3323 = vmatprep.subr.mxu0 0.0
    %3324 = vmatpush1.msra.mxu0 0.0
    %3325 = vmatprep.subr.mxu0 0.0
    %3326 = vmatpush1.msra.mxu0 0.0
    %3327 = vmatprep.subr.mxu0 0.0
    %3328 = vmatpush1.msra.mxu0 0.0
    %3329 = vmatprep.subr.mxu0 0.0
    %3330 = vmatpush1.msra.mxu0 0.0
    %3331 = vmatprep.subr.mxu0 0.0
    %3332 = vmatpush1.msra.mxu0 0.0
    %3333 = vmatprep.subr.mxu0 0.0
    %3334 = vmatpush1.msra.mxu0 0.0
    %3335 = vmatprep.mubr.f32.mxu0 0.0
    %3336 = vmatmul.mubr.f32.gmra.mrb[0].mxu0 %v3266
    %v3337 = vpop.f32.mrb[0].mxu0
    %v3338 = vadd.f32 %v3262, %v3337
    %v3339 = vpop.f32.mrb[0].mxu0
    %3340 = vmatprep.mubr.f32.mxu0 0.0
    %3341 = vmatmul.mubr.f32.gmra.mrb[0].mxu0 %v3269
    %v3342 = vpop.f32.mrb[0].mxu0
    %v3343 = vadd.f32 %v3262, %v3342
    %v3344 = vpop.f32.mrb[0].mxu0
    %3345 = vdwg.mxu0
    %v3346 = vadd.f32 %v3151, %v3338
    %v3347 = vadd.f32 %v3152, %v3343
    %v3348 = vsel %vm79, %v3346, 0.0
    %3349 = vadd.xlane.f32.xlu0 %v3348
    %v3350 = vpop.xlane.xlu0 %3349
    %v3351 = vsel %vm79, %v3347, 0.0
    %3352 = vadd.xlane.f32.xlu0 %v3351
    %v3353 = vpop.xlane.xlu0 %3352
    %v3354 = vmul.f32 %v3350, %v86
    %v3355 = vmul.f32 %v3353, %v86
    %v3356 = vsub.f32 %v3346, %v3354
    %v3357 = vsub.f32 %v3347, %v3355
    %v3358 = vmul.f32 %v3356, %v3356
    %v3359 = vmul.f32 %v3357, %v3357
    %v3360 = vsel %vm79, %v3358, 0.0
    %3361 = vadd.xlane.f32.xlu0 %v3360
    %v3362 = vpop.xlane.xlu0 %3361
    %v3363 = vsel %vm79, %v3359, 0.0
    %3364 = vadd.xlane.f32.xlu0 %v3363
    %v3365 = vpop.xlane.xlu0 %3364
    %v3366 = vmul.f32 %v3362, %v86
    %v3367 = vmul.f32 %v3365, %v86
    %v3368 = vadd.f32 %v3366, 1e-12
    %v3369 = vadd.f32 %v3367, 1e-12
    %v3370 = vrsqrt.pop %v3368
    %v3371 = vrsqrt.pop %v3369
    %v3372 = vmul.f32 %v3356, %v3370
    %v3373 = vmul.f32 %v3357, %v3371
    %v3375 = vlaneseq
    %v3376 = vshrl.u32 %v3375, 7
    %v3377 = vsub.s32 0, %v3376
    %v3378 = vrot.slane %v143, %v3377
    %v3380 = vmul.f32 %v3372, %v3378
    %v3381 = vmul.f32 %v3373, %v3378
    %v3383 = vlaneseq
    %v3384 = vshrl.u32 %v3383, 7
    %v3385 = vsub.s32 0, %v3384
    %v3386 = vrot.slane %v144, %v3385
    %v3388 = vadd.f32 %v3380, %v3386
    %v3389 = vadd.f32 %v3381, %v3386
    %s3390 = scalar_lea.vmem %s12, 1
    %v3391 = vld [vmem:[%s3390] sm:$0x1]
    %s3392 = scalar_lea.vmem %s13, 1
    %v3393 = vld [vmem:[%s3392] sm:$0x1]
    %s3394 = scalar_lea.vmem %s14, 1
    %v3395 = vld [vmem:[%s3394] sm:$0x1]
    %s3396 = scalar_lea.vmem %s15, 32
    %v3397 = vld [vmem:[%s3396] sm:$0xff]
    %v3398 = vld [vmem:[%s3396 + $0x8] sm:$0xff]
    %v3399 = vld [vmem:[%s3396 + $0x10] sm:$0xff]
    %v3400 = vld [vmem:[%s3396 + $0x18] sm:$0xff]
    %s3401 = scalar_lea.vmem %s16, 1
    %v3402 = vld [vmem:[%s3401] sm:$0x1]
    %s3403 = scalar_lea.vmem %s17, 64
    %v3404 = vld [vmem:[%s3403] sm:$0xff]
    %v3405 = vld [vmem:[%s3403 + $0x8] sm:$0xff]
    %v3406 = vld [vmem:[%s3403 + $0x10] sm:$0xff]
    %v3407 = vld [vmem:[%s3403 + $0x18] sm:$0xff]
    %v3408 = vld [vmem:[%s3403 + $0x20] sm:$0xff]
    %v3409 = vld [vmem:[%s3403 + $0x28] sm:$0xff]
    %v3410 = vld [vmem:[%s3403 + $0x30] sm:$0xff]
    %v3411 = vld [vmem:[%s3403 + $0x38] sm:$0xff]
    %s3412 = scalar_lea.vmem %s18, 1
    %v3413 = vld [vmem:[%s3412] sm:$0x1]
    %s3414 = scalar_lea.vmem %s19, 1
    %v3415 = vld [vmem:[%s3414] sm:$0x1]
    %s3416 = scalar_lea.vmem %s20, 1
    %v3417 = vld [vmem:[%s3416] sm:$0x1]
    %s3418 = scalar_lea.vmem %s5, 128
    %v3419 = vld [vmem:[%s3418] sm:$0xff]
    %v3420 = vld [vmem:[%s3418 + $0x8] sm:$0xff]
    %v3421 = vld [vmem:[%s3418 + $0x10] sm:$0xff]
    %v3422 = vld [vmem:[%s3418 + $0x18] sm:$0xff]
    %s3423 = scalar_lea.vmem %s6, 4
    %v3424 = vld [vmem:[%s3423] sm:$0x1]
    %s3425 = scalar_lea.vmem %s7, 128
    %v3426 = vld [vmem:[%s3425] sm:$0xff]
    %v3427 = vld [vmem:[%s3425 + $0x8] sm:$0xff]
    %v3428 = vld [vmem:[%s3425 + $0x10] sm:$0xff]
    %v3429 = vld [vmem:[%s3425 + $0x18] sm:$0xff]
    %s3430 = scalar_lea.vmem %s8, 4
    %v3431 = vld [vmem:[%s3430] sm:$0x1]
    %s3432 = scalar_lea.vmem %s9, 128
    %v3433 = vld [vmem:[%s3432] sm:$0xff]
    %v3434 = vld [vmem:[%s3432 + $0x8] sm:$0xff]
    %v3435 = vld [vmem:[%s3432 + $0x10] sm:$0xff]
    %v3436 = vld [vmem:[%s3432 + $0x18] sm:$0xff]
    %s3437 = scalar_lea.vmem %s10, 4
    %v3438 = vld [vmem:[%s3437] sm:$0x1]
    %s3439 = scalar_lea.vmem %s11, 32
    %v3440 = vld [vmem:[%s3439] sm:$0xff]
    %v3442 = vlaneseq
    %v3443 = vshrl.u32 %v3442, 7
    %v3444 = vsub.s32 0, %v3443
    %v3445 = vrot.slane %v3424, %v3444
    %v3448 = vsel %vm79, %v3388, 0
    %v3451 = vsel %vm79, %v3389, 0
    %3453 = vmatprep.subr.mxu0 0.0
    %3454 = vmatpush1.msra.mxu0 %v3419
    %3455 = vmatprep.subr.mxu0 0.0
    %3456 = vmatpush1.msra.mxu0 %v3420
    %3457 = vmatprep.subr.mxu0 0.0
    %3458 = vmatpush1.msra.mxu0 %v3421
    %3459 = vmatprep.subr.mxu0 0.0
    %3460 = vmatpush1.msra.mxu0 %v3422
    %3461 = vmatprep.subr.mxu0 0.0
    %3462 = vmatpush1.msra.mxu0 0.0
    %3463 = vmatprep.subr.mxu0 0.0
    %3464 = vmatpush1.msra.mxu0 0.0
    %3465 = vmatprep.subr.mxu0 0.0
    %3466 = vmatpush1.msra.mxu0 0.0
    %3467 = vmatprep.subr.mxu0 0.0
    %3468 = vmatpush1.msra.mxu0 0.0
    %3469 = vmatprep.subr.mxu0 0.0
    %3470 = vmatpush1.msra.mxu0 0.0
    %3471 = vmatprep.subr.mxu0 0.0
    %3472 = vmatpush1.msra.mxu0 0.0
    %3473 = vmatprep.subr.mxu0 0.0
    %3474 = vmatpush1.msra.mxu0 0.0
    %3475 = vmatprep.subr.mxu0 0.0
    %3476 = vmatpush1.msra.mxu0 0.0
    %3477 = vmatprep.subr.mxu0 0.0
    %3478 = vmatpush1.msra.mxu0 0.0
    %3479 = vmatprep.subr.mxu0 0.0
    %3480 = vmatpush1.msra.mxu0 0.0
    %3481 = vmatprep.subr.mxu0 0.0
    %3482 = vmatpush1.msra.mxu0 0.0
    %3483 = vmatprep.subr.mxu0 0.0
    %3484 = vmatpush1.msra.mxu0 0.0
    %3485 = vmatprep.subr.mxu0 0.0
    %3486 = vmatpush1.msra.mxu0 0.0
    %3487 = vmatprep.subr.mxu0 0.0
    %3488 = vmatpush1.msra.mxu0 0.0
    %3489 = vmatprep.subr.mxu0 0.0
    %3490 = vmatpush1.msra.mxu0 0.0
    %3491 = vmatprep.subr.mxu0 0.0
    %3492 = vmatpush1.msra.mxu0 0.0
    %3493 = vmatprep.subr.mxu0 0.0
    %3494 = vmatpush1.msra.mxu0 0.0
    %3495 = vmatprep.subr.mxu0 0.0
    %3496 = vmatpush1.msra.mxu0 0.0
    %3497 = vmatprep.subr.mxu0 0.0
    %3498 = vmatpush1.msra.mxu0 0.0
    %3499 = vmatprep.subr.mxu0 0.0
    %3500 = vmatpush1.msra.mxu0 0.0
    %3501 = vmatprep.subr.mxu0 0.0
    %3502 = vmatpush1.msra.mxu0 0.0
    %3503 = vmatprep.subr.mxu0 0.0
    %3504 = vmatpush1.msra.mxu0 0.0
    %3505 = vmatprep.subr.mxu0 0.0
    %3506 = vmatpush1.msra.mxu0 0.0
    %3507 = vmatprep.subr.mxu0 0.0
    %3508 = vmatpush1.msra.mxu0 0.0
    %3509 = vmatprep.subr.mxu0 0.0
    %3510 = vmatpush1.msra.mxu0 0.0
    %3511 = vmatprep.subr.mxu0 0.0
    %3512 = vmatpush1.msra.mxu0 0.0
    %3513 = vmatprep.subr.mxu0 0.0
    %3514 = vmatpush1.msra.mxu0 0.0
    %3515 = vmatprep.subr.mxu0 0.0
    %3516 = vmatpush1.msra.mxu0 0.0
    %3517 = vmatprep.mubr.f32.mxu0 0.0
    %3518 = vmatmul.mubr.f32.gmra.mrb[0].mxu0 %v3448
    %v3519 = vpop.f32.mrb[0].mxu0
    %v3520 = vadd.f32 %v3445, %v3519
    %v3521 = vpop.f32.mrb[0].mxu0
    %3522 = vmatprep.mubr.f32.mxu0 0.0
    %3523 = vmatmul.mubr.f32.gmra.mrb[0].mxu0 %v3451
    %v3524 = vpop.f32.mrb[0].mxu0
    %v3525 = vadd.f32 %v3445, %v3524
    %v3526 = vpop.f32.mrb[0].mxu0
    %3527 = vdwg.mxu0
    %v3529 = vlaneseq
    %v3530 = vshrl.u32 %v3529, 7
    %v3531 = vsub.s32 0, %v3530
    %v3532 = vrot.slane %v3431, %v3531
    %3534 = vmatprep.subr.mxu0 0.0
    %3535 = vmatpush1.msra.mxu0 %v3426
    %3536 = vmatprep.subr.mxu0 0.0
    %3537 = vmatpush1.msra.mxu0 %v3427
    %3538 = vmatprep.subr.mxu0 0.0
    %3539 = vmatpush1.msra.mxu0 %v3428
    %3540 = vmatprep.subr.mxu0 0.0
    %3541 = vmatpush1.msra.mxu0 %v3429
    %3542 = vmatprep.subr.mxu0 0.0
    %3543 = vmatpush1.msra.mxu0 0.0
    %3544 = vmatprep.subr.mxu0 0.0
    %3545 = vmatpush1.msra.mxu0 0.0
    %3546 = vmatprep.subr.mxu0 0.0
    %3547 = vmatpush1.msra.mxu0 0.0
    %3548 = vmatprep.subr.mxu0 0.0
    %3549 = vmatpush1.msra.mxu0 0.0
    %3550 = vmatprep.subr.mxu0 0.0
    %3551 = vmatpush1.msra.mxu0 0.0
    %3552 = vmatprep.subr.mxu0 0.0
    %3553 = vmatpush1.msra.mxu0 0.0
    %3554 = vmatprep.subr.mxu0 0.0
    %3555 = vmatpush1.msra.mxu0 0.0
    %3556 = vmatprep.subr.mxu0 0.0
    %3557 = vmatpush1.msra.mxu0 0.0
    %3558 = vmatprep.subr.mxu0 0.0
    %3559 = vmatpush1.msra.mxu0 0.0
    %3560 = vmatprep.subr.mxu0 0.0
    %3561 = vmatpush1.msra.mxu0 0.0
    %3562 = vmatprep.subr.mxu0 0.0
    %3563 = vmatpush1.msra.mxu0 0.0
    %3564 = vmatprep.subr.mxu0 0.0
    %3565 = vmatpush1.msra.mxu0 0.0
    %3566 = vmatprep.subr.mxu0 0.0
    %3567 = vmatpush1.msra.mxu0 0.0
    %3568 = vmatprep.subr.mxu0 0.0
    %3569 = vmatpush1.msra.mxu0 0.0
    %3570 = vmatprep.subr.mxu0 0.0
    %3571 = vmatpush1.msra.mxu0 0.0
    %3572 = vmatprep.subr.mxu0 0.0
    %3573 = vmatpush1.msra.mxu0 0.0
    %3574 = vmatprep.subr.mxu0 0.0
    %3575 = vmatpush1.msra.mxu0 0.0
    %3576 = vmatprep.subr.mxu0 0.0
    %3577 = vmatpush1.msra.mxu0 0.0
    %3578 = vmatprep.subr.mxu0 0.0
    %3579 = vmatpush1.msra.mxu0 0.0
    %3580 = vmatprep.subr.mxu0 0.0
    %3581 = vmatpush1.msra.mxu0 0.0
    %3582 = vmatprep.subr.mxu0 0.0
    %3583 = vmatpush1.msra.mxu0 0.0
    %3584 = vmatprep.subr.mxu0 0.0
    %3585 = vmatpush1.msra.mxu0 0.0
    %3586 = vmatprep.subr.mxu0 0.0
    %3587 = vmatpush1.msra.mxu0 0.0
    %3588 = vmatprep.subr.mxu0 0.0
    %3589 = vmatpush1.msra.mxu0 0.0
    %3590 = vmatprep.subr.mxu0 0.0
    %3591 = vmatpush1.msra.mxu0 0.0
    %3592 = vmatprep.subr.mxu0 0.0
    %3593 = vmatpush1.msra.mxu0 0.0
    %3594 = vmatprep.subr.mxu0 0.0
    %3595 = vmatpush1.msra.mxu0 0.0
    %3596 = vmatprep.subr.mxu0 0.0
    %3597 = vmatpush1.msra.mxu0 0.0
    %3598 = vmatprep.mubr.f32.mxu0 0.0
    %3599 = vmatmul.mubr.f32.gmra.mrb[0].mxu0 %v3448
    %v3600 = vpop.f32.mrb[0].mxu0
    %v3601 = vadd.f32 %v3532, %v3600
    %v3602 = vpop.f32.mrb[0].mxu0
    %3603 = vmatprep.mubr.f32.mxu0 0.0
    %3604 = vmatmul.mubr.f32.gmra.mrb[0].mxu0 %v3451
    %v3605 = vpop.f32.mrb[0].mxu0
    %v3606 = vadd.f32 %v3532, %v3605
    %v3607 = vpop.f32.mrb[0].mxu0
    %3608 = vdwg.mxu0
    %v3610 = vlaneseq
    %v3611 = vshrl.u32 %v3610, 7
    %v3612 = vsub.s32 0, %v3611
    %v3613 = vrot.slane %v3438, %v3612
    %3615 = vmatprep.subr.mxu0 0.0
    %3616 = vmatpush1.msra.mxu0 %v3433
    %3617 = vmatprep.subr.mxu0 0.0
    %3618 = vmatpush1.msra.mxu0 %v3434
    %3619 = vmatprep.subr.mxu0 0.0
    %3620 = vmatpush1.msra.mxu0 %v3435
    %3621 = vmatprep.subr.mxu0 0.0
    %3622 = vmatpush1.msra.mxu0 %v3436
    %3623 = vmatprep.subr.mxu0 0.0
    %3624 = vmatpush1.msra.mxu0 0.0
    %3625 = vmatprep.subr.mxu0 0.0
    %3626 = vmatpush1.msra.mxu0 0.0
    %3627 = vmatprep.subr.mxu0 0.0
    %3628 = vmatpush1.msra.mxu0 0.0
    %3629 = vmatprep.subr.mxu0 0.0
    %3630 = vmatpush1.msra.mxu0 0.0
    %3631 = vmatprep.subr.mxu0 0.0
    %3632 = vmatpush1.msra.mxu0 0.0
    %3633 = vmatprep.subr.mxu0 0.0
    %3634 = vmatpush1.msra.mxu0 0.0
    %3635 = vmatprep.subr.mxu0 0.0
    %3636 = vmatpush1.msra.mxu0 0.0
    %3637 = vmatprep.subr.mxu0 0.0
    %3638 = vmatpush1.msra.mxu0 0.0
    %3639 = vmatprep.subr.mxu0 0.0
    %3640 = vmatpush1.msra.mxu0 0.0
    %3641 = vmatprep.subr.mxu0 0.0
    %3642 = vmatpush1.msra.mxu0 0.0
    %3643 = vmatprep.subr.mxu0 0.0
    %3644 = vmatpush1.msra.mxu0 0.0
    %3645 = vmatprep.subr.mxu0 0.0
    %3646 = vmatpush1.msra.mxu0 0.0
    %3647 = vmatprep.subr.mxu0 0.0
    %3648 = vmatpush1.msra.mxu0 0.0
    %3649 = vmatprep.subr.mxu0 0.0
    %3650 = vmatpush1.msra.mxu0 0.0
    %3651 = vmatprep.subr.mxu0 0.0
    %3652 = vmatpush1.msra.mxu0 0.0
    %3653 = vmatprep.subr.mxu0 0.0
    %3654 = vmatpush1.msra.mxu0 0.0
    %3655 = vmatprep.subr.mxu0 0.0
    %3656 = vmatpush1.msra.mxu0 0.0
    %3657 = vmatprep.subr.mxu0 0.0
    %3658 = vmatpush1.msra.mxu0 0.0
    %3659 = vmatprep.subr.mxu0 0.0
    %3660 = vmatpush1.msra.mxu0 0.0
    %3661 = vmatprep.subr.mxu0 0.0
    %3662 = vmatpush1.msra.mxu0 0.0
    %3663 = vmatprep.subr.mxu0 0.0
    %3664 = vmatpush1.msra.mxu0 0.0
    %3665 = vmatprep.subr.mxu0 0.0
    %3666 = vmatpush1.msra.mxu0 0.0
    %3667 = vmatprep.subr.mxu0 0.0
    %3668 = vmatpush1.msra.mxu0 0.0
    %3669 = vmatprep.subr.mxu0 0.0
    %3670 = vmatpush1.msra.mxu0 0.0
    %3671 = vmatprep.subr.mxu0 0.0
    %3672 = vmatpush1.msra.mxu0 0.0
    %3673 = vmatprep.subr.mxu0 0.0
    %3674 = vmatpush1.msra.mxu0 0.0
    %3675 = vmatprep.subr.mxu0 0.0
    %3676 = vmatpush1.msra.mxu0 0.0
    %3677 = vmatprep.subr.mxu0 0.0
    %3678 = vmatpush1.msra.mxu0 0.0
    %3679 = vmatprep.mubr.f32.mxu0 0.0
    %3680 = vmatmul.mubr.f32.gmra.mrb[0].mxu0 %v3448
    %v3681 = vpop.f32.mrb[0].mxu0
    %v3682 = vadd.f32 %v3613, %v3681
    %v3683 = vpop.f32.mrb[0].mxu0
    %3684 = vmatprep.mubr.f32.mxu0 0.0
    %3685 = vmatmul.mubr.f32.gmra.mrb[0].mxu0 %v3451
    %v3686 = vpop.f32.mrb[0].mxu0
    %v3687 = vadd.f32 %v3613, %v3686
    %v3688 = vpop.f32.mrb[0].mxu0
    %3689 = vdwg.mxu0
    %v3691 = vsel %vm410, %v3520, 0
    %v3694 = vsel %vm410, %v3601, 0
    %3696 = vmatprep.subr.mxu0 0.0
    %3697 = vmatpush1.xpose.msra.mxu0 %v3694
    %3698 = vmatprep.subr.mxu0 0.0
    %3699 = vmatpush1.xpose.msra.mxu0 0.0
    %3700 = vmatprep.subr.mxu0 0.0
    %3701 = vmatpush1.xpose.msra.mxu0 0.0
    %3702 = vmatprep.subr.mxu0 0.0
    %3703 = vmatpush1.xpose.msra.mxu0 0.0
    %3704 = vmatprep.subr.mxu0 0.0
    %3705 = vmatpush1.xpose.msra.mxu0 0.0
    %3706 = vmatprep.subr.mxu0 0.0
    %3707 = vmatpush1.xpose.msra.mxu0 0.0
    %3708 = vmatprep.subr.mxu0 0.0
    %3709 = vmatpush1.xpose.msra.mxu0 0.0
    %3710 = vmatprep.subr.mxu0 0.0
    %3711 = vmatpush1.xpose.msra.mxu0 0.0
    %3712 = vmatprep.subr.mxu0 0.0
    %3713 = vmatpush1.xpose.msra.mxu0 0.0
    %3714 = vmatprep.subr.mxu0 0.0
    %3715 = vmatpush1.xpose.msra.mxu0 0.0
    %3716 = vmatprep.subr.mxu0 0.0
    %3717 = vmatpush1.xpose.msra.mxu0 0.0
    %3718 = vmatprep.subr.mxu0 0.0
    %3719 = vmatpush1.xpose.msra.mxu0 0.0
    %3720 = vmatprep.subr.mxu0 0.0
    %3721 = vmatpush1.xpose.msra.mxu0 0.0
    %3722 = vmatprep.subr.mxu0 0.0
    %3723 = vmatpush1.xpose.msra.mxu0 0.0
    %3724 = vmatprep.subr.mxu0 0.0
    %3725 = vmatpush1.xpose.msra.mxu0 0.0
    %3726 = vmatprep.subr.mxu0 0.0
    %3727 = vmatpush1.xpose.msra.mxu0 0.0
    %3728 = vmatprep.subr.mxu0 0.0
    %3729 = vmatpush1.xpose.msra.mxu0 0.0
    %3730 = vmatprep.subr.mxu0 0.0
    %3731 = vmatpush1.xpose.msra.mxu0 0.0
    %3732 = vmatprep.subr.mxu0 0.0
    %3733 = vmatpush1.xpose.msra.mxu0 0.0
    %3734 = vmatprep.subr.mxu0 0.0
    %3735 = vmatpush1.xpose.msra.mxu0 0.0
    %3736 = vmatprep.subr.mxu0 0.0
    %3737 = vmatpush1.xpose.msra.mxu0 0.0
    %3738 = vmatprep.subr.mxu0 0.0
    %3739 = vmatpush1.xpose.msra.mxu0 0.0
    %3740 = vmatprep.subr.mxu0 0.0
    %3741 = vmatpush1.xpose.msra.mxu0 0.0
    %3742 = vmatprep.subr.mxu0 0.0
    %3743 = vmatpush1.xpose.msra.mxu0 0.0
    %3744 = vmatprep.subr.mxu0 0.0
    %3745 = vmatpush1.xpose.msra.mxu0 0.0
    %3746 = vmatprep.subr.mxu0 0.0
    %3747 = vmatpush1.xpose.msra.mxu0 0.0
    %3748 = vmatprep.subr.mxu0 0.0
    %3749 = vmatpush1.xpose.msra.mxu0 0.0
    %3750 = vmatprep.subr.mxu0 0.0
    %3751 = vmatpush1.xpose.msra.mxu0 0.0
    %3752 = vmatprep.subr.mxu0 0.0
    %3753 = vmatpush1.xpose.msra.mxu0 0.0
    %3754 = vmatprep.subr.mxu0 0.0
    %3755 = vmatpush1.xpose.msra.mxu0 0.0
    %3756 = vmatprep.subr.mxu0 0.0
    %3757 = vmatpush1.xpose.msra.mxu0 0.0
    %3758 = vmatprep.subr.mxu0 0.0
    %3759 = vmatpush1.xpose.msra.mxu0 0.0
    %3760 = vmatprep.mubr.f32.mxu0 0.0
    %3761 = vmatmul.mubr.f32.gmra.mrb[0].mxu0 %v3691
    %v3762 = vpop.f32.mrb[0].mxu0
    %v3763 = vadd.f32 0.0, %v3762
    %v3764 = vpop.f32.mrb[0].mxu0
    %3765 = vdwg.mxu0
    %v3766 = vmul.f32 %v3763, 0.35355338
    %v3767 = vadd.f32 %v3766, %v491
    %v3768 = vsel %vm410, %v3767, -inf
    %3769 = vmax.xlane.f32.xlu0 %v3768
    %v3770 = vpop.xlane.xlu0 %3769
    %v3771 = vsub.f32 %v3767, %v3770
    %v3772 = vmul.f32 %v3771, 1.442695
    %v3773 = vpow.pop %v3772
    %v3774 = vsel %vm410, %v3773, 0.0
    %3775 = vadd.xlane.f32.xlu0 %v3774
    %v3776 = vpop.xlane.xlu0 %3775
    %v3777 = vrcp.pop %v3776
    %v3778 = vmul.f32 %v3773, %v3777
    %v3780 = vsel %vm410, %v3778, 0
    %3782 = vmatprep.subr.mxu0 0.0
    %3783 = vmatpush1.msra.mxu0 %v3682
    %3784 = vmatprep.subr.mxu0 0.0
    %3785 = vmatpush1.msra.mxu0 0.0
    %3786 = vmatprep.subr.mxu0 0.0
    %3787 = vmatpush1.msra.mxu0 0.0
    %3788 = vmatprep.subr.mxu0 0.0
    %3789 = vmatpush1.msra.mxu0 0.0
    %3790 = vmatprep.subr.mxu0 0.0
    %3791 = vmatpush1.msra.mxu0 0.0
    %3792 = vmatprep.subr.mxu0 0.0
    %3793 = vmatpush1.msra.mxu0 0.0
    %3794 = vmatprep.subr.mxu0 0.0
    %3795 = vmatpush1.msra.mxu0 0.0
    %3796 = vmatprep.subr.mxu0 0.0
    %3797 = vmatpush1.msra.mxu0 0.0
    %3798 = vmatprep.subr.mxu0 0.0
    %3799 = vmatpush1.msra.mxu0 0.0
    %3800 = vmatprep.subr.mxu0 0.0
    %3801 = vmatpush1.msra.mxu0 0.0
    %3802 = vmatprep.subr.mxu0 0.0
    %3803 = vmatpush1.msra.mxu0 0.0
    %3804 = vmatprep.subr.mxu0 0.0
    %3805 = vmatpush1.msra.mxu0 0.0
    %3806 = vmatprep.subr.mxu0 0.0
    %3807 = vmatpush1.msra.mxu0 0.0
    %3808 = vmatprep.subr.mxu0 0.0
    %3809 = vmatpush1.msra.mxu0 0.0
    %3810 = vmatprep.subr.mxu0 0.0
    %3811 = vmatpush1.msra.mxu0 0.0
    %3812 = vmatprep.subr.mxu0 0.0
    %3813 = vmatpush1.msra.mxu0 0.0
    %3814 = vmatprep.subr.mxu0 0.0
    %3815 = vmatpush1.msra.mxu0 0.0
    %3816 = vmatprep.subr.mxu0 0.0
    %3817 = vmatpush1.msra.mxu0 0.0
    %3818 = vmatprep.subr.mxu0 0.0
    %3819 = vmatpush1.msra.mxu0 0.0
    %3820 = vmatprep.subr.mxu0 0.0
    %3821 = vmatpush1.msra.mxu0 0.0
    %3822 = vmatprep.subr.mxu0 0.0
    %3823 = vmatpush1.msra.mxu0 0.0
    %3824 = vmatprep.subr.mxu0 0.0
    %3825 = vmatpush1.msra.mxu0 0.0
    %3826 = vmatprep.subr.mxu0 0.0
    %3827 = vmatpush1.msra.mxu0 0.0
    %3828 = vmatprep.subr.mxu0 0.0
    %3829 = vmatpush1.msra.mxu0 0.0
    %3830 = vmatprep.subr.mxu0 0.0
    %3831 = vmatpush1.msra.mxu0 0.0
    %3832 = vmatprep.subr.mxu0 0.0
    %3833 = vmatpush1.msra.mxu0 0.0
    %3834 = vmatprep.subr.mxu0 0.0
    %3835 = vmatpush1.msra.mxu0 0.0
    %3836 = vmatprep.subr.mxu0 0.0
    %3837 = vmatpush1.msra.mxu0 0.0
    %3838 = vmatprep.subr.mxu0 0.0
    %3839 = vmatpush1.msra.mxu0 0.0
    %3840 = vmatprep.subr.mxu0 0.0
    %3841 = vmatpush1.msra.mxu0 0.0
    %3842 = vmatprep.subr.mxu0 0.0
    %3843 = vmatpush1.msra.mxu0 0.0
    %3844 = vmatprep.subr.mxu0 0.0
    %3845 = vmatpush1.msra.mxu0 0.0
    %3846 = vmatprep.mubr.f32.mxu0 0.0
    %3847 = vmatmul.mubr.f32.gmra.mrb[0].mxu0 %v3780
    %v3848 = vpop.f32.mrb[0].mxu0
    %v3849 = vadd.f32 0.0, %v3848
    %v3850 = vpop.f32.mrb[0].mxu0
    %3851 = vdwg.mxu0
    %v3853 = vsel %vm410, %v3525, 0
    %v3856 = vsel %vm410, %v3606, 0
    %3858 = vmatprep.subr.mxu0 0.0
    %3859 = vmatpush1.xpose.msra.mxu0 %v3856
    %3860 = vmatprep.subr.mxu0 0.0
    %3861 = vmatpush1.xpose.msra.mxu0 0.0
    %3862 = vmatprep.subr.mxu0 0.0
    %3863 = vmatpush1.xpose.msra.mxu0 0.0
    %3864 = vmatprep.subr.mxu0 0.0
    %3865 = vmatpush1.xpose.msra.mxu0 0.0
    %3866 = vmatprep.subr.mxu0 0.0
    %3867 = vmatpush1.xpose.msra.mxu0 0.0
    %3868 = vmatprep.subr.mxu0 0.0
    %3869 = vmatpush1.xpose.msra.mxu0 0.0
    %3870 = vmatprep.subr.mxu0 0.0
    %3871 = vmatpush1.xpose.msra.mxu0 0.0
    %3872 = vmatprep.subr.mxu0 0.0
    %3873 = vmatpush1.xpose.msra.mxu0 0.0
    %3874 = vmatprep.subr.mxu0 0.0
    %3875 = vmatpush1.xpose.msra.mxu0 0.0
    %3876 = vmatprep.subr.mxu0 0.0
    %3877 = vmatpush1.xpose.msra.mxu0 0.0
    %3878 = vmatprep.subr.mxu0 0.0
    %3879 = vmatpush1.xpose.msra.mxu0 0.0
    %3880 = vmatprep.subr.mxu0 0.0
    %3881 = vmatpush1.xpose.msra.mxu0 0.0
    %3882 = vmatprep.subr.mxu0 0.0
    %3883 = vmatpush1.xpose.msra.mxu0 0.0
    %3884 = vmatprep.subr.mxu0 0.0
    %3885 = vmatpush1.xpose.msra.mxu0 0.0
    %3886 = vmatprep.subr.mxu0 0.0
    %3887 = vmatpush1.xpose.msra.mxu0 0.0
    %3888 = vmatprep.subr.mxu0 0.0
    %3889 = vmatpush1.xpose.msra.mxu0 0.0
    %3890 = vmatprep.subr.mxu0 0.0
    %3891 = vmatpush1.xpose.msra.mxu0 0.0
    %3892 = vmatprep.subr.mxu0 0.0
    %3893 = vmatpush1.xpose.msra.mxu0 0.0
    %3894 = vmatprep.subr.mxu0 0.0
    %3895 = vmatpush1.xpose.msra.mxu0 0.0
    %3896 = vmatprep.subr.mxu0 0.0
    %3897 = vmatpush1.xpose.msra.mxu0 0.0
    %3898 = vmatprep.subr.mxu0 0.0
    %3899 = vmatpush1.xpose.msra.mxu0 0.0
    %3900 = vmatprep.subr.mxu0 0.0
    %3901 = vmatpush1.xpose.msra.mxu0 0.0
    %3902 = vmatprep.subr.mxu0 0.0
    %3903 = vmatpush1.xpose.msra.mxu0 0.0
    %3904 = vmatprep.subr.mxu0 0.0
    %3905 = vmatpush1.xpose.msra.mxu0 0.0
    %3906 = vmatprep.subr.mxu0 0.0
    %3907 = vmatpush1.xpose.msra.mxu0 0.0
    %3908 = vmatprep.subr.mxu0 0.0
    %3909 = vmatpush1.xpose.msra.mxu0 0.0
    %3910 = vmatprep.subr.mxu0 0.0
    %3911 = vmatpush1.xpose.msra.mxu0 0.0
    %3912 = vmatprep.subr.mxu0 0.0
    %3913 = vmatpush1.xpose.msra.mxu0 0.0
    %3914 = vmatprep.subr.mxu0 0.0
    %3915 = vmatpush1.xpose.msra.mxu0 0.0
    %3916 = vmatprep.subr.mxu0 0.0
    %3917 = vmatpush1.xpose.msra.mxu0 0.0
    %3918 = vmatprep.subr.mxu0 0.0
    %3919 = vmatpush1.xpose.msra.mxu0 0.0
    %3920 = vmatprep.subr.mxu0 0.0
    %3921 = vmatpush1.xpose.msra.mxu0 0.0
    %3922 = vmatprep.mubr.f32.mxu0 0.0
    %3923 = vmatmul.mubr.f32.gmra.mrb[0].mxu0 %v3853
    %v3924 = vpop.f32.mrb[0].mxu0
    %v3925 = vadd.f32 0.0, %v3924
    %v3926 = vpop.f32.mrb[0].mxu0
    %3927 = vdwg.mxu0
    %v3928 = vmul.f32 %v3925, 0.35355338
    %v3929 = vadd.f32 %v3928, %v657
    %v3930 = vsel %vm410, %v3929, -inf
    %3931 = vmax.xlane.f32.xlu0 %v3930
    %v3932 = vpop.xlane.xlu0 %3931
    %v3933 = vsub.f32 %v3929, %v3932
    %v3934 = vmul.f32 %v3933, 1.442695
    %v3935 = vpow.pop %v3934
    %v3936 = vsel %vm410, %v3935, 0.0
    %3937 = vadd.xlane.f32.xlu0 %v3936
    %v3938 = vpop.xlane.xlu0 %3937
    %v3939 = vrcp.pop %v3938
    %v3940 = vmul.f32 %v3935, %v3939
    %v3942 = vsel %vm410, %v3940, 0
    %3944 = vmatprep.subr.mxu0 0.0
    %3945 = vmatpush1.msra.mxu0 %v3687
    %3946 = vmatprep.subr.mxu0 0.0
    %3947 = vmatpush1.msra.mxu0 0.0
    %3948 = vmatprep.subr.mxu0 0.0
    %3949 = vmatpush1.msra.mxu0 0.0
    %3950 = vmatprep.subr.mxu0 0.0
    %3951 = vmatpush1.msra.mxu0 0.0
    %3952 = vmatprep.subr.mxu0 0.0
    %3953 = vmatpush1.msra.mxu0 0.0
    %3954 = vmatprep.subr.mxu0 0.0
    %3955 = vmatpush1.msra.mxu0 0.0
    %3956 = vmatprep.subr.mxu0 0.0
    %3957 = vmatpush1.msra.mxu0 0.0
    %3958 = vmatprep.subr.mxu0 0.0
    %3959 = vmatpush1.msra.mxu0 0.0
    %3960 = vmatprep.subr.mxu0 0.0
    %3961 = vmatpush1.msra.mxu0 0.0
    %3962 = vmatprep.subr.mxu0 0.0
    %3963 = vmatpush1.msra.mxu0 0.0
    %3964 = vmatprep.subr.mxu0 0.0
    %3965 = vmatpush1.msra.mxu0 0.0
    %3966 = vmatprep.subr.mxu0 0.0
    %3967 = vmatpush1.msra.mxu0 0.0
    %3968 = vmatprep.subr.mxu0 0.0
    %3969 = vmatpush1.msra.mxu0 0.0
    %3970 = vmatprep.subr.mxu0 0.0
    %3971 = vmatpush1.msra.mxu0 0.0
    %3972 = vmatprep.subr.mxu0 0.0
    %3973 = vmatpush1.msra.mxu0 0.0
    %3974 = vmatprep.subr.mxu0 0.0
    %3975 = vmatpush1.msra.mxu0 0.0
    %3976 = vmatprep.subr.mxu0 0.0
    %3977 = vmatpush1.msra.mxu0 0.0
    %3978 = vmatprep.subr.mxu0 0.0
    %3979 = vmatpush1.msra.mxu0 0.0
    %3980 = vmatprep.subr.mxu0 0.0
    %3981 = vmatpush1.msra.mxu0 0.0
    %3982 = vmatprep.subr.mxu0 0.0
    %3983 = vmatpush1.msra.mxu0 0.0
    %3984 = vmatprep.subr.mxu0 0.0
    %3985 = vmatpush1.msra.mxu0 0.0
    %3986 = vmatprep.subr.mxu0 0.0
    %3987 = vmatpush1.msra.mxu0 0.0
    %3988 = vmatprep.subr.mxu0 0.0
    %3989 = vmatpush1.msra.mxu0 0.0
    %3990 = vmatprep.subr.mxu0 0.0
    %3991 = vmatpush1.msra.mxu0 0.0
    %3992 = vmatprep.subr.mxu0 0.0
    %3993 = vmatpush1.msra.mxu0 0.0
    %3994 = vmatprep.subr.mxu0 0.0
    %3995 = vmatpush1.msra.mxu0 0.0
    %3996 = vmatprep.subr.mxu0 0.0
    %3997 = vmatpush1.msra.mxu0 0.0
    %3998 = vmatprep.subr.mxu0 0.0
    %3999 = vmatpush1.msra.mxu0 0.0
    %4000 = vmatprep.subr.mxu0 0.0
    %4001 = vmatpush1.msra.mxu0 0.0
    %4002 = vmatprep.subr.mxu0 0.0
    %4003 = vmatpush1.msra.mxu0 0.0
    %4004 = vmatprep.subr.mxu0 0.0
    %4005 = vmatpush1.msra.mxu0 0.0
    %4006 = vmatprep.subr.mxu0 0.0
    %4007 = vmatpush1.msra.mxu0 0.0
    %4008 = vmatprep.mubr.f32.mxu0 0.0
    %4009 = vmatmul.mubr.f32.gmra.mrb[0].mxu0 %v3942
    %v4010 = vpop.f32.mrb[0].mxu0
    %v4011 = vadd.f32 0.0, %v4010
    %v4012 = vpop.f32.mrb[0].mxu0
    %4013 = vdwg.mxu0
    %s4014 = scalar_lea.vmem %s5, 160
    %v4015 = vld [vmem:[%s4014] sm:$0xff]
    %v4016 = vld [vmem:[%s4014 + $0x8] sm:$0xff]
    %v4017 = vld [vmem:[%s4014 + $0x10] sm:$0xff]
    %v4018 = vld [vmem:[%s4014 + $0x18] sm:$0xff]
    %s4019 = scalar_lea.vmem %s6, 5
    %v4020 = vld [vmem:[%s4019] sm:$0x1]
    %s4021 = scalar_lea.vmem %s7, 160
    %v4022 = vld [vmem:[%s4021] sm:$0xff]
    %v4023 = vld [vmem:[%s4021 + $0x8] sm:$0xff]
    %v4024 = vld [vmem:[%s4021 + $0x10] sm:$0xff]
    %v4025 = vld [vmem:[%s4021 + $0x18] sm:$0xff]
    %s4026 = scalar_lea.vmem %s8, 5
    %v4027 = vld [vmem:[%s4026] sm:$0x1]
    %s4028 = scalar_lea.vmem %s9, 160
    %v4029 = vld [vmem:[%s4028] sm:$0xff]
    %v4030 = vld [vmem:[%s4028 + $0x8] sm:$0xff]
    %v4031 = vld [vmem:[%s4028 + $0x10] sm:$0xff]
    %v4032 = vld [vmem:[%s4028 + $0x18] sm:$0xff]
    %s4033 = scalar_lea.vmem %s10, 5
    %v4034 = vld [vmem:[%s4033] sm:$0x1]
    %s4035 = scalar_lea.vmem %s11, 40
    %v4036 = vld [vmem:[%s4035] sm:$0xff]
    %v4038 = vlaneseq
    %v4039 = vshrl.u32 %v4038, 7
    %v4040 = vsub.s32 0, %v4039
    %v4041 = vrot.slane %v4020, %v4040
    %4043 = vmatprep.subr.mxu0 0.0
    %4044 = vmatpush1.msra.mxu0 %v4015
    %4045 = vmatprep.subr.mxu0 0.0
    %4046 = vmatpush1.msra.mxu0 %v4016
    %4047 = vmatprep.subr.mxu0 0.0
    %4048 = vmatpush1.msra.mxu0 %v4017
    %4049 = vmatprep.subr.mxu0 0.0
    %4050 = vmatpush1.msra.mxu0 %v4018
    %4051 = vmatprep.subr.mxu0 0.0
    %4052 = vmatpush1.msra.mxu0 0.0
    %4053 = vmatprep.subr.mxu0 0.0
    %4054 = vmatpush1.msra.mxu0 0.0
    %4055 = vmatprep.subr.mxu0 0.0
    %4056 = vmatpush1.msra.mxu0 0.0
    %4057 = vmatprep.subr.mxu0 0.0
    %4058 = vmatpush1.msra.mxu0 0.0
    %4059 = vmatprep.subr.mxu0 0.0
    %4060 = vmatpush1.msra.mxu0 0.0
    %4061 = vmatprep.subr.mxu0 0.0
    %4062 = vmatpush1.msra.mxu0 0.0
    %4063 = vmatprep.subr.mxu0 0.0
    %4064 = vmatpush1.msra.mxu0 0.0
    %4065 = vmatprep.subr.mxu0 0.0
    %4066 = vmatpush1.msra.mxu0 0.0
    %4067 = vmatprep.subr.mxu0 0.0
    %4068 = vmatpush1.msra.mxu0 0.0
    %4069 = vmatprep.subr.mxu0 0.0
    %4070 = vmatpush1.msra.mxu0 0.0
    %4071 = vmatprep.subr.mxu0 0.0
    %4072 = vmatpush1.msra.mxu0 0.0
    %4073 = vmatprep.subr.mxu0 0.0
    %4074 = vmatpush1.msra.mxu0 0.0
    %4075 = vmatprep.subr.mxu0 0.0
    %4076 = vmatpush1.msra.mxu0 0.0
    %4077 = vmatprep.subr.mxu0 0.0
    %4078 = vmatpush1.msra.mxu0 0.0
    %4079 = vmatprep.subr.mxu0 0.0
    %4080 = vmatpush1.msra.mxu0 0.0
    %4081 = vmatprep.subr.mxu0 0.0
    %4082 = vmatpush1.msra.mxu0 0.0
    %4083 = vmatprep.subr.mxu0 0.0
    %4084 = vmatpush1.msra.mxu0 0.0
    %4085 = vmatprep.subr.mxu0 0.0
    %4086 = vmatpush1.msra.mxu0 0.0
    %4087 = vmatprep.subr.mxu0 0.0
    %4088 = vmatpush1.msra.mxu0 0.0
    %4089 = vmatprep.subr.mxu0 0.0
    %4090 = vmatpush1.msra.mxu0 0.0
    %4091 = vmatprep.subr.mxu0 0.0
    %4092 = vmatpush1.msra.mxu0 0.0
    %4093 = vmatprep.subr.mxu0 0.0
    %4094 = vmatpush1.msra.mxu0 0.0
    %4095 = vmatprep.subr.mxu0 0.0
    %4096 = vmatpush1.msra.mxu0 0.0
    %4097 = vmatprep.subr.mxu0 0.0
    %4098 = vmatpush1.msra.mxu0 0.0
    %4099 = vmatprep.subr.mxu0 0.0
    %4100 = vmatpush1.msra.mxu0 0.0
    %4101 = vmatprep.subr.mxu0 0.0
    %4102 = vmatpush1.msra.mxu0 0.0
    %4103 = vmatprep.subr.mxu0 0.0
    %4104 = vmatpush1.msra.mxu0 0.0
    %4105 = vmatprep.subr.mxu0 0.0
    %4106 = vmatpush1.msra.mxu0 0.0
    %4107 = vmatprep.mubr.f32.mxu0 0.0
    %4108 = vmatmul.mubr.f32.gmra.mrb[0].mxu0 %v3448
    %v4109 = vpop.f32.mrb[0].mxu0
    %v4110 = vadd.f32 %v4041, %v4109
    %v4111 = vpop.f32.mrb[0].mxu0
    %4112 = vmatprep.mubr.f32.mxu0 0.0
    %4113 = vmatmul.mubr.f32.gmra.mrb[0].mxu0 %v3451
    %v4114 = vpop.f32.mrb[0].mxu0
    %v4115 = vadd.f32 %v4041, %v4114
    %v4116 = vpop.f32.mrb[0].mxu0
    %4117 = vdwg.mxu0
    %v4119 = vlaneseq
    %v4120 = vshrl.u32 %v4119, 7
    %v4121 = vsub.s32 0, %v4120
    %v4122 = vrot.slane %v4027, %v4121
    %4124 = vmatprep.subr.mxu0 0.0
    %4125 = vmatpush1.msra.mxu0 %v4022
    %4126 = vmatprep.subr.mxu0 0.0
    %4127 = vmatpush1.msra.mxu0 %v4023
    %4128 = vmatprep.subr.mxu0 0.0
    %4129 = vmatpush1.msra.mxu0 %v4024
    %4130 = vmatprep.subr.mxu0 0.0
    %4131 = vmatpush1.msra.mxu0 %v4025
    %4132 = vmatprep.subr.mxu0 0.0
    %4133 = vmatpush1.msra.mxu0 0.0
    %4134 = vmatprep.subr.mxu0 0.0
    %4135 = vmatpush1.msra.mxu0 0.0
    %4136 = vmatprep.subr.mxu0 0.0
    %4137 = vmatpush1.msra.mxu0 0.0
    %4138 = vmatprep.subr.mxu0 0.0
    %4139 = vmatpush1.msra.mxu0 0.0
    %4140 = vmatprep.subr.mxu0 0.0
    %4141 = vmatpush1.msra.mxu0 0.0
    %4142 = vmatprep.subr.mxu0 0.0
    %4143 = vmatpush1.msra.mxu0 0.0
    %4144 = vmatprep.subr.mxu0 0.0
    %4145 = vmatpush1.msra.mxu0 0.0
    %4146 = vmatprep.subr.mxu0 0.0
    %4147 = vmatpush1.msra.mxu0 0.0
    %4148 = vmatprep.subr.mxu0 0.0
    %4149 = vmatpush1.msra.mxu0 0.0
    %4150 = vmatprep.subr.mxu0 0.0
    %4151 = vmatpush1.msra.mxu0 0.0
    %4152 = vmatprep.subr.mxu0 0.0
    %4153 = vmatpush1.msra.mxu0 0.0
    %4154 = vmatprep.subr.mxu0 0.0
    %4155 = vmatpush1.msra.mxu0 0.0
    %4156 = vmatprep.subr.mxu0 0.0
    %4157 = vmatpush1.msra.mxu0 0.0
    %4158 = vmatprep.subr.mxu0 0.0
    %4159 = vmatpush1.msra.mxu0 0.0
    %4160 = vmatprep.subr.mxu0 0.0
    %4161 = vmatpush1.msra.mxu0 0.0
    %4162 = vmatprep.subr.mxu0 0.0
    %4163 = vmatpush1.msra.mxu0 0.0
    %4164 = vmatprep.subr.mxu0 0.0
    %4165 = vmatpush1.msra.mxu0 0.0
    %4166 = vmatprep.subr.mxu0 0.0
    %4167 = vmatpush1.msra.mxu0 0.0
    %4168 = vmatprep.subr.mxu0 0.0
    %4169 = vmatpush1.msra.mxu0 0.0
    %4170 = vmatprep.subr.mxu0 0.0
    %4171 = vmatpush1.msra.mxu0 0.0
    %4172 = vmatprep.subr.mxu0 0.0
    %4173 = vmatpush1.msra.mxu0 0.0
    %4174 = vmatprep.subr.mxu0 0.0
    %4175 = vmatpush1.msra.mxu0 0.0
    %4176 = vmatprep.subr.mxu0 0.0
    %4177 = vmatpush1.msra.mxu0 0.0
    %4178 = vmatprep.subr.mxu0 0.0
    %4179 = vmatpush1.msra.mxu0 0.0
    %4180 = vmatprep.subr.mxu0 0.0
    %4181 = vmatpush1.msra.mxu0 0.0
    %4182 = vmatprep.subr.mxu0 0.0
    %4183 = vmatpush1.msra.mxu0 0.0
    %4184 = vmatprep.subr.mxu0 0.0
    %4185 = vmatpush1.msra.mxu0 0.0
    %4186 = vmatprep.subr.mxu0 0.0
    %4187 = vmatpush1.msra.mxu0 0.0
    %4188 = vmatprep.mubr.f32.mxu0 0.0
    %4189 = vmatmul.mubr.f32.gmra.mrb[0].mxu0 %v3448
    %v4190 = vpop.f32.mrb[0].mxu0
    %v4191 = vadd.f32 %v4122, %v4190
    %v4192 = vpop.f32.mrb[0].mxu0
    %4193 = vmatprep.mubr.f32.mxu0 0.0
    %4194 = vmatmul.mubr.f32.gmra.mrb[0].mxu0 %v3451
    %v4195 = vpop.f32.mrb[0].mxu0
    %v4196 = vadd.f32 %v4122, %v4195
    %v4197 = vpop.f32.mrb[0].mxu0
    %4198 = vdwg.mxu0
    %v4200 = vlaneseq
    %v4201 = vshrl.u32 %v4200, 7
    %v4202 = vsub.s32 0, %v4201
    %v4203 = vrot.slane %v4034, %v4202
    %4205 = vmatprep.subr.mxu0 0.0
    %4206 = vmatpush1.msra.mxu0 %v4029
    %4207 = vmatprep.subr.mxu0 0.0
    %4208 = vmatpush1.msra.mxu0 %v4030
    %4209 = vmatprep.subr.mxu0 0.0
    %4210 = vmatpush1.msra.mxu0 %v4031
    %4211 = vmatprep.subr.mxu0 0.0
    %4212 = vmatpush1.msra.mxu0 %v4032
    %4213 = vmatprep.subr.mxu0 0.0
    %4214 = vmatpush1.msra.mxu0 0.0
    %4215 = vmatprep.subr.mxu0 0.0
    %4216 = vmatpush1.msra.mxu0 0.0
    %4217 = vmatprep.subr.mxu0 0.0
    %4218 = vmatpush1.msra.mxu0 0.0
    %4219 = vmatprep.subr.mxu0 0.0
    %4220 = vmatpush1.msra.mxu0 0.0
    %4221 = vmatprep.subr.mxu0 0.0
    %4222 = vmatpush1.msra.mxu0 0.0
    %4223 = vmatprep.subr.mxu0 0.0
    %4224 = vmatpush1.msra.mxu0 0.0
    %4225 = vmatprep.subr.mxu0 0.0
    %4226 = vmatpush1.msra.mxu0 0.0
    %4227 = vmatprep.subr.mxu0 0.0
    %4228 = vmatpush1.msra.mxu0 0.0
    %4229 = vmatprep.subr.mxu0 0.0
    %4230 = vmatpush1.msra.mxu0 0.0
    %4231 = vmatprep.subr.mxu0 0.0
    %4232 = vmatpush1.msra.mxu0 0.0
    %4233 = vmatprep.subr.mxu0 0.0
    %4234 = vmatpush1.msra.mxu0 0.0
    %4235 = vmatprep.subr.mxu0 0.0
    %4236 = vmatpush1.msra.mxu0 0.0
    %4237 = vmatprep.subr.mxu0 0.0
    %4238 = vmatpush1.msra.mxu0 0.0
    %4239 = vmatprep.subr.mxu0 0.0
    %4240 = vmatpush1.msra.mxu0 0.0
    %4241 = vmatprep.subr.mxu0 0.0
    %4242 = vmatpush1.msra.mxu0 0.0
    %4243 = vmatprep.subr.mxu0 0.0
    %4244 = vmatpush1.msra.mxu0 0.0
    %4245 = vmatprep.subr.mxu0 0.0
    %4246 = vmatpush1.msra.mxu0 0.0
    %4247 = vmatprep.subr.mxu0 0.0
    %4248 = vmatpush1.msra.mxu0 0.0
    %4249 = vmatprep.subr.mxu0 0.0
    %4250 = vmatpush1.msra.mxu0 0.0
    %4251 = vmatprep.subr.mxu0 0.0
    %4252 = vmatpush1.msra.mxu0 0.0
    %4253 = vmatprep.subr.mxu0 0.0
    %4254 = vmatpush1.msra.mxu0 0.0
    %4255 = vmatprep.subr.mxu0 0.0
    %4256 = vmatpush1.msra.mxu0 0.0
    %4257 = vmatprep.subr.mxu0 0.0
    %4258 = vmatpush1.msra.mxu0 0.0
    %4259 = vmatprep.subr.mxu0 0.0
    %4260 = vmatpush1.msra.mxu0 0.0
    %4261 = vmatprep.subr.mxu0 0.0
    %4262 = vmatpush1.msra.mxu0 0.0
    %4263 = vmatprep.subr.mxu0 0.0
    %4264 = vmatpush1.msra.mxu0 0.0
    %4265 = vmatprep.subr.mxu0 0.0
    %4266 = vmatpush1.msra.mxu0 0.0
    %4267 = vmatprep.subr.mxu0 0.0
    %4268 = vmatpush1.msra.mxu0 0.0
    %4269 = vmatprep.mubr.f32.mxu0 0.0
    %4270 = vmatmul.mubr.f32.gmra.mrb[0].mxu0 %v3448
    %v4271 = vpop.f32.mrb[0].mxu0
    %v4272 = vadd.f32 %v4203, %v4271
    %v4273 = vpop.f32.mrb[0].mxu0
    %4274 = vmatprep.mubr.f32.mxu0 0.0
    %4275 = vmatmul.mubr.f32.gmra.mrb[0].mxu0 %v3451
    %v4276 = vpop.f32.mrb[0].mxu0
    %v4277 = vadd.f32 %v4203, %v4276
    %v4278 = vpop.f32.mrb[0].mxu0
    %4279 = vdwg.mxu0
    %v4281 = vsel %vm410, %v4110, 0
    %v4284 = vsel %vm410, %v4191, 0
    %4286 = vmatprep.subr.mxu0 0.0
    %4287 = vmatpush1.xpose.msra.mxu0 %v4284
    %4288 = vmatprep.subr.mxu0 0.0
    %4289 = vmatpush1.xpose.msra.mxu0 0.0
    %4290 = vmatprep.subr.mxu0 0.0
    %4291 = vmatpush1.xpose.msra.mxu0 0.0
    %4292 = vmatprep.subr.mxu0 0.0
    %4293 = vmatpush1.xpose.msra.mxu0 0.0
    %4294 = vmatprep.subr.mxu0 0.0
    %4295 = vmatpush1.xpose.msra.mxu0 0.0
    %4296 = vmatprep.subr.mxu0 0.0
    %4297 = vmatpush1.xpose.msra.mxu0 0.0
    %4298 = vmatprep.subr.mxu0 0.0
    %4299 = vmatpush1.xpose.msra.mxu0 0.0
    %4300 = vmatprep.subr.mxu0 0.0
    %4301 = vmatpush1.xpose.msra.mxu0 0.0
    %4302 = vmatprep.subr.mxu0 0.0
    %4303 = vmatpush1.xpose.msra.mxu0 0.0
    %4304 = vmatprep.subr.mxu0 0.0
    %4305 = vmatpush1.xpose.msra.mxu0 0.0
    %4306 = vmatprep.subr.mxu0 0.0
    %4307 = vmatpush1.xpose.msra.mxu0 0.0
    %4308 = vmatprep.subr.mxu0 0.0
    %4309 = vmatpush1.xpose.msra.mxu0 0.0
    %4310 = vmatprep.subr.mxu0 0.0
    %4311 = vmatpush1.xpose.msra.mxu0 0.0
    %4312 = vmatprep.subr.mxu0 0.0
    %4313 = vmatpush1.xpose.msra.mxu0 0.0
    %4314 = vmatprep.subr.mxu0 0.0
    %4315 = vmatpush1.xpose.msra.mxu0 0.0
    %4316 = vmatprep.subr.mxu0 0.0
    %4317 = vmatpush1.xpose.msra.mxu0 0.0
    %4318 = vmatprep.subr.mxu0 0.0
    %4319 = vmatpush1.xpose.msra.mxu0 0.0
    %4320 = vmatprep.subr.mxu0 0.0
    %4321 = vmatpush1.xpose.msra.mxu0 0.0
    %4322 = vmatprep.subr.mxu0 0.0
    %4323 = vmatpush1.xpose.msra.mxu0 0.0
    %4324 = vmatprep.subr.mxu0 0.0
    %4325 = vmatpush1.xpose.msra.mxu0 0.0
    %4326 = vmatprep.subr.mxu0 0.0
    %4327 = vmatpush1.xpose.msra.mxu0 0.0
    %4328 = vmatprep.subr.mxu0 0.0
    %4329 = vmatpush1.xpose.msra.mxu0 0.0
    %4330 = vmatprep.subr.mxu0 0.0
    %4331 = vmatpush1.xpose.msra.mxu0 0.0
    %4332 = vmatprep.subr.mxu0 0.0
    %4333 = vmatpush1.xpose.msra.mxu0 0.0
    %4334 = vmatprep.subr.mxu0 0.0
    %4335 = vmatpush1.xpose.msra.mxu0 0.0
    %4336 = vmatprep.subr.mxu0 0.0
    %4337 = vmatpush1.xpose.msra.mxu0 0.0
    %4338 = vmatprep.subr.mxu0 0.0
    %4339 = vmatpush1.xpose.msra.mxu0 0.0
    %4340 = vmatprep.subr.mxu0 0.0
    %4341 = vmatpush1.xpose.msra.mxu0 0.0
    %4342 = vmatprep.subr.mxu0 0.0
    %4343 = vmatpush1.xpose.msra.mxu0 0.0
    %4344 = vmatprep.subr.mxu0 0.0
    %4345 = vmatpush1.xpose.msra.mxu0 0.0
    %4346 = vmatprep.subr.mxu0 0.0
    %4347 = vmatpush1.xpose.msra.mxu0 0.0
    %4348 = vmatprep.subr.mxu0 0.0
    %4349 = vmatpush1.xpose.msra.mxu0 0.0
    %4350 = vmatprep.mubr.f32.mxu0 0.0
    %4351 = vmatmul.mubr.f32.gmra.mrb[0].mxu0 %v4281
    %v4352 = vpop.f32.mrb[0].mxu0
    %v4353 = vadd.f32 0.0, %v4352
    %v4354 = vpop.f32.mrb[0].mxu0
    %4355 = vdwg.mxu0
    %v4356 = vmul.f32 %v4353, 0.35355338
    %v4357 = vadd.f32 %v4356, %v491
    %v4358 = vsel %vm410, %v4357, -inf
    %4359 = vmax.xlane.f32.xlu0 %v4358
    %v4360 = vpop.xlane.xlu0 %4359
    %v4361 = vsub.f32 %v4357, %v4360
    %v4362 = vmul.f32 %v4361, 1.442695
    %v4363 = vpow.pop %v4362
    %v4364 = vsel %vm410, %v4363, 0.0
    %4365 = vadd.xlane.f32.xlu0 %v4364
    %v4366 = vpop.xlane.xlu0 %4365
    %v4367 = vrcp.pop %v4366
    %v4368 = vmul.f32 %v4363, %v4367
    %v4370 = vsel %vm410, %v4368, 0
    %4372 = vmatprep.subr.mxu0 0.0
    %4373 = vmatpush1.msra.mxu0 %v4272
    %4374 = vmatprep.subr.mxu0 0.0
    %4375 = vmatpush1.msra.mxu0 0.0
    %4376 = vmatprep.subr.mxu0 0.0
    %4377 = vmatpush1.msra.mxu0 0.0
    %4378 = vmatprep.subr.mxu0 0.0
    %4379 = vmatpush1.msra.mxu0 0.0
    %4380 = vmatprep.subr.mxu0 0.0
    %4381 = vmatpush1.msra.mxu0 0.0
    %4382 = vmatprep.subr.mxu0 0.0
    %4383 = vmatpush1.msra.mxu0 0.0
    %4384 = vmatprep.subr.mxu0 0.0
    %4385 = vmatpush1.msra.mxu0 0.0
    %4386 = vmatprep.subr.mxu0 0.0
    %4387 = vmatpush1.msra.mxu0 0.0
    %4388 = vmatprep.subr.mxu0 0.0
    %4389 = vmatpush1.msra.mxu0 0.0
    %4390 = vmatprep.subr.mxu0 0.0
    %4391 = vmatpush1.msra.mxu0 0.0
    %4392 = vmatprep.subr.mxu0 0.0
    %4393 = vmatpush1.msra.mxu0 0.0
    %4394 = vmatprep.subr.mxu0 0.0
    %4395 = vmatpush1.msra.mxu0 0.0
    %4396 = vmatprep.subr.mxu0 0.0
    %4397 = vmatpush1.msra.mxu0 0.0
    %4398 = vmatprep.subr.mxu0 0.0
    %4399 = vmatpush1.msra.mxu0 0.0
    %4400 = vmatprep.subr.mxu0 0.0
    %4401 = vmatpush1.msra.mxu0 0.0
    %4402 = vmatprep.subr.mxu0 0.0
    %4403 = vmatpush1.msra.mxu0 0.0
    %4404 = vmatprep.subr.mxu0 0.0
    %4405 = vmatpush1.msra.mxu0 0.0
    %4406 = vmatprep.subr.mxu0 0.0
    %4407 = vmatpush1.msra.mxu0 0.0
    %4408 = vmatprep.subr.mxu0 0.0
    %4409 = vmatpush1.msra.mxu0 0.0
    %4410 = vmatprep.subr.mxu0 0.0
    %4411 = vmatpush1.msra.mxu0 0.0
    %4412 = vmatprep.subr.mxu0 0.0
    %4413 = vmatpush1.msra.mxu0 0.0
    %4414 = vmatprep.subr.mxu0 0.0
    %4415 = vmatpush1.msra.mxu0 0.0
    %4416 = vmatprep.subr.mxu0 0.0
    %4417 = vmatpush1.msra.mxu0 0.0
    %4418 = vmatprep.subr.mxu0 0.0
    %4419 = vmatpush1.msra.mxu0 0.0
    %4420 = vmatprep.subr.mxu0 0.0
    %4421 = vmatpush1.msra.mxu0 0.0
    %4422 = vmatprep.subr.mxu0 0.0
    %4423 = vmatpush1.msra.mxu0 0.0
    %4424 = vmatprep.subr.mxu0 0.0
    %4425 = vmatpush1.msra.mxu0 0.0
    %4426 = vmatprep.subr.mxu0 0.0
    %4427 = vmatpush1.msra.mxu0 0.0
    %4428 = vmatprep.subr.mxu0 0.0
    %4429 = vmatpush1.msra.mxu0 0.0
    %4430 = vmatprep.subr.mxu0 0.0
    %4431 = vmatpush1.msra.mxu0 0.0
    %4432 = vmatprep.subr.mxu0 0.0
    %4433 = vmatpush1.msra.mxu0 0.0
    %4434 = vmatprep.subr.mxu0 0.0
    %4435 = vmatpush1.msra.mxu0 0.0
    %4436 = vmatprep.mubr.f32.mxu0 0.0
    %4437 = vmatmul.mubr.f32.gmra.mrb[0].mxu0 %v4370
    %v4438 = vpop.f32.mrb[0].mxu0
    %v4439 = vadd.f32 0.0, %v4438
    %v4440 = vpop.f32.mrb[0].mxu0
    %4441 = vdwg.mxu0
    %v4443 = vsel %vm410, %v4439, 0
    %4445 = vmatprep.subr.mxu0 0.0
    %4446 = vmatpush1.msra.mxu0 %v4036
    %4447 = vmatprep.subr.mxu0 0.0
    %4448 = vmatpush1.msra.mxu0 0.0
    %4449 = vmatprep.subr.mxu0 0.0
    %4450 = vmatpush1.msra.mxu0 0.0
    %4451 = vmatprep.subr.mxu0 0.0
    %4452 = vmatpush1.msra.mxu0 0.0
    %4453 = vmatprep.subr.mxu0 0.0
    %4454 = vmatpush1.msra.mxu0 0.0
    %4455 = vmatprep.subr.mxu0 0.0
    %4456 = vmatpush1.msra.mxu0 0.0
    %4457 = vmatprep.subr.mxu0 0.0
    %4458 = vmatpush1.msra.mxu0 0.0
    %4459 = vmatprep.subr.mxu0 0.0
    %4460 = vmatpush1.msra.mxu0 0.0
    %4461 = vmatprep.subr.mxu0 0.0
    %4462 = vmatpush1.msra.mxu0 0.0
    %4463 = vmatprep.subr.mxu0 0.0
    %4464 = vmatpush1.msra.mxu0 0.0
    %4465 = vmatprep.subr.mxu0 0.0
    %4466 = vmatpush1.msra.mxu0 0.0
    %4467 = vmatprep.subr.mxu0 0.0
    %4468 = vmatpush1.msra.mxu0 0.0
    %4469 = vmatprep.subr.mxu0 0.0
    %4470 = vmatpush1.msra.mxu0 0.0
    %4471 = vmatprep.subr.mxu0 0.0
    %4472 = vmatpush1.msra.mxu0 0.0
    %4473 = vmatprep.subr.mxu0 0.0
    %4474 = vmatpush1.msra.mxu0 0.0
    %4475 = vmatprep.subr.mxu0 0.0
    %4476 = vmatpush1.msra.mxu0 0.0
    %4477 = vmatprep.subr.mxu0 0.0
    %4478 = vmatpush1.msra.mxu0 0.0
    %4479 = vmatprep.subr.mxu0 0.0
    %4480 = vmatpush1.msra.mxu0 0.0
    %4481 = vmatprep.subr.mxu0 0.0
    %4482 = vmatpush1.msra.mxu0 0.0
    %4483 = vmatprep.subr.mxu0 0.0
    %4484 = vmatpush1.msra.mxu0 0.0
    %4485 = vmatprep.subr.mxu0 0.0
    %4486 = vmatpush1.msra.mxu0 0.0
    %4487 = vmatprep.subr.mxu0 0.0
    %4488 = vmatpush1.msra.mxu0 0.0
    %4489 = vmatprep.subr.mxu0 0.0
    %4490 = vmatpush1.msra.mxu0 0.0
    %4491 = vmatprep.subr.mxu0 0.0
    %4492 = vmatpush1.msra.mxu0 0.0
    %4493 = vmatprep.subr.mxu0 0.0
    %4494 = vmatpush1.msra.mxu0 0.0
    %4495 = vmatprep.subr.mxu0 0.0
    %4496 = vmatpush1.msra.mxu0 0.0
    %4497 = vmatprep.subr.mxu0 0.0
    %4498 = vmatpush1.msra.mxu0 0.0
    %4499 = vmatprep.subr.mxu0 0.0
    %4500 = vmatpush1.msra.mxu0 0.0
    %4501 = vmatprep.subr.mxu0 0.0
    %4502 = vmatpush1.msra.mxu0 0.0
    %4503 = vmatprep.subr.mxu0 0.0
    %4504 = vmatpush1.msra.mxu0 0.0
    %4505 = vmatprep.subr.mxu0 0.0
    %4506 = vmatpush1.msra.mxu0 0.0
    %4507 = vmatprep.subr.mxu0 0.0
    %4508 = vmatpush1.msra.mxu0 0.0
    %4509 = vmatprep.mubr.f32.mxu0 0.0
    %4510 = vmatmul.mubr.f32.gmra.mrb[0].mxu0 %v4443
    %v4511 = vpop.f32.mrb[0].mxu0
    %v4512 = vadd.f32 0.0, %v4511
    %v4513 = vpop.f32.mrb[0].mxu0
    %4514 = vdwg.mxu0
    %v4516 = vsel %vm410, %v3849, 0
    %4518 = vmatprep.subr.mxu0 0.0
    %4519 = vmatpush1.msra.mxu0 %v3440
    %4520 = vmatprep.subr.mxu0 0.0
    %4521 = vmatpush1.msra.mxu0 0.0
    %4522 = vmatprep.subr.mxu0 0.0
    %4523 = vmatpush1.msra.mxu0 0.0
    %4524 = vmatprep.subr.mxu0 0.0
    %4525 = vmatpush1.msra.mxu0 0.0
    %4526 = vmatprep.subr.mxu0 0.0
    %4527 = vmatpush1.msra.mxu0 0.0
    %4528 = vmatprep.subr.mxu0 0.0
    %4529 = vmatpush1.msra.mxu0 0.0
    %4530 = vmatprep.subr.mxu0 0.0
    %4531 = vmatpush1.msra.mxu0 0.0
    %4532 = vmatprep.subr.mxu0 0.0
    %4533 = vmatpush1.msra.mxu0 0.0
    %4534 = vmatprep.subr.mxu0 0.0
    %4535 = vmatpush1.msra.mxu0 0.0
    %4536 = vmatprep.subr.mxu0 0.0
    %4537 = vmatpush1.msra.mxu0 0.0
    %4538 = vmatprep.subr.mxu0 0.0
    %4539 = vmatpush1.msra.mxu0 0.0
    %4540 = vmatprep.subr.mxu0 0.0
    %4541 = vmatpush1.msra.mxu0 0.0
    %4542 = vmatprep.subr.mxu0 0.0
    %4543 = vmatpush1.msra.mxu0 0.0
    %4544 = vmatprep.subr.mxu0 0.0
    %4545 = vmatpush1.msra.mxu0 0.0
    %4546 = vmatprep.subr.mxu0 0.0
    %4547 = vmatpush1.msra.mxu0 0.0
    %4548 = vmatprep.subr.mxu0 0.0
    %4549 = vmatpush1.msra.mxu0 0.0
    %4550 = vmatprep.subr.mxu0 0.0
    %4551 = vmatpush1.msra.mxu0 0.0
    %4552 = vmatprep.subr.mxu0 0.0
    %4553 = vmatpush1.msra.mxu0 0.0
    %4554 = vmatprep.subr.mxu0 0.0
    %4555 = vmatpush1.msra.mxu0 0.0
    %4556 = vmatprep.subr.mxu0 0.0
    %4557 = vmatpush1.msra.mxu0 0.0
    %4558 = vmatprep.subr.mxu0 0.0
    %4559 = vmatpush1.msra.mxu0 0.0
    %4560 = vmatprep.subr.mxu0 0.0
    %4561 = vmatpush1.msra.mxu0 0.0
    %4562 = vmatprep.subr.mxu0 0.0
    %4563 = vmatpush1.msra.mxu0 0.0
    %4564 = vmatprep.subr.mxu0 0.0
    %4565 = vmatpush1.msra.mxu0 0.0
    %4566 = vmatprep.subr.mxu0 0.0
    %4567 = vmatpush1.msra.mxu0 0.0
    %4568 = vmatprep.subr.mxu0 0.0
    %4569 = vmatpush1.msra.mxu0 0.0
    %4570 = vmatprep.subr.mxu0 0.0
    %4571 = vmatpush1.msra.mxu0 0.0
    %4572 = vmatprep.subr.mxu0 0.0
    %4573 = vmatpush1.msra.mxu0 0.0
    %4574 = vmatprep.subr.mxu0 0.0
    %4575 = vmatpush1.msra.mxu0 0.0
    %4576 = vmatprep.subr.mxu0 0.0
    %4577 = vmatpush1.msra.mxu0 0.0
    %4578 = vmatprep.subr.mxu0 0.0
    %4579 = vmatpush1.msra.mxu0 0.0
    %4580 = vmatprep.subr.mxu0 0.0
    %4581 = vmatpush1.msra.mxu0 0.0
    %4582 = vmatprep.mubr.f32.mxu0 0.0
    %4583 = vmatmul.mubr.f32.gmra.mrb[0].mxu0 %v4516
    %v4584 = vpop.f32.mrb[0].mxu0
    %v4585 = vadd.f32 %v4512, %v4584
    %v4586 = vpop.f32.mrb[0].mxu0
    %4587 = vdwg.mxu0
    %v4589 = vsel %vm410, %v4115, 0
    %v4592 = vsel %vm410, %v4196, 0
    %4594 = vmatprep.subr.mxu0 0.0
    %4595 = vmatpush1.xpose.msra.mxu0 %v4592
    %4596 = vmatprep.subr.mxu0 0.0
    %4597 = vmatpush1.xpose.msra.mxu0 0.0
    %4598 = vmatprep.subr.mxu0 0.0
    %4599 = vmatpush1.xpose.msra.mxu0 0.0
    %4600 = vmatprep.subr.mxu0 0.0
    %4601 = vmatpush1.xpose.msra.mxu0 0.0
    %4602 = vmatprep.subr.mxu0 0.0
    %4603 = vmatpush1.xpose.msra.mxu0 0.0
    %4604 = vmatprep.subr.mxu0 0.0
    %4605 = vmatpush1.xpose.msra.mxu0 0.0
    %4606 = vmatprep.subr.mxu0 0.0
    %4607 = vmatpush1.xpose.msra.mxu0 0.0
    %4608 = vmatprep.subr.mxu0 0.0
    %4609 = vmatpush1.xpose.msra.mxu0 0.0
    %4610 = vmatprep.subr.mxu0 0.0
    %4611 = vmatpush1.xpose.msra.mxu0 0.0
    %4612 = vmatprep.subr.mxu0 0.0
    %4613 = vmatpush1.xpose.msra.mxu0 0.0
    %4614 = vmatprep.subr.mxu0 0.0
    %4615 = vmatpush1.xpose.msra.mxu0 0.0
    %4616 = vmatprep.subr.mxu0 0.0
    %4617 = vmatpush1.xpose.msra.mxu0 0.0
    %4618 = vmatprep.subr.mxu0 0.0
    %4619 = vmatpush1.xpose.msra.mxu0 0.0
    %4620 = vmatprep.subr.mxu0 0.0
    %4621 = vmatpush1.xpose.msra.mxu0 0.0
    %4622 = vmatprep.subr.mxu0 0.0
    %4623 = vmatpush1.xpose.msra.mxu0 0.0
    %4624 = vmatprep.subr.mxu0 0.0
    %4625 = vmatpush1.xpose.msra.mxu0 0.0
    %4626 = vmatprep.subr.mxu0 0.0
    %4627 = vmatpush1.xpose.msra.mxu0 0.0
    %4628 = vmatprep.subr.mxu0 0.0
    %4629 = vmatpush1.xpose.msra.mxu0 0.0
    %4630 = vmatprep.subr.mxu0 0.0
    %4631 = vmatpush1.xpose.msra.mxu0 0.0
    %4632 = vmatprep.subr.mxu0 0.0
    %4633 = vmatpush1.xpose.msra.mxu0 0.0
    %4634 = vmatprep.subr.mxu0 0.0
    %4635 = vmatpush1.xpose.msra.mxu0 0.0
    %4636 = vmatprep.subr.mxu0 0.0
    %4637 = vmatpush1.xpose.msra.mxu0 0.0
    %4638 = vmatprep.subr.mxu0 0.0
    %4639 = vmatpush1.xpose.msra.mxu0 0.0
    %4640 = vmatprep.subr.mxu0 0.0
    %4641 = vmatpush1.xpose.msra.mxu0 0.0
    %4642 = vmatprep.subr.mxu0 0.0
    %4643 = vmatpush1.xpose.msra.mxu0 0.0
    %4644 = vmatprep.subr.mxu0 0.0
    %4645 = vmatpush1.xpose.msra.mxu0 0.0
    %4646 = vmatprep.subr.mxu0 0.0
    %4647 = vmatpush1.xpose.msra.mxu0 0.0
    %4648 = vmatprep.subr.mxu0 0.0
    %4649 = vmatpush1.xpose.msra.mxu0 0.0
    %4650 = vmatprep.subr.mxu0 0.0
    %4651 = vmatpush1.xpose.msra.mxu0 0.0
    %4652 = vmatprep.subr.mxu0 0.0
    %4653 = vmatpush1.xpose.msra.mxu0 0.0
    %4654 = vmatprep.subr.mxu0 0.0
    %4655 = vmatpush1.xpose.msra.mxu0 0.0
    %4656 = vmatprep.subr.mxu0 0.0
    %4657 = vmatpush1.xpose.msra.mxu0 0.0
    %4658 = vmatprep.mubr.f32.mxu0 0.0
    %4659 = vmatmul.mubr.f32.gmra.mrb[0].mxu0 %v4589
    %v4660 = vpop.f32.mrb[0].mxu0
    %v4661 = vadd.f32 0.0, %v4660
    %v4662 = vpop.f32.mrb[0].mxu0
    %4663 = vdwg.mxu0
    %v4664 = vmul.f32 %v4661, 0.35355338
    %v4665 = vadd.f32 %v4664, %v657
    %v4666 = vsel %vm410, %v4665, -inf
    %4667 = vmax.xlane.f32.xlu0 %v4666
    %v4668 = vpop.xlane.xlu0 %4667
    %v4669 = vsub.f32 %v4665, %v4668
    %v4670 = vmul.f32 %v4669, 1.442695
    %v4671 = vpow.pop %v4670
    %v4672 = vsel %vm410, %v4671, 0.0
    %4673 = vadd.xlane.f32.xlu0 %v4672
    %v4674 = vpop.xlane.xlu0 %4673
    %v4675 = vrcp.pop %v4674
    %v4676 = vmul.f32 %v4671, %v4675
    %v4678 = vsel %vm410, %v4676, 0
    %4680 = vmatprep.subr.mxu0 0.0
    %4681 = vmatpush1.msra.mxu0 %v4277
    %4682 = vmatprep.subr.mxu0 0.0
    %4683 = vmatpush1.msra.mxu0 0.0
    %4684 = vmatprep.subr.mxu0 0.0
    %4685 = vmatpush1.msra.mxu0 0.0
    %4686 = vmatprep.subr.mxu0 0.0
    %4687 = vmatpush1.msra.mxu0 0.0
    %4688 = vmatprep.subr.mxu0 0.0
    %4689 = vmatpush1.msra.mxu0 0.0
    %4690 = vmatprep.subr.mxu0 0.0
    %4691 = vmatpush1.msra.mxu0 0.0
    %4692 = vmatprep.subr.mxu0 0.0
    %4693 = vmatpush1.msra.mxu0 0.0
    %4694 = vmatprep.subr.mxu0 0.0
    %4695 = vmatpush1.msra.mxu0 0.0
    %4696 = vmatprep.subr.mxu0 0.0
    %4697 = vmatpush1.msra.mxu0 0.0
    %4698 = vmatprep.subr.mxu0 0.0
    %4699 = vmatpush1.msra.mxu0 0.0
    %4700 = vmatprep.subr.mxu0 0.0
    %4701 = vmatpush1.msra.mxu0 0.0
    %4702 = vmatprep.subr.mxu0 0.0
    %4703 = vmatpush1.msra.mxu0 0.0
    %4704 = vmatprep.subr.mxu0 0.0
    %4705 = vmatpush1.msra.mxu0 0.0
    %4706 = vmatprep.subr.mxu0 0.0
    %4707 = vmatpush1.msra.mxu0 0.0
    %4708 = vmatprep.subr.mxu0 0.0
    %4709 = vmatpush1.msra.mxu0 0.0
    %4710 = vmatprep.subr.mxu0 0.0
    %4711 = vmatpush1.msra.mxu0 0.0
    %4712 = vmatprep.subr.mxu0 0.0
    %4713 = vmatpush1.msra.mxu0 0.0
    %4714 = vmatprep.subr.mxu0 0.0
    %4715 = vmatpush1.msra.mxu0 0.0
    %4716 = vmatprep.subr.mxu0 0.0
    %4717 = vmatpush1.msra.mxu0 0.0
    %4718 = vmatprep.subr.mxu0 0.0
    %4719 = vmatpush1.msra.mxu0 0.0
    %4720 = vmatprep.subr.mxu0 0.0
    %4721 = vmatpush1.msra.mxu0 0.0
    %4722 = vmatprep.subr.mxu0 0.0
    %4723 = vmatpush1.msra.mxu0 0.0
    %4724 = vmatprep.subr.mxu0 0.0
    %4725 = vmatpush1.msra.mxu0 0.0
    %4726 = vmatprep.subr.mxu0 0.0
    %4727 = vmatpush1.msra.mxu0 0.0
    %4728 = vmatprep.subr.mxu0 0.0
    %4729 = vmatpush1.msra.mxu0 0.0
    %4730 = vmatprep.subr.mxu0 0.0
    %4731 = vmatpush1.msra.mxu0 0.0
    %4732 = vmatprep.subr.mxu0 0.0
    %4733 = vmatpush1.msra.mxu0 0.0
    %4734 = vmatprep.subr.mxu0 0.0
    %4735 = vmatpush1.msra.mxu0 0.0
    %4736 = vmatprep.subr.mxu0 0.0
    %4737 = vmatpush1.msra.mxu0 0.0
    %4738 = vmatprep.subr.mxu0 0.0
    %4739 = vmatpush1.msra.mxu0 0.0
    %4740 = vmatprep.subr.mxu0 0.0
    %4741 = vmatpush1.msra.mxu0 0.0
    %4742 = vmatprep.subr.mxu0 0.0
    %4743 = vmatpush1.msra.mxu0 0.0
    %4744 = vmatprep.mubr.f32.mxu0 0.0
    %4745 = vmatmul.mubr.f32.gmra.mrb[0].mxu0 %v4678
    %v4746 = vpop.f32.mrb[0].mxu0
    %v4747 = vadd.f32 0.0, %v4746
    %v4748 = vpop.f32.mrb[0].mxu0
    %4749 = vdwg.mxu0
    %v4751 = vsel %vm410, %v4747, 0
    %4753 = vmatprep.subr.mxu0 0.0
    %4754 = vmatpush1.msra.mxu0 %v4036
    %4755 = vmatprep.subr.mxu0 0.0
    %4756 = vmatpush1.msra.mxu0 0.0
    %4757 = vmatprep.subr.mxu0 0.0
    %4758 = vmatpush1.msra.mxu0 0.0
    %4759 = vmatprep.subr.mxu0 0.0
    %4760 = vmatpush1.msra.mxu0 0.0
    %4761 = vmatprep.subr.mxu0 0.0
    %4762 = vmatpush1.msra.mxu0 0.0
    %4763 = vmatprep.subr.mxu0 0.0
    %4764 = vmatpush1.msra.mxu0 0.0
    %4765 = vmatprep.subr.mxu0 0.0
    %4766 = vmatpush1.msra.mxu0 0.0
    %4767 = vmatprep.subr.mxu0 0.0
    %4768 = vmatpush1.msra.mxu0 0.0
    %4769 = vmatprep.subr.mxu0 0.0
    %4770 = vmatpush1.msra.mxu0 0.0
    %4771 = vmatprep.subr.mxu0 0.0
    %4772 = vmatpush1.msra.mxu0 0.0
    %4773 = vmatprep.subr.mxu0 0.0
    %4774 = vmatpush1.msra.mxu0 0.0
    %4775 = vmatprep.subr.mxu0 0.0
    %4776 = vmatpush1.msra.mxu0 0.0
    %4777 = vmatprep.subr.mxu0 0.0
    %4778 = vmatpush1.msra.mxu0 0.0
    %4779 = vmatprep.subr.mxu0 0.0
    %4780 = vmatpush1.msra.mxu0 0.0
    %4781 = vmatprep.subr.mxu0 0.0
    %4782 = vmatpush1.msra.mxu0 0.0
    %4783 = vmatprep.subr.mxu0 0.0
    %4784 = vmatpush1.msra.mxu0 0.0
    %4785 = vmatprep.subr.mxu0 0.0
    %4786 = vmatpush1.msra.mxu0 0.0
    %4787 = vmatprep.subr.mxu0 0.0
    %4788 = vmatpush1.msra.mxu0 0.0
    %4789 = vmatprep.subr.mxu0 0.0
    %4790 = vmatpush1.msra.mxu0 0.0
    %4791 = vmatprep.subr.mxu0 0.0
    %4792 = vmatpush1.msra.mxu0 0.0
    %4793 = vmatprep.subr.mxu0 0.0
    %4794 = vmatpush1.msra.mxu0 0.0
    %4795 = vmatprep.subr.mxu0 0.0
    %4796 = vmatpush1.msra.mxu0 0.0
    %4797 = vmatprep.subr.mxu0 0.0
    %4798 = vmatpush1.msra.mxu0 0.0
    %4799 = vmatprep.subr.mxu0 0.0
    %4800 = vmatpush1.msra.mxu0 0.0
    %4801 = vmatprep.subr.mxu0 0.0
    %4802 = vmatpush1.msra.mxu0 0.0
    %4803 = vmatprep.subr.mxu0 0.0
    %4804 = vmatpush1.msra.mxu0 0.0
    %4805 = vmatprep.subr.mxu0 0.0
    %4806 = vmatpush1.msra.mxu0 0.0
    %4807 = vmatprep.subr.mxu0 0.0
    %4808 = vmatpush1.msra.mxu0 0.0
    %4809 = vmatprep.subr.mxu0 0.0
    %4810 = vmatpush1.msra.mxu0 0.0
    %4811 = vmatprep.subr.mxu0 0.0
    %4812 = vmatpush1.msra.mxu0 0.0
    %4813 = vmatprep.subr.mxu0 0.0
    %4814 = vmatpush1.msra.mxu0 0.0
    %4815 = vmatprep.subr.mxu0 0.0
    %4816 = vmatpush1.msra.mxu0 0.0
    %4817 = vmatprep.mubr.f32.mxu0 0.0
    %4818 = vmatmul.mubr.f32.gmra.mrb[0].mxu0 %v4751
    %v4819 = vpop.f32.mrb[0].mxu0
    %v4820 = vadd.f32 0.0, %v4819
    %v4821 = vpop.f32.mrb[0].mxu0
    %4822 = vdwg.mxu0
    %v4824 = vsel %vm410, %v4011, 0
    %4826 = vmatprep.subr.mxu0 0.0
    %4827 = vmatpush1.msra.mxu0 %v3440
    %4828 = vmatprep.subr.mxu0 0.0
    %4829 = vmatpush1.msra.mxu0 0.0
    %4830 = vmatprep.subr.mxu0 0.0
    %4831 = vmatpush1.msra.mxu0 0.0
    %4832 = vmatprep.subr.mxu0 0.0
    %4833 = vmatpush1.msra.mxu0 0.0
    %4834 = vmatprep.subr.mxu0 0.0
    %4835 = vmatpush1.msra.mxu0 0.0
    %4836 = vmatprep.subr.mxu0 0.0
    %4837 = vmatpush1.msra.mxu0 0.0
    %4838 = vmatprep.subr.mxu0 0.0
    %4839 = vmatpush1.msra.mxu0 0.0
    %4840 = vmatprep.subr.mxu0 0.0
    %4841 = vmatpush1.msra.mxu0 0.0
    %4842 = vmatprep.subr.mxu0 0.0
    %4843 = vmatpush1.msra.mxu0 0.0
    %4844 = vmatprep.subr.mxu0 0.0
    %4845 = vmatpush1.msra.mxu0 0.0
    %4846 = vmatprep.subr.mxu0 0.0
    %4847 = vmatpush1.msra.mxu0 0.0
    %4848 = vmatprep.subr.mxu0 0.0
    %4849 = vmatpush1.msra.mxu0 0.0
    %4850 = vmatprep.subr.mxu0 0.0
    %4851 = vmatpush1.msra.mxu0 0.0
    %4852 = vmatprep.subr.mxu0 0.0
    %4853 = vmatpush1.msra.mxu0 0.0
    %4854 = vmatprep.subr.mxu0 0.0
    %4855 = vmatpush1.msra.mxu0 0.0
    %4856 = vmatprep.subr.mxu0 0.0
    %4857 = vmatpush1.msra.mxu0 0.0
    %4858 = vmatprep.subr.mxu0 0.0
    %4859 = vmatpush1.msra.mxu0 0.0
    %4860 = vmatprep.subr.mxu0 0.0
    %4861 = vmatpush1.msra.mxu0 0.0
    %4862 = vmatprep.subr.mxu0 0.0
    %4863 = vmatpush1.msra.mxu0 0.0
    %4864 = vmatprep.subr.mxu0 0.0
    %4865 = vmatpush1.msra.mxu0 0.0
    %4866 = vmatprep.subr.mxu0 0.0
    %4867 = vmatpush1.msra.mxu0 0.0
    %4868 = vmatprep.subr.mxu0 0.0
    %4869 = vmatpush1.msra.mxu0 0.0
    %4870 = vmatprep.subr.mxu0 0.0
    %4871 = vmatpush1.msra.mxu0 0.0
    %4872 = vmatprep.subr.mxu0 0.0
    %4873 = vmatpush1.msra.mxu0 0.0
    %4874 = vmatprep.subr.mxu0 0.0
    %4875 = vmatpush1.msra.mxu0 0.0
    %4876 = vmatprep.subr.mxu0 0.0
    %4877 = vmatpush1.msra.mxu0 0.0
    %4878 = vmatprep.subr.mxu0 0.0
    %4879 = vmatpush1.msra.mxu0 0.0
    %4880 = vmatprep.subr.mxu0 0.0
    %4881 = vmatpush1.msra.mxu0 0.0
    %4882 = vmatprep.subr.mxu0 0.0
    %4883 = vmatpush1.msra.mxu0 0.0
    %4884 = vmatprep.subr.mxu0 0.0
    %4885 = vmatpush1.msra.mxu0 0.0
    %4886 = vmatprep.subr.mxu0 0.0
    %4887 = vmatpush1.msra.mxu0 0.0
    %4888 = vmatprep.subr.mxu0 0.0
    %4889 = vmatpush1.msra.mxu0 0.0
    %4890 = vmatprep.mubr.f32.mxu0 0.0
    %4891 = vmatmul.mubr.f32.gmra.mrb[0].mxu0 %v4824
    %v4892 = vpop.f32.mrb[0].mxu0
    %v4893 = vadd.f32 %v4820, %v4892
    %v4894 = vpop.f32.mrb[0].mxu0
    %4895 = vdwg.mxu0
    %s4896 = scalar_lea.vmem %s5, 192
    %v4897 = vld [vmem:[%s4896] sm:$0xff]
    %v4898 = vld [vmem:[%s4896 + $0x8] sm:$0xff]
    %v4899 = vld [vmem:[%s4896 + $0x10] sm:$0xff]
    %v4900 = vld [vmem:[%s4896 + $0x18] sm:$0xff]
    %s4901 = scalar_lea.vmem %s6, 6
    %v4902 = vld [vmem:[%s4901] sm:$0x1]
    %s4903 = scalar_lea.vmem %s7, 192
    %v4904 = vld [vmem:[%s4903] sm:$0xff]
    %v4905 = vld [vmem:[%s4903 + $0x8] sm:$0xff]
    %v4906 = vld [vmem:[%s4903 + $0x10] sm:$0xff]
    %v4907 = vld [vmem:[%s4903 + $0x18] sm:$0xff]
    %s4908 = scalar_lea.vmem %s8, 6
    %v4909 = vld [vmem:[%s4908] sm:$0x1]
    %s4910 = scalar_lea.vmem %s9, 192
    %v4911 = vld [vmem:[%s4910] sm:$0xff]
    %v4912 = vld [vmem:[%s4910 + $0x8] sm:$0xff]
    %v4913 = vld [vmem:[%s4910 + $0x10] sm:$0xff]
    %v4914 = vld [vmem:[%s4910 + $0x18] sm:$0xff]
    %s4915 = scalar_lea.vmem %s10, 6
    %v4916 = vld [vmem:[%s4915] sm:$0x1]
    %s4917 = scalar_lea.vmem %s11, 48
    %v4918 = vld [vmem:[%s4917] sm:$0xff]
    %v4920 = vlaneseq
    %v4921 = vshrl.u32 %v4920, 7
    %v4922 = vsub.s32 0, %v4921
    %v4923 = vrot.slane %v4902, %v4922
    %4925 = vmatprep.subr.mxu0 0.0
    %4926 = vmatpush1.msra.mxu0 %v4897
    %4927 = vmatprep.subr.mxu0 0.0
    %4928 = vmatpush1.msra.mxu0 %v4898
    %4929 = vmatprep.subr.mxu0 0.0
    %4930 = vmatpush1.msra.mxu0 %v4899
    %4931 = vmatprep.subr.mxu0 0.0
    %4932 = vmatpush1.msra.mxu0 %v4900
    %4933 = vmatprep.subr.mxu0 0.0
    %4934 = vmatpush1.msra.mxu0 0.0
    %4935 = vmatprep.subr.mxu0 0.0
    %4936 = vmatpush1.msra.mxu0 0.0
    %4937 = vmatprep.subr.mxu0 0.0
    %4938 = vmatpush1.msra.mxu0 0.0
    %4939 = vmatprep.subr.mxu0 0.0
    %4940 = vmatpush1.msra.mxu0 0.0
    %4941 = vmatprep.subr.mxu0 0.0
    %4942 = vmatpush1.msra.mxu0 0.0
    %4943 = vmatprep.subr.mxu0 0.0
    %4944 = vmatpush1.msra.mxu0 0.0
    %4945 = vmatprep.subr.mxu0 0.0
    %4946 = vmatpush1.msra.mxu0 0.0
    %4947 = vmatprep.subr.mxu0 0.0
    %4948 = vmatpush1.msra.mxu0 0.0
    %4949 = vmatprep.subr.mxu0 0.0
    %4950 = vmatpush1.msra.mxu0 0.0
    %4951 = vmatprep.subr.mxu0 0.0
    %4952 = vmatpush1.msra.mxu0 0.0
    %4953 = vmatprep.subr.mxu0 0.0
    %4954 = vmatpush1.msra.mxu0 0.0
    %4955 = vmatprep.subr.mxu0 0.0
    %4956 = vmatpush1.msra.mxu0 0.0
    %4957 = vmatprep.subr.mxu0 0.0
    %4958 = vmatpush1.msra.mxu0 0.0
    %4959 = vmatprep.subr.mxu0 0.0
    %4960 = vmatpush1.msra.mxu0 0.0
    %4961 = vmatprep.subr.mxu0 0.0
    %4962 = vmatpush1.msra.mxu0 0.0
    %4963 = vmatprep.subr.mxu0 0.0
    %4964 = vmatpush1.msra.mxu0 0.0
    %4965 = vmatprep.subr.mxu0 0.0
    %4966 = vmatpush1.msra.mxu0 0.0
    %4967 = vmatprep.subr.mxu0 0.0
    %4968 = vmatpush1.msra.mxu0 0.0
    %4969 = vmatprep.subr.mxu0 0.0
    %4970 = vmatpush1.msra.mxu0 0.0
    %4971 = vmatprep.subr.mxu0 0.0
    %4972 = vmatpush1.msra.mxu0 0.0
    %4973 = vmatprep.subr.mxu0 0.0
    %4974 = vmatpush1.msra.mxu0 0.0
    %4975 = vmatprep.subr.mxu0 0.0
    %4976 = vmatpush1.msra.mxu0 0.0
    %4977 = vmatprep.subr.mxu0 0.0
    %4978 = vmatpush1.msra.mxu0 0.0
    %4979 = vmatprep.subr.mxu0 0.0
    %4980 = vmatpush1.msra.mxu0 0.0
    %4981 = vmatprep.subr.mxu0 0.0
    %4982 = vmatpush1.msra.mxu0 0.0
    %4983 = vmatprep.subr.mxu0 0.0
    %4984 = vmatpush1.msra.mxu0 0.0
    %4985 = vmatprep.subr.mxu0 0.0
    %4986 = vmatpush1.msra.mxu0 0.0
    %4987 = vmatprep.subr.mxu0 0.0
    %4988 = vmatpush1.msra.mxu0 0.0
    %4989 = vmatprep.mubr.f32.mxu0 0.0
    %4990 = vmatmul.mubr.f32.gmra.mrb[0].mxu0 %v3448
    %v4991 = vpop.f32.mrb[0].mxu0
    %v4992 = vadd.f32 %v4923, %v4991
    %v4993 = vpop.f32.mrb[0].mxu0
    %4994 = vmatprep.mubr.f32.mxu0 0.0
    %4995 = vmatmul.mubr.f32.gmra.mrb[0].mxu0 %v3451
    %v4996 = vpop.f32.mrb[0].mxu0
    %v4997 = vadd.f32 %v4923, %v4996
    %v4998 = vpop.f32.mrb[0].mxu0
    %4999 = vdwg.mxu0
    %v5001 = vlaneseq
    %v5002 = vshrl.u32 %v5001, 7
    %v5003 = vsub.s32 0, %v5002
    %v5004 = vrot.slane %v4909, %v5003
    %5006 = vmatprep.subr.mxu0 0.0
    %5007 = vmatpush1.msra.mxu0 %v4904
    %5008 = vmatprep.subr.mxu0 0.0
    %5009 = vmatpush1.msra.mxu0 %v4905
    %5010 = vmatprep.subr.mxu0 0.0
    %5011 = vmatpush1.msra.mxu0 %v4906
    %5012 = vmatprep.subr.mxu0 0.0
    %5013 = vmatpush1.msra.mxu0 %v4907
    %5014 = vmatprep.subr.mxu0 0.0
    %5015 = vmatpush1.msra.mxu0 0.0
    %5016 = vmatprep.subr.mxu0 0.0
    %5017 = vmatpush1.msra.mxu0 0.0
    %5018 = vmatprep.subr.mxu0 0.0
    %5019 = vmatpush1.msra.mxu0 0.0
    %5020 = vmatprep.subr.mxu0 0.0
    %5021 = vmatpush1.msra.mxu0 0.0
    %5022 = vmatprep.subr.mxu0 0.0
    %5023 = vmatpush1.msra.mxu0 0.0
    %5024 = vmatprep.subr.mxu0 0.0
    %5025 = vmatpush1.msra.mxu0 0.0
    %5026 = vmatprep.subr.mxu0 0.0
    %5027 = vmatpush1.msra.mxu0 0.0
    %5028 = vmatprep.subr.mxu0 0.0
    %5029 = vmatpush1.msra.mxu0 0.0
    %5030 = vmatprep.subr.mxu0 0.0
    %5031 = vmatpush1.msra.mxu0 0.0
    %5032 = vmatprep.subr.mxu0 0.0
    %5033 = vmatpush1.msra.mxu0 0.0
    %5034 = vmatprep.subr.mxu0 0.0
    %5035 = vmatpush1.msra.mxu0 0.0
    %5036 = vmatprep.subr.mxu0 0.0
    %5037 = vmatpush1.msra.mxu0 0.0
    %5038 = vmatprep.subr.mxu0 0.0
    %5039 = vmatpush1.msra.mxu0 0.0
    %5040 = vmatprep.subr.mxu0 0.0
    %5041 = vmatpush1.msra.mxu0 0.0
    %5042 = vmatprep.subr.mxu0 0.0
    %5043 = vmatpush1.msra.mxu0 0.0
    %5044 = vmatprep.subr.mxu0 0.0
    %5045 = vmatpush1.msra.mxu0 0.0
    %5046 = vmatprep.subr.mxu0 0.0
    %5047 = vmatpush1.msra.mxu0 0.0
    %5048 = vmatprep.subr.mxu0 0.0
    %5049 = vmatpush1.msra.mxu0 0.0
    %5050 = vmatprep.subr.mxu0 0.0
    %5051 = vmatpush1.msra.mxu0 0.0
    %5052 = vmatprep.subr.mxu0 0.0
    %5053 = vmatpush1.msra.mxu0 0.0
    %5054 = vmatprep.subr.mxu0 0.0
    %5055 = vmatpush1.msra.mxu0 0.0
    %5056 = vmatprep.subr.mxu0 0.0
    %5057 = vmatpush1.msra.mxu0 0.0
    %5058 = vmatprep.subr.mxu0 0.0
    %5059 = vmatpush1.msra.mxu0 0.0
    %5060 = vmatprep.subr.mxu0 0.0
    %5061 = vmatpush1.msra.mxu0 0.0
    %5062 = vmatprep.subr.mxu0 0.0
    %5063 = vmatpush1.msra.mxu0 0.0
    %5064 = vmatprep.subr.mxu0 0.0
    %5065 = vmatpush1.msra.mxu0 0.0
    %5066 = vmatprep.subr.mxu0 0.0
    %5067 = vmatpush1.msra.mxu0 0.0
    %5068 = vmatprep.subr.mxu0 0.0
    %5069 = vmatpush1.msra.mxu0 0.0
    %5070 = vmatprep.mubr.f32.mxu0 0.0
    %5071 = vmatmul.mubr.f32.gmra.mrb[0].mxu0 %v3448
    %v5072 = vpop.f32.mrb[0].mxu0
    %v5073 = vadd.f32 %v5004, %v5072
    %v5074 = vpop.f32.mrb[0].mxu0
    %5075 = vmatprep.mubr.f32.mxu0 0.0
    %5076 = vmatmul.mubr.f32.gmra.mrb[0].mxu0 %v3451
    %v5077 = vpop.f32.mrb[0].mxu0
    %v5078 = vadd.f32 %v5004, %v5077
    %v5079 = vpop.f32.mrb[0].mxu0
    %5080 = vdwg.mxu0
    %v5082 = vlaneseq
    %v5083 = vshrl.u32 %v5082, 7
    %v5084 = vsub.s32 0, %v5083
    %v5085 = vrot.slane %v4916, %v5084
    %5087 = vmatprep.subr.mxu0 0.0
    %5088 = vmatpush1.msra.mxu0 %v4911
    %5089 = vmatprep.subr.mxu0 0.0
    %5090 = vmatpush1.msra.mxu0 %v4912
    %5091 = vmatprep.subr.mxu0 0.0
    %5092 = vmatpush1.msra.mxu0 %v4913
    %5093 = vmatprep.subr.mxu0 0.0
    %5094 = vmatpush1.msra.mxu0 %v4914
    %5095 = vmatprep.subr.mxu0 0.0
    %5096 = vmatpush1.msra.mxu0 0.0
    %5097 = vmatprep.subr.mxu0 0.0
    %5098 = vmatpush1.msra.mxu0 0.0
    %5099 = vmatprep.subr.mxu0 0.0
    %5100 = vmatpush1.msra.mxu0 0.0
    %5101 = vmatprep.subr.mxu0 0.0
    %5102 = vmatpush1.msra.mxu0 0.0
    %5103 = vmatprep.subr.mxu0 0.0
    %5104 = vmatpush1.msra.mxu0 0.0
    %5105 = vmatprep.subr.mxu0 0.0
    %5106 = vmatpush1.msra.mxu0 0.0
    %5107 = vmatprep.subr.mxu0 0.0
    %5108 = vmatpush1.msra.mxu0 0.0
    %5109 = vmatprep.subr.mxu0 0.0
    %5110 = vmatpush1.msra.mxu0 0.0
    %5111 = vmatprep.subr.mxu0 0.0
    %5112 = vmatpush1.msra.mxu0 0.0
    %5113 = vmatprep.subr.mxu0 0.0
    %5114 = vmatpush1.msra.mxu0 0.0
    %5115 = vmatprep.subr.mxu0 0.0
    %5116 = vmatpush1.msra.mxu0 0.0
    %5117 = vmatprep.subr.mxu0 0.0
    %5118 = vmatpush1.msra.mxu0 0.0
    %5119 = vmatprep.subr.mxu0 0.0
    %5120 = vmatpush1.msra.mxu0 0.0
    %5121 = vmatprep.subr.mxu0 0.0
    %5122 = vmatpush1.msra.mxu0 0.0
    %5123 = vmatprep.subr.mxu0 0.0
    %5124 = vmatpush1.msra.mxu0 0.0
    %5125 = vmatprep.subr.mxu0 0.0
    %5126 = vmatpush1.msra.mxu0 0.0
    %5127 = vmatprep.subr.mxu0 0.0
    %5128 = vmatpush1.msra.mxu0 0.0
    %5129 = vmatprep.subr.mxu0 0.0
    %5130 = vmatpush1.msra.mxu0 0.0
    %5131 = vmatprep.subr.mxu0 0.0
    %5132 = vmatpush1.msra.mxu0 0.0
    %5133 = vmatprep.subr.mxu0 0.0
    %5134 = vmatpush1.msra.mxu0 0.0
    %5135 = vmatprep.subr.mxu0 0.0
    %5136 = vmatpush1.msra.mxu0 0.0
    %5137 = vmatprep.subr.mxu0 0.0
    %5138 = vmatpush1.msra.mxu0 0.0
    %5139 = vmatprep.subr.mxu0 0.0
    %5140 = vmatpush1.msra.mxu0 0.0
    %5141 = vmatprep.subr.mxu0 0.0
    %5142 = vmatpush1.msra.mxu0 0.0
    %5143 = vmatprep.subr.mxu0 0.0
    %5144 = vmatpush1.msra.mxu0 0.0
    %5145 = vmatprep.subr.mxu0 0.0
    %5146 = vmatpush1.msra.mxu0 0.0
    %5147 = vmatprep.subr.mxu0 0.0
    %5148 = vmatpush1.msra.mxu0 0.0
    %5149 = vmatprep.subr.mxu0 0.0
    %5150 = vmatpush1.msra.mxu0 0.0
    %5151 = vmatprep.mubr.f32.mxu0 0.0
    %5152 = vmatmul.mubr.f32.gmra.mrb[0].mxu0 %v3448
    %v5153 = vpop.f32.mrb[0].mxu0
    %v5154 = vadd.f32 %v5085, %v5153
    %v5155 = vpop.f32.mrb[0].mxu0
    %5156 = vmatprep.mubr.f32.mxu0 0.0
    %5157 = vmatmul.mubr.f32.gmra.mrb[0].mxu0 %v3451
    %v5158 = vpop.f32.mrb[0].mxu0
    %v5159 = vadd.f32 %v5085, %v5158
    %v5160 = vpop.f32.mrb[0].mxu0
    %5161 = vdwg.mxu0
    %v5163 = vsel %vm410, %v4992, 0
    %v5166 = vsel %vm410, %v5073, 0
    %5168 = vmatprep.subr.mxu0 0.0
    %5169 = vmatpush1.xpose.msra.mxu0 %v5166
    %5170 = vmatprep.subr.mxu0 0.0
    %5171 = vmatpush1.xpose.msra.mxu0 0.0
    %5172 = vmatprep.subr.mxu0 0.0
    %5173 = vmatpush1.xpose.msra.mxu0 0.0
    %5174 = vmatprep.subr.mxu0 0.0
    %5175 = vmatpush1.xpose.msra.mxu0 0.0
    %5176 = vmatprep.subr.mxu0 0.0
    %5177 = vmatpush1.xpose.msra.mxu0 0.0
    %5178 = vmatprep.subr.mxu0 0.0
    %5179 = vmatpush1.xpose.msra.mxu0 0.0
    %5180 = vmatprep.subr.mxu0 0.0
    %5181 = vmatpush1.xpose.msra.mxu0 0.0
    %5182 = vmatprep.subr.mxu0 0.0
    %5183 = vmatpush1.xpose.msra.mxu0 0.0
    %5184 = vmatprep.subr.mxu0 0.0
    %5185 = vmatpush1.xpose.msra.mxu0 0.0
    %5186 = vmatprep.subr.mxu0 0.0
    %5187 = vmatpush1.xpose.msra.mxu0 0.0
    %5188 = vmatprep.subr.mxu0 0.0
    %5189 = vmatpush1.xpose.msra.mxu0 0.0
    %5190 = vmatprep.subr.mxu0 0.0
    %5191 = vmatpush1.xpose.msra.mxu0 0.0
    %5192 = vmatprep.subr.mxu0 0.0
    %5193 = vmatpush1.xpose.msra.mxu0 0.0
    %5194 = vmatprep.subr.mxu0 0.0
    %5195 = vmatpush1.xpose.msra.mxu0 0.0
    %5196 = vmatprep.subr.mxu0 0.0
    %5197 = vmatpush1.xpose.msra.mxu0 0.0
    %5198 = vmatprep.subr.mxu0 0.0
    %5199 = vmatpush1.xpose.msra.mxu0 0.0
    %5200 = vmatprep.subr.mxu0 0.0
    %5201 = vmatpush1.xpose.msra.mxu0 0.0
    %5202 = vmatprep.subr.mxu0 0.0
    %5203 = vmatpush1.xpose.msra.mxu0 0.0
    %5204 = vmatprep.subr.mxu0 0.0
    %5205 = vmatpush1.xpose.msra.mxu0 0.0
    %5206 = vmatprep.subr.mxu0 0.0
    %5207 = vmatpush1.xpose.msra.mxu0 0.0
    %5208 = vmatprep.subr.mxu0 0.0
    %5209 = vmatpush1.xpose.msra.mxu0 0.0
    %5210 = vmatprep.subr.mxu0 0.0
    %5211 = vmatpush1.xpose.msra.mxu0 0.0
    %5212 = vmatprep.subr.mxu0 0.0
    %5213 = vmatpush1.xpose.msra.mxu0 0.0
    %5214 = vmatprep.subr.mxu0 0.0
    %5215 = vmatpush1.xpose.msra.mxu0 0.0
    %5216 = vmatprep.subr.mxu0 0.0
    %5217 = vmatpush1.xpose.msra.mxu0 0.0
    %5218 = vmatprep.subr.mxu0 0.0
    %5219 = vmatpush1.xpose.msra.mxu0 0.0
    %5220 = vmatprep.subr.mxu0 0.0
    %5221 = vmatpush1.xpose.msra.mxu0 0.0
    %5222 = vmatprep.subr.mxu0 0.0
    %5223 = vmatpush1.xpose.msra.mxu0 0.0
    %5224 = vmatprep.subr.mxu0 0.0
    %5225 = vmatpush1.xpose.msra.mxu0 0.0
    %5226 = vmatprep.subr.mxu0 0.0
    %5227 = vmatpush1.xpose.msra.mxu0 0.0
    %5228 = vmatprep.subr.mxu0 0.0
    %5229 = vmatpush1.xpose.msra.mxu0 0.0
    %5230 = vmatprep.subr.mxu0 0.0
    %5231 = vmatpush1.xpose.msra.mxu0 0.0
    %5232 = vmatprep.mubr.f32.mxu0 0.0
    %5233 = vmatmul.mubr.f32.gmra.mrb[0].mxu0 %v5163
    %v5234 = vpop.f32.mrb[0].mxu0
    %v5235 = vadd.f32 0.0, %v5234
    %v5236 = vpop.f32.mrb[0].mxu0
    %5237 = vdwg.mxu0
    %v5238 = vmul.f32 %v5235, 0.35355338
    %v5239 = vadd.f32 %v5238, %v491
    %v5240 = vsel %vm410, %v5239, -inf
    %5241 = vmax.xlane.f32.xlu0 %v5240
    %v5242 = vpop.xlane.xlu0 %5241
    %v5243 = vsub.f32 %v5239, %v5242
    %v5244 = vmul.f32 %v5243, 1.442695
    %v5245 = vpow.pop %v5244
    %v5246 = vsel %vm410, %v5245, 0.0
    %5247 = vadd.xlane.f32.xlu0 %v5246
    %v5248 = vpop.xlane.xlu0 %5247
    %v5249 = vrcp.pop %v5248
    %v5250 = vmul.f32 %v5245, %v5249
    %v5252 = vsel %vm410, %v5250, 0
    %5254 = vmatprep.subr.mxu0 0.0
    %5255 = vmatpush1.msra.mxu0 %v5154
    %5256 = vmatprep.subr.mxu0 0.0
    %5257 = vmatpush1.msra.mxu0 0.0
    %5258 = vmatprep.subr.mxu0 0.0
    %5259 = vmatpush1.msra.mxu0 0.0
    %5260 = vmatprep.subr.mxu0 0.0
    %5261 = vmatpush1.msra.mxu0 0.0
    %5262 = vmatprep.subr.mxu0 0.0
    %5263 = vmatpush1.msra.mxu0 0.0
    %5264 = vmatprep.subr.mxu0 0.0
    %5265 = vmatpush1.msra.mxu0 0.0
    %5266 = vmatprep.subr.mxu0 0.0
    %5267 = vmatpush1.msra.mxu0 0.0
    %5268 = vmatprep.subr.mxu0 0.0
    %5269 = vmatpush1.msra.mxu0 0.0
    %5270 = vmatprep.subr.mxu0 0.0
    %5271 = vmatpush1.msra.mxu0 0.0
    %5272 = vmatprep.subr.mxu0 0.0
    %5273 = vmatpush1.msra.mxu0 0.0
    %5274 = vmatprep.subr.mxu0 0.0
    %5275 = vmatpush1.msra.mxu0 0.0
    %5276 = vmatprep.subr.mxu0 0.0
    %5277 = vmatpush1.msra.mxu0 0.0
    %5278 = vmatprep.subr.mxu0 0.0
    %5279 = vmatpush1.msra.mxu0 0.0
    %5280 = vmatprep.subr.mxu0 0.0
    %5281 = vmatpush1.msra.mxu0 0.0
    %5282 = vmatprep.subr.mxu0 0.0
    %5283 = vmatpush1.msra.mxu0 0.0
    %5284 = vmatprep.subr.mxu0 0.0
    %5285 = vmatpush1.msra.mxu0 0.0
    %5286 = vmatprep.subr.mxu0 0.0
    %5287 = vmatpush1.msra.mxu0 0.0
    %5288 = vmatprep.subr.mxu0 0.0
    %5289 = vmatpush1.msra.mxu0 0.0
    %5290 = vmatprep.subr.mxu0 0.0
    %5291 = vmatpush1.msra.mxu0 0.0
    %5292 = vmatprep.subr.mxu0 0.0
    %5293 = vmatpush1.msra.mxu0 0.0
    %5294 = vmatprep.subr.mxu0 0.0
    %5295 = vmatpush1.msra.mxu0 0.0
    %5296 = vmatprep.subr.mxu0 0.0
    %5297 = vmatpush1.msra.mxu0 0.0
    %5298 = vmatprep.subr.mxu0 0.0
    %5299 = vmatpush1.msra.mxu0 0.0
    %5300 = vmatprep.subr.mxu0 0.0
    %5301 = vmatpush1.msra.mxu0 0.0
    %5302 = vmatprep.subr.mxu0 0.0
    %5303 = vmatpush1.msra.mxu0 0.0
    %5304 = vmatprep.subr.mxu0 0.0
    %5305 = vmatpush1.msra.mxu0 0.0
    %5306 = vmatprep.subr.mxu0 0.0
    %5307 = vmatpush1.msra.mxu0 0.0
    %5308 = vmatprep.subr.mxu0 0.0
    %5309 = vmatpush1.msra.mxu0 0.0
    %5310 = vmatprep.subr.mxu0 0.0
    %5311 = vmatpush1.msra.mxu0 0.0
    %5312 = vmatprep.subr.mxu0 0.0
    %5313 = vmatpush1.msra.mxu0 0.0
    %5314 = vmatprep.subr.mxu0 0.0
    %5315 = vmatpush1.msra.mxu0 0.0
    %5316 = vmatprep.subr.mxu0 0.0
    %5317 = vmatpush1.msra.mxu0 0.0
    %5318 = vmatprep.mubr.f32.mxu0 0.0
    %5319 = vmatmul.mubr.f32.gmra.mrb[0].mxu0 %v5252
    %v5320 = vpop.f32.mrb[0].mxu0
    %v5321 = vadd.f32 0.0, %v5320
    %v5322 = vpop.f32.mrb[0].mxu0
    %5323 = vdwg.mxu0
    %v5325 = vsel %vm410, %v5321, 0
    %5327 = vmatprep.subr.mxu0 0.0
    %5328 = vmatpush1.msra.mxu0 %v4918
    %5329 = vmatprep.subr.mxu0 0.0
    %5330 = vmatpush1.msra.mxu0 0.0
    %5331 = vmatprep.subr.mxu0 0.0
    %5332 = vmatpush1.msra.mxu0 0.0
    %5333 = vmatprep.subr.mxu0 0.0
    %5334 = vmatpush1.msra.mxu0 0.0
    %5335 = vmatprep.subr.mxu0 0.0
    %5336 = vmatpush1.msra.mxu0 0.0
    %5337 = vmatprep.subr.mxu0 0.0
    %5338 = vmatpush1.msra.mxu0 0.0
    %5339 = vmatprep.subr.mxu0 0.0
    %5340 = vmatpush1.msra.mxu0 0.0
    %5341 = vmatprep.subr.mxu0 0.0
    %5342 = vmatpush1.msra.mxu0 0.0
    %5343 = vmatprep.subr.mxu0 0.0
    %5344 = vmatpush1.msra.mxu0 0.0
    %5345 = vmatprep.subr.mxu0 0.0
    %5346 = vmatpush1.msra.mxu0 0.0
    %5347 = vmatprep.subr.mxu0 0.0
    %5348 = vmatpush1.msra.mxu0 0.0
    %5349 = vmatprep.subr.mxu0 0.0
    %5350 = vmatpush1.msra.mxu0 0.0
    %5351 = vmatprep.subr.mxu0 0.0
    %5352 = vmatpush1.msra.mxu0 0.0
    %5353 = vmatprep.subr.mxu0 0.0
    %5354 = vmatpush1.msra.mxu0 0.0
    %5355 = vmatprep.subr.mxu0 0.0
    %5356 = vmatpush1.msra.mxu0 0.0
    %5357 = vmatprep.subr.mxu0 0.0
    %5358 = vmatpush1.msra.mxu0 0.0
    %5359 = vmatprep.subr.mxu0 0.0
    %5360 = vmatpush1.msra.mxu0 0.0
    %5361 = vmatprep.subr.mxu0 0.0
    %5362 = vmatpush1.msra.mxu0 0.0
    %5363 = vmatprep.subr.mxu0 0.0
    %5364 = vmatpush1.msra.mxu0 0.0
    %5365 = vmatprep.subr.mxu0 0.0
    %5366 = vmatpush1.msra.mxu0 0.0
    %5367 = vmatprep.subr.mxu0 0.0
    %5368 = vmatpush1.msra.mxu0 0.0
    %5369 = vmatprep.subr.mxu0 0.0
    %5370 = vmatpush1.msra.mxu0 0.0
    %5371 = vmatprep.subr.mxu0 0.0
    %5372 = vmatpush1.msra.mxu0 0.0
    %5373 = vmatprep.subr.mxu0 0.0
    %5374 = vmatpush1.msra.mxu0 0.0
    %5375 = vmatprep.subr.mxu0 0.0
    %5376 = vmatpush1.msra.mxu0 0.0
    %5377 = vmatprep.subr.mxu0 0.0
    %5378 = vmatpush1.msra.mxu0 0.0
    %5379 = vmatprep.subr.mxu0 0.0
    %5380 = vmatpush1.msra.mxu0 0.0
    %5381 = vmatprep.subr.mxu0 0.0
    %5382 = vmatpush1.msra.mxu0 0.0
    %5383 = vmatprep.subr.mxu0 0.0
    %5384 = vmatpush1.msra.mxu0 0.0
    %5385 = vmatprep.subr.mxu0 0.0
    %5386 = vmatpush1.msra.mxu0 0.0
    %5387 = vmatprep.subr.mxu0 0.0
    %5388 = vmatpush1.msra.mxu0 0.0
    %5389 = vmatprep.subr.mxu0 0.0
    %5390 = vmatpush1.msra.mxu0 0.0
    %5391 = vmatprep.mubr.f32.mxu0 0.0
    %5392 = vmatmul.mubr.f32.gmra.mrb[0].mxu0 %v5325
    %v5393 = vpop.f32.mrb[0].mxu0
    %v5394 = vadd.f32 0.0, %v5393
    %v5395 = vpop.f32.mrb[0].mxu0
    %5396 = vdwg.mxu0
    %v5397 = vadd.f32 %v4585, %v5394
    %v5399 = vsel %vm410, %v4997, 0
    %v5402 = vsel %vm410, %v5078, 0
    %5404 = vmatprep.subr.mxu0 0.0
    %5405 = vmatpush1.xpose.msra.mxu0 %v5402
    %5406 = vmatprep.subr.mxu0 0.0
    %5407 = vmatpush1.xpose.msra.mxu0 0.0
    %5408 = vmatprep.subr.mxu0 0.0
    %5409 = vmatpush1.xpose.msra.mxu0 0.0
    %5410 = vmatprep.subr.mxu0 0.0
    %5411 = vmatpush1.xpose.msra.mxu0 0.0
    %5412 = vmatprep.subr.mxu0 0.0
    %5413 = vmatpush1.xpose.msra.mxu0 0.0
    %5414 = vmatprep.subr.mxu0 0.0
    %5415 = vmatpush1.xpose.msra.mxu0 0.0
    %5416 = vmatprep.subr.mxu0 0.0
    %5417 = vmatpush1.xpose.msra.mxu0 0.0
    %5418 = vmatprep.subr.mxu0 0.0
    %5419 = vmatpush1.xpose.msra.mxu0 0.0
    %5420 = vmatprep.subr.mxu0 0.0
    %5421 = vmatpush1.xpose.msra.mxu0 0.0
    %5422 = vmatprep.subr.mxu0 0.0
    %5423 = vmatpush1.xpose.msra.mxu0 0.0
    %5424 = vmatprep.subr.mxu0 0.0
    %5425 = vmatpush1.xpose.msra.mxu0 0.0
    %5426 = vmatprep.subr.mxu0 0.0
    %5427 = vmatpush1.xpose.msra.mxu0 0.0
    %5428 = vmatprep.subr.mxu0 0.0
    %5429 = vmatpush1.xpose.msra.mxu0 0.0
    %5430 = vmatprep.subr.mxu0 0.0
    %5431 = vmatpush1.xpose.msra.mxu0 0.0
    %5432 = vmatprep.subr.mxu0 0.0
    %5433 = vmatpush1.xpose.msra.mxu0 0.0
    %5434 = vmatprep.subr.mxu0 0.0
    %5435 = vmatpush1.xpose.msra.mxu0 0.0
    %5436 = vmatprep.subr.mxu0 0.0
    %5437 = vmatpush1.xpose.msra.mxu0 0.0
    %5438 = vmatprep.subr.mxu0 0.0
    %5439 = vmatpush1.xpose.msra.mxu0 0.0
    %5440 = vmatprep.subr.mxu0 0.0
    %5441 = vmatpush1.xpose.msra.mxu0 0.0
    %5442 = vmatprep.subr.mxu0 0.0
    %5443 = vmatpush1.xpose.msra.mxu0 0.0
    %5444 = vmatprep.subr.mxu0 0.0
    %5445 = vmatpush1.xpose.msra.mxu0 0.0
    %5446 = vmatprep.subr.mxu0 0.0
    %5447 = vmatpush1.xpose.msra.mxu0 0.0
    %5448 = vmatprep.subr.mxu0 0.0
    %5449 = vmatpush1.xpose.msra.mxu0 0.0
    %5450 = vmatprep.subr.mxu0 0.0
    %5451 = vmatpush1.xpose.msra.mxu0 0.0
    %5452 = vmatprep.subr.mxu0 0.0
    %5453 = vmatpush1.xpose.msra.mxu0 0.0
    %5454 = vmatprep.subr.mxu0 0.0
    %5455 = vmatpush1.xpose.msra.mxu0 0.0
    %5456 = vmatprep.subr.mxu0 0.0
    %5457 = vmatpush1.xpose.msra.mxu0 0.0
    %5458 = vmatprep.subr.mxu0 0.0
    %5459 = vmatpush1.xpose.msra.mxu0 0.0
    %5460 = vmatprep.subr.mxu0 0.0
    %5461 = vmatpush1.xpose.msra.mxu0 0.0
    %5462 = vmatprep.subr.mxu0 0.0
    %5463 = vmatpush1.xpose.msra.mxu0 0.0
    %5464 = vmatprep.subr.mxu0 0.0
    %5465 = vmatpush1.xpose.msra.mxu0 0.0
    %5466 = vmatprep.subr.mxu0 0.0
    %5467 = vmatpush1.xpose.msra.mxu0 0.0
    %5468 = vmatprep.mubr.f32.mxu0 0.0
    %5469 = vmatmul.mubr.f32.gmra.mrb[0].mxu0 %v5399
    %v5470 = vpop.f32.mrb[0].mxu0
    %v5471 = vadd.f32 0.0, %v5470
    %v5472 = vpop.f32.mrb[0].mxu0
    %5473 = vdwg.mxu0
    %v5474 = vmul.f32 %v5471, 0.35355338
    %v5475 = vadd.f32 %v5474, %v657
    %v5476 = vsel %vm410, %v5475, -inf
    %5477 = vmax.xlane.f32.xlu0 %v5476
    %v5478 = vpop.xlane.xlu0 %5477
    %v5479 = vsub.f32 %v5475, %v5478
    %v5480 = vmul.f32 %v5479, 1.442695
    %v5481 = vpow.pop %v5480
    %v5482 = vsel %vm410, %v5481, 0.0
    %5483 = vadd.xlane.f32.xlu0 %v5482
    %v5484 = vpop.xlane.xlu0 %5483
    %v5485 = vrcp.pop %v5484
    %v5486 = vmul.f32 %v5481, %v5485
    %v5488 = vsel %vm410, %v5486, 0
    %5490 = vmatprep.subr.mxu0 0.0
    %5491 = vmatpush1.msra.mxu0 %v5159
    %5492 = vmatprep.subr.mxu0 0.0
    %5493 = vmatpush1.msra.mxu0 0.0
    %5494 = vmatprep.subr.mxu0 0.0
    %5495 = vmatpush1.msra.mxu0 0.0
    %5496 = vmatprep.subr.mxu0 0.0
    %5497 = vmatpush1.msra.mxu0 0.0
    %5498 = vmatprep.subr.mxu0 0.0
    %5499 = vmatpush1.msra.mxu0 0.0
    %5500 = vmatprep.subr.mxu0 0.0
    %5501 = vmatpush1.msra.mxu0 0.0
    %5502 = vmatprep.subr.mxu0 0.0
    %5503 = vmatpush1.msra.mxu0 0.0
    %5504 = vmatprep.subr.mxu0 0.0
    %5505 = vmatpush1.msra.mxu0 0.0
    %5506 = vmatprep.subr.mxu0 0.0
    %5507 = vmatpush1.msra.mxu0 0.0
    %5508 = vmatprep.subr.mxu0 0.0
    %5509 = vmatpush1.msra.mxu0 0.0
    %5510 = vmatprep.subr.mxu0 0.0
    %5511 = vmatpush1.msra.mxu0 0.0
    %5512 = vmatprep.subr.mxu0 0.0
    %5513 = vmatpush1.msra.mxu0 0.0
    %5514 = vmatprep.subr.mxu0 0.0
    %5515 = vmatpush1.msra.mxu0 0.0
    %5516 = vmatprep.subr.mxu0 0.0
    %5517 = vmatpush1.msra.mxu0 0.0
    %5518 = vmatprep.subr.mxu0 0.0
    %5519 = vmatpush1.msra.mxu0 0.0
    %5520 = vmatprep.subr.mxu0 0.0
    %5521 = vmatpush1.msra.mxu0 0.0
    %5522 = vmatprep.subr.mxu0 0.0
    %5523 = vmatpush1.msra.mxu0 0.0
    %5524 = vmatprep.subr.mxu0 0.0
    %5525 = vmatpush1.msra.mxu0 0.0
    %5526 = vmatprep.subr.mxu0 0.0
    %5527 = vmatpush1.msra.mxu0 0.0
    %5528 = vmatprep.subr.mxu0 0.0
    %5529 = vmatpush1.msra.mxu0 0.0
    %5530 = vmatprep.subr.mxu0 0.0
    %5531 = vmatpush1.msra.mxu0 0.0
    %5532 = vmatprep.subr.mxu0 0.0
    %5533 = vmatpush1.msra.mxu0 0.0
    %5534 = vmatprep.subr.mxu0 0.0
    %5535 = vmatpush1.msra.mxu0 0.0
    %5536 = vmatprep.subr.mxu0 0.0
    %5537 = vmatpush1.msra.mxu0 0.0
    %5538 = vmatprep.subr.mxu0 0.0
    %5539 = vmatpush1.msra.mxu0 0.0
    %5540 = vmatprep.subr.mxu0 0.0
    %5541 = vmatpush1.msra.mxu0 0.0
    %5542 = vmatprep.subr.mxu0 0.0
    %5543 = vmatpush1.msra.mxu0 0.0
    %5544 = vmatprep.subr.mxu0 0.0
    %5545 = vmatpush1.msra.mxu0 0.0
    %5546 = vmatprep.subr.mxu0 0.0
    %5547 = vmatpush1.msra.mxu0 0.0
    %5548 = vmatprep.subr.mxu0 0.0
    %5549 = vmatpush1.msra.mxu0 0.0
    %5550 = vmatprep.subr.mxu0 0.0
    %5551 = vmatpush1.msra.mxu0 0.0
    %5552 = vmatprep.subr.mxu0 0.0
    %5553 = vmatpush1.msra.mxu0 0.0
    %5554 = vmatprep.mubr.f32.mxu0 0.0
    %5555 = vmatmul.mubr.f32.gmra.mrb[0].mxu0 %v5488
    %v5556 = vpop.f32.mrb[0].mxu0
    %v5557 = vadd.f32 0.0, %v5556
    %v5558 = vpop.f32.mrb[0].mxu0
    %5559 = vdwg.mxu0
    %v5561 = vsel %vm410, %v5557, 0
    %5563 = vmatprep.subr.mxu0 0.0
    %5564 = vmatpush1.msra.mxu0 %v4918
    %5565 = vmatprep.subr.mxu0 0.0
    %5566 = vmatpush1.msra.mxu0 0.0
    %5567 = vmatprep.subr.mxu0 0.0
    %5568 = vmatpush1.msra.mxu0 0.0
    %5569 = vmatprep.subr.mxu0 0.0
    %5570 = vmatpush1.msra.mxu0 0.0
    %5571 = vmatprep.subr.mxu0 0.0
    %5572 = vmatpush1.msra.mxu0 0.0
    %5573 = vmatprep.subr.mxu0 0.0
    %5574 = vmatpush1.msra.mxu0 0.0
    %5575 = vmatprep.subr.mxu0 0.0
    %5576 = vmatpush1.msra.mxu0 0.0
    %5577 = vmatprep.subr.mxu0 0.0
    %5578 = vmatpush1.msra.mxu0 0.0
    %5579 = vmatprep.subr.mxu0 0.0
    %5580 = vmatpush1.msra.mxu0 0.0
    %5581 = vmatprep.subr.mxu0 0.0
    %5582 = vmatpush1.msra.mxu0 0.0
    %5583 = vmatprep.subr.mxu0 0.0
    %5584 = vmatpush1.msra.mxu0 0.0
    %5585 = vmatprep.subr.mxu0 0.0
    %5586 = vmatpush1.msra.mxu0 0.0
    %5587 = vmatprep.subr.mxu0 0.0
    %5588 = vmatpush1.msra.mxu0 0.0
    %5589 = vmatprep.subr.mxu0 0.0
    %5590 = vmatpush1.msra.mxu0 0.0
    %5591 = vmatprep.subr.mxu0 0.0
    %5592 = vmatpush1.msra.mxu0 0.0
    %5593 = vmatprep.subr.mxu0 0.0
    %5594 = vmatpush1.msra.mxu0 0.0
    %5595 = vmatprep.subr.mxu0 0.0
    %5596 = vmatpush1.msra.mxu0 0.0
    %5597 = vmatprep.subr.mxu0 0.0
    %5598 = vmatpush1.msra.mxu0 0.0
    %5599 = vmatprep.subr.mxu0 0.0
    %5600 = vmatpush1.msra.mxu0 0.0
    %5601 = vmatprep.subr.mxu0 0.0
    %5602 = vmatpush1.msra.mxu0 0.0
    %5603 = vmatprep.subr.mxu0 0.0
    %5604 = vmatpush1.msra.mxu0 0.0
    %5605 = vmatprep.subr.mxu0 0.0
    %5606 = vmatpush1.msra.mxu0 0.0
    %5607 = vmatprep.subr.mxu0 0.0
    %5608 = vmatpush1.msra.mxu0 0.0
    %5609 = vmatprep.subr.mxu0 0.0
    %5610 = vmatpush1.msra.mxu0 0.0
    %5611 = vmatprep.subr.mxu0 0.0
    %5612 = vmatpush1.msra.mxu0 0.0
    %5613 = vmatprep.subr.mxu0 0.0
    %5614 = vmatpush1.msra.mxu0 0.0
    %5615 = vmatprep.subr.mxu0 0.0
    %5616 = vmatpush1.msra.mxu0 0.0
    %5617 = vmatprep.subr.mxu0 0.0
    %5618 = vmatpush1.msra.mxu0 0.0
    %5619 = vmatprep.subr.mxu0 0.0
    %5620 = vmatpush1.msra.mxu0 0.0
    %5621 = vmatprep.subr.mxu0 0.0
    %5622 = vmatpush1.msra.mxu0 0.0
    %5623 = vmatprep.subr.mxu0 0.0
    %5624 = vmatpush1.msra.mxu0 0.0
    %5625 = vmatprep.subr.mxu0 0.0
    %5626 = vmatpush1.msra.mxu0 0.0
    %5627 = vmatprep.mubr.f32.mxu0 0.0
    %5628 = vmatmul.mubr.f32.gmra.mrb[0].mxu0 %v5561
    %v5629 = vpop.f32.mrb[0].mxu0
    %v5630 = vadd.f32 0.0, %v5629
    %v5631 = vpop.f32.mrb[0].mxu0
    %5632 = vdwg.mxu0
    %v5633 = vadd.f32 %v4893, %v5630
    %s5634 = scalar_lea.vmem %s5, 224
    %v5635 = vld [vmem:[%s5634] sm:$0xff]
    %v5636 = vld [vmem:[%s5634 + $0x8] sm:$0xff]
    %v5637 = vld [vmem:[%s5634 + $0x10] sm:$0xff]
    %v5638 = vld [vmem:[%s5634 + $0x18] sm:$0xff]
    %s5639 = scalar_lea.vmem %s6, 7
    %v5640 = vld [vmem:[%s5639] sm:$0x1]
    %s5641 = scalar_lea.vmem %s7, 224
    %v5642 = vld [vmem:[%s5641] sm:$0xff]
    %v5643 = vld [vmem:[%s5641 + $0x8] sm:$0xff]
    %v5644 = vld [vmem:[%s5641 + $0x10] sm:$0xff]
    %v5645 = vld [vmem:[%s5641 + $0x18] sm:$0xff]
    %s5646 = scalar_lea.vmem %s8, 7
    %v5647 = vld [vmem:[%s5646] sm:$0x1]
    %s5648 = scalar_lea.vmem %s9, 224
    %v5649 = vld [vmem:[%s5648] sm:$0xff]
    %v5650 = vld [vmem:[%s5648 + $0x8] sm:$0xff]
    %v5651 = vld [vmem:[%s5648 + $0x10] sm:$0xff]
    %v5652 = vld [vmem:[%s5648 + $0x18] sm:$0xff]
    %s5653 = scalar_lea.vmem %s10, 7
    %v5654 = vld [vmem:[%s5653] sm:$0x1]
    %s5655 = scalar_lea.vmem %s11, 56
    %v5656 = vld [vmem:[%s5655] sm:$0xff]
    %v5658 = vlaneseq
    %v5659 = vshrl.u32 %v5658, 7
    %v5660 = vsub.s32 0, %v5659
    %v5661 = vrot.slane %v5640, %v5660
    %5663 = vmatprep.subr.mxu0 0.0
    %5664 = vmatpush1.msra.mxu0 %v5635
    %5665 = vmatprep.subr.mxu0 0.0
    %5666 = vmatpush1.msra.mxu0 %v5636
    %5667 = vmatprep.subr.mxu0 0.0
    %5668 = vmatpush1.msra.mxu0 %v5637
    %5669 = vmatprep.subr.mxu0 0.0
    %5670 = vmatpush1.msra.mxu0 %v5638
    %5671 = vmatprep.subr.mxu0 0.0
    %5672 = vmatpush1.msra.mxu0 0.0
    %5673 = vmatprep.subr.mxu0 0.0
    %5674 = vmatpush1.msra.mxu0 0.0
    %5675 = vmatprep.subr.mxu0 0.0
    %5676 = vmatpush1.msra.mxu0 0.0
    %5677 = vmatprep.subr.mxu0 0.0
    %5678 = vmatpush1.msra.mxu0 0.0
    %5679 = vmatprep.subr.mxu0 0.0
    %5680 = vmatpush1.msra.mxu0 0.0
    %5681 = vmatprep.subr.mxu0 0.0
    %5682 = vmatpush1.msra.mxu0 0.0
    %5683 = vmatprep.subr.mxu0 0.0
    %5684 = vmatpush1.msra.mxu0 0.0
    %5685 = vmatprep.subr.mxu0 0.0
    %5686 = vmatpush1.msra.mxu0 0.0
    %5687 = vmatprep.subr.mxu0 0.0
    %5688 = vmatpush1.msra.mxu0 0.0
    %5689 = vmatprep.subr.mxu0 0.0
    %5690 = vmatpush1.msra.mxu0 0.0
    %5691 = vmatprep.subr.mxu0 0.0
    %5692 = vmatpush1.msra.mxu0 0.0
    %5693 = vmatprep.subr.mxu0 0.0
    %5694 = vmatpush1.msra.mxu0 0.0
    %5695 = vmatprep.subr.mxu0 0.0
    %5696 = vmatpush1.msra.mxu0 0.0
    %5697 = vmatprep.subr.mxu0 0.0
    %5698 = vmatpush1.msra.mxu0 0.0
    %5699 = vmatprep.subr.mxu0 0.0
    %5700 = vmatpush1.msra.mxu0 0.0
    %5701 = vmatprep.subr.mxu0 0.0
    %5702 = vmatpush1.msra.mxu0 0.0
    %5703 = vmatprep.subr.mxu0 0.0
    %5704 = vmatpush1.msra.mxu0 0.0
    %5705 = vmatprep.subr.mxu0 0.0
    %5706 = vmatpush1.msra.mxu0 0.0
    %5707 = vmatprep.subr.mxu0 0.0
    %5708 = vmatpush1.msra.mxu0 0.0
    %5709 = vmatprep.subr.mxu0 0.0
    %5710 = vmatpush1.msra.mxu0 0.0
    %5711 = vmatprep.subr.mxu0 0.0
    %5712 = vmatpush1.msra.mxu0 0.0
    %5713 = vmatprep.subr.mxu0 0.0
    %5714 = vmatpush1.msra.mxu0 0.0
    %5715 = vmatprep.subr.mxu0 0.0
    %5716 = vmatpush1.msra.mxu0 0.0
    %5717 = vmatprep.subr.mxu0 0.0
    %5718 = vmatpush1.msra.mxu0 0.0
    %5719 = vmatprep.subr.mxu0 0.0
    %5720 = vmatpush1.msra.mxu0 0.0
    %5721 = vmatprep.subr.mxu0 0.0
    %5722 = vmatpush1.msra.mxu0 0.0
    %5723 = vmatprep.subr.mxu0 0.0
    %5724 = vmatpush1.msra.mxu0 0.0
    %5725 = vmatprep.subr.mxu0 0.0
    %5726 = vmatpush1.msra.mxu0 0.0
    %5727 = vmatprep.mubr.f32.mxu0 0.0
    %5728 = vmatmul.mubr.f32.gmra.mrb[0].mxu0 %v3448
    %v5729 = vpop.f32.mrb[0].mxu0
    %v5730 = vadd.f32 %v5661, %v5729
    %v5731 = vpop.f32.mrb[0].mxu0
    %5732 = vmatprep.mubr.f32.mxu0 0.0
    %5733 = vmatmul.mubr.f32.gmra.mrb[0].mxu0 %v3451
    %v5734 = vpop.f32.mrb[0].mxu0
    %v5735 = vadd.f32 %v5661, %v5734
    %v5736 = vpop.f32.mrb[0].mxu0
    %5737 = vdwg.mxu0
    %v5739 = vlaneseq
    %v5740 = vshrl.u32 %v5739, 7
    %v5741 = vsub.s32 0, %v5740
    %v5742 = vrot.slane %v5647, %v5741
    %5744 = vmatprep.subr.mxu0 0.0
    %5745 = vmatpush1.msra.mxu0 %v5642
    %5746 = vmatprep.subr.mxu0 0.0
    %5747 = vmatpush1.msra.mxu0 %v5643
    %5748 = vmatprep.subr.mxu0 0.0
    %5749 = vmatpush1.msra.mxu0 %v5644
    %5750 = vmatprep.subr.mxu0 0.0
    %5751 = vmatpush1.msra.mxu0 %v5645
    %5752 = vmatprep.subr.mxu0 0.0
    %5753 = vmatpush1.msra.mxu0 0.0
    %5754 = vmatprep.subr.mxu0 0.0
    %5755 = vmatpush1.msra.mxu0 0.0
    %5756 = vmatprep.subr.mxu0 0.0
    %5757 = vmatpush1.msra.mxu0 0.0
    %5758 = vmatprep.subr.mxu0 0.0
    %5759 = vmatpush1.msra.mxu0 0.0
    %5760 = vmatprep.subr.mxu0 0.0
    %5761 = vmatpush1.msra.mxu0 0.0
    %5762 = vmatprep.subr.mxu0 0.0
    %5763 = vmatpush1.msra.mxu0 0.0
    %5764 = vmatprep.subr.mxu0 0.0
    %5765 = vmatpush1.msra.mxu0 0.0
    %5766 = vmatprep.subr.mxu0 0.0
    %5767 = vmatpush1.msra.mxu0 0.0
    %5768 = vmatprep.subr.mxu0 0.0
    %5769 = vmatpush1.msra.mxu0 0.0
    %5770 = vmatprep.subr.mxu0 0.0
    %5771 = vmatpush1.msra.mxu0 0.0
    %5772 = vmatprep.subr.mxu0 0.0
    %5773 = vmatpush1.msra.mxu0 0.0
    %5774 = vmatprep.subr.mxu0 0.0
    %5775 = vmatpush1.msra.mxu0 0.0
    %5776 = vmatprep.subr.mxu0 0.0
    %5777 = vmatpush1.msra.mxu0 0.0
    %5778 = vmatprep.subr.mxu0 0.0
    %5779 = vmatpush1.msra.mxu0 0.0
    %5780 = vmatprep.subr.mxu0 0.0
    %5781 = vmatpush1.msra.mxu0 0.0
    %5782 = vmatprep.subr.mxu0 0.0
    %5783 = vmatpush1.msra.mxu0 0.0
    %5784 = vmatprep.subr.mxu0 0.0
    %5785 = vmatpush1.msra.mxu0 0.0
    %5786 = vmatprep.subr.mxu0 0.0
    %5787 = vmatpush1.msra.mxu0 0.0
    %5788 = vmatprep.subr.mxu0 0.0
    %5789 = vmatpush1.msra.mxu0 0.0
    %5790 = vmatprep.subr.mxu0 0.0
    %5791 = vmatpush1.msra.mxu0 0.0
    %5792 = vmatprep.subr.mxu0 0.0
    %5793 = vmatpush1.msra.mxu0 0.0
    %5794 = vmatprep.subr.mxu0 0.0
    %5795 = vmatpush1.msra.mxu0 0.0
    %5796 = vmatprep.subr.mxu0 0.0
    %5797 = vmatpush1.msra.mxu0 0.0
    %5798 = vmatprep.subr.mxu0 0.0
    %5799 = vmatpush1.msra.mxu0 0.0
    %5800 = vmatprep.subr.mxu0 0.0
    %5801 = vmatpush1.msra.mxu0 0.0
    %5802 = vmatprep.subr.mxu0 0.0
    %5803 = vmatpush1.msra.mxu0 0.0
    %5804 = vmatprep.subr.mxu0 0.0
    %5805 = vmatpush1.msra.mxu0 0.0
    %5806 = vmatprep.subr.mxu0 0.0
    %5807 = vmatpush1.msra.mxu0 0.0
    %5808 = vmatprep.mubr.f32.mxu0 0.0
    %5809 = vmatmul.mubr.f32.gmra.mrb[0].mxu0 %v3448
    %v5810 = vpop.f32.mrb[0].mxu0
    %v5811 = vadd.f32 %v5742, %v5810
    %v5812 = vpop.f32.mrb[0].mxu0
    %5813 = vmatprep.mubr.f32.mxu0 0.0
    %5814 = vmatmul.mubr.f32.gmra.mrb[0].mxu0 %v3451
    %v5815 = vpop.f32.mrb[0].mxu0
    %v5816 = vadd.f32 %v5742, %v5815
    %v5817 = vpop.f32.mrb[0].mxu0
    %5818 = vdwg.mxu0
    %v5820 = vlaneseq
    %v5821 = vshrl.u32 %v5820, 7
    %v5822 = vsub.s32 0, %v5821
    %v5823 = vrot.slane %v5654, %v5822
    %5825 = vmatprep.subr.mxu0 0.0
    %5826 = vmatpush1.msra.mxu0 %v5649
    %5827 = vmatprep.subr.mxu0 0.0
    %5828 = vmatpush1.msra.mxu0 %v5650
    %5829 = vmatprep.subr.mxu0 0.0
    %5830 = vmatpush1.msra.mxu0 %v5651
    %5831 = vmatprep.subr.mxu0 0.0
    %5832 = vmatpush1.msra.mxu0 %v5652
    %5833 = vmatprep.subr.mxu0 0.0
    %5834 = vmatpush1.msra.mxu0 0.0
    %5835 = vmatprep.subr.mxu0 0.0
    %5836 = vmatpush1.msra.mxu0 0.0
    %5837 = vmatprep.subr.mxu0 0.0
    %5838 = vmatpush1.msra.mxu0 0.0
    %5839 = vmatprep.subr.mxu0 0.0
    %5840 = vmatpush1.msra.mxu0 0.0
    %5841 = vmatprep.subr.mxu0 0.0
    %5842 = vmatpush1.msra.mxu0 0.0
    %5843 = vmatprep.subr.mxu0 0.0
    %5844 = vmatpush1.msra.mxu0 0.0
    %5845 = vmatprep.subr.mxu0 0.0
    %5846 = vmatpush1.msra.mxu0 0.0
    %5847 = vmatprep.subr.mxu0 0.0
    %5848 = vmatpush1.msra.mxu0 0.0
    %5849 = vmatprep.subr.mxu0 0.0
    %5850 = vmatpush1.msra.mxu0 0.0
    %5851 = vmatprep.subr.mxu0 0.0
    %5852 = vmatpush1.msra.mxu0 0.0
    %5853 = vmatprep.subr.mxu0 0.0
    %5854 = vmatpush1.msra.mxu0 0.0
    %5855 = vmatprep.subr.mxu0 0.0
    %5856 = vmatpush1.msra.mxu0 0.0
    %5857 = vmatprep.subr.mxu0 0.0
    %5858 = vmatpush1.msra.mxu0 0.0
    %5859 = vmatprep.subr.mxu0 0.0
    %5860 = vmatpush1.msra.mxu0 0.0
    %5861 = vmatprep.subr.mxu0 0.0
    %5862 = vmatpush1.msra.mxu0 0.0
    %5863 = vmatprep.subr.mxu0 0.0
    %5864 = vmatpush1.msra.mxu0 0.0
    %5865 = vmatprep.subr.mxu0 0.0
    %5866 = vmatpush1.msra.mxu0 0.0
    %5867 = vmatprep.subr.mxu0 0.0
    %5868 = vmatpush1.msra.mxu0 0.0
    %5869 = vmatprep.subr.mxu0 0.0
    %5870 = vmatpush1.msra.mxu0 0.0
    %5871 = vmatprep.subr.mxu0 0.0
    %5872 = vmatpush1.msra.mxu0 0.0
    %5873 = vmatprep.subr.mxu0 0.0
    %5874 = vmatpush1.msra.mxu0 0.0
    %5875 = vmatprep.subr.mxu0 0.0
    %5876 = vmatpush1.msra.mxu0 0.0
    %5877 = vmatprep.subr.mxu0 0.0
    %5878 = vmatpush1.msra.mxu0 0.0
    %5879 = vmatprep.subr.mxu0 0.0
    %5880 = vmatpush1.msra.mxu0 0.0
    %5881 = vmatprep.subr.mxu0 0.0
    %5882 = vmatpush1.msra.mxu0 0.0
    %5883 = vmatprep.subr.mxu0 0.0
    %5884 = vmatpush1.msra.mxu0 0.0
    %5885 = vmatprep.subr.mxu0 0.0
    %5886 = vmatpush1.msra.mxu0 0.0
    %5887 = vmatprep.subr.mxu0 0.0
    %5888 = vmatpush1.msra.mxu0 0.0
    %5889 = vmatprep.mubr.f32.mxu0 0.0
    %5890 = vmatmul.mubr.f32.gmra.mrb[0].mxu0 %v3448
    %v5891 = vpop.f32.mrb[0].mxu0
    %v5892 = vadd.f32 %v5823, %v5891
    %v5893 = vpop.f32.mrb[0].mxu0
    %5894 = vmatprep.mubr.f32.mxu0 0.0
    %5895 = vmatmul.mubr.f32.gmra.mrb[0].mxu0 %v3451
    %v5896 = vpop.f32.mrb[0].mxu0
    %v5897 = vadd.f32 %v5823, %v5896
    %v5898 = vpop.f32.mrb[0].mxu0
    %5899 = vdwg.mxu0
    %v5901 = vsel %vm410, %v5730, 0
    %v5904 = vsel %vm410, %v5811, 0
    %5906 = vmatprep.subr.mxu0 0.0
    %5907 = vmatpush1.xpose.msra.mxu0 %v5904
    %5908 = vmatprep.subr.mxu0 0.0
    %5909 = vmatpush1.xpose.msra.mxu0 0.0
    %5910 = vmatprep.subr.mxu0 0.0
    %5911 = vmatpush1.xpose.msra.mxu0 0.0
    %5912 = vmatprep.subr.mxu0 0.0
    %5913 = vmatpush1.xpose.msra.mxu0 0.0
    %5914 = vmatprep.subr.mxu0 0.0
    %5915 = vmatpush1.xpose.msra.mxu0 0.0
    %5916 = vmatprep.subr.mxu0 0.0
    %5917 = vmatpush1.xpose.msra.mxu0 0.0
    %5918 = vmatprep.subr.mxu0 0.0
    %5919 = vmatpush1.xpose.msra.mxu0 0.0
    %5920 = vmatprep.subr.mxu0 0.0
    %5921 = vmatpush1.xpose.msra.mxu0 0.0
    %5922 = vmatprep.subr.mxu0 0.0
    %5923 = vmatpush1.xpose.msra.mxu0 0.0
    %5924 = vmatprep.subr.mxu0 0.0
    %5925 = vmatpush1.xpose.msra.mxu0 0.0
    %5926 = vmatprep.subr.mxu0 0.0
    %5927 = vmatpush1.xpose.msra.mxu0 0.0
    %5928 = vmatprep.subr.mxu0 0.0
    %5929 = vmatpush1.xpose.msra.mxu0 0.0
    %5930 = vmatprep.subr.mxu0 0.0
    %5931 = vmatpush1.xpose.msra.mxu0 0.0
    %5932 = vmatprep.subr.mxu0 0.0
    %5933 = vmatpush1.xpose.msra.mxu0 0.0
    %5934 = vmatprep.subr.mxu0 0.0
    %5935 = vmatpush1.xpose.msra.mxu0 0.0
    %5936 = vmatprep.subr.mxu0 0.0
    %5937 = vmatpush1.xpose.msra.mxu0 0.0
    %5938 = vmatprep.subr.mxu0 0.0
    %5939 = vmatpush1.xpose.msra.mxu0 0.0
    %5940 = vmatprep.subr.mxu0 0.0
    %5941 = vmatpush1.xpose.msra.mxu0 0.0
    %5942 = vmatprep.subr.mxu0 0.0
    %5943 = vmatpush1.xpose.msra.mxu0 0.0
    %5944 = vmatprep.subr.mxu0 0.0
    %5945 = vmatpush1.xpose.msra.mxu0 0.0
    %5946 = vmatprep.subr.mxu0 0.0
    %5947 = vmatpush1.xpose.msra.mxu0 0.0
    %5948 = vmatprep.subr.mxu0 0.0
    %5949 = vmatpush1.xpose.msra.mxu0 0.0
    %5950 = vmatprep.subr.mxu0 0.0
    %5951 = vmatpush1.xpose.msra.mxu0 0.0
    %5952 = vmatprep.subr.mxu0 0.0
    %5953 = vmatpush1.xpose.msra.mxu0 0.0
    %5954 = vmatprep.subr.mxu0 0.0
    %5955 = vmatpush1.xpose.msra.mxu0 0.0
    %5956 = vmatprep.subr.mxu0 0.0
    %5957 = vmatpush1.xpose.msra.mxu0 0.0
    %5958 = vmatprep.subr.mxu0 0.0
    %5959 = vmatpush1.xpose.msra.mxu0 0.0
    %5960 = vmatprep.subr.mxu0 0.0
    %5961 = vmatpush1.xpose.msra.mxu0 0.0
    %5962 = vmatprep.subr.mxu0 0.0
    %5963 = vmatpush1.xpose.msra.mxu0 0.0
    %5964 = vmatprep.subr.mxu0 0.0
    %5965 = vmatpush1.xpose.msra.mxu0 0.0
    %5966 = vmatprep.subr.mxu0 0.0
    %5967 = vmatpush1.xpose.msra.mxu0 0.0
    %5968 = vmatprep.subr.mxu0 0.0
    %5969 = vmatpush1.xpose.msra.mxu0 0.0
    %5970 = vmatprep.mubr.f32.mxu0 0.0
    %5971 = vmatmul.mubr.f32.gmra.mrb[0].mxu0 %v5901
    %v5972 = vpop.f32.mrb[0].mxu0
    %v5973 = vadd.f32 0.0, %v5972
    %v5974 = vpop.f32.mrb[0].mxu0
    %5975 = vdwg.mxu0
    %v5976 = vmul.f32 %v5973, 0.35355338
    %v5977 = vadd.f32 %v5976, %v491
    %v5978 = vsel %vm410, %v5977, -inf
    %5979 = vmax.xlane.f32.xlu0 %v5978
    %v5980 = vpop.xlane.xlu0 %5979
    %v5981 = vsub.f32 %v5977, %v5980
    %v5982 = vmul.f32 %v5981, 1.442695
    %v5983 = vpow.pop %v5982
    %v5984 = vsel %vm410, %v5983, 0.0
    %5985 = vadd.xlane.f32.xlu0 %v5984
    %v5986 = vpop.xlane.xlu0 %5985
    %v5987 = vrcp.pop %v5986
    %v5988 = vmul.f32 %v5983, %v5987
    %v5990 = vsel %vm410, %v5988, 0
    %5992 = vmatprep.subr.mxu0 0.0
    %5993 = vmatpush1.msra.mxu0 %v5892
    %5994 = vmatprep.subr.mxu0 0.0
    %5995 = vmatpush1.msra.mxu0 0.0
    %5996 = vmatprep.subr.mxu0 0.0
    %5997 = vmatpush1.msra.mxu0 0.0
    %5998 = vmatprep.subr.mxu0 0.0
    %5999 = vmatpush1.msra.mxu0 0.0
    %6000 = vmatprep.subr.mxu0 0.0
    %6001 = vmatpush1.msra.mxu0 0.0
    %6002 = vmatprep.subr.mxu0 0.0
    %6003 = vmatpush1.msra.mxu0 0.0
    %6004 = vmatprep.subr.mxu0 0.0
    %6005 = vmatpush1.msra.mxu0 0.0
    %6006 = vmatprep.subr.mxu0 0.0
    %6007 = vmatpush1.msra.mxu0 0.0
    %6008 = vmatprep.subr.mxu0 0.0
    %6009 = vmatpush1.msra.mxu0 0.0
    %6010 = vmatprep.subr.mxu0 0.0
    %6011 = vmatpush1.msra.mxu0 0.0
    %6012 = vmatprep.subr.mxu0 0.0
    %6013 = vmatpush1.msra.mxu0 0.0
    %6014 = vmatprep.subr.mxu0 0.0
    %6015 = vmatpush1.msra.mxu0 0.0
    %6016 = vmatprep.subr.mxu0 0.0
    %6017 = vmatpush1.msra.mxu0 0.0
    %6018 = vmatprep.subr.mxu0 0.0
    %6019 = vmatpush1.msra.mxu0 0.0
    %6020 = vmatprep.subr.mxu0 0.0
    %6021 = vmatpush1.msra.mxu0 0.0
    %6022 = vmatprep.subr.mxu0 0.0
    %6023 = vmatpush1.msra.mxu0 0.0
    %6024 = vmatprep.subr.mxu0 0.0
    %6025 = vmatpush1.msra.mxu0 0.0
    %6026 = vmatprep.subr.mxu0 0.0
    %6027 = vmatpush1.msra.mxu0 0.0
    %6028 = vmatprep.subr.mxu0 0.0
    %6029 = vmatpush1.msra.mxu0 0.0
    %6030 = vmatprep.subr.mxu0 0.0
    %6031 = vmatpush1.msra.mxu0 0.0
    %6032 = vmatprep.subr.mxu0 0.0
    %6033 = vmatpush1.msra.mxu0 0.0
    %6034 = vmatprep.subr.mxu0 0.0
    %6035 = vmatpush1.msra.mxu0 0.0
    %6036 = vmatprep.subr.mxu0 0.0
    %6037 = vmatpush1.msra.mxu0 0.0
    %6038 = vmatprep.subr.mxu0 0.0
    %6039 = vmatpush1.msra.mxu0 0.0
    %6040 = vmatprep.subr.mxu0 0.0
    %6041 = vmatpush1.msra.mxu0 0.0
    %6042 = vmatprep.subr.mxu0 0.0
    %6043 = vmatpush1.msra.mxu0 0.0
    %6044 = vmatprep.subr.mxu0 0.0
    %6045 = vmatpush1.msra.mxu0 0.0
    %6046 = vmatprep.subr.mxu0 0.0
    %6047 = vmatpush1.msra.mxu0 0.0
    %6048 = vmatprep.subr.mxu0 0.0
    %6049 = vmatpush1.msra.mxu0 0.0
    %6050 = vmatprep.subr.mxu0 0.0
    %6051 = vmatpush1.msra.mxu0 0.0
    %6052 = vmatprep.subr.mxu0 0.0
    %6053 = vmatpush1.msra.mxu0 0.0
    %6054 = vmatprep.subr.mxu0 0.0
    %6055 = vmatpush1.msra.mxu0 0.0
    %6056 = vmatprep.mubr.f32.mxu0 0.0
    %6057 = vmatmul.mubr.f32.gmra.mrb[0].mxu0 %v5990
    %v6058 = vpop.f32.mrb[0].mxu0
    %v6059 = vadd.f32 0.0, %v6058
    %v6060 = vpop.f32.mrb[0].mxu0
    %6061 = vdwg.mxu0
    %v6063 = vsel %vm410, %v6059, 0
    %6065 = vmatprep.subr.mxu0 0.0
    %6066 = vmatpush1.msra.mxu0 %v5656
    %6067 = vmatprep.subr.mxu0 0.0
    %6068 = vmatpush1.msra.mxu0 0.0
    %6069 = vmatprep.subr.mxu0 0.0
    %6070 = vmatpush1.msra.mxu0 0.0
    %6071 = vmatprep.subr.mxu0 0.0
    %6072 = vmatpush1.msra.mxu0 0.0
    %6073 = vmatprep.subr.mxu0 0.0
    %6074 = vmatpush1.msra.mxu0 0.0
    %6075 = vmatprep.subr.mxu0 0.0
    %6076 = vmatpush1.msra.mxu0 0.0
    %6077 = vmatprep.subr.mxu0 0.0
    %6078 = vmatpush1.msra.mxu0 0.0
    %6079 = vmatprep.subr.mxu0 0.0
    %6080 = vmatpush1.msra.mxu0 0.0
    %6081 = vmatprep.subr.mxu0 0.0
    %6082 = vmatpush1.msra.mxu0 0.0
    %6083 = vmatprep.subr.mxu0 0.0
    %6084 = vmatpush1.msra.mxu0 0.0
    %6085 = vmatprep.subr.mxu0 0.0
    %6086 = vmatpush1.msra.mxu0 0.0
    %6087 = vmatprep.subr.mxu0 0.0
    %6088 = vmatpush1.msra.mxu0 0.0
    %6089 = vmatprep.subr.mxu0 0.0
    %6090 = vmatpush1.msra.mxu0 0.0
    %6091 = vmatprep.subr.mxu0 0.0
    %6092 = vmatpush1.msra.mxu0 0.0
    %6093 = vmatprep.subr.mxu0 0.0
    %6094 = vmatpush1.msra.mxu0 0.0
    %6095 = vmatprep.subr.mxu0 0.0
    %6096 = vmatpush1.msra.mxu0 0.0
    %6097 = vmatprep.subr.mxu0 0.0
    %6098 = vmatpush1.msra.mxu0 0.0
    %6099 = vmatprep.subr.mxu0 0.0
    %6100 = vmatpush1.msra.mxu0 0.0
    %6101 = vmatprep.subr.mxu0 0.0
    %6102 = vmatpush1.msra.mxu0 0.0
    %6103 = vmatprep.subr.mxu0 0.0
    %6104 = vmatpush1.msra.mxu0 0.0
    %6105 = vmatprep.subr.mxu0 0.0
    %6106 = vmatpush1.msra.mxu0 0.0
    %6107 = vmatprep.subr.mxu0 0.0
    %6108 = vmatpush1.msra.mxu0 0.0
    %6109 = vmatprep.subr.mxu0 0.0
    %6110 = vmatpush1.msra.mxu0 0.0
    %6111 = vmatprep.subr.mxu0 0.0
    %6112 = vmatpush1.msra.mxu0 0.0
    %6113 = vmatprep.subr.mxu0 0.0
    %6114 = vmatpush1.msra.mxu0 0.0
    %6115 = vmatprep.subr.mxu0 0.0
    %6116 = vmatpush1.msra.mxu0 0.0
    %6117 = vmatprep.subr.mxu0 0.0
    %6118 = vmatpush1.msra.mxu0 0.0
    %6119 = vmatprep.subr.mxu0 0.0
    %6120 = vmatpush1.msra.mxu0 0.0
    %6121 = vmatprep.subr.mxu0 0.0
    %6122 = vmatpush1.msra.mxu0 0.0
    %6123 = vmatprep.subr.mxu0 0.0
    %6124 = vmatpush1.msra.mxu0 0.0
    %6125 = vmatprep.subr.mxu0 0.0
    %6126 = vmatpush1.msra.mxu0 0.0
    %6127 = vmatprep.subr.mxu0 0.0
    %6128 = vmatpush1.msra.mxu0 0.0
    %6129 = vmatprep.mubr.f32.mxu0 0.0
    %6130 = vmatmul.mubr.f32.gmra.mrb[0].mxu0 %v6063
    %v6131 = vpop.f32.mrb[0].mxu0
    %v6132 = vadd.f32 0.0, %v6131
    %v6133 = vpop.f32.mrb[0].mxu0
    %6134 = vdwg.mxu0
    %v6135 = vadd.f32 %v5397, %v6132
    %v6137 = vsel %vm410, %v5735, 0
    %v6140 = vsel %vm410, %v5816, 0
    %6142 = vmatprep.subr.mxu0 0.0
    %6143 = vmatpush1.xpose.msra.mxu0 %v6140
    %6144 = vmatprep.subr.mxu0 0.0
    %6145 = vmatpush1.xpose.msra.mxu0 0.0
    %6146 = vmatprep.subr.mxu0 0.0
    %6147 = vmatpush1.xpose.msra.mxu0 0.0
    %6148 = vmatprep.subr.mxu0 0.0
    %6149 = vmatpush1.xpose.msra.mxu0 0.0
    %6150 = vmatprep.subr.mxu0 0.0
    %6151 = vmatpush1.xpose.msra.mxu0 0.0
    %6152 = vmatprep.subr.mxu0 0.0
    %6153 = vmatpush1.xpose.msra.mxu0 0.0
    %6154 = vmatprep.subr.mxu0 0.0
    %6155 = vmatpush1.xpose.msra.mxu0 0.0
    %6156 = vmatprep.subr.mxu0 0.0
    %6157 = vmatpush1.xpose.msra.mxu0 0.0
    %6158 = vmatprep.subr.mxu0 0.0
    %6159 = vmatpush1.xpose.msra.mxu0 0.0
    %6160 = vmatprep.subr.mxu0 0.0
    %6161 = vmatpush1.xpose.msra.mxu0 0.0
    %6162 = vmatprep.subr.mxu0 0.0
    %6163 = vmatpush1.xpose.msra.mxu0 0.0
    %6164 = vmatprep.subr.mxu0 0.0
    %6165 = vmatpush1.xpose.msra.mxu0 0.0
    %6166 = vmatprep.subr.mxu0 0.0
    %6167 = vmatpush1.xpose.msra.mxu0 0.0
    %6168 = vmatprep.subr.mxu0 0.0
    %6169 = vmatpush1.xpose.msra.mxu0 0.0
    %6170 = vmatprep.subr.mxu0 0.0
    %6171 = vmatpush1.xpose.msra.mxu0 0.0
    %6172 = vmatprep.subr.mxu0 0.0
    %6173 = vmatpush1.xpose.msra.mxu0 0.0
    %6174 = vmatprep.subr.mxu0 0.0
    %6175 = vmatpush1.xpose.msra.mxu0 0.0
    %6176 = vmatprep.subr.mxu0 0.0
    %6177 = vmatpush1.xpose.msra.mxu0 0.0
    %6178 = vmatprep.subr.mxu0 0.0
    %6179 = vmatpush1.xpose.msra.mxu0 0.0
    %6180 = vmatprep.subr.mxu0 0.0
    %6181 = vmatpush1.xpose.msra.mxu0 0.0
    %6182 = vmatprep.subr.mxu0 0.0
    %6183 = vmatpush1.xpose.msra.mxu0 0.0
    %6184 = vmatprep.subr.mxu0 0.0
    %6185 = vmatpush1.xpose.msra.mxu0 0.0
    %6186 = vmatprep.subr.mxu0 0.0
    %6187 = vmatpush1.xpose.msra.mxu0 0.0
    %6188 = vmatprep.subr.mxu0 0.0
    %6189 = vmatpush1.xpose.msra.mxu0 0.0
    %6190 = vmatprep.subr.mxu0 0.0
    %6191 = vmatpush1.xpose.msra.mxu0 0.0
    %6192 = vmatprep.subr.mxu0 0.0
    %6193 = vmatpush1.xpose.msra.mxu0 0.0
    %6194 = vmatprep.subr.mxu0 0.0
    %6195 = vmatpush1.xpose.msra.mxu0 0.0
    %6196 = vmatprep.subr.mxu0 0.0
    %6197 = vmatpush1.xpose.msra.mxu0 0.0
    %6198 = vmatprep.subr.mxu0 0.0
    %6199 = vmatpush1.xpose.msra.mxu0 0.0
    %6200 = vmatprep.subr.mxu0 0.0
    %6201 = vmatpush1.xpose.msra.mxu0 0.0
    %6202 = vmatprep.subr.mxu0 0.0
    %6203 = vmatpush1.xpose.msra.mxu0 0.0
    %6204 = vmatprep.subr.mxu0 0.0
    %6205 = vmatpush1.xpose.msra.mxu0 0.0
    %6206 = vmatprep.mubr.f32.mxu0 0.0
    %6207 = vmatmul.mubr.f32.gmra.mrb[0].mxu0 %v6137
    %v6208 = vpop.f32.mrb[0].mxu0
    %v6209 = vadd.f32 0.0, %v6208
    %v6210 = vpop.f32.mrb[0].mxu0
    %6211 = vdwg.mxu0
    %v6212 = vmul.f32 %v6209, 0.35355338
    %v6213 = vadd.f32 %v6212, %v657
    %v6214 = vsel %vm410, %v6213, -inf
    %6215 = vmax.xlane.f32.xlu0 %v6214
    %v6216 = vpop.xlane.xlu0 %6215
    %v6217 = vsub.f32 %v6213, %v6216
    %v6218 = vmul.f32 %v6217, 1.442695
    %v6219 = vpow.pop %v6218
    %v6220 = vsel %vm410, %v6219, 0.0
    %6221 = vadd.xlane.f32.xlu0 %v6220
    %v6222 = vpop.xlane.xlu0 %6221
    %v6223 = vrcp.pop %v6222
    %v6224 = vmul.f32 %v6219, %v6223
    %v6226 = vsel %vm410, %v6224, 0
    %6228 = vmatprep.subr.mxu0 0.0
    %6229 = vmatpush1.msra.mxu0 %v5897
    %6230 = vmatprep.subr.mxu0 0.0
    %6231 = vmatpush1.msra.mxu0 0.0
    %6232 = vmatprep.subr.mxu0 0.0
    %6233 = vmatpush1.msra.mxu0 0.0
    %6234 = vmatprep.subr.mxu0 0.0
    %6235 = vmatpush1.msra.mxu0 0.0
    %6236 = vmatprep.subr.mxu0 0.0
    %6237 = vmatpush1.msra.mxu0 0.0
    %6238 = vmatprep.subr.mxu0 0.0
    %6239 = vmatpush1.msra.mxu0 0.0
    %6240 = vmatprep.subr.mxu0 0.0
    %6241 = vmatpush1.msra.mxu0 0.0
    %6242 = vmatprep.subr.mxu0 0.0
    %6243 = vmatpush1.msra.mxu0 0.0
    %6244 = vmatprep.subr.mxu0 0.0
    %6245 = vmatpush1.msra.mxu0 0.0
    %6246 = vmatprep.subr.mxu0 0.0
    %6247 = vmatpush1.msra.mxu0 0.0
    %6248 = vmatprep.subr.mxu0 0.0
    %6249 = vmatpush1.msra.mxu0 0.0
    %6250 = vmatprep.subr.mxu0 0.0
    %6251 = vmatpush1.msra.mxu0 0.0
    %6252 = vmatprep.subr.mxu0 0.0
    %6253 = vmatpush1.msra.mxu0 0.0
    %6254 = vmatprep.subr.mxu0 0.0
    %6255 = vmatpush1.msra.mxu0 0.0
    %6256 = vmatprep.subr.mxu0 0.0
    %6257 = vmatpush1.msra.mxu0 0.0
    %6258 = vmatprep.subr.mxu0 0.0
    %6259 = vmatpush1.msra.mxu0 0.0
    %6260 = vmatprep.subr.mxu0 0.0
    %6261 = vmatpush1.msra.mxu0 0.0
    %6262 = vmatprep.subr.mxu0 0.0
    %6263 = vmatpush1.msra.mxu0 0.0
    %6264 = vmatprep.subr.mxu0 0.0
    %6265 = vmatpush1.msra.mxu0 0.0
    %6266 = vmatprep.subr.mxu0 0.0
    %6267 = vmatpush1.msra.mxu0 0.0
    %6268 = vmatprep.subr.mxu0 0.0
    %6269 = vmatpush1.msra.mxu0 0.0
    %6270 = vmatprep.subr.mxu0 0.0
    %6271 = vmatpush1.msra.mxu0 0.0
    %6272 = vmatprep.subr.mxu0 0.0
    %6273 = vmatpush1.msra.mxu0 0.0
    %6274 = vmatprep.subr.mxu0 0.0
    %6275 = vmatpush1.msra.mxu0 0.0
    %6276 = vmatprep.subr.mxu0 0.0
    %6277 = vmatpush1.msra.mxu0 0.0
    %6278 = vmatprep.subr.mxu0 0.0
    %6279 = vmatpush1.msra.mxu0 0.0
    %6280 = vmatprep.subr.mxu0 0.0
    %6281 = vmatpush1.msra.mxu0 0.0
    %6282 = vmatprep.subr.mxu0 0.0
    %6283 = vmatpush1.msra.mxu0 0.0
    %6284 = vmatprep.subr.mxu0 0.0
    %6285 = vmatpush1.msra.mxu0 0.0
    %6286 = vmatprep.subr.mxu0 0.0
    %6287 = vmatpush1.msra.mxu0 0.0
    %6288 = vmatprep.subr.mxu0 0.0
    %6289 = vmatpush1.msra.mxu0 0.0
    %6290 = vmatprep.subr.mxu0 0.0
    %6291 = vmatpush1.msra.mxu0 0.0
    %6292 = vmatprep.mubr.f32.mxu0 0.0
    %6293 = vmatmul.mubr.f32.gmra.mrb[0].mxu0 %v6226
    %v6294 = vpop.f32.mrb[0].mxu0
    %v6295 = vadd.f32 0.0, %v6294
    %v6296 = vpop.f32.mrb[0].mxu0
    %6297 = vdwg.mxu0
    %v6299 = vsel %vm410, %v6295, 0
    %6301 = vmatprep.subr.mxu0 0.0
    %6302 = vmatpush1.msra.mxu0 %v5656
    %6303 = vmatprep.subr.mxu0 0.0
    %6304 = vmatpush1.msra.mxu0 0.0
    %6305 = vmatprep.subr.mxu0 0.0
    %6306 = vmatpush1.msra.mxu0 0.0
    %6307 = vmatprep.subr.mxu0 0.0
    %6308 = vmatpush1.msra.mxu0 0.0
    %6309 = vmatprep.subr.mxu0 0.0
    %6310 = vmatpush1.msra.mxu0 0.0
    %6311 = vmatprep.subr.mxu0 0.0
    %6312 = vmatpush1.msra.mxu0 0.0
    %6313 = vmatprep.subr.mxu0 0.0
    %6314 = vmatpush1.msra.mxu0 0.0
    %6315 = vmatprep.subr.mxu0 0.0
    %6316 = vmatpush1.msra.mxu0 0.0
    %6317 = vmatprep.subr.mxu0 0.0
    %6318 = vmatpush1.msra.mxu0 0.0
    %6319 = vmatprep.subr.mxu0 0.0
    %6320 = vmatpush1.msra.mxu0 0.0
    %6321 = vmatprep.subr.mxu0 0.0
    %6322 = vmatpush1.msra.mxu0 0.0
    %6323 = vmatprep.subr.mxu0 0.0
    %6324 = vmatpush1.msra.mxu0 0.0
    %6325 = vmatprep.subr.mxu0 0.0
    %6326 = vmatpush1.msra.mxu0 0.0
    %6327 = vmatprep.subr.mxu0 0.0
    %6328 = vmatpush1.msra.mxu0 0.0
    %6329 = vmatprep.subr.mxu0 0.0
    %6330 = vmatpush1.msra.mxu0 0.0
    %6331 = vmatprep.subr.mxu0 0.0
    %6332 = vmatpush1.msra.mxu0 0.0
    %6333 = vmatprep.subr.mxu0 0.0
    %6334 = vmatpush1.msra.mxu0 0.0
    %6335 = vmatprep.subr.mxu0 0.0
    %6336 = vmatpush1.msra.mxu0 0.0
    %6337 = vmatprep.subr.mxu0 0.0
    %6338 = vmatpush1.msra.mxu0 0.0
    %6339 = vmatprep.subr.mxu0 0.0
    %6340 = vmatpush1.msra.mxu0 0.0
    %6341 = vmatprep.subr.mxu0 0.0
    %6342 = vmatpush1.msra.mxu0 0.0
    %6343 = vmatprep.subr.mxu0 0.0
    %6344 = vmatpush1.msra.mxu0 0.0
    %6345 = vmatprep.subr.mxu0 0.0
    %6346 = vmatpush1.msra.mxu0 0.0
    %6347 = vmatprep.subr.mxu0 0.0
    %6348 = vmatpush1.msra.mxu0 0.0
    %6349 = vmatprep.subr.mxu0 0.0
    %6350 = vmatpush1.msra.mxu0 0.0
    %6351 = vmatprep.subr.mxu0 0.0
    %6352 = vmatpush1.msra.mxu0 0.0
    %6353 = vmatprep.subr.mxu0 0.0
    %6354 = vmatpush1.msra.mxu0 0.0
    %6355 = vmatprep.subr.mxu0 0.0
    %6356 = vmatpush1.msra.mxu0 0.0
    %6357 = vmatprep.subr.mxu0 0.0
    %6358 = vmatpush1.msra.mxu0 0.0
    %6359 = vmatprep.subr.mxu0 0.0
    %6360 = vmatpush1.msra.mxu0 0.0
    %6361 = vmatprep.subr.mxu0 0.0
    %6362 = vmatpush1.msra.mxu0 0.0
    %6363 = vmatprep.subr.mxu0 0.0
    %6364 = vmatpush1.msra.mxu0 0.0
    %6365 = vmatprep.mubr.f32.mxu0 0.0
    %6366 = vmatmul.mubr.f32.gmra.mrb[0].mxu0 %v6299
    %v6367 = vpop.f32.mrb[0].mxu0
    %v6368 = vadd.f32 0.0, %v6367
    %v6369 = vpop.f32.mrb[0].mxu0
    %6370 = vdwg.mxu0
    %v6371 = vadd.f32 %v5633, %v6368
    %v6373 = vlaneseq
    %v6374 = vshrl.u32 %v6373, 7
    %v6375 = vsub.s32 0, %v6374
    %v6376 = vrot.slane %v3391, %v6375
    %v6378 = vadd.f32 %v6135, %v6376
    %v6379 = vadd.f32 %v6371, %v6376
    %v6380 = vadd.f32 %v3388, %v6378
    %v6381 = vadd.f32 %v3389, %v6379
    %v6382 = vsel %vm79, %v6380, 0.0
    %6383 = vadd.xlane.f32.xlu0 %v6382
    %v6384 = vpop.xlane.xlu0 %6383
    %v6385 = vsel %vm79, %v6381, 0.0
    %6386 = vadd.xlane.f32.xlu0 %v6385
    %v6387 = vpop.xlane.xlu0 %6386
    %v6388 = vmul.f32 %v6384, %v86
    %v6389 = vmul.f32 %v6387, %v86
    %v6390 = vsub.f32 %v6380, %v6388
    %v6391 = vsub.f32 %v6381, %v6389
    %v6392 = vmul.f32 %v6390, %v6390
    %v6393 = vmul.f32 %v6391, %v6391
    %v6394 = vsel %vm79, %v6392, 0.0
    %6395 = vadd.xlane.f32.xlu0 %v6394
    %v6396 = vpop.xlane.xlu0 %6395
    %v6397 = vsel %vm79, %v6393, 0.0
    %6398 = vadd.xlane.f32.xlu0 %v6397
    %v6399 = vpop.xlane.xlu0 %6398
    %v6400 = vmul.f32 %v6396, %v86
    %v6401 = vmul.f32 %v6399, %v86
    %v6402 = vadd.f32 %v6400, 1e-12
    %v6403 = vadd.f32 %v6401, 1e-12
    %v6404 = vrsqrt.pop %v6402
    %v6405 = vrsqrt.pop %v6403
    %v6406 = vmul.f32 %v6390, %v6404
    %v6407 = vmul.f32 %v6391, %v6405
    %v6409 = vlaneseq
    %v6410 = vshrl.u32 %v6409, 7
    %v6411 = vsub.s32 0, %v6410
    %v6412 = vrot.slane %v3393, %v6411
    %v6414 = vmul.f32 %v6406, %v6412
    %v6415 = vmul.f32 %v6407, %v6412
    %v6417 = vlaneseq
    %v6418 = vshrl.u32 %v6417, 7
    %v6419 = vsub.s32 0, %v6418
    %v6420 = vrot.slane %v3395, %v6419
    %v6422 = vadd.f32 %v6414, %v6420
    %v6423 = vadd.f32 %v6415, %v6420
    %v6425 = vlaneseq
    %v6426 = vshrl.u32 %v6425, 7
    %v6427 = vsub.s32 0, %v6426
    %v6428 = vrot.slane %v3402, %v6427
    %v6431 = vsel %vm79, %v6422, 0
    %v6434 = vsel %vm79, %v6423, 0
    %6436 = vmatprep.subr.mxu0 0.0
    %6437 = vmatpush1.msra.mxu0 %v3397
    %6438 = vmatprep.subr.mxu0 0.0
    %6439 = vmatpush1.msra.mxu0 %v3398
    %6440 = vmatprep.subr.mxu0 0.0
    %6441 = vmatpush1.msra.mxu0 %v3399
    %6442 = vmatprep.subr.mxu0 0.0
    %6443 = vmatpush1.msra.mxu0 %v3400
    %6444 = vmatprep.subr.mxu0 0.0
    %6445 = vmatpush1.msra.mxu0 0.0
    %6446 = vmatprep.subr.mxu0 0.0
    %6447 = vmatpush1.msra.mxu0 0.0
    %6448 = vmatprep.subr.mxu0 0.0
    %6449 = vmatpush1.msra.mxu0 0.0
    %6450 = vmatprep.subr.mxu0 0.0
    %6451 = vmatpush1.msra.mxu0 0.0
    %6452 = vmatprep.subr.mxu0 0.0
    %6453 = vmatpush1.msra.mxu0 0.0
    %6454 = vmatprep.subr.mxu0 0.0
    %6455 = vmatpush1.msra.mxu0 0.0
    %6456 = vmatprep.subr.mxu0 0.0
    %6457 = vmatpush1.msra.mxu0 0.0
    %6458 = vmatprep.subr.mxu0 0.0
    %6459 = vmatpush1.msra.mxu0 0.0
    %6460 = vmatprep.subr.mxu0 0.0
    %6461 = vmatpush1.msra.mxu0 0.0
    %6462 = vmatprep.subr.mxu0 0.0
    %6463 = vmatpush1.msra.mxu0 0.0
    %6464 = vmatprep.subr.mxu0 0.0
    %6465 = vmatpush1.msra.mxu0 0.0
    %6466 = vmatprep.subr.mxu0 0.0
    %6467 = vmatpush1.msra.mxu0 0.0
    %6468 = vmatprep.subr.mxu0 0.0
    %6469 = vmatpush1.msra.mxu0 0.0
    %6470 = vmatprep.subr.mxu0 0.0
    %6471 = vmatpush1.msra.mxu0 0.0
    %6472 = vmatprep.subr.mxu0 0.0
    %6473 = vmatpush1.msra.mxu0 0.0
    %6474 = vmatprep.subr.mxu0 0.0
    %6475 = vmatpush1.msra.mxu0 0.0
    %6476 = vmatprep.subr.mxu0 0.0
    %6477 = vmatpush1.msra.mxu0 0.0
    %6478 = vmatprep.subr.mxu0 0.0
    %6479 = vmatpush1.msra.mxu0 0.0
    %6480 = vmatprep.subr.mxu0 0.0
    %6481 = vmatpush1.msra.mxu0 0.0
    %6482 = vmatprep.subr.mxu0 0.0
    %6483 = vmatpush1.msra.mxu0 0.0
    %6484 = vmatprep.subr.mxu0 0.0
    %6485 = vmatpush1.msra.mxu0 0.0
    %6486 = vmatprep.subr.mxu0 0.0
    %6487 = vmatpush1.msra.mxu0 0.0
    %6488 = vmatprep.subr.mxu0 0.0
    %6489 = vmatpush1.msra.mxu0 0.0
    %6490 = vmatprep.subr.mxu0 0.0
    %6491 = vmatpush1.msra.mxu0 0.0
    %6492 = vmatprep.subr.mxu0 0.0
    %6493 = vmatpush1.msra.mxu0 0.0
    %6494 = vmatprep.subr.mxu0 0.0
    %6495 = vmatpush1.msra.mxu0 0.0
    %6496 = vmatprep.subr.mxu0 0.0
    %6497 = vmatpush1.msra.mxu0 0.0
    %6498 = vmatprep.subr.mxu0 0.0
    %6499 = vmatpush1.msra.mxu0 0.0
    %6500 = vmatprep.mubr.f32.mxu0 0.0
    %6501 = vmatmul.mubr.f32.gmra.mrb[0].mxu0 %v6431
    %v6502 = vpop.f32.mrb[0].mxu0
    %v6503 = vadd.f32 %v6428, %v6502
    %v6504 = vpop.f32.mrb[0].mxu0
    %6505 = vmatprep.mubr.f32.mxu0 0.0
    %6506 = vmatmul.mubr.f32.gmra.mrb[0].mxu0 %v6434
    %v6507 = vpop.f32.mrb[0].mxu0
    %v6508 = vadd.f32 %v6428, %v6507
    %v6509 = vpop.f32.mrb[0].mxu0
    %6510 = vdwg.mxu0
    %v6511 = vmul.f32 %v6503, 0.5
    %v6512 = vmul.f32 %v6508, 0.5
    %v6513 = vmul.f32 %v6503, 0.044715
    %v6514 = vmul.f32 %v6508, 0.044715
    %v6515 = vmul.f32 %v6513, %v6503
    %v6516 = vmul.f32 %v6514, %v6508
    %v6517 = vmul.f32 %v6515, %v6503
    %v6518 = vmul.f32 %v6516, %v6508
    %v6519 = vadd.f32 %v6503, %v6517
    %v6520 = vadd.f32 %v6508, %v6518
    %v6521 = vmul.f32 %v6519, 0.7978846
    %v6522 = vmul.f32 %v6520, 0.7978846
    %v6523 = vtanh.pop %v6521
    %v6524 = vtanh.pop %v6522
    %v6525 = vadd.f32 %v6523, 1.0
    %v6526 = vadd.f32 %v6524, 1.0
    %v6527 = vmul.f32 %v6511, %v6525
    %v6528 = vmul.f32 %v6512, %v6526
    %v6530 = vlaneseq
    %v6531 = vshrl.u32 %v6530, 7
    %v6532 = vsub.s32 0, %v6531
    %v6533 = vrot.slane %v3413, %v6532
    %v6536 = vsel %vm3264, %v6527, 0
    %v6539 = vsel %vm3264, %v6528, 0
    %6541 = vmatprep.subr.mxu0 0.0
    %6542 = vmatpush1.msra.mxu0 %v3404
    %6543 = vmatprep.subr.mxu0 0.0
    %6544 = vmatpush1.msra.mxu0 %v3405
    %6545 = vmatprep.subr.mxu0 0.0
    %6546 = vmatpush1.msra.mxu0 %v3406
    %6547 = vmatprep.subr.mxu0 0.0
    %6548 = vmatpush1.msra.mxu0 %v3407
    %6549 = vmatprep.subr.mxu0 0.0
    %6550 = vmatpush1.msra.mxu0 %v3408
    %6551 = vmatprep.subr.mxu0 0.0
    %6552 = vmatpush1.msra.mxu0 %v3409
    %6553 = vmatprep.subr.mxu0 0.0
    %6554 = vmatpush1.msra.mxu0 %v3410
    %6555 = vmatprep.subr.mxu0 0.0
    %6556 = vmatpush1.msra.mxu0 %v3411
    %6557 = vmatprep.subr.mxu0 0.0
    %6558 = vmatpush1.msra.mxu0 0.0
    %6559 = vmatprep.subr.mxu0 0.0
    %6560 = vmatpush1.msra.mxu0 0.0
    %6561 = vmatprep.subr.mxu0 0.0
    %6562 = vmatpush1.msra.mxu0 0.0
    %6563 = vmatprep.subr.mxu0 0.0
    %6564 = vmatpush1.msra.mxu0 0.0
    %6565 = vmatprep.subr.mxu0 0.0
    %6566 = vmatpush1.msra.mxu0 0.0
    %6567 = vmatprep.subr.mxu0 0.0
    %6568 = vmatpush1.msra.mxu0 0.0
    %6569 = vmatprep.subr.mxu0 0.0
    %6570 = vmatpush1.msra.mxu0 0.0
    %6571 = vmatprep.subr.mxu0 0.0
    %6572 = vmatpush1.msra.mxu0 0.0
    %6573 = vmatprep.subr.mxu0 0.0
    %6574 = vmatpush1.msra.mxu0 0.0
    %6575 = vmatprep.subr.mxu0 0.0
    %6576 = vmatpush1.msra.mxu0 0.0
    %6577 = vmatprep.subr.mxu0 0.0
    %6578 = vmatpush1.msra.mxu0 0.0
    %6579 = vmatprep.subr.mxu0 0.0
    %6580 = vmatpush1.msra.mxu0 0.0
    %6581 = vmatprep.subr.mxu0 0.0
    %6582 = vmatpush1.msra.mxu0 0.0
    %6583 = vmatprep.subr.mxu0 0.0
    %6584 = vmatpush1.msra.mxu0 0.0
    %6585 = vmatprep.subr.mxu0 0.0
    %6586 = vmatpush1.msra.mxu0 0.0
    %6587 = vmatprep.subr.mxu0 0.0
    %6588 = vmatpush1.msra.mxu0 0.0
    %6589 = vmatprep.subr.mxu0 0.0
    %6590 = vmatpush1.msra.mxu0 0.0
    %6591 = vmatprep.subr.mxu0 0.0
    %6592 = vmatpush1.msra.mxu0 0.0
    %6593 = vmatprep.subr.mxu0 0.0
    %6594 = vmatpush1.msra.mxu0 0.0
    %6595 = vmatprep.subr.mxu0 0.0
    %6596 = vmatpush1.msra.mxu0 0.0
    %6597 = vmatprep.subr.mxu0 0.0
    %6598 = vmatpush1.msra.mxu0 0.0
    %6599 = vmatprep.subr.mxu0 0.0
    %6600 = vmatpush1.msra.mxu0 0.0
    %6601 = vmatprep.subr.mxu0 0.0
    %6602 = vmatpush1.msra.mxu0 0.0
    %6603 = vmatprep.subr.mxu0 0.0
    %6604 = vmatpush1.msra.mxu0 0.0
    %6605 = vmatprep.mubr.f32.mxu0 0.0
    %6606 = vmatmul.mubr.f32.gmra.mrb[0].mxu0 %v6536
    %v6607 = vpop.f32.mrb[0].mxu0
    %v6608 = vadd.f32 %v6533, %v6607
    %v6609 = vpop.f32.mrb[0].mxu0
    %6610 = vmatprep.mubr.f32.mxu0 0.0
    %6611 = vmatmul.mubr.f32.gmra.mrb[0].mxu0 %v6539
    %v6612 = vpop.f32.mrb[0].mxu0
    %v6613 = vadd.f32 %v6533, %v6612
    %v6614 = vpop.f32.mrb[0].mxu0
    %6615 = vdwg.mxu0
    %v6616 = vadd.f32 %v6422, %v6608
    %v6617 = vadd.f32 %v6423, %v6613
    %v6618 = vsel %vm79, %v6616, 0.0
    %6619 = vadd.xlane.f32.xlu0 %v6618
    %v6620 = vpop.xlane.xlu0 %6619
    %v6621 = vsel %vm79, %v6617, 0.0
    %6622 = vadd.xlane.f32.xlu0 %v6621
    %v6623 = vpop.xlane.xlu0 %6622
    %v6624 = vmul.f32 %v6620, %v86
    %v6625 = vmul.f32 %v6623, %v86
    %v6626 = vsub.f32 %v6616, %v6624
    %v6627 = vsub.f32 %v6617, %v6625
    %v6628 = vmul.f32 %v6626, %v6626
    %v6629 = vmul.f32 %v6627, %v6627
    %v6630 = vsel %vm79, %v6628, 0.0
    %6631 = vadd.xlane.f32.xlu0 %v6630
    %v6632 = vpop.xlane.xlu0 %6631
    %v6633 = vsel %vm79, %v6629, 0.0
    %6634 = vadd.xlane.f32.xlu0 %v6633
    %v6635 = vpop.xlane.xlu0 %6634
    %v6636 = vmul.f32 %v6632, %v86
    %v6637 = vmul.f32 %v6635, %v86
    %v6638 = vadd.f32 %v6636, 1e-12
    %v6639 = vadd.f32 %v6637, 1e-12
    %v6640 = vrsqrt.pop %v6638
    %v6641 = vrsqrt.pop %v6639
    %v6642 = vmul.f32 %v6626, %v6640
    %v6643 = vmul.f32 %v6627, %v6641
    %v6645 = vlaneseq
    %v6646 = vshrl.u32 %v6645, 7
    %v6647 = vsub.s32 0, %v6646
    %v6648 = vrot.slane %v3415, %v6647
    %v6650 = vmul.f32 %v6642, %v6648
    %v6651 = vmul.f32 %v6643, %v6648
    %v6653 = vlaneseq
    %v6654 = vshrl.u32 %v6653, 7
    %v6655 = vsub.s32 0, %v6654
    %v6656 = vrot.slane %v3417, %v6655
    %v6658 = vadd.f32 %v6650, %v6656
    %v6659 = vadd.f32 %v6651, %v6656
    %v6660 = vld [vmem:[%s2] sm:$0xff]
    %v6661 = vld [vmem:[%s2 + $0x8] sm:$0xff]
    %6663 = vset.pattern.permute.xlu0 0
    %6664 = vperm.xlu0 %6663, %v6660
    %v6665 = vpop.permute.xlu0 %6664
    %6668 = vset.pattern.permute.xlu0 0
    %6669 = vperm.xlu0 %6668, %v6661
    %v6670 = vpop.permute.xlu0 %6669
    %v6672 = vmul.f32 %v6658, %v6665
    %v6673 = vmul.f32 %v6659, %v6670
    %v6674 = vsel %vm79, %v6672, 0.0
    %v6675 = vrot.slane %v6674, 4
    %v6676 = vadd.f32 %v6674, %v6675
    %v6677 = vrot.slane %v6676, 2
    %v6678 = vadd.f32 %v6676, %v6677
    %v6679 = vrot.slane %v6678, 1
    %v6680 = vadd.f32 %v6678, %v6679
    %vm6681 = vcmask 57344
    %v6682 = vsel %vm6681, %v123, 0.0
    %6683 = vadd.xlane.f32.xlu0 %v6682
    %v6684 = vpop.xlane.xlu0 %6683
    %v6685 = vadd.f32 %v6684, 1e-06
    %v6686 = vrcp.pop %v6685
    %v6687 = vmul.f32 %v6680, %v6686
    %v6688 = vsel %vm79, %v6673, 0.0
    %v6689 = vrot.slane %v6688, 4
    %v6690 = vadd.f32 %v6688, %v6689
    %v6691 = vrot.slane %v6690, 2
    %v6692 = vadd.f32 %v6690, %v6691
    %v6693 = vrot.slane %v6692, 1
    %v6694 = vadd.f32 %v6692, %v6693
    %vm6695 = vcmask 58369
    %v6696 = vsel %vm6695, %v123, 0.0
    %6697 = vadd.xlane.f32.xlu0 %v6696
    %v6698 = vpop.xlane.xlu0 %6697
    %v6699 = vadd.f32 %v6698, 1e-06
    %v6700 = vrcp.pop %v6699
    %v6701 = vmul.f32 %v6694, %v6700
    %vm6702 = vcmask 1040384
    %v6703 = vsel %vm6702, %v6687, %v6701
    %v6704 = vld [vmem:[%s21] sm:$0xff]
    %v6705 = vld [vmem:[%s21 + $0x8] sm:$0xff]
    %v6706 = vld [vmem:[%s21 + $0x10] sm:$0xff]
    %v6707 = vld [vmem:[%s21 + $0x18] sm:$0xff]
    %v6708 = vld [vmem:[%s21 + $0x20] sm:$0xff]
    %v6709 = vld [vmem:[%s21 + $0x28] sm:$0xff]
    %v6710 = vld [vmem:[%s21 + $0x30] sm:$0xff]
    %v6711 = vld [vmem:[%s21 + $0x38] sm:$0xff]
    %v6712 = vld [vmem:[%s21 + $0x40] sm:$0xff]
    %v6713 = vld [vmem:[%s21 + $0x48] sm:$0xff]
    %v6714 = vld [vmem:[%s21 + $0x50] sm:$0xff]
    %v6715 = vld [vmem:[%s21 + $0x58] sm:$0xff]
    %v6716 = vld [vmem:[%s21 + $0x60] sm:$0xff]
    %v6717 = vld [vmem:[%s21 + $0x68] sm:$0xff]
    %v6718 = vld [vmem:[%s21 + $0x70] sm:$0xff]
    %v6719 = vld [vmem:[%s21 + $0x78] sm:$0xff]
    %v6720 = vld [vmem:[%s21 + $0x80] sm:$0xff]
    %v6721 = vld [vmem:[%s21 + $0x88] sm:$0xff]
    %v6722 = vld [vmem:[%s21 + $0x90] sm:$0xff]
    %v6723 = vld [vmem:[%s21 + $0x98] sm:$0xff]
    %v6724 = vld [vmem:[%s21 + $0xa0] sm:$0xff]
    %v6725 = vld [vmem:[%s21 + $0xa8] sm:$0xff]
    %v6726 = vld [vmem:[%s21 + $0xb0] sm:$0xff]
    %v6727 = vld [vmem:[%s21 + $0xb8] sm:$0xff]
    %v6728 = vld [vmem:[%s21 + $0xc0] sm:$0xff]
    %v6729 = vld [vmem:[%s21 + $0xc8] sm:$0xff]
    %v6730 = vld [vmem:[%s21 + $0xd0] sm:$0xff]
    %v6731 = vld [vmem:[%s21 + $0xd8] sm:$0xff]
    %v6732 = vld [vmem:[%s21 + $0xe0] sm:$0xff]
    %v6733 = vld [vmem:[%s21 + $0xe8] sm:$0xff]
    %v6734 = vld [vmem:[%s21 + $0xf0] sm:$0xff]
    %v6735 = vld [vmem:[%s21 + $0xf8] sm:$0xff]
    %v6736 = vld [vmem:[%s21 + $0x100] sm:$0xff]
    %v6737 = vld [vmem:[%s21 + $0x108] sm:$0xff]
    %v6738 = vld [vmem:[%s21 + $0x110] sm:$0xff]
    %v6739 = vld [vmem:[%s21 + $0x118] sm:$0xff]
    %v6740 = vld [vmem:[%s21 + $0x120] sm:$0xff]
    %v6741 = vld [vmem:[%s21 + $0x128] sm:$0xff]
    %v6742 = vld [vmem:[%s21 + $0x130] sm:$0xff]
    %v6743 = vld [vmem:[%s21 + $0x138] sm:$0xff]
    %v6744 = vld [vmem:[%s21 + $0x140] sm:$0xff]
    %v6745 = vld [vmem:[%s21 + $0x148] sm:$0xff]
    %v6746 = vld [vmem:[%s21 + $0x150] sm:$0xff]
    %v6747 = vld [vmem:[%s21 + $0x158] sm:$0xff]
    %v6748 = vld [vmem:[%s21 + $0x160] sm:$0xff]
    %v6749 = vld [vmem:[%s21 + $0x168] sm:$0xff]
    %v6750 = vld [vmem:[%s21 + $0x170] sm:$0xff]
    %v6751 = vld [vmem:[%s21 + $0x178] sm:$0xff]
    %v6752 = vld [vmem:[%s21 + $0x180] sm:$0xff]
    %v6753 = vld [vmem:[%s21 + $0x188] sm:$0xff]
    %v6754 = vld [vmem:[%s21 + $0x190] sm:$0xff]
    %v6755 = vld [vmem:[%s21 + $0x198] sm:$0xff]
    %v6756 = vld [vmem:[%s21 + $0x1a0] sm:$0xff]
    %v6757 = vld [vmem:[%s21 + $0x1a8] sm:$0xff]
    %v6758 = vld [vmem:[%s21 + $0x1b0] sm:$0xff]
    %v6759 = vld [vmem:[%s21 + $0x1b8] sm:$0xff]
    %v6760 = vld [vmem:[%s21 + $0x1c0] sm:$0xff]
    %v6761 = vld [vmem:[%s21 + $0x1c8] sm:$0xff]
    %v6762 = vld [vmem:[%s21 + $0x1d0] sm:$0xff]
    %v6763 = vld [vmem:[%s21 + $0x1d8] sm:$0xff]
    %v6764 = vld [vmem:[%s21 + $0x1e0] sm:$0xff]
    %v6765 = vld [vmem:[%s21 + $0x1e8] sm:$0xff]
    %v6766 = vld [vmem:[%s21 + $0x1f0] sm:$0xff]
    %v6767 = vld [vmem:[%s21 + $0x1f8] sm:$0xff]
    %v6768 = vld [vmem:[%s22] sm:$0xff]
    %v6769 = vld [vmem:[%s22 + $0x8] sm:$0xff]
    %v6772 = vlaneseq
    %v6773 = vshrl.u32 %v6772, 7
    %v6774 = vsub.s32 0, %v6773
    %v6775 = vrot.slane %v6768, %v6774
    %v6776 = vlaneseq
    %v6777 = vshrl.u32 %v6776, 7
    %v6778 = vsub.s32 1, %v6777
    %v6779 = vrot.slane %v6768, %v6778
    %v6780 = vlaneseq
    %v6781 = vshrl.u32 %v6780, 7
    %v6782 = vsub.s32 2, %v6781
    %v6783 = vrot.slane %v6768, %v6782
    %v6784 = vlaneseq
    %v6785 = vshrl.u32 %v6784, 7
    %v6786 = vsub.s32 3, %v6785
    %v6787 = vrot.slane %v6768, %v6786
    %v6788 = vlaneseq
    %v6789 = vshrl.u32 %v6788, 7
    %v6790 = vsub.s32 4, %v6789
    %v6791 = vrot.slane %v6768, %v6790
    %v6792 = vlaneseq
    %v6793 = vshrl.u32 %v6792, 7
    %v6794 = vsub.s32 5, %v6793
    %v6795 = vrot.slane %v6768, %v6794
    %v6796 = vlaneseq
    %v6797 = vshrl.u32 %v6796, 7
    %v6798 = vsub.s32 6, %v6797
    %v6799 = vrot.slane %v6768, %v6798
    %v6800 = vlaneseq
    %v6801 = vshrl.u32 %v6800, 7
    %v6802 = vsub.s32 7, %v6801
    %v6803 = vrot.slane %v6768, %v6802
    %v6804 = vlaneseq
    %v6805 = vshrl.u32 %v6804, 7
    %v6806 = vsub.s32 0, %v6805
    %v6807 = vrot.slane %v6769, %v6806
    %v6808 = vlaneseq
    %v6809 = vshrl.u32 %v6808, 7
    %v6810 = vsub.s32 1, %v6809
    %v6811 = vrot.slane %v6769, %v6810
    %v6812 = vlaneseq
    %v6813 = vshrl.u32 %v6812, 7
    %v6814 = vsub.s32 2, %v6813
    %v6815 = vrot.slane %v6769, %v6814
    %v6816 = vlaneseq
    %v6817 = vshrl.u32 %v6816, 7
    %v6818 = vsub.s32 3, %v6817
    %v6819 = vrot.slane %v6769, %v6818
    %v6820 = vlaneseq
    %v6821 = vshrl.u32 %v6820, 7
    %v6822 = vsub.s32 4, %v6821
    %v6823 = vrot.slane %v6769, %v6822
    %v6824 = vlaneseq
    %v6825 = vshrl.u32 %v6824, 7
    %v6826 = vsub.s32 5, %v6825
    %v6827 = vrot.slane %v6769, %v6826
    %v6828 = vlaneseq
    %v6829 = vshrl.u32 %v6828, 7
    %v6830 = vsub.s32 6, %v6829
    %v6831 = vrot.slane %v6769, %v6830
    %v6832 = vlaneseq
    %v6833 = vshrl.u32 %v6832, 7
    %v6834 = vsub.s32 7, %v6833
    %v6835 = vrot.slane %v6769, %v6834
    %v6853 = vsel %vm79, %v6703, 0
    %6855 = vmatprep.subr.mxu0 %v6705
    %6856 = vmatpush1.msra.mxu0 %v6704
    %6857 = vmatprep.subr.mxu0 %v6721
    %6858 = vmatpush1.msra.mxu0 %v6720
    %6859 = vmatprep.subr.mxu0 %v6737
    %6860 = vmatpush1.msra.mxu0 %v6736
    %6861 = vmatprep.subr.mxu0 %v6753
    %6862 = vmatpush1.msra.mxu0 %v6752
    %6863 = vmatprep.subr.mxu0 0.0
    %6864 = vmatpush1.msra.mxu0 0.0
    %6865 = vmatprep.subr.mxu0 0.0
    %6866 = vmatpush1.msra.mxu0 0.0
    %6867 = vmatprep.subr.mxu0 0.0
    %6868 = vmatpush1.msra.mxu0 0.0
    %6869 = vmatprep.subr.mxu0 0.0
    %6870 = vmatpush1.msra.mxu0 0.0
    %6871 = vmatprep.subr.mxu0 0.0
    %6872 = vmatpush1.msra.mxu0 0.0
    %6873 = vmatprep.subr.mxu0 0.0
    %6874 = vmatpush1.msra.mxu0 0.0
    %6875 = vmatprep.subr.mxu0 0.0
    %6876 = vmatpush1.msra.mxu0 0.0
    %6877 = vmatprep.subr.mxu0 0.0
    %6878 = vmatpush1.msra.mxu0 0.0
    %6879 = vmatprep.subr.mxu0 0.0
    %6880 = vmatpush1.msra.mxu0 0.0
    %6881 = vmatprep.subr.mxu0 0.0
    %6882 = vmatpush1.msra.mxu0 0.0
    %6883 = vmatprep.subr.mxu0 0.0
    %6884 = vmatpush1.msra.mxu0 0.0
    %6885 = vmatprep.subr.mxu0 0.0
    %6886 = vmatpush1.msra.mxu0 0.0
    %6887 = vmatprep.subr.mxu0 0.0
    %6888 = vmatpush1.msra.mxu0 0.0
    %6889 = vmatprep.subr.mxu0 0.0
    %6890 = vmatpush1.msra.mxu0 0.0
    %6891 = vmatprep.subr.mxu0 0.0
    %6892 = vmatpush1.msra.mxu0 0.0
    %6893 = vmatprep.subr.mxu0 0.0
    %6894 = vmatpush1.msra.mxu0 0.0
    %6895 = vmatprep.subr.mxu0 0.0
    %6896 = vmatpush1.msra.mxu0 0.0
    %6897 = vmatprep.subr.mxu0 0.0
    %6898 = vmatpush1.msra.mxu0 0.0
    %6899 = vmatprep.subr.mxu0 0.0
    %6900 = vmatpush1.msra.mxu0 0.0
    %6901 = vmatprep.subr.mxu0 0.0
    %6902 = vmatpush1.msra.mxu0 0.0
    %6903 = vmatprep.subr.mxu0 0.0
    %6904 = vmatpush1.msra.mxu0 0.0
    %6905 = vmatprep.subr.mxu0 0.0
    %6906 = vmatpush1.msra.mxu0 0.0
    %6907 = vmatprep.subr.mxu0 0.0
    %6908 = vmatpush1.msra.mxu0 0.0
    %6909 = vmatprep.subr.mxu0 0.0
    %6910 = vmatpush1.msra.mxu0 0.0
    %6911 = vmatprep.subr.mxu0 0.0
    %6912 = vmatpush1.msra.mxu0 0.0
    %6913 = vmatprep.subr.mxu0 0.0
    %6914 = vmatpush1.msra.mxu0 0.0
    %6915 = vmatprep.subr.mxu0 0.0
    %6916 = vmatpush1.msra.mxu0 0.0
    %6917 = vmatprep.subr.mxu0 0.0
    %6918 = vmatpush1.msra.mxu0 0.0
    %6919 = vmatprep.mubr.f32.mxu0 0.0
    %6920 = vmatmul.mubr.f32.gmra.mrb[0].mxu0 %v6853
    %v6921 = vpop.f32.mrb[0].mxu0
    %v6922 = vadd.f32 %v6775, %v6921
    %v6923 = vpop.f32.mrb[0].mxu0
    %v6924 = vadd.f32 %v6779, %v6923
    %6925 = vdwg.mxu0
    %6926 = vmatprep.subr.mxu0 %v6707
    %6927 = vmatpush1.msra.mxu0 %v6706
    %6928 = vmatprep.subr.mxu0 %v6723
    %6929 = vmatpush1.msra.mxu0 %v6722
    %6930 = vmatprep.subr.mxu0 %v6739
    %6931 = vmatpush1.msra.mxu0 %v6738
    %6932 = vmatprep.subr.mxu0 %v6755
    %6933 = vmatpush1.msra.mxu0 %v6754
    %6934 = vmatprep.subr.mxu0 0.0
    %6935 = vmatpush1.msra.mxu0 0.0
    %6936 = vmatprep.subr.mxu0 0.0
    %6937 = vmatpush1.msra.mxu0 0.0
    %6938 = vmatprep.subr.mxu0 0.0
    %6939 = vmatpush1.msra.mxu0 0.0
    %6940 = vmatprep.subr.mxu0 0.0
    %6941 = vmatpush1.msra.mxu0 0.0
    %6942 = vmatprep.subr.mxu0 0.0
    %6943 = vmatpush1.msra.mxu0 0.0
    %6944 = vmatprep.subr.mxu0 0.0
    %6945 = vmatpush1.msra.mxu0 0.0
    %6946 = vmatprep.subr.mxu0 0.0
    %6947 = vmatpush1.msra.mxu0 0.0
    %6948 = vmatprep.subr.mxu0 0.0
    %6949 = vmatpush1.msra.mxu0 0.0
    %6950 = vmatprep.subr.mxu0 0.0
    %6951 = vmatpush1.msra.mxu0 0.0
    %6952 = vmatprep.subr.mxu0 0.0
    %6953 = vmatpush1.msra.mxu0 0.0
    %6954 = vmatprep.subr.mxu0 0.0
    %6955 = vmatpush1.msra.mxu0 0.0
    %6956 = vmatprep.subr.mxu0 0.0
    %6957 = vmatpush1.msra.mxu0 0.0
    %6958 = vmatprep.subr.mxu0 0.0
    %6959 = vmatpush1.msra.mxu0 0.0
    %6960 = vmatprep.subr.mxu0 0.0
    %6961 = vmatpush1.msra.mxu0 0.0
    %6962 = vmatprep.subr.mxu0 0.0
    %6963 = vmatpush1.msra.mxu0 0.0
    %6964 = vmatprep.subr.mxu0 0.0
    %6965 = vmatpush1.msra.mxu0 0.0
    %6966 = vmatprep.subr.mxu0 0.0
    %6967 = vmatpush1.msra.mxu0 0.0
    %6968 = vmatprep.subr.mxu0 0.0
    %6969 = vmatpush1.msra.mxu0 0.0
    %6970 = vmatprep.subr.mxu0 0.0
    %6971 = vmatpush1.msra.mxu0 0.0
    %6972 = vmatprep.subr.mxu0 0.0
    %6973 = vmatpush1.msra.mxu0 0.0
    %6974 = vmatprep.subr.mxu0 0.0
    %6975 = vmatpush1.msra.mxu0 0.0
    %6976 = vmatprep.subr.mxu0 0.0
    %6977 = vmatpush1.msra.mxu0 0.0
    %6978 = vmatprep.subr.mxu0 0.0
    %6979 = vmatpush1.msra.mxu0 0.0
    %6980 = vmatprep.subr.mxu0 0.0
    %6981 = vmatpush1.msra.mxu0 0.0
    %6982 = vmatprep.subr.mxu0 0.0
    %6983 = vmatpush1.msra.mxu0 0.0
    %6984 = vmatprep.subr.mxu0 0.0
    %6985 = vmatpush1.msra.mxu0 0.0
    %6986 = vmatprep.subr.mxu0 0.0
    %6987 = vmatpush1.msra.mxu0 0.0
    %6988 = vmatprep.subr.mxu0 0.0
    %6989 = vmatpush1.msra.mxu0 0.0
    %6990 = vmatprep.mubr.f32.mxu0 0.0
    %6991 = vmatmul.mubr.f32.gmra.mrb[0].mxu0 %v6853
    %v6992 = vpop.f32.mrb[0].mxu0
    %v6993 = vadd.f32 %v6783, %v6992
    %v6994 = vpop.f32.mrb[0].mxu0
    %v6995 = vadd.f32 %v6787, %v6994
    %6996 = vdwg.mxu0
    %6997 = vmatprep.subr.mxu0 %v6709
    %6998 = vmatpush1.msra.mxu0 %v6708
    %6999 = vmatprep.subr.mxu0 %v6725
    %7000 = vmatpush1.msra.mxu0 %v6724
    %7001 = vmatprep.subr.mxu0 %v6741
    %7002 = vmatpush1.msra.mxu0 %v6740
    %7003 = vmatprep.subr.mxu0 %v6757
    %7004 = vmatpush1.msra.mxu0 %v6756
    %7005 = vmatprep.subr.mxu0 0.0
    %7006 = vmatpush1.msra.mxu0 0.0
    %7007 = vmatprep.subr.mxu0 0.0
    %7008 = vmatpush1.msra.mxu0 0.0
    %7009 = vmatprep.subr.mxu0 0.0
    %7010 = vmatpush1.msra.mxu0 0.0
    %7011 = vmatprep.subr.mxu0 0.0
    %7012 = vmatpush1.msra.mxu0 0.0
    %7013 = vmatprep.subr.mxu0 0.0
    %7014 = vmatpush1.msra.mxu0 0.0
    %7015 = vmatprep.subr.mxu0 0.0
    %7016 = vmatpush1.msra.mxu0 0.0
    %7017 = vmatprep.subr.mxu0 0.0
    %7018 = vmatpush1.msra.mxu0 0.0
    %7019 = vmatprep.subr.mxu0 0.0
    %7020 = vmatpush1.msra.mxu0 0.0
    %7021 = vmatprep.subr.mxu0 0.0
    %7022 = vmatpush1.msra.mxu0 0.0
    %7023 = vmatprep.subr.mxu0 0.0
    %7024 = vmatpush1.msra.mxu0 0.0
    %7025 = vmatprep.subr.mxu0 0.0
    %7026 = vmatpush1.msra.mxu0 0.0
    %7027 = vmatprep.subr.mxu0 0.0
    %7028 = vmatpush1.msra.mxu0 0.0
    %7029 = vmatprep.subr.mxu0 0.0
    %7030 = vmatpush1.msra.mxu0 0.0
    %7031 = vmatprep.subr.mxu0 0.0
    %7032 = vmatpush1.msra.mxu0 0.0
    %7033 = vmatprep.subr.mxu0 0.0
    %7034 = vmatpush1.msra.mxu0 0.0
    %7035 = vmatprep.subr.mxu0 0.0
    %7036 = vmatpush1.msra.mxu0 0.0
    %7037 = vmatprep.subr.mxu0 0.0
    %7038 = vmatpush1.msra.mxu0 0.0
    %7039 = vmatprep.subr.mxu0 0.0
    %7040 = vmatpush1.msra.mxu0 0.0
    %7041 = vmatprep.subr.mxu0 0.0
    %7042 = vmatpush1.msra.mxu0 0.0
    %7043 = vmatprep.subr.mxu0 0.0
    %7044 = vmatpush1.msra.mxu0 0.0
    %7045 = vmatprep.subr.mxu0 0.0
    %7046 = vmatpush1.msra.mxu0 0.0
    %7047 = vmatprep.subr.mxu0 0.0
    %7048 = vmatpush1.msra.mxu0 0.0
    %7049 = vmatprep.subr.mxu0 0.0
    %7050 = vmatpush1.msra.mxu0 0.0
    %7051 = vmatprep.subr.mxu0 0.0
    %7052 = vmatpush1.msra.mxu0 0.0
    %7053 = vmatprep.subr.mxu0 0.0
    %7054 = vmatpush1.msra.mxu0 0.0
    %7055 = vmatprep.subr.mxu0 0.0
    %7056 = vmatpush1.msra.mxu0 0.0
    %7057 = vmatprep.subr.mxu0 0.0
    %7058 = vmatpush1.msra.mxu0 0.0
    %7059 = vmatprep.subr.mxu0 0.0
    %7060 = vmatpush1.msra.mxu0 0.0
    %7061 = vmatprep.mubr.f32.mxu0 0.0
    %7062 = vmatmul.mubr.f32.gmra.mrb[0].mxu0 %v6853
    %v7063 = vpop.f32.mrb[0].mxu0
    %v7064 = vadd.f32 %v6791, %v7063
    %v7065 = vpop.f32.mrb[0].mxu0
    %v7066 = vadd.f32 %v6795, %v7065
    %7067 = vdwg.mxu0
    %7068 = vmatprep.subr.mxu0 %v6711
    %7069 = vmatpush1.msra.mxu0 %v6710
    %7070 = vmatprep.subr.mxu0 %v6727
    %7071 = vmatpush1.msra.mxu0 %v6726
    %7072 = vmatprep.subr.mxu0 %v6743
    %7073 = vmatpush1.msra.mxu0 %v6742
    %7074 = vmatprep.subr.mxu0 %v6759
    %7075 = vmatpush1.msra.mxu0 %v6758
    %7076 = vmatprep.subr.mxu0 0.0
    %7077 = vmatpush1.msra.mxu0 0.0
    %7078 = vmatprep.subr.mxu0 0.0
    %7079 = vmatpush1.msra.mxu0 0.0
    %7080 = vmatprep.subr.mxu0 0.0
    %7081 = vmatpush1.msra.mxu0 0.0
    %7082 = vmatprep.subr.mxu0 0.0
    %7083 = vmatpush1.msra.mxu0 0.0
    %7084 = vmatprep.subr.mxu0 0.0
    %7085 = vmatpush1.msra.mxu0 0.0
    %7086 = vmatprep.subr.mxu0 0.0
    %7087 = vmatpush1.msra.mxu0 0.0
    %7088 = vmatprep.subr.mxu0 0.0
    %7089 = vmatpush1.msra.mxu0 0.0
    %7090 = vmatprep.subr.mxu0 0.0
    %7091 = vmatpush1.msra.mxu0 0.0
    %7092 = vmatprep.subr.mxu0 0.0
    %7093 = vmatpush1.msra.mxu0 0.0
    %7094 = vmatprep.subr.mxu0 0.0
    %7095 = vmatpush1.msra.mxu0 0.0
    %7096 = vmatprep.subr.mxu0 0.0
    %7097 = vmatpush1.msra.mxu0 0.0
    %7098 = vmatprep.subr.mxu0 0.0
    %7099 = vmatpush1.msra.mxu0 0.0
    %7100 = vmatprep.subr.mxu0 0.0
    %7101 = vmatpush1.msra.mxu0 0.0
    %7102 = vmatprep.subr.mxu0 0.0
    %7103 = vmatpush1.msra.mxu0 0.0
    %7104 = vmatprep.subr.mxu0 0.0
    %7105 = vmatpush1.msra.mxu0 0.0
    %7106 = vmatprep.subr.mxu0 0.0
    %7107 = vmatpush1.msra.mxu0 0.0
    %7108 = vmatprep.subr.mxu0 0.0
    %7109 = vmatpush1.msra.mxu0 0.0
    %7110 = vmatprep.subr.mxu0 0.0
    %7111 = vmatpush1.msra.mxu0 0.0
    %7112 = vmatprep.subr.mxu0 0.0
    %7113 = vmatpush1.msra.mxu0 0.0
    %7114 = vmatprep.subr.mxu0 0.0
    %7115 = vmatpush1.msra.mxu0 0.0
    %7116 = vmatprep.subr.mxu0 0.0
    %7117 = vmatpush1.msra.mxu0 0.0
    %7118 = vmatprep.subr.mxu0 0.0
    %7119 = vmatpush1.msra.mxu0 0.0
    %7120 = vmatprep.subr.mxu0 0.0
    %7121 = vmatpush1.msra.mxu0 0.0
    %7122 = vmatprep.subr.mxu0 0.0
    %7123 = vmatpush1.msra.mxu0 0.0
    %7124 = vmatprep.subr.mxu0 0.0
    %7125 = vmatpush1.msra.mxu0 0.0
    %7126 = vmatprep.subr.mxu0 0.0
    %7127 = vmatpush1.msra.mxu0 0.0
    %7128 = vmatprep.subr.mxu0 0.0
    %7129 = vmatpush1.msra.mxu0 0.0
    %7130 = vmatprep.subr.mxu0 0.0
    %7131 = vmatpush1.msra.mxu0 0.0
    %7132 = vmatprep.mubr.f32.mxu0 0.0
    %7133 = vmatmul.mubr.f32.gmra.mrb[0].mxu0 %v6853
    %v7134 = vpop.f32.mrb[0].mxu0
    %v7135 = vadd.f32 %v6799, %v7134
    %v7136 = vpop.f32.mrb[0].mxu0
    %v7137 = vadd.f32 %v6803, %v7136
    %7138 = vdwg.mxu0
    %7139 = vmatprep.subr.mxu0 %v6713
    %7140 = vmatpush1.msra.mxu0 %v6712
    %7141 = vmatprep.subr.mxu0 %v6729
    %7142 = vmatpush1.msra.mxu0 %v6728
    %7143 = vmatprep.subr.mxu0 %v6745
    %7144 = vmatpush1.msra.mxu0 %v6744
    %7145 = vmatprep.subr.mxu0 %v6761
    %7146 = vmatpush1.msra.mxu0 %v6760
    %7147 = vmatprep.subr.mxu0 0.0
    %7148 = vmatpush1.msra.mxu0 0.0
    %7149 = vmatprep.subr.mxu0 0.0
    %7150 = vmatpush1.msra.mxu0 0.0
    %7151 = vmatprep.subr.mxu0 0.0
    %7152 = vmatpush1.msra.mxu0 0.0
    %7153 = vmatprep.subr.mxu0 0.0
    %7154 = vmatpush1.msra.mxu0 0.0
    %7155 = vmatprep.subr.mxu0 0.0
    %7156 = vmatpush1.msra.mxu0 0.0
    %7157 = vmatprep.subr.mxu0 0.0
    %7158 = vmatpush1.msra.mxu0 0.0
    %7159 = vmatprep.subr.mxu0 0.0
    %7160 = vmatpush1.msra.mxu0 0.0
    %7161 = vmatprep.subr.mxu0 0.0
    %7162 = vmatpush1.msra.mxu0 0.0
    %7163 = vmatprep.subr.mxu0 0.0
    %7164 = vmatpush1.msra.mxu0 0.0
    %7165 = vmatprep.subr.mxu0 0.0
    %7166 = vmatpush1.msra.mxu0 0.0
    %7167 = vmatprep.subr.mxu0 0.0
    %7168 = vmatpush1.msra.mxu0 0.0
    %7169 = vmatprep.subr.mxu0 0.0
    %7170 = vmatpush1.msra.mxu0 0.0
    %7171 = vmatprep.subr.mxu0 0.0
    %7172 = vmatpush1.msra.mxu0 0.0
    %7173 = vmatprep.subr.mxu0 0.0
    %7174 = vmatpush1.msra.mxu0 0.0
    %7175 = vmatprep.subr.mxu0 0.0
    %7176 = vmatpush1.msra.mxu0 0.0
    %7177 = vmatprep.subr.mxu0 0.0
    %7178 = vmatpush1.msra.mxu0 0.0
    %7179 = vmatprep.subr.mxu0 0.0
    %7180 = vmatpush1.msra.mxu0 0.0
    %7181 = vmatprep.subr.mxu0 0.0
    %7182 = vmatpush1.msra.mxu0 0.0
    %7183 = vmatprep.subr.mxu0 0.0
    %7184 = vmatpush1.msra.mxu0 0.0
    %7185 = vmatprep.subr.mxu0 0.0
    %7186 = vmatpush1.msra.mxu0 0.0
    %7187 = vmatprep.subr.mxu0 0.0
    %7188 = vmatpush1.msra.mxu0 0.0
    %7189 = vmatprep.subr.mxu0 0.0
    %7190 = vmatpush1.msra.mxu0 0.0
    %7191 = vmatprep.subr.mxu0 0.0
    %7192 = vmatpush1.msra.mxu0 0.0
    %7193 = vmatprep.subr.mxu0 0.0
    %7194 = vmatpush1.msra.mxu0 0.0
    %7195 = vmatprep.subr.mxu0 0.0
    %7196 = vmatpush1.msra.mxu0 0.0
    %7197 = vmatprep.subr.mxu0 0.0
    %7198 = vmatpush1.msra.mxu0 0.0
    %7199 = vmatprep.subr.mxu0 0.0
    %7200 = vmatpush1.msra.mxu0 0.0
    %7201 = vmatprep.subr.mxu0 0.0
    %7202 = vmatpush1.msra.mxu0 0.0
    %7203 = vmatprep.mubr.f32.mxu0 0.0
    %7204 = vmatmul.mubr.f32.gmra.mrb[0].mxu0 %v6853
    %v7205 = vpop.f32.mrb[0].mxu0
    %v7206 = vadd.f32 %v6807, %v7205
    %v7207 = vpop.f32.mrb[0].mxu0
    %v7208 = vadd.f32 %v6811, %v7207
    %7209 = vdwg.mxu0
    %7210 = vmatprep.subr.mxu0 %v6715
    %7211 = vmatpush1.msra.mxu0 %v6714
    %7212 = vmatprep.subr.mxu0 %v6731
    %7213 = vmatpush1.msra.mxu0 %v6730
    %7214 = vmatprep.subr.mxu0 %v6747
    %7215 = vmatpush1.msra.mxu0 %v6746
    %7216 = vmatprep.subr.mxu0 %v6763
    %7217 = vmatpush1.msra.mxu0 %v6762
    %7218 = vmatprep.subr.mxu0 0.0
    %7219 = vmatpush1.msra.mxu0 0.0
    %7220 = vmatprep.subr.mxu0 0.0
    %7221 = vmatpush1.msra.mxu0 0.0
    %7222 = vmatprep.subr.mxu0 0.0
    %7223 = vmatpush1.msra.mxu0 0.0
    %7224 = vmatprep.subr.mxu0 0.0
    %7225 = vmatpush1.msra.mxu0 0.0
    %7226 = vmatprep.subr.mxu0 0.0
    %7227 = vmatpush1.msra.mxu0 0.0
    %7228 = vmatprep.subr.mxu0 0.0
    %7229 = vmatpush1.msra.mxu0 0.0
    %7230 = vmatprep.subr.mxu0 0.0
    %7231 = vmatpush1.msra.mxu0 0.0
    %7232 = vmatprep.subr.mxu0 0.0
    %7233 = vmatpush1.msra.mxu0 0.0
    %7234 = vmatprep.subr.mxu0 0.0
    %7235 = vmatpush1.msra.mxu0 0.0
    %7236 = vmatprep.subr.mxu0 0.0
    %7237 = vmatpush1.msra.mxu0 0.0
    %7238 = vmatprep.subr.mxu0 0.0
    %7239 = vmatpush1.msra.mxu0 0.0
    %7240 = vmatprep.subr.mxu0 0.0
    %7241 = vmatpush1.msra.mxu0 0.0
    %7242 = vmatprep.subr.mxu0 0.0
    %7243 = vmatpush1.msra.mxu0 0.0
    %7244 = vmatprep.subr.mxu0 0.0
    %7245 = vmatpush1.msra.mxu0 0.0
    %7246 = vmatprep.subr.mxu0 0.0
    %7247 = vmatpush1.msra.mxu0 0.0
    %7248 = vmatprep.subr.mxu0 0.0
    %7249 = vmatpush1.msra.mxu0 0.0
    %7250 = vmatprep.subr.mxu0 0.0
    %7251 = vmatpush1.msra.mxu0 0.0
    %7252 = vmatprep.subr.mxu0 0.0
    %7253 = vmatpush1.msra.mxu0 0.0
    %7254 = vmatprep.subr.mxu0 0.0
    %7255 = vmatpush1.msra.mxu0 0.0
    %7256 = vmatprep.subr.mxu0 0.0
    %7257 = vmatpush1.msra.mxu0 0.0
    %7258 = vmatprep.subr.mxu0 0.0
    %7259 = vmatpush1.msra.mxu0 0.0
    %7260 = vmatprep.subr.mxu0 0.0
    %7261 = vmatpush1.msra.mxu0 0.0
    %7262 = vmatprep.subr.mxu0 0.0
    %7263 = vmatpush1.msra.mxu0 0.0
    %7264 = vmatprep.subr.mxu0 0.0
    %7265 = vmatpush1.msra.mxu0 0.0
    %7266 = vmatprep.subr.mxu0 0.0
    %7267 = vmatpush1.msra.mxu0 0.0
    %7268 = vmatprep.subr.mxu0 0.0
    %7269 = vmatpush1.msra.mxu0 0.0
    %7270 = vmatprep.subr.mxu0 0.0
    %7271 = vmatpush1.msra.mxu0 0.0
    %7272 = vmatprep.subr.mxu0 0.0
    %7273 = vmatpush1.msra.mxu0 0.0
    %7274 = vmatprep.mubr.f32.mxu0 0.0
    %7275 = vmatmul.mubr.f32.gmra.mrb[0].mxu0 %v6853
    %v7276 = vpop.f32.mrb[0].mxu0
    %v7277 = vadd.f32 %v6815, %v7276
    %v7278 = vpop.f32.mrb[0].mxu0
    %v7279 = vadd.f32 %v6819, %v7278
    %7280 = vdwg.mxu0
    %7281 = vmatprep.subr.mxu0 %v6717
    %7282 = vmatpush1.msra.mxu0 %v6716
    %7283 = vmatprep.subr.mxu0 %v6733
    %7284 = vmatpush1.msra.mxu0 %v6732
    %7285 = vmatprep.subr.mxu0 %v6749
    %7286 = vmatpush1.msra.mxu0 %v6748
    %7287 = vmatprep.subr.mxu0 %v6765
    %7288 = vmatpush1.msra.mxu0 %v6764
    %7289 = vmatprep.subr.mxu0 0.0
    %7290 = vmatpush1.msra.mxu0 0.0
    %7291 = vmatprep.subr.mxu0 0.0
    %7292 = vmatpush1.msra.mxu0 0.0
    %7293 = vmatprep.subr.mxu0 0.0
    %7294 = vmatpush1.msra.mxu0 0.0
    %7295 = vmatprep.subr.mxu0 0.0
    %7296 = vmatpush1.msra.mxu0 0.0
    %7297 = vmatprep.subr.mxu0 0.0
    %7298 = vmatpush1.msra.mxu0 0.0
    %7299 = vmatprep.subr.mxu0 0.0
    %7300 = vmatpush1.msra.mxu0 0.0
    %7301 = vmatprep.subr.mxu0 0.0
    %7302 = vmatpush1.msra.mxu0 0.0
    %7303 = vmatprep.subr.mxu0 0.0
    %7304 = vmatpush1.msra.mxu0 0.0
    %7305 = vmatprep.subr.mxu0 0.0
    %7306 = vmatpush1.msra.mxu0 0.0
    %7307 = vmatprep.subr.mxu0 0.0
    %7308 = vmatpush1.msra.mxu0 0.0
    %7309 = vmatprep.subr.mxu0 0.0
    %7310 = vmatpush1.msra.mxu0 0.0
    %7311 = vmatprep.subr.mxu0 0.0
    %7312 = vmatpush1.msra.mxu0 0.0
    %7313 = vmatprep.subr.mxu0 0.0
    %7314 = vmatpush1.msra.mxu0 0.0
    %7315 = vmatprep.subr.mxu0 0.0
    %7316 = vmatpush1.msra.mxu0 0.0
    %7317 = vmatprep.subr.mxu0 0.0
    %7318 = vmatpush1.msra.mxu0 0.0
    %7319 = vmatprep.subr.mxu0 0.0
    %7320 = vmatpush1.msra.mxu0 0.0
    %7321 = vmatprep.subr.mxu0 0.0
    %7322 = vmatpush1.msra.mxu0 0.0
    %7323 = vmatprep.subr.mxu0 0.0
    %7324 = vmatpush1.msra.mxu0 0.0
    %7325 = vmatprep.subr.mxu0 0.0
    %7326 = vmatpush1.msra.mxu0 0.0
    %7327 = vmatprep.subr.mxu0 0.0
    %7328 = vmatpush1.msra.mxu0 0.0
    %7329 = vmatprep.subr.mxu0 0.0
    %7330 = vmatpush1.msra.mxu0 0.0
    %7331 = vmatprep.subr.mxu0 0.0
    %7332 = vmatpush1.msra.mxu0 0.0
    %7333 = vmatprep.subr.mxu0 0.0
    %7334 = vmatpush1.msra.mxu0 0.0
    %7335 = vmatprep.subr.mxu0 0.0
    %7336 = vmatpush1.msra.mxu0 0.0
    %7337 = vmatprep.subr.mxu0 0.0
    %7338 = vmatpush1.msra.mxu0 0.0
    %7339 = vmatprep.subr.mxu0 0.0
    %7340 = vmatpush1.msra.mxu0 0.0
    %7341 = vmatprep.subr.mxu0 0.0
    %7342 = vmatpush1.msra.mxu0 0.0
    %7343 = vmatprep.subr.mxu0 0.0
    %7344 = vmatpush1.msra.mxu0 0.0
    %7345 = vmatprep.mubr.f32.mxu0 0.0
    %7346 = vmatmul.mubr.f32.gmra.mrb[0].mxu0 %v6853
    %v7347 = vpop.f32.mrb[0].mxu0
    %v7348 = vadd.f32 %v6823, %v7347
    %v7349 = vpop.f32.mrb[0].mxu0
    %v7350 = vadd.f32 %v6827, %v7349
    %7351 = vdwg.mxu0
    %7352 = vmatprep.subr.mxu0 %v6719
    %7353 = vmatpush1.msra.mxu0 %v6718
    %7354 = vmatprep.subr.mxu0 %v6735
    %7355 = vmatpush1.msra.mxu0 %v6734
    %7356 = vmatprep.subr.mxu0 %v6751
    %7357 = vmatpush1.msra.mxu0 %v6750
    %7358 = vmatprep.subr.mxu0 %v6767
    %7359 = vmatpush1.msra.mxu0 %v6766
    %7360 = vmatprep.subr.mxu0 0.0
    %7361 = vmatpush1.msra.mxu0 0.0
    %7362 = vmatprep.subr.mxu0 0.0
    %7363 = vmatpush1.msra.mxu0 0.0
    %7364 = vmatprep.subr.mxu0 0.0
    %7365 = vmatpush1.msra.mxu0 0.0
    %7366 = vmatprep.subr.mxu0 0.0
    %7367 = vmatpush1.msra.mxu0 0.0
    %7368 = vmatprep.subr.mxu0 0.0
    %7369 = vmatpush1.msra.mxu0 0.0
    %7370 = vmatprep.subr.mxu0 0.0
    %7371 = vmatpush1.msra.mxu0 0.0
    %7372 = vmatprep.subr.mxu0 0.0
    %7373 = vmatpush1.msra.mxu0 0.0
    %7374 = vmatprep.subr.mxu0 0.0
    %7375 = vmatpush1.msra.mxu0 0.0
    %7376 = vmatprep.subr.mxu0 0.0
    %7377 = vmatpush1.msra.mxu0 0.0
    %7378 = vmatprep.subr.mxu0 0.0
    %7379 = vmatpush1.msra.mxu0 0.0
    %7380 = vmatprep.subr.mxu0 0.0
    %7381 = vmatpush1.msra.mxu0 0.0
    %7382 = vmatprep.subr.mxu0 0.0
    %7383 = vmatpush1.msra.mxu0 0.0
    %7384 = vmatprep.subr.mxu0 0.0
    %7385 = vmatpush1.msra.mxu0 0.0
    %7386 = vmatprep.subr.mxu0 0.0
    %7387 = vmatpush1.msra.mxu0 0.0
    %7388 = vmatprep.subr.mxu0 0.0
    %7389 = vmatpush1.msra.mxu0 0.0
    %7390 = vmatprep.subr.mxu0 0.0
    %7391 = vmatpush1.msra.mxu0 0.0
    %7392 = vmatprep.subr.mxu0 0.0
    %7393 = vmatpush1.msra.mxu0 0.0
    %7394 = vmatprep.subr.mxu0 0.0
    %7395 = vmatpush1.msra.mxu0 0.0
    %7396 = vmatprep.subr.mxu0 0.0
    %7397 = vmatpush1.msra.mxu0 0.0
    %7398 = vmatprep.subr.mxu0 0.0
    %7399 = vmatpush1.msra.mxu0 0.0
    %7400 = vmatprep.subr.mxu0 0.0
    %7401 = vmatpush1.msra.mxu0 0.0
    %7402 = vmatprep.subr.mxu0 0.0
    %7403 = vmatpush1.msra.mxu0 0.0
    %7404 = vmatprep.subr.mxu0 0.0
    %7405 = vmatpush1.msra.mxu0 0.0
    %7406 = vmatprep.subr.mxu0 0.0
    %7407 = vmatpush1.msra.mxu0 0.0
    %7408 = vmatprep.subr.mxu0 0.0
    %7409 = vmatpush1.msra.mxu0 0.0
    %7410 = vmatprep.subr.mxu0 0.0
    %7411 = vmatpush1.msra.mxu0 0.0
    %7412 = vmatprep.subr.mxu0 0.0
    %7413 = vmatpush1.msra.mxu0 0.0
    %7414 = vmatprep.subr.mxu0 0.0
    %7415 = vmatpush1.msra.mxu0 0.0
    %7416 = vmatprep.mubr.f32.mxu0 0.0
    %7417 = vmatmul.mubr.f32.gmra.mrb[0].mxu0 %v6853
    %v7418 = vpop.f32.mrb[0].mxu0
    %v7419 = vadd.f32 %v6831, %v7418
    %v7420 = vpop.f32.mrb[0].mxu0
    %v7421 = vadd.f32 %v6835, %v7420
    %7422 = vdwg.mxu0
    %v7439 = vcombine.low %v6922, %v6924
    %v7440 = vcombine.low %v6993, %v6995
    %v7442 = vunpack.c.l.s4 1983009808
    %v7443 = vunpack.c.0.s8 %v7442
    %v7444 = vlaneseq
    %v7445 = vshrl.u32 %v7444, 7
    %v7446 = vsub.s32 %v7443, %v7445
    %v7447 = vrot.slane %v7439, %v7446
    %v7449 = vunpack.c.l.s4 1983009808
    %v7450 = vunpack.c.0.s8 %v7449
    %v7451 = vlaneseq
    %v7452 = vshrl.u32 %v7451, 7
    %v7453 = vsub.s32 %v7450, %v7452
    %v7454 = vrot.slane %v7440, %v7453
    %v7455 = vcombine.low %v7447, %v7454
    %v7456 = vcombine.low %v7064, %v7066
    %v7457 = vcombine.low %v7135, %v7137
    %v7459 = vunpack.c.l.s4 1983009808
    %v7460 = vunpack.c.0.s8 %v7459
    %v7461 = vlaneseq
    %v7462 = vshrl.u32 %v7461, 7
    %v7463 = vsub.s32 %v7460, %v7462
    %v7464 = vrot.slane %v7456, %v7463
    %v7466 = vunpack.c.l.s4 1983009808
    %v7467 = vunpack.c.0.s8 %v7466
    %v7468 = vlaneseq
    %v7469 = vshrl.u32 %v7468, 7
    %v7470 = vsub.s32 %v7467, %v7469
    %v7471 = vrot.slane %v7457, %v7470
    %v7472 = vcombine.low %v7464, %v7471
    %v7473 = vcombine.low %v7206, %v7208
    %v7474 = vcombine.low %v7277, %v7279
    %v7476 = vunpack.c.l.s4 1983009808
    %v7477 = vunpack.c.0.s8 %v7476
    %v7478 = vlaneseq
    %v7479 = vshrl.u32 %v7478, 7
    %v7480 = vsub.s32 %v7477, %v7479
    %v7481 = vrot.slane %v7473, %v7480
    %v7483 = vunpack.c.l.s4 1983009808
    %v7484 = vunpack.c.0.s8 %v7483
    %v7485 = vlaneseq
    %v7486 = vshrl.u32 %v7485, 7
    %v7487 = vsub.s32 %v7484, %v7486
    %v7488 = vrot.slane %v7474, %v7487
    %v7489 = vcombine.low %v7481, %v7488
    %v7490 = vcombine.low %v7348, %v7350
    %v7491 = vcombine.low %v7419, %v7421
    %v7493 = vunpack.c.l.s4 1983009808
    %v7494 = vunpack.c.0.s8 %v7493
    %v7495 = vlaneseq
    %v7496 = vshrl.u32 %v7495, 7
    %v7497 = vsub.s32 %v7494, %v7496
    %v7498 = vrot.slane %v7490, %v7497
    %v7500 = vunpack.c.l.s4 1983009808
    %v7501 = vunpack.c.0.s8 %v7500
    %v7502 = vlaneseq
    %v7503 = vshrl.u32 %v7502, 7
    %v7504 = vsub.s32 %v7501, %v7503
    %v7505 = vrot.slane %v7491, %v7504
    %v7506 = vcombine.low %v7498, %v7505
    %7511 = vst [vmem:[#allocation2] sm:$0xff] %v7455
    %7512 = vst [vmem:[#allocation2 + $0x8] sm:$0xff] %v7472
    %7513 = vst [vmem:[#allocation2 + $0x10] sm:$0xff] %v7489
    %7514 = vst [vmem:[#allocation2 + $0x18] sm:$0xff] %v7506
    // Predicated region
    $region94: #{tpu_custom_call.1} parent=1 // pred_check
      _
    $region95: #{tpu_custom_call.1} parent=1 // pred_check_branch
      %7516 = sbr.rel (0) target = $region97
    $region96: #{tpu_custom_call.1} parent=1 // pred_region
      %s7518 = ssub.s32 512, 512
      %7519 = vsyncadd [#allocation3], %s7518
      %s7521 = sshll.u32 [#allocation2], 4
      %s7522 = int_to_ptr.vmem [resolvable:$true] %s7521
      %7524 = dma.vmem_to_hbm [thread:$0]  %s7522, 512, %s23, [#allocation3]
    $region97: #{tpu_custom_call.1} parent=1 // pred_fallthru
      _
    // Predicated region
    $region98: #{tpu_custom_call.1} parent=1 // pred_check
      _
    $region99: #{tpu_custom_call.1} parent=1 // pred_check_branch
      %7526 = sbr.rel (0) target = $region101
    $region100: #{tpu_custom_call.1} parent=1 // pred_region
      %7527 = dma.done [#allocation3], 512
    $region101: #{tpu_custom_call.1} parent=1 // pred_fallthru
      _
    %7528 = vsyncpa [#allocation3], 1

</llo_original>
